<compile_context>
chip_gen: v6e
topology: v6e:2x2x1
jax: 0.10.0
libtpu: 0.0.40
codegen_flags: <defaults>
</compile_context>

<pallas_src>
import functools

import jax
import jax.numpy as jnp
from jax.experimental import pallas as pl
from jax.experimental.pallas import tpu as pltpu

LAYER_SIZES = [128, 512, 1024, 512, 128, 1]  # as in the PyTorch nn.Sequential
LAST_PAD = 128  # last (128 -> 1) layer zero-padded to 128 output lanes (lane-dense MXU matmul)


def _mlp_kernel(x_ref, *refs):
    """Full MLP on one (batch_tile, n_input) tile.

    refs = (w1, b1, ..., w6, b6, o_ref).  Weights are bf16 (last one padded to
    128 columns), biases f32, output f32 (batch_tile, 1)."""
    o_ref = refs[-1]
    param_refs = refs[:-1]
    n_layers = len(param_refs) // 2

    h = x_ref[...].astype(jnp.bfloat16)  # f32 input, cast on the VPU
    for li in range(n_layers):
        w = param_refs[2 * li]
        b = param_refs[2 * li + 1]
        # bf16 x bf16 -> f32 accumulation on the MXU.
        z = jnp.dot(h, w[...], preferred_element_type=jnp.float32) + b[...]
        if li < n_layers - 1:
            h = jnp.maximum(z, 0.0).astype(jnp.bfloat16)  # ReLU, back to bf16
        else:
            # Only column 0 of the zero-padded last layer is real.  Storing
            # just that column makes output HBM traffic B_pad*4 bytes (f32,
            # exact) instead of a 128x-padded slab re-read by the wrapper.
            o_ref[...] = jax.nn.sigmoid(z[:, 0:1])


def init_params(key, n_input):
    """PyTorch-Linear-style init: U(-1/sqrt(fan_in), 1/sqrt(fan_in)).

    Weights stored as (in, out) (already transposed vs. torch)."""
    params = []
    fan_in = n_input
    for fan_out in LAYER_SIZES:
        key, kw, kb = jax.random.split(key, 3)
        bound = 1.0 / jnp.sqrt(jnp.float32(fan_in))
        w = jax.random.uniform(kw, (fan_in, fan_out), jnp.float32, -bound, bound)
        b = jax.random.uniform(kb, (1, fan_out), jnp.float32, -bound, bound)
        params.append((w, b))
        fan_in = fan_out
    return params


def prepare_params(params):
    """One-time parameter prep (call ONCE, outside the per-step path):
    weights -> bf16, biases -> f32, last layer zero-padded to 128 lanes."""
    n_layers = len(params)
    flat = []
    for li, (w, b) in enumerate(params):
        w = jnp.asarray(w, jnp.bfloat16)
        b = jnp.asarray(b, jnp.float32).reshape(1, -1)
        if li == n_layers - 1:
            w = jnp.pad(w, ((0, 0), (0, LAST_PAD - w.shape[1])))
            b = jnp.pad(b, ((0, 0), (0, LAST_PAD - b.shape[1])))
        flat += [w, b]
    return tuple(flat)


def _choose_batch_tile(B):
    """Single grid step for small B (minimal zero-row padding); 512/1024-row
    tiles for large B (amortize per-step overhead, keep >=2 grid steps)."""
    if B <= 1024:
        return max(128, 128 * ((B + 127) // 128))
    if B <= 8192:
        return 512
    return 1024


@functools.partial(jax.jit, static_argnames=("batch_tile",))
def _nn_forward(x, flat_params, batch_tile):
    B, n_input = x.shape
    n_tiles = -(-B // batch_tile)
    B_pad = batch_tile * n_tiles
    if B_pad != B:
        x = jnp.pad(x, ((0, B_pad - B), (0, 0)))

    in_specs = [pl.BlockSpec((batch_tile, n_input), lambda i: (i, 0))]
    for p in flat_params:
        # Full tensor resident in VMEM; same block every grid step -> DMA'd once.
        # TODO(synk): pipeline_mode=pl.Buffered(1) would halve the resident
        # weight copies (~2.4 MB) for extra v7x headroom; left out because the
        # default double-buffered bf16 weights + tile-1024 f32 intermediates
        # already fit comfortably under the 48 MiB limit.
        in_specs.append(pl.BlockSpec(p.shape, lambda i: (0, 0)))

    out_spec = pl.BlockSpec((batch_tile, 1), lambda i: (i, 0))

    # Advisory cost estimate for XLA's scheduler.
    layer_dims = []
    fan_in = n_input
    for li, fan_out in enumerate(LAYER_SIZES):
        out_dim = LAST_PAD if li == len(LAYER_SIZES) - 1 else fan_out
        layer_dims.append((fan_in, out_dim))
        fan_in = fan_out
    flops = 2 * B_pad * sum(i * o for i, o in layer_dims)
    weight_bytes = sum(i * o * 2 + o * 4 for i, o in layer_dims)
    bytes_accessed = B_pad * n_input * 4 + weight_bytes + B_pad * 4

    out = pl.pallas_call(
        _mlp_kernel,
        out_shape=jax.ShapeDtypeStruct((B_pad, 1), jnp.float32),
        grid_spec=pltpu.PrefetchScalarGridSpec(
            num_scalar_prefetch=0,
            grid=(n_tiles,),
            in_specs=in_specs,
            out_specs=out_spec,
        ),
        compiler_params=pltpu.CompilerParams(
            # Batch axis is independent.
            # TODO(synk): verify on v7x that "parallel" actually shards the
            # grid across both TensorCores; if not, switch this axis to
            # pltpu.CORE_PARALLEL (grid length is >=2 for large B by design).
            dimension_semantics=("parallel",),
            # Headroom for resident bf16 weights + a 1024-row tile of f32
            # intermediates; under v7x's 64 MiB physical VMEM and overrides
            # v5e's small 16 MiB scoped default.
            vmem_limit_bytes=48 * 1024 * 1024,
        ),
        cost_estimate=pl.CostEstimate(
            flops=flops,
            transcendentals=B_pad,
            bytes_accessed=bytes_accessed,
        ),
    )(x, *flat_params)

    return out[:B]  # drop batch padding; already a single column


def nn_forward(x, flat_params, batch_tile=None):
    """Run the MLP. `flat_params` must come from prepare_params()."""
    if batch_tile is None:
        batch_tile = _choose_batch_tile(x.shape[0])
    return _nn_forward(x, flat_params, batch_tile=batch_tile)


def nn_forward_ref(x, params):
    """Pure-f32 JAX reference."""
    h = x
    for i, (w, b) in enumerate(params):
        h = h @ w + b
        if i < len(params) - 1:
            h = jnp.maximum(h, 0.0)
    return jax.nn.sigmoid(h)


def nn_forward_ref_bf16(x, params):
    """Pure-JAX reference using the kernel's bf16-matmul / f32-accumulate recipe."""
    h = x.astype(jnp.bfloat16)
    z = None
    for i, (w, b) in enumerate(params):
        z = jnp.dot(h, w.astype(jnp.bfloat16),
                    preferred_element_type=jnp.float32) + b
        if i < len(params) - 1:
            h = jnp.maximum(z, 0.0).astype(jnp.bfloat16)
    return jax.nn.sigmoid(z)


if __name__ == "__main__":
    key = jax.random.PRNGKey(0)
    k_x, k_p = jax.random.split(key)

    # n_input is the only free dim; hidden sizes are fixed by the module.
    n_input = 32
    params = init_params(k_p, n_input)
    flat_params = prepare_params(params)  # one-time conversion, outside the call path

    # B=300: single grid step, batch padded 300 -> 384 (exercises padding).
    # B=1536: multi-step "parallel" grid (3 tiles of 512 rows).
    for B in (300, 1536):
        x = jax.random.normal(jax.random.fold_in(k_x, B), (B, n_input), jnp.float32)
        out = jax.block_until_ready(nn_forward(x, flat_params))
        assert out.shape == (B, 1), out.shape

        ref_bf16 = nn_forward_ref_bf16(x, params)
        ref_f32 = nn_forward_ref(x, params)
        err_bf16 = float(jnp.max(jnp.abs(out - ref_bf16)))
        err_f32 = float(jnp.max(jnp.abs(out - ref_f32)))
        assert err_bf16 < 1e-3, f"B={B}: vs bf16-matmul reference, max err {err_bf16}"
        assert err_f32 < 5e-2, f"B={B}: vs f32 reference, max err {err_f32}"

    print("KERNEL_OK")
</pallas_src>

<mosaic_0001>
module attributes {stable_mosaic.version = 11 : i64} {
  func.func @_mlp_kernel(%arg0: i32, %arg1: memref<384x32xf32, #tpu.memory_space<vmem>>, %arg2: memref<32x128xbf16, #tpu.memory_space<vmem>>, %arg3: memref<1x128xf32, #tpu.memory_space<vmem>>, %arg4: memref<128x512xbf16, #tpu.memory_space<vmem>>, %arg5: memref<1x512xf32, #tpu.memory_space<vmem>>, %arg6: memref<512x1024xbf16, #tpu.memory_space<vmem>>, %arg7: memref<1x1024xf32, #tpu.memory_space<vmem>>, %arg8: memref<1024x512xbf16, #tpu.memory_space<vmem>>, %arg9: memref<1x512xf32, #tpu.memory_space<vmem>>, %arg10: memref<512x128xbf16, #tpu.memory_space<vmem>>, %arg11: memref<1x128xf32, #tpu.memory_space<vmem>>, %arg12: memref<128x128xbf16, #tpu.memory_space<vmem>>, %arg13: memref<1x128xf32, #tpu.memory_space<vmem>>, %arg14: memref<384x1xf32, #tpu.memory_space<vmem>>) attributes {dimension_semantics = [#tpu.dimension_semantics<parallel>], iteration_bounds = array<i64: 1>, scalar_prefetch = 0 : i64, scratch_operands = 0 : i64, tpu.core_type = #tpu.core_type<tc>, window_params = [{transform_indices = @transform_0, window_bounds = array<i64: 384, 32>}, {pipeline_mode = #tpu.pipeline_mode<synchronous>, transform_indices = @transform_1, window_bounds = array<i64: 32, 128>}, {pipeline_mode = #tpu.pipeline_mode<synchronous>, transform_indices = @transform_2, window_bounds = array<i64: 1, 128>}, {pipeline_mode = #tpu.pipeline_mode<synchronous>, transform_indices = @transform_3, window_bounds = array<i64: 128, 512>}, {pipeline_mode = #tpu.pipeline_mode<synchronous>, transform_indices = @transform_4, window_bounds = array<i64: 1, 512>}, {pipeline_mode = #tpu.pipeline_mode<synchronous>, transform_indices = @transform_5, window_bounds = array<i64: 512, 1024>}, {pipeline_mode = #tpu.pipeline_mode<synchronous>, transform_indices = @transform_6, window_bounds = array<i64: 1, 1024>}, {pipeline_mode = #tpu.pipeline_mode<synchronous>, transform_indices = @transform_7, window_bounds = array<i64: 1024, 512>}, {pipeline_mode = #tpu.pipeline_mode<synchronous>, transform_indices = @transform_8, window_bounds = array<i64: 1, 512>}, {pipeline_mode = #tpu.pipeline_mode<synchronous>, transform_indices = @transform_9, window_bounds = array<i64: 512, 128>}, {pipeline_mode = #tpu.pipeline_mode<synchronous>, transform_indices = @transform_10, window_bounds = array<i64: 1, 128>}, {pipeline_mode = #tpu.pipeline_mode<synchronous>, transform_indices = @transform_11, window_bounds = array<i64: 128, 128>}, {pipeline_mode = #tpu.pipeline_mode<synchronous>, transform_indices = @transform_12, window_bounds = array<i64: 1, 128>}, {transform_indices = @transform_13, window_bounds = array<i64: 384, 1>}]} {
    %c0 = arith.constant 0 : index
    %c0_0 = arith.constant 0 : index
    %0 = vector.load %arg1[%c0, %c0_0] : memref<384x32xf32, #tpu.memory_space<vmem>>, vector<384x32xf32>
    %1 = arith.truncf %0 : vector<384x32xf32> to vector<384x32xbf16>
    %c0_1 = arith.constant 0 : index
    %c0_2 = arith.constant 0 : index
    %2 = vector.load %arg2[%c0_1, %c0_2] : memref<32x128xbf16, #tpu.memory_space<vmem>>, vector<32x128xbf16>
    %cst = arith.constant dense<0.000000e+00> : vector<384x128xf32>
    %3 = tpu.matmul %1, %2, %cst {dimension_numbers = #tpu.dot_dimension_numbers<[1], [0], [0], [1], [0, 0, 1, 1], [], []>} : vector<384x32xbf16>, vector<32x128xbf16>, vector<384x128xf32> -> vector<384x128xf32>
    %c0_3 = arith.constant 0 : index
    %c0_4 = arith.constant 0 : index
    %4 = vector.load %arg3[%c0_3, %c0_4] : memref<1x128xf32, #tpu.memory_space<vmem>>, vector<1x128xf32>
    %5 = vector.broadcast %4 : vector<1x128xf32> to vector<384x128xf32>
    %6 = arith.addf %3, %5 : vector<384x128xf32>
    %cst_5 = arith.constant 0.000000e+00 : f32
    %7 = vector.broadcast %cst_5 : f32 to vector<384x128xf32>
    %8 = arith.maximumf %6, %7 : vector<384x128xf32>
    %9 = arith.truncf %8 : vector<384x128xf32> to vector<384x128xbf16>
    %c0_6 = arith.constant 0 : index
    %c0_7 = arith.constant 0 : index
    %10 = vector.load %arg4[%c0_6, %c0_7] : memref<128x512xbf16, #tpu.memory_space<vmem>>, vector<128x512xbf16>
    %cst_8 = arith.constant dense<0.000000e+00> : vector<384x512xf32>
    %11 = tpu.matmul %9, %10, %cst_8 {dimension_numbers = #tpu.dot_dimension_numbers<[1], [0], [0], [1], [0, 0, 1, 1], [], []>} : vector<384x128xbf16>, vector<128x512xbf16>, vector<384x512xf32> -> vector<384x512xf32>
    %c0_9 = arith.constant 0 : index
    %c0_10 = arith.constant 0 : index
    %12 = vector.load %arg5[%c0_9, %c0_10] : memref<1x512xf32, #tpu.memory_space<vmem>>, vector<1x512xf32>
    %13 = vector.broadcast %12 : vector<1x512xf32> to vector<384x512xf32>
    %14 = arith.addf %11, %13 : vector<384x512xf32>
    %cst_11 = arith.constant 0.000000e+00 : f32
    %15 = vector.broadcast %cst_11 : f32 to vector<384x512xf32>
    %16 = arith.maximumf %14, %15 : vector<384x512xf32>
    %17 = arith.truncf %16 : vector<384x512xf32> to vector<384x512xbf16>
    %c0_12 = arith.constant 0 : index
    %c0_13 = arith.constant 0 : index
    %18 = vector.load %arg6[%c0_12, %c0_13] : memref<512x1024xbf16, #tpu.memory_space<vmem>>, vector<512x1024xbf16>
    %cst_14 = arith.constant dense<0.000000e+00> : vector<384x1024xf32>
    %19 = tpu.matmul %17, %18, %cst_14 {dimension_numbers = #tpu.dot_dimension_numbers<[1], [0], [0], [1], [0, 0, 1, 1], [], []>} : vector<384x512xbf16>, vector<512x1024xbf16>, vector<384x1024xf32> -> vector<384x1024xf32>
    %c0_15 = arith.constant 0 : index
    %c0_16 = arith.constant 0 : index
    %20 = vector.load %arg7[%c0_15, %c0_16] : memref<1x1024xf32, #tpu.memory_space<vmem>>, vector<1x1024xf32>
    %21 = vector.broadcast %20 : vector<1x1024xf32> to vector<384x1024xf32>
    %22 = arith.addf %19, %21 : vector<384x1024xf32>
    %cst_17 = arith.constant 0.000000e+00 : f32
    %23 = vector.broadcast %cst_17 : f32 to vector<384x1024xf32>
    %24 = arith.maximumf %22, %23 : vector<384x1024xf32>
    %25 = arith.truncf %24 : vector<384x1024xf32> to vector<384x1024xbf16>
    %c0_18 = arith.constant 0 : index
    %c0_19 = arith.constant 0 : index
    %26 = vector.load %arg8[%c0_18, %c0_19] : memref<1024x512xbf16, #tpu.memory_space<vmem>>, vector<1024x512xbf16>
    %cst_20 = arith.constant dense<0.000000e+00> : vector<384x512xf32>
    %27 = tpu.matmul %25, %26, %cst_20 {dimension_numbers = #tpu.dot_dimension_numbers<[1], [0], [0], [1], [0, 0, 1, 1], [], []>} : vector<384x1024xbf16>, vector<1024x512xbf16>, vector<384x512xf32> -> vector<384x512xf32>
    %c0_21 = arith.constant 0 : index
    %c0_22 = arith.constant 0 : index
    %28 = vector.load %arg9[%c0_21, %c0_22] : memref<1x512xf32, #tpu.memory_space<vmem>>, vector<1x512xf32>
    %29 = vector.broadcast %28 : vector<1x512xf32> to vector<384x512xf32>
    %30 = arith.addf %27, %29 : vector<384x512xf32>
    %cst_23 = arith.constant 0.000000e+00 : f32
    %31 = vector.broadcast %cst_23 : f32 to vector<384x512xf32>
    %32 = arith.maximumf %30, %31 : vector<384x512xf32>
    %33 = arith.truncf %32 : vector<384x512xf32> to vector<384x512xbf16>
    %c0_24 = arith.constant 0 : index
    %c0_25 = arith.constant 0 : index
    %34 = vector.load %arg10[%c0_24, %c0_25] : memref<512x128xbf16, #tpu.memory_space<vmem>>, vector<512x128xbf16>
    %cst_26 = arith.constant dense<0.000000e+00> : vector<384x128xf32>
    %35 = tpu.matmul %33, %34, %cst_26 {dimension_numbers = #tpu.dot_dimension_numbers<[1], [0], [0], [1], [0, 0, 1, 1], [], []>} : vector<384x512xbf16>, vector<512x128xbf16>, vector<384x128xf32> -> vector<384x128xf32>
    %c0_27 = arith.constant 0 : index
    %c0_28 = arith.constant 0 : index
    %36 = vector.load %arg11[%c0_27, %c0_28] : memref<1x128xf32, #tpu.memory_space<vmem>>, vector<1x128xf32>
    %37 = vector.broadcast %36 : vector<1x128xf32> to vector<384x128xf32>
    %38 = arith.addf %35, %37 : vector<384x128xf32>
    %cst_29 = arith.constant 0.000000e+00 : f32
    %39 = vector.broadcast %cst_29 : f32 to vector<384x128xf32>
    %40 = arith.maximumf %38, %39 : vector<384x128xf32>
    %41 = arith.truncf %40 : vector<384x128xf32> to vector<384x128xbf16>
    %c0_30 = arith.constant 0 : index
    %c0_31 = arith.constant 0 : index
    %42 = vector.load %arg12[%c0_30, %c0_31] : memref<128x128xbf16, #tpu.memory_space<vmem>>, vector<128x128xbf16>
    %cst_32 = arith.constant dense<0.000000e+00> : vector<384x128xf32>
    %43 = tpu.matmul %41, %42, %cst_32 {dimension_numbers = #tpu.dot_dimension_numbers<[1], [0], [0], [1], [0, 0, 1, 1], [], []>} : vector<384x128xbf16>, vector<128x128xbf16>, vector<384x128xf32> -> vector<384x128xf32>
    %c0_33 = arith.constant 0 : index
    %c0_34 = arith.constant 0 : index
    %44 = vector.load %arg13[%c0_33, %c0_34] : memref<1x128xf32, #tpu.memory_space<vmem>>, vector<1x128xf32>
    %45 = vector.broadcast %44 : vector<1x128xf32> to vector<384x128xf32>
    %46 = arith.addf %43, %45 : vector<384x128xf32>
    %47 = vector.extract_strided_slice %46 {offsets = [0, 0], sizes = [384, 1], strides = [1, 1]} : vector<384x128xf32> to vector<384x1xf32>
    %48 = arith.negf %47 : vector<384x1xf32>
    %49 = math.exp %48 : vector<384x1xf32>
    %cst_35 = arith.constant 1.000000e+00 : f32
    %50 = vector.broadcast %cst_35 : f32 to vector<384x1xf32>
    %51 = arith.addf %50, %49 : vector<384x1xf32>
    %52 = arith.divf %50, %51 : vector<384x1xf32>
    %c0_36 = arith.constant 0 : index
    %c0_37 = arith.constant 0 : index
    %53 = vector.load %arg14[%c0_36, %c0_37] : memref<384x1xf32, #tpu.memory_space<vmem>>, vector<384x1xf32>
    tpu.vector_store %arg14[%c0_36, %c0_37], %52 {strides = array<i32>} : memref<384x1xf32, #tpu.memory_space<vmem>>, vector<384x1xf32>,
    return
  }
  func.func @transform_0(%arg0: i32) -> (i32, i32) {
    %c0_i32 = arith.constant 0 : i32
    %c0_i32_0 = arith.constant 0 : i32
    return %arg0, %c0_i32 : i32, i32
  }
  func.func @transform_1(%arg0: i32) -> (i32, i32) {
    %c0_i32 = arith.constant 0 : i32
    %c0_i32_0 = arith.constant 0 : i32
    %c0_i32_1 = arith.constant 0 : i32
    return %c0_i32, %c0_i32_0 : i32, i32
  }
  func.func @transform_2(%arg0: i32) -> (i32, i32) {
    %c0_i32 = arith.constant 0 : i32
    %c0_i32_0 = arith.constant 0 : i32
    %c0_i32_1 = arith.constant 0 : i32
    return %c0_i32, %c0_i32_0 : i32, i32
  }
  func.func @transform_3(%arg0: i32) -> (i32, i32) {
    %c0_i32 = arith.constant 0 : i32
    %c0_i32_0 = arith.constant 0 : i32
    %c0_i32_1 = arith.constant 0 : i32
    return %c0_i32, %c0_i32_0 : i32, i32
  }
  func.func @transform_4(%arg0: i32) -> (i32, i32) {
    %c0_i32 = arith.constant 0 : i32
    %c0_i32_0 = arith.constant 0 : i32
    %c0_i32_1 = arith.constant 0 : i32
    return %c0_i32, %c0_i32_0 : i32, i32
  }
  func.func @transform_5(%arg0: i32) -> (i32, i32) {
    %c0_i32 = arith.constant 0 : i32
    %c0_i32_0 = arith.constant 0 : i32
    %c0_i32_1 = arith.constant 0 : i32
    return %c0_i32, %c0_i32_0 : i32, i32
  }
  func.func @transform_6(%arg0: i32) -> (i32, i32) {
    %c0_i32 = arith.constant 0 : i32
    %c0_i32_0 = arith.constant 0 : i32
    %c0_i32_1 = arith.constant 0 : i32
    return %c0_i32, %c0_i32_0 : i32, i32
  }
  func.func @transform_7(%arg0: i32) -> (i32, i32) {
    %c0_i32 = arith.constant 0 : i32
    %c0_i32_0 = arith.constant 0 : i32
    %c0_i32_1 = arith.constant 0 : i32
    return %c0_i32, %c0_i32_0 : i32, i32
  }
  func.func @transform_8(%arg0: i32) -> (i32, i32) {
    %c0_i32 = arith.constant 0 : i32
    %c0_i32_0 = arith.constant 0 : i32
    %c0_i32_1 = arith.constant 0 : i32
    return %c0_i32, %c0_i32_0 : i32, i32
  }
  func.func @transform_9(%arg0: i32) -> (i32, i32) {
    %c0_i32 = arith.constant 0 : i32
    %c0_i32_0 = arith.constant 0 : i32
    %c0_i32_1 = arith.constant 0 : i32
    return %c0_i32, %c0_i32_0 : i32, i32
  }
  func.func @transform_10(%arg0: i32) -> (i32, i32) {
    %c0_i32 = arith.constant 0 : i32
    %c0_i32_0 = arith.constant 0 : i32
    %c0_i32_1 = arith.constant 0 : i32
    return %c0_i32, %c0_i32_0 : i32, i32
  }
  func.func @transform_11(%arg0: i32) -> (i32, i32) {
    %c0_i32 = arith.constant 0 : i32
    %c0_i32_0 = arith.constant 0 : i32
    %c0_i32_1 = arith.constant 0 : i32
    return %c0_i32, %c0_i32_0 : i32, i32
  }
  func.func @transform_12(%arg0: i32) -> (i32, i32) {
    %c0_i32 = arith.constant 0 : i32
    %c0_i32_0 = arith.constant 0 : i32
    %c0_i32_1 = arith.constant 0 : i32
    return %c0_i32, %c0_i32_0 : i32, i32
  }
  func.func @transform_13(%arg0: i32) -> (i32, i32) {
    %c0_i32 = arith.constant 0 : i32
    %c0_i32_0 = arith.constant 0 : i32
    return %arg0, %c0_i32 : i32, i32
  }
}

</mosaic_0001>

<llo_original>
// kernel: _nn_forward.1
$region0: #{_nn_forward.1}
  #allocation0 [shape = 'u32[]', space=smem, size = 0x4, offset = 0x4, fixed_abs, tag = 'smem constant byte address 0x4 - core index']
  #allocation1 [shape = 'u32[144,128]{1,0:T(1,128)}', space=vmem, size = 0x12000, scoped, tag = 'internal scratch']
  %s0 = inlined_call_operand.vmem [shape: f32[384,32], index: 0, kind: input, shape index: {}]
  %s1 = inlined_call_operand.vmem [shape: bf16[32,128], index: 1, kind: input, shape index: {}]
  %s2 = inlined_call_operand.vmem [shape: f32[1,128], index: 2, kind: input, shape index: {}]
  %s3 = inlined_call_operand.vmem [shape: bf16[128,512], index: 3, kind: input, shape index: {}]
  %s4 = inlined_call_operand.vmem [shape: f32[1,512], index: 4, kind: input, shape index: {}]
  %s5 = inlined_call_operand.hbm [shape: bf16[512,1024], index: 5, kind: input, shape index: {}]
  %s6 = inlined_call_operand.vmem [shape: f32[1,1024], index: 6, kind: input, shape index: {}]
  %s7 = inlined_call_operand.hbm [shape: bf16[1024,512], index: 7, kind: input, shape index: {}]
  %s8 = inlined_call_operand.vmem [shape: f32[1,512], index: 8, kind: input, shape index: {}]
  %s9 = inlined_call_operand.vmem [shape: bf16[512,128], index: 9, kind: input, shape index: {}]
  %s10 = inlined_call_operand.vmem [shape: f32[1,128], index: 10, kind: input, shape index: {}]
  %s11 = inlined_call_operand.vmem [shape: bf16[128,128], index: 11, kind: input, shape index: {}]
  %s12 = inlined_call_operand.vmem [shape: f32[1,128], index: 12, kind: input, shape index: {}]
  %s13 = inlined_call_operand.vmem [shape: f32[384,1], index: 13, kind: output, shape index: {}]
  %s14 = sld [smem:[#allocation0]]
  $region70: #{_nn_forward.1} parent=0
    _
  %s16 = ssub.s32 1, %s14
  %s17 = scalar_select 0, %s16, %s14
  $region1: #{_nn_forward.1} parent=0
    #allocation2 [shape = 'u8[1048576]{0}', space=vmem, size = 0x100000, scoped, tag = 'input window, operand 5, single buffered']
    #allocation3 [shape = 's32[1]{0}', space=sflag, size = 0x4, scoped, tag = 'scoped memory for _nn_forward.1']
    #allocation4 [shape = 'u8[1048576]{0}', space=vmem, size = 0x100000, scoped, tag = 'input window, operand 7, single buffered']
    #allocation5 [shape = 's32[1]{0}', space=sflag, size = 0x4, scoped, tag = 'scoped memory for _nn_forward.1']
    %18 = vsyncpa [#allocation3], 0
    %19 = vsyncpa [#allocation5], 0
    // Predicated region
    $region2: #{_nn_forward.1} parent=1 // pred_check
      _
    $region3: #{_nn_forward.1} parent=1 // pred_check_branch
      %21 = sbr.rel (0) target = $region5
    $region4: #{_nn_forward.1} parent=1 // pred_region
      _
    $region5: #{_nn_forward.1} parent=1 // pred_fallthru
      _
    // Predicated region
    $region6: #{_nn_forward.1} parent=1 // pred_check
      _
    $region7: #{_nn_forward.1} parent=1 // pred_check_branch
      %23 = sbr.rel (0) target = $region9
    $region8: #{_nn_forward.1} parent=1 // pred_region
      _
    $region9: #{_nn_forward.1} parent=1 // pred_fallthru
      _
    // Predicated region
    $region10: #{_nn_forward.1} parent=1 // pred_check
      _
    $region11: #{_nn_forward.1} parent=1 // pred_check_branch
      %25 = sbr.rel (0) target = $region13
    $region12: #{_nn_forward.1} parent=1 // pred_region
      _
    $region13: #{_nn_forward.1} parent=1 // pred_fallthru
      _
    // Predicated region
    $region14: #{_nn_forward.1} parent=1 // pred_check
      _
    $region15: #{_nn_forward.1} parent=1 // pred_check_branch
      %27 = sbr.rel (0) target = $region17
    $region16: #{_nn_forward.1} parent=1 // pred_region
      _
    $region17: #{_nn_forward.1} parent=1 // pred_fallthru
      _
    // Predicated region
    $region18: #{_nn_forward.1} parent=1 // pred_check
      _
    $region19: #{_nn_forward.1} parent=1 // pred_check_branch
      %29 = sbr.rel (0) target = $region21
    $region20: #{_nn_forward.1} parent=1 // pred_region
      _
    $region21: #{_nn_forward.1} parent=1 // pred_fallthru
      _
    // Predicated region
    $region22: #{_nn_forward.1} parent=1 // pred_check
      _
    $region23: #{_nn_forward.1} parent=1 // pred_check_branch
      %31 = sbr.rel (0) target = $region25
    $region24: #{_nn_forward.1} parent=1 // pred_region
      %s33 = ssub.s32 32768, 32768
      %34 = vsyncadd [#allocation3], %s33
      %s35 = sshll.u32 [#allocation2], 4
      %s36 = int_to_ptr.vmem [resolvable:$true] %s35
      %41 = dma.hbm_to_vmem [thread:$0]  %s5, 32768, %s36, [#allocation3], 512, 512, 32
    $region25: #{_nn_forward.1} parent=1 // pred_fallthru
      _
    // Predicated region
    $region26: #{_nn_forward.1} parent=1 // pred_check
      _
    $region27: #{_nn_forward.1} parent=1 // pred_check_branch
      %43 = sbr.rel (0) target = $region29
    $region28: #{_nn_forward.1} parent=1 // pred_region
      _
    $region29: #{_nn_forward.1} parent=1 // pred_fallthru
      _
    // Predicated region
    $region30: #{_nn_forward.1} parent=1 // pred_check
      _
    $region31: #{_nn_forward.1} parent=1 // pred_check_branch
      %45 = sbr.rel (0) target = $region33
    $region32: #{_nn_forward.1} parent=1 // pred_region
      %s47 = ssub.s32 32768, 32768
      %48 = vsyncadd [#allocation5], %s47
      %s49 = sshll.u32 [#allocation4], 4
      %s50 = int_to_ptr.vmem [resolvable:$true] %s49
      %55 = dma.hbm_to_vmem [thread:$0]  %s7, 32768, %s50, [#allocation5], 256, 256, 16
    $region33: #{_nn_forward.1} parent=1 // pred_fallthru
      _
    // Predicated region
    $region34: #{_nn_forward.1} parent=1 // pred_check
      _
    $region35: #{_nn_forward.1} parent=1 // pred_check_branch
      %57 = sbr.rel (0) target = $region37
    $region36: #{_nn_forward.1} parent=1 // pred_region
      _
    $region37: #{_nn_forward.1} parent=1 // pred_fallthru
      _
    // Predicated region
    $region38: #{_nn_forward.1} parent=1 // pred_check
      _
    $region39: #{_nn_forward.1} parent=1 // pred_check_branch
      %59 = sbr.rel (0) target = $region41
    $region40: #{_nn_forward.1} parent=1 // pred_region
      _
    $region41: #{_nn_forward.1} parent=1 // pred_fallthru
      _
    // Predicated region
    $region42: #{_nn_forward.1} parent=1 // pred_check
      _
    $region43: #{_nn_forward.1} parent=1 // pred_check_branch
      %61 = sbr.rel (0) target = $region45
    $region44: #{_nn_forward.1} parent=1 // pred_region
      _
    $region45: #{_nn_forward.1} parent=1 // pred_fallthru
      _
    // Predicated region
    $region46: #{_nn_forward.1} parent=1 // pred_check
      _
    $region47: #{_nn_forward.1} parent=1 // pred_check_branch
      %63 = sbr.rel (0) target = $region49
    $region48: #{_nn_forward.1} parent=1 // pred_region
      _
    $region49: #{_nn_forward.1} parent=1 // pred_fallthru
      _
    // Predicated region
    $region50: #{_nn_forward.1} parent=1 // pred_check
      _
    $region51: #{_nn_forward.1} parent=1 // pred_check_branch
      %65 = sbr.rel (0) target = $region53
    $region52: #{_nn_forward.1} parent=1 // pred_region
      _
    $region53: #{_nn_forward.1} parent=1 // pred_fallthru
      _
    // Predicated region
    $region54: #{_nn_forward.1} parent=1 // pred_check
      _
    $region55: #{_nn_forward.1} parent=1 // pred_check_branch
      %67 = sbr.rel (0) target = $region57
    $region56: #{_nn_forward.1} parent=1 // pred_region
      %68 = dma.done [#allocation3], 32768
    $region57: #{_nn_forward.1} parent=1 // pred_fallthru
      _
    // Predicated region
    $region58: #{_nn_forward.1} parent=1 // pred_check
      _
    $region59: #{_nn_forward.1} parent=1 // pred_check_branch
      %70 = sbr.rel (0) target = $region61
    $region60: #{_nn_forward.1} parent=1 // pred_region
      %71 = dma.done [#allocation5], 32768
    $region61: #{_nn_forward.1} parent=1 // pred_fallthru
      _
    %v73 = vld [vmem:[%s0] sm:$0xff]
    %v74 = vld [vmem:[%s0 + $0x8] sm:$0xff]
    %v75 = vld [vmem:[%s0 + $0x10] sm:$0xff]
    %v76 = vld [vmem:[%s0 + $0x18] sm:$0xff]
    %v77 = vld [vmem:[%s0 + $0x20] sm:$0xff]
    %v78 = vld [vmem:[%s0 + $0x28] sm:$0xff]
    %v79 = vld [vmem:[%s0 + $0x30] sm:$0xff]
    %v80 = vld [vmem:[%s0 + $0x38] sm:$0xff]
    %v81 = vld [vmem:[%s0 + $0x40] sm:$0xff]
    %v82 = vld [vmem:[%s0 + $0x48] sm:$0xff]
    %v83 = vld [vmem:[%s0 + $0x50] sm:$0xff]
    %v84 = vld [vmem:[%s0 + $0x58] sm:$0xff]
    %v85 = vld [vmem:[%s0 + $0x60] sm:$0xff]
    %v86 = vld [vmem:[%s0 + $0x68] sm:$0xff]
    %v87 = vld [vmem:[%s0 + $0x70] sm:$0xff]
    %v88 = vld [vmem:[%s0 + $0x78] sm:$0xff]
    %v89 = vld [vmem:[%s0 + $0x80] sm:$0xff]
    %v90 = vld [vmem:[%s0 + $0x88] sm:$0xff]
    %v91 = vld [vmem:[%s0 + $0x90] sm:$0xff]
    %v92 = vld [vmem:[%s0 + $0x98] sm:$0xff]
    %v93 = vld [vmem:[%s0 + $0xa0] sm:$0xff]
    %v94 = vld [vmem:[%s0 + $0xa8] sm:$0xff]
    %v95 = vld [vmem:[%s0 + $0xb0] sm:$0xff]
    %v96 = vld [vmem:[%s0 + $0xb8] sm:$0xff]
    %v97 = vld [vmem:[%s0 + $0xc0] sm:$0xff]
    %v98 = vld [vmem:[%s0 + $0xc8] sm:$0xff]
    %v99 = vld [vmem:[%s0 + $0xd0] sm:$0xff]
    %v100 = vld [vmem:[%s0 + $0xd8] sm:$0xff]
    %v101 = vld [vmem:[%s0 + $0xe0] sm:$0xff]
    %v102 = vld [vmem:[%s0 + $0xe8] sm:$0xff]
    %v103 = vld [vmem:[%s0 + $0xf0] sm:$0xff]
    %v104 = vld [vmem:[%s0 + $0xf8] sm:$0xff]
    %v105 = vld [vmem:[%s0 + $0x100] sm:$0xff]
    %v106 = vld [vmem:[%s0 + $0x108] sm:$0xff]
    %v107 = vld [vmem:[%s0 + $0x110] sm:$0xff]
    %v108 = vld [vmem:[%s0 + $0x118] sm:$0xff]
    %v109 = vld [vmem:[%s0 + $0x120] sm:$0xff]
    %v110 = vld [vmem:[%s0 + $0x128] sm:$0xff]
    %v111 = vld [vmem:[%s0 + $0x130] sm:$0xff]
    %v112 = vld [vmem:[%s0 + $0x138] sm:$0xff]
    %v113 = vld [vmem:[%s0 + $0x140] sm:$0xff]
    %v114 = vld [vmem:[%s0 + $0x148] sm:$0xff]
    %v115 = vld [vmem:[%s0 + $0x150] sm:$0xff]
    %v116 = vld [vmem:[%s0 + $0x158] sm:$0xff]
    %v117 = vld [vmem:[%s0 + $0x160] sm:$0xff]
    %v118 = vld [vmem:[%s0 + $0x168] sm:$0xff]
    %v119 = vld [vmem:[%s0 + $0x170] sm:$0xff]
    %v120 = vld [vmem:[%s0 + $0x178] sm:$0xff]
    %v121 = vpack.c.bf16 %v74, %v73
    %v122 = vpack.c.bf16 %v76, %v75
    %v123 = vpack.c.bf16 %v78, %v77
    %v124 = vpack.c.bf16 %v80, %v79
    %v125 = vpack.c.bf16 %v82, %v81
    %v126 = vpack.c.bf16 %v84, %v83
    %v127 = vpack.c.bf16 %v86, %v85
    %v128 = vpack.c.bf16 %v88, %v87
    %v129 = vpack.c.bf16 %v90, %v89
    %v130 = vpack.c.bf16 %v92, %v91
    %v131 = vpack.c.bf16 %v94, %v93
    %v132 = vpack.c.bf16 %v96, %v95
    %v133 = vpack.c.bf16 %v98, %v97
    %v134 = vpack.c.bf16 %v100, %v99
    %v135 = vpack.c.bf16 %v102, %v101
    %v136 = vpack.c.bf16 %v104, %v103
    %v137 = vpack.c.bf16 %v106, %v105
    %v138 = vpack.c.bf16 %v108, %v107
    %v139 = vpack.c.bf16 %v110, %v109
    %v140 = vpack.c.bf16 %v112, %v111
    %v141 = vpack.c.bf16 %v114, %v113
    %v142 = vpack.c.bf16 %v116, %v115
    %v143 = vpack.c.bf16 %v118, %v117
    %v144 = vpack.c.bf16 %v120, %v119
    %v145 = vld [vmem:[%s1] sm:$0xf]
    %v146 = vld [vmem:[%s1 + $0x4] sm:$0xf]
    %v147 = vld [vmem:[%s1 + $0x8] sm:$0xf]
    %v148 = vld [vmem:[%s1 + $0xc] sm:$0xf]
    %v149 = vld [vmem:[%s2] sm:$0x1]
    %v151 = vlaneseq
    %v152 = vshrl.u32 %v151, 7
    %v153 = vsub.s32 0, %v152
    %v154 = vrot.slane %v149, %v153
    %v160 = vunpack.c.l.b16 %v145
    %v161 = vunpack.c.l.b16 %v146
    %v162 = vunpack.c.l.b16 %v147
    %v163 = vunpack.c.l.b16 %v148
    %v164 = vpack.c.b16 %v161, %v160
    %v165 = vpack.c.b16 %v163, %v162
    %vm168 = vcmask 261120
    %v170 = vsel %vm168, %v121, 0
    %v173 = vsel %vm168, %v122, 0
    %v176 = vsel %vm168, %v123, 0
    %v179 = vsel %vm168, %v124, 0
    %v182 = vsel %vm168, %v125, 0
    %v185 = vsel %vm168, %v126, 0
    %v188 = vsel %vm168, %v127, 0
    %v191 = vsel %vm168, %v128, 0
    %v194 = vsel %vm168, %v129, 0
    %v197 = vsel %vm168, %v130, 0
    %v200 = vsel %vm168, %v131, 0
    %v203 = vsel %vm168, %v132, 0
    %v206 = vsel %vm168, %v133, 0
    %v209 = vsel %vm168, %v134, 0
    %v212 = vsel %vm168, %v135, 0
    %v215 = vsel %vm168, %v136, 0
    %v218 = vsel %vm168, %v137, 0
    %v221 = vsel %vm168, %v138, 0
    %v224 = vsel %vm168, %v139, 0
    %v227 = vsel %vm168, %v140, 0
    %v230 = vsel %vm168, %v141, 0
    %v233 = vsel %vm168, %v142, 0
    %v236 = vsel %vm168, %v143, 0
    %v239 = vsel %vm168, %v144, 0
    %241 = vmatprep.subr.bf16.mxu0 0
    %242 = vmatpush1.bf16.msra.mxu0 0
    %243 = vmatprep.subr.bf16.mxu0 0
    %244 = vmatpush1.bf16.msra.mxu0 0
    %245 = vmatprep.subr.bf16.mxu0 0
    %246 = vmatpush1.bf16.msra.mxu0 0
    %247 = vmatprep.subr.bf16.mxu0 0
    %248 = vmatpush1.bf16.msra.mxu0 0
    %249 = vmatprep.subr.bf16.mxu0 0
    %250 = vmatpush1.bf16.msra.mxu0 0
    %251 = vmatprep.subr.bf16.mxu0 0
    %252 = vmatpush1.bf16.msra.mxu0 0
    %253 = vmatprep.subr.bf16.mxu0 0
    %254 = vmatpush1.bf16.msra.mxu0 %v165
    %255 = vmatprep.subr.bf16.mxu0 0
    %256 = vmatpush1.bf16.msra.mxu0 %v164
    %257 = vmatprep.subr.bf16.mxu0 0
    %258 = vmatpush2.bf16.msra.mxu0 0
    %259 = vmatprep.subr.bf16.mxu0 0
    %260 = vmatpush2.bf16.msra.mxu0 0
    %261 = vmatprep.subr.bf16.mxu0 0
    %262 = vmatpush2.bf16.msra.mxu0 0
    %263 = vmatprep.subr.bf16.mxu0 0
    %264 = vmatpush2.bf16.msra.mxu0 0
    %265 = vmatprep.subr.bf16.mxu0 0
    %266 = vmatpush2.bf16.msra.mxu0 0
    %267 = vmatprep.subr.bf16.mxu0 0
    %268 = vmatpush2.bf16.msra.mxu0 0
    %269 = vmatprep.subr.bf16.mxu0 0
    %270 = vmatpush2.bf16.msra.mxu0 0
    %271 = vmatprep.subr.bf16.mxu0 0
    %272 = vmatpush2.bf16.msra.mxu0 0
    %273 = vmatprep.mubr.bf16.mxu0 0
    %274 = vmatmul.mubr.bf16.gmra.mxu0 %v170
    %v275 = vpop.f32.mrf.mxu0
    %v276 = vadd.f32 %v154, %v275
    %v277 = vpop.f32.mrf.mxu0
    %v278 = vpop.f32.mrf.mxu0
    %v279 = vadd.f32 %v154, %v278
    %v280 = vpop.f32.mrf.mxu0
    %281 = vmatprep.mubr.bf16.mxu0 0
    %282 = vmatmul.mubr.bf16.gmra.mxu0 %v173
    %v283 = vpop.f32.mrf.mxu0
    %v284 = vadd.f32 %v154, %v283
    %v285 = vpop.f32.mrf.mxu0
    %v286 = vpop.f32.mrf.mxu0
    %v287 = vadd.f32 %v154, %v286
    %v288 = vpop.f32.mrf.mxu0
    %289 = vmatprep.mubr.bf16.mxu0 0
    %290 = vmatmul.mubr.bf16.gmra.mxu0 %v176
    %v291 = vpop.f32.mrf.mxu0
    %v292 = vadd.f32 %v154, %v291
    %v293 = vpop.f32.mrf.mxu0
    %v294 = vpop.f32.mrf.mxu0
    %v295 = vadd.f32 %v154, %v294
    %v296 = vpop.f32.mrf.mxu0
    %297 = vmatprep.mubr.bf16.mxu0 0
    %298 = vmatmul.mubr.bf16.gmra.mxu0 %v179
    %v299 = vpop.f32.mrf.mxu0
    %v300 = vadd.f32 %v154, %v299
    %v301 = vpop.f32.mrf.mxu0
    %v302 = vpop.f32.mrf.mxu0
    %v303 = vadd.f32 %v154, %v302
    %v304 = vpop.f32.mrf.mxu0
    %305 = vmatprep.mubr.bf16.mxu0 0
    %306 = vmatmul.mubr.bf16.gmra.mxu0 %v182
    %v307 = vpop.f32.mrf.mxu0
    %v308 = vadd.f32 %v154, %v307
    %v309 = vpop.f32.mrf.mxu0
    %v310 = vpop.f32.mrf.mxu0
    %v311 = vadd.f32 %v154, %v310
    %v312 = vpop.f32.mrf.mxu0
    %313 = vmatprep.mubr.bf16.mxu0 0
    %314 = vmatmul.mubr.bf16.gmra.mxu0 %v185
    %v315 = vpop.f32.mrf.mxu0
    %v316 = vadd.f32 %v154, %v315
    %v317 = vpop.f32.mrf.mxu0
    %v318 = vpop.f32.mrf.mxu0
    %v319 = vadd.f32 %v154, %v318
    %v320 = vpop.f32.mrf.mxu0
    %321 = vmatprep.mubr.bf16.mxu0 0
    %322 = vmatmul.mubr.bf16.gmra.mxu0 %v188
    %v323 = vpop.f32.mrf.mxu0
    %v324 = vadd.f32 %v154, %v323
    %v325 = vpop.f32.mrf.mxu0
    %v326 = vpop.f32.mrf.mxu0
    %v327 = vadd.f32 %v154, %v326
    %v328 = vpop.f32.mrf.mxu0
    %329 = vmatprep.mubr.bf16.mxu0 0
    %330 = vmatmul.mubr.bf16.gmra.mxu0 %v191
    %v331 = vpop.f32.mrf.mxu0
    %v332 = vadd.f32 %v154, %v331
    %v333 = vpop.f32.mrf.mxu0
    %v334 = vpop.f32.mrf.mxu0
    %v335 = vadd.f32 %v154, %v334
    %v336 = vpop.f32.mrf.mxu0
    %337 = vmatprep.mubr.bf16.mxu0 0
    %338 = vmatmul.mubr.bf16.gmra.mxu0 %v194
    %v339 = vpop.f32.mrf.mxu0
    %v340 = vadd.f32 %v154, %v339
    %v341 = vpop.f32.mrf.mxu0
    %v342 = vpop.f32.mrf.mxu0
    %v343 = vadd.f32 %v154, %v342
    %v344 = vpop.f32.mrf.mxu0
    %345 = vmatprep.mubr.bf16.mxu0 0
    %346 = vmatmul.mubr.bf16.gmra.mxu0 %v197
    %v347 = vpop.f32.mrf.mxu0
    %v348 = vadd.f32 %v154, %v347
    %v349 = vpop.f32.mrf.mxu0
    %v350 = vpop.f32.mrf.mxu0
    %v351 = vadd.f32 %v154, %v350
    %v352 = vpop.f32.mrf.mxu0
    %353 = vmatprep.mubr.bf16.mxu0 0
    %354 = vmatmul.mubr.bf16.gmra.mxu0 %v200
    %v355 = vpop.f32.mrf.mxu0
    %v356 = vadd.f32 %v154, %v355
    %v357 = vpop.f32.mrf.mxu0
    %v358 = vpop.f32.mrf.mxu0
    %v359 = vadd.f32 %v154, %v358
    %v360 = vpop.f32.mrf.mxu0
    %361 = vmatprep.mubr.bf16.mxu0 0
    %362 = vmatmul.mubr.bf16.gmra.mxu0 %v203
    %v363 = vpop.f32.mrf.mxu0
    %v364 = vadd.f32 %v154, %v363
    %v365 = vpop.f32.mrf.mxu0
    %v366 = vpop.f32.mrf.mxu0
    %v367 = vadd.f32 %v154, %v366
    %v368 = vpop.f32.mrf.mxu0
    %369 = vmatprep.mubr.bf16.mxu0 0
    %370 = vmatmul.mubr.bf16.gmra.mxu0 %v206
    %v371 = vpop.f32.mrf.mxu0
    %v372 = vadd.f32 %v154, %v371
    %v373 = vpop.f32.mrf.mxu0
    %v374 = vpop.f32.mrf.mxu0
    %v375 = vadd.f32 %v154, %v374
    %v376 = vpop.f32.mrf.mxu0
    %377 = vmatprep.mubr.bf16.mxu0 0
    %378 = vmatmul.mubr.bf16.gmra.mxu0 %v209
    %v379 = vpop.f32.mrf.mxu0
    %v380 = vadd.f32 %v154, %v379
    %v381 = vpop.f32.mrf.mxu0
    %v382 = vpop.f32.mrf.mxu0
    %v383 = vadd.f32 %v154, %v382
    %v384 = vpop.f32.mrf.mxu0
    %385 = vmatprep.mubr.bf16.mxu0 0
    %386 = vmatmul.mubr.bf16.gmra.mxu0 %v212
    %v387 = vpop.f32.mrf.mxu0
    %v388 = vadd.f32 %v154, %v387
    %v389 = vpop.f32.mrf.mxu0
    %v390 = vpop.f32.mrf.mxu0
    %v391 = vadd.f32 %v154, %v390
    %v392 = vpop.f32.mrf.mxu0
    %393 = vmatprep.mubr.bf16.mxu0 0
    %394 = vmatmul.mubr.bf16.gmra.mxu0 %v215
    %v395 = vpop.f32.mrf.mxu0
    %v396 = vadd.f32 %v154, %v395
    %v397 = vpop.f32.mrf.mxu0
    %v398 = vpop.f32.mrf.mxu0
    %v399 = vadd.f32 %v154, %v398
    %v400 = vpop.f32.mrf.mxu0
    %401 = vmatprep.mubr.bf16.mxu0 0
    %402 = vmatmul.mubr.bf16.gmra.mxu0 %v218
    %v403 = vpop.f32.mrf.mxu0
    %v404 = vadd.f32 %v154, %v403
    %v405 = vpop.f32.mrf.mxu0
    %v406 = vpop.f32.mrf.mxu0
    %v407 = vadd.f32 %v154, %v406
    %v408 = vpop.f32.mrf.mxu0
    %409 = vmatprep.mubr.bf16.mxu0 0
    %410 = vmatmul.mubr.bf16.gmra.mxu0 %v221
    %v411 = vpop.f32.mrf.mxu0
    %v412 = vadd.f32 %v154, %v411
    %v413 = vpop.f32.mrf.mxu0
    %v414 = vpop.f32.mrf.mxu0
    %v415 = vadd.f32 %v154, %v414
    %v416 = vpop.f32.mrf.mxu0
    %417 = vmatprep.mubr.bf16.mxu0 0
    %418 = vmatmul.mubr.bf16.gmra.mxu0 %v224
    %v419 = vpop.f32.mrf.mxu0
    %v420 = vadd.f32 %v154, %v419
    %v421 = vpop.f32.mrf.mxu0
    %v422 = vpop.f32.mrf.mxu0
    %v423 = vadd.f32 %v154, %v422
    %v424 = vpop.f32.mrf.mxu0
    %425 = vmatprep.mubr.bf16.mxu0 0
    %426 = vmatmul.mubr.bf16.gmra.mxu0 %v227
    %v427 = vpop.f32.mrf.mxu0
    %v428 = vadd.f32 %v154, %v427
    %v429 = vpop.f32.mrf.mxu0
    %v430 = vpop.f32.mrf.mxu0
    %v431 = vadd.f32 %v154, %v430
    %v432 = vpop.f32.mrf.mxu0
    %433 = vmatprep.mubr.bf16.mxu0 0
    %434 = vmatmul.mubr.bf16.gmra.mxu0 %v230
    %v435 = vpop.f32.mrf.mxu0
    %v436 = vadd.f32 %v154, %v435
    %v437 = vpop.f32.mrf.mxu0
    %v438 = vpop.f32.mrf.mxu0
    %v439 = vadd.f32 %v154, %v438
    %v440 = vpop.f32.mrf.mxu0
    %441 = vmatprep.mubr.bf16.mxu0 0
    %442 = vmatmul.mubr.bf16.gmra.mxu0 %v233
    %v443 = vpop.f32.mrf.mxu0
    %v444 = vadd.f32 %v154, %v443
    %v445 = vpop.f32.mrf.mxu0
    %v446 = vpop.f32.mrf.mxu0
    %v447 = vadd.f32 %v154, %v446
    %v448 = vpop.f32.mrf.mxu0
    %449 = vmatprep.mubr.bf16.mxu0 0
    %450 = vmatmul.mubr.bf16.gmra.mxu0 %v236
    %v451 = vpop.f32.mrf.mxu0
    %v452 = vadd.f32 %v154, %v451
    %v453 = vpop.f32.mrf.mxu0
    %v454 = vpop.f32.mrf.mxu0
    %v455 = vadd.f32 %v154, %v454
    %v456 = vpop.f32.mrf.mxu0
    %457 = vmatprep.mubr.bf16.mxu0 0
    %458 = vmatmul.mubr.bf16.gmra.mxu0 %v239
    %v459 = vpop.f32.mrf.mxu0
    %v460 = vadd.f32 %v154, %v459
    %v461 = vpop.f32.mrf.mxu0
    %v462 = vpop.f32.mrf.mxu0
    %v463 = vadd.f32 %v154, %v462
    %v464 = vpop.f32.mrf.mxu0
    %465 = vdwg.mxu0
    %v466 = vmax.f32 %v276, 0.0
    %v467 = vmax.f32 %v279, 0.0
    %v468 = vmax.f32 %v284, 0.0
    %v469 = vmax.f32 %v287, 0.0
    %v470 = vmax.f32 %v292, 0.0
    %v471 = vmax.f32 %v295, 0.0
    %v472 = vmax.f32 %v300, 0.0
    %v473 = vmax.f32 %v303, 0.0
    %v474 = vmax.f32 %v308, 0.0
    %v475 = vmax.f32 %v311, 0.0
    %v476 = vmax.f32 %v316, 0.0
    %v477 = vmax.f32 %v319, 0.0
    %v478 = vmax.f32 %v324, 0.0
    %v479 = vmax.f32 %v327, 0.0
    %v480 = vmax.f32 %v332, 0.0
    %v481 = vmax.f32 %v335, 0.0
    %v482 = vmax.f32 %v340, 0.0
    %v483 = vmax.f32 %v343, 0.0
    %v484 = vmax.f32 %v348, 0.0
    %v485 = vmax.f32 %v351, 0.0
    %v486 = vmax.f32 %v356, 0.0
    %v487 = vmax.f32 %v359, 0.0
    %v488 = vmax.f32 %v364, 0.0
    %v489 = vmax.f32 %v367, 0.0
    %v490 = vmax.f32 %v372, 0.0
    %v491 = vmax.f32 %v375, 0.0
    %v492 = vmax.f32 %v380, 0.0
    %v493 = vmax.f32 %v383, 0.0
    %v494 = vmax.f32 %v388, 0.0
    %v495 = vmax.f32 %v391, 0.0
    %v496 = vmax.f32 %v396, 0.0
    %v497 = vmax.f32 %v399, 0.0
    %v498 = vmax.f32 %v404, 0.0
    %v499 = vmax.f32 %v407, 0.0
    %v500 = vmax.f32 %v412, 0.0
    %v501 = vmax.f32 %v415, 0.0
    %v502 = vmax.f32 %v420, 0.0
    %v503 = vmax.f32 %v423, 0.0
    %v504 = vmax.f32 %v428, 0.0
    %v505 = vmax.f32 %v431, 0.0
    %v506 = vmax.f32 %v436, 0.0
    %v507 = vmax.f32 %v439, 0.0
    %v508 = vmax.f32 %v444, 0.0
    %v509 = vmax.f32 %v447, 0.0
    %v510 = vmax.f32 %v452, 0.0
    %v511 = vmax.f32 %v455, 0.0
    %v512 = vmax.f32 %v460, 0.0
    %v513 = vmax.f32 %v463, 0.0
    %v514 = vpack.c.bf16 %v467, %v466
    %v515 = vpack.c.bf16 %v469, %v468
    %v516 = vpack.c.bf16 %v471, %v470
    %v517 = vpack.c.bf16 %v473, %v472
    %v518 = vpack.c.bf16 %v475, %v474
    %v519 = vpack.c.bf16 %v477, %v476
    %v520 = vpack.c.bf16 %v479, %v478
    %v521 = vpack.c.bf16 %v481, %v480
    %v522 = vpack.c.bf16 %v483, %v482
    %v523 = vpack.c.bf16 %v485, %v484
    %v524 = vpack.c.bf16 %v487, %v486
    %v525 = vpack.c.bf16 %v489, %v488
    %v526 = vpack.c.bf16 %v491, %v490
    %v527 = vpack.c.bf16 %v493, %v492
    %v528 = vpack.c.bf16 %v495, %v494
    %v529 = vpack.c.bf16 %v497, %v496
    %v530 = vpack.c.bf16 %v499, %v498
    %v531 = vpack.c.bf16 %v501, %v500
    %v532 = vpack.c.bf16 %v503, %v502
    %v533 = vpack.c.bf16 %v505, %v504
    %v534 = vpack.c.bf16 %v507, %v506
    %v535 = vpack.c.bf16 %v509, %v508
    %v536 = vpack.c.bf16 %v511, %v510
    %v537 = vpack.c.bf16 %v513, %v512
    %v538 = vld [vmem:[%s3] sm:$0xff]
    %v539 = vld [vmem:[%s3 + $0x8] sm:$0xff]
    %v540 = vld [vmem:[%s3 + $0x10] sm:$0xff]
    %v541 = vld [vmem:[%s3 + $0x18] sm:$0xff]
    %v542 = vld [vmem:[%s3 + $0x20] sm:$0xff]
    %v543 = vld [vmem:[%s3 + $0x28] sm:$0xff]
    %v544 = vld [vmem:[%s3 + $0x30] sm:$0xff]
    %v545 = vld [vmem:[%s3 + $0x38] sm:$0xff]
    %v546 = vld [vmem:[%s3 + $0x40] sm:$0xff]
    %v547 = vld [vmem:[%s3 + $0x48] sm:$0xff]
    %v548 = vld [vmem:[%s3 + $0x50] sm:$0xff]
    %v549 = vld [vmem:[%s3 + $0x58] sm:$0xff]
    %v550 = vld [vmem:[%s3 + $0x60] sm:$0xff]
    %v551 = vld [vmem:[%s3 + $0x68] sm:$0xff]
    %v552 = vld [vmem:[%s3 + $0x70] sm:$0xff]
    %v553 = vld [vmem:[%s3 + $0x78] sm:$0xff]
    %v554 = vld [vmem:[%s3 + $0x80] sm:$0xff]
    %v555 = vld [vmem:[%s3 + $0x88] sm:$0xff]
    %v556 = vld [vmem:[%s3 + $0x90] sm:$0xff]
    %v557 = vld [vmem:[%s3 + $0x98] sm:$0xff]
    %v558 = vld [vmem:[%s3 + $0xa0] sm:$0xff]
    %v559 = vld [vmem:[%s3 + $0xa8] sm:$0xff]
    %v560 = vld [vmem:[%s3 + $0xb0] sm:$0xff]
    %v561 = vld [vmem:[%s3 + $0xb8] sm:$0xff]
    %v562 = vld [vmem:[%s3 + $0xc0] sm:$0xff]
    %v563 = vld [vmem:[%s3 + $0xc8] sm:$0xff]
    %v564 = vld [vmem:[%s3 + $0xd0] sm:$0xff]
    %v565 = vld [vmem:[%s3 + $0xd8] sm:$0xff]
    %v566 = vld [vmem:[%s3 + $0xe0] sm:$0xff]
    %v567 = vld [vmem:[%s3 + $0xe8] sm:$0xff]
    %v568 = vld [vmem:[%s3 + $0xf0] sm:$0xff]
    %v569 = vld [vmem:[%s3 + $0xf8] sm:$0xff]
    %v570 = vld [vmem:[%s4] sm:$0xf]
    %v572 = vlaneseq
    %v573 = vshrl.u32 %v572, 7
    %v574 = vsub.s32 0, %v573
    %v575 = vrot.slane %v570, %v574
    %v576 = vlaneseq
    %v577 = vshrl.u32 %v576, 7
    %v578 = vsub.s32 1, %v577
    %v579 = vrot.slane %v570, %v578
    %v580 = vlaneseq
    %v581 = vshrl.u32 %v580, 7
    %v582 = vsub.s32 2, %v581
    %v583 = vrot.slane %v570, %v582
    %v584 = vlaneseq
    %v585 = vshrl.u32 %v584, 7
    %v586 = vsub.s32 3, %v585
    %v587 = vrot.slane %v570, %v586
    %v624 = vunpack.c.l.b16 %v538
    %v625 = vunpack.c.h.b16 %v538
    %v626 = vunpack.c.l.b16 %v539
    %v627 = vunpack.c.h.b16 %v539
    %v628 = vunpack.c.l.b16 %v540
    %v629 = vunpack.c.h.b16 %v540
    %v630 = vunpack.c.l.b16 %v541
    %v631 = vunpack.c.h.b16 %v541
    %v632 = vunpack.c.l.b16 %v542
    %v633 = vunpack.c.h.b16 %v542
    %v634 = vunpack.c.l.b16 %v543
    %v635 = vunpack.c.h.b16 %v543
    %v636 = vunpack.c.l.b16 %v544
    %v637 = vunpack.c.h.b16 %v544
    %v638 = vunpack.c.l.b16 %v545
    %v639 = vunpack.c.h.b16 %v545
    %v640 = vunpack.c.l.b16 %v546
    %v641 = vunpack.c.h.b16 %v546
    %v642 = vunpack.c.l.b16 %v547
    %v643 = vunpack.c.h.b16 %v547
    %v644 = vunpack.c.l.b16 %v548
    %v645 = vunpack.c.h.b16 %v548
    %v646 = vunpack.c.l.b16 %v549
    %v647 = vunpack.c.h.b16 %v549
    %v648 = vunpack.c.l.b16 %v550
    %v649 = vunpack.c.h.b16 %v550
    %v650 = vunpack.c.l.b16 %v551
    %v651 = vunpack.c.h.b16 %v551
    %v652 = vunpack.c.l.b16 %v552
    %v653 = vunpack.c.h.b16 %v552
    %v654 = vunpack.c.l.b16 %v553
    %v655 = vunpack.c.h.b16 %v553
    %v656 = vunpack.c.l.b16 %v554
    %v657 = vunpack.c.h.b16 %v554
    %v658 = vunpack.c.l.b16 %v555
    %v659 = vunpack.c.h.b16 %v555
    %v660 = vunpack.c.l.b16 %v556
    %v661 = vunpack.c.h.b16 %v556
    %v662 = vunpack.c.l.b16 %v557
    %v663 = vunpack.c.h.b16 %v557
    %v664 = vunpack.c.l.b16 %v558
    %v665 = vunpack.c.h.b16 %v558
    %v666 = vunpack.c.l.b16 %v559
    %v667 = vunpack.c.h.b16 %v559
    %v668 = vunpack.c.l.b16 %v560
    %v669 = vunpack.c.h.b16 %v560
    %v670 = vunpack.c.l.b16 %v561
    %v671 = vunpack.c.h.b16 %v561
    %v672 = vunpack.c.l.b16 %v562
    %v673 = vunpack.c.h.b16 %v562
    %v674 = vunpack.c.l.b16 %v563
    %v675 = vunpack.c.h.b16 %v563
    %v676 = vunpack.c.l.b16 %v564
    %v677 = vunpack.c.h.b16 %v564
    %v678 = vunpack.c.l.b16 %v565
    %v679 = vunpack.c.h.b16 %v565
    %v680 = vunpack.c.l.b16 %v566
    %v681 = vunpack.c.h.b16 %v566
    %v682 = vunpack.c.l.b16 %v567
    %v683 = vunpack.c.h.b16 %v567
    %v684 = vunpack.c.l.b16 %v568
    %v685 = vunpack.c.h.b16 %v568
    %v686 = vunpack.c.l.b16 %v569
    %v687 = vunpack.c.h.b16 %v569
    %v688 = vpack.c.b16 %v628, %v624
    %v689 = vpack.c.b16 %v629, %v625
    %v690 = vpack.c.b16 %v630, %v626
    %v691 = vpack.c.b16 %v631, %v627
    %v692 = vpack.c.b16 %v636, %v632
    %v693 = vpack.c.b16 %v637, %v633
    %v694 = vpack.c.b16 %v638, %v634
    %v695 = vpack.c.b16 %v639, %v635
    %v696 = vpack.c.b16 %v644, %v640
    %v697 = vpack.c.b16 %v645, %v641
    %v698 = vpack.c.b16 %v646, %v642
    %v699 = vpack.c.b16 %v647, %v643
    %v700 = vpack.c.b16 %v652, %v648
    %v701 = vpack.c.b16 %v653, %v649
    %v702 = vpack.c.b16 %v654, %v650
    %v703 = vpack.c.b16 %v655, %v651
    %v704 = vpack.c.b16 %v660, %v656
    %v705 = vpack.c.b16 %v661, %v657
    %v706 = vpack.c.b16 %v662, %v658
    %v707 = vpack.c.b16 %v663, %v659
    %v708 = vpack.c.b16 %v668, %v664
    %v709 = vpack.c.b16 %v669, %v665
    %v710 = vpack.c.b16 %v670, %v666
    %v711 = vpack.c.b16 %v671, %v667
    %v712 = vpack.c.b16 %v676, %v672
    %v713 = vpack.c.b16 %v677, %v673
    %v714 = vpack.c.b16 %v678, %v674
    %v715 = vpack.c.b16 %v679, %v675
    %v716 = vpack.c.b16 %v684, %v680
    %v717 = vpack.c.b16 %v685, %v681
    %v718 = vpack.c.b16 %v686, %v682
    %v719 = vpack.c.b16 %v687, %v683
    %752 = vmatprep.subr.bf16.mxu0 %v717
    %753 = vmatpush1.bf16.msra.mxu0 %v716
    %754 = vmatprep.subr.bf16.mxu0 %v713
    %755 = vmatpush1.bf16.msra.mxu0 %v712
    %756 = vmatprep.subr.bf16.mxu0 %v709
    %757 = vmatpush1.bf16.msra.mxu0 %v708
    %758 = vmatprep.subr.bf16.mxu0 %v705
    %759 = vmatpush1.bf16.msra.mxu0 %v704
    %760 = vmatprep.subr.bf16.mxu0 %v701
    %761 = vmatpush1.bf16.msra.mxu0 %v700
    %762 = vmatprep.subr.bf16.mxu0 %v697
    %763 = vmatpush1.bf16.msra.mxu0 %v696
    %764 = vmatprep.subr.bf16.mxu0 %v693
    %765 = vmatpush1.bf16.msra.mxu0 %v692
    %766 = vmatprep.subr.bf16.mxu0 %v689
    %767 = vmatpush1.bf16.msra.mxu0 %v688
    %768 = vmatprep.subr.bf16.mxu0 0
    %769 = vmatpush2.bf16.msra.mxu0 0
    %770 = vmatprep.subr.bf16.mxu0 0
    %771 = vmatpush2.bf16.msra.mxu0 0
    %772 = vmatprep.subr.bf16.mxu0 0
    %773 = vmatpush2.bf16.msra.mxu0 0
    %774 = vmatprep.subr.bf16.mxu0 0
    %775 = vmatpush2.bf16.msra.mxu0 0
    %776 = vmatprep.subr.bf16.mxu0 0
    %777 = vmatpush2.bf16.msra.mxu0 0
    %778 = vmatprep.subr.bf16.mxu0 0
    %779 = vmatpush2.bf16.msra.mxu0 0
    %780 = vmatprep.subr.bf16.mxu0 0
    %781 = vmatpush2.bf16.msra.mxu0 0
    %782 = vmatprep.subr.bf16.mxu0 0
    %783 = vmatpush2.bf16.msra.mxu0 0
    %784 = vmatprep.mubr.bf16.mxu0 0
    %785 = vmatmul.mubr.bf16.gmra.mxu0 %v514
    %v786 = vpop.f32.mrf.mxu0
    %v787 = vadd.f32 %v575, %v786
    %v788 = vpop.f32.mrf.mxu0
    %v789 = vadd.f32 %v579, %v788
    %v790 = vpop.f32.mrf.mxu0
    %v791 = vadd.f32 %v575, %v790
    %v792 = vpop.f32.mrf.mxu0
    %v793 = vadd.f32 %v579, %v792
    %794 = vmatprep.mubr.bf16.mxu0 0
    %795 = vmatmul.mubr.bf16.gmra.mxu0 %v515
    %v796 = vpop.f32.mrf.mxu0
    %v797 = vadd.f32 %v575, %v796
    %v798 = vpop.f32.mrf.mxu0
    %v799 = vadd.f32 %v579, %v798
    %v800 = vpop.f32.mrf.mxu0
    %v801 = vadd.f32 %v575, %v800
    %v802 = vpop.f32.mrf.mxu0
    %v803 = vadd.f32 %v579, %v802
    %804 = vmatprep.mubr.bf16.mxu0 0
    %805 = vmatmul.mubr.bf16.gmra.mxu0 %v516
    %v806 = vpop.f32.mrf.mxu0
    %v807 = vadd.f32 %v575, %v806
    %v808 = vpop.f32.mrf.mxu0
    %v809 = vadd.f32 %v579, %v808
    %v810 = vpop.f32.mrf.mxu0
    %v811 = vadd.f32 %v575, %v810
    %v812 = vpop.f32.mrf.mxu0
    %v813 = vadd.f32 %v579, %v812
    %814 = vmatprep.mubr.bf16.mxu0 0
    %815 = vmatmul.mubr.bf16.gmra.mxu0 %v517
    %v816 = vpop.f32.mrf.mxu0
    %v817 = vadd.f32 %v575, %v816
    %v818 = vpop.f32.mrf.mxu0
    %v819 = vadd.f32 %v579, %v818
    %v820 = vpop.f32.mrf.mxu0
    %v821 = vadd.f32 %v575, %v820
    %v822 = vpop.f32.mrf.mxu0
    %v823 = vadd.f32 %v579, %v822
    %824 = vmatprep.mubr.bf16.mxu0 0
    %825 = vmatmul.mubr.bf16.gmra.mxu0 %v518
    %v826 = vpop.f32.mrf.mxu0
    %v827 = vadd.f32 %v575, %v826
    %v828 = vpop.f32.mrf.mxu0
    %v829 = vadd.f32 %v579, %v828
    %v830 = vpop.f32.mrf.mxu0
    %v831 = vadd.f32 %v575, %v830
    %v832 = vpop.f32.mrf.mxu0
    %v833 = vadd.f32 %v579, %v832
    %834 = vmatprep.mubr.bf16.mxu0 0
    %835 = vmatmul.mubr.bf16.gmra.mxu0 %v519
    %v836 = vpop.f32.mrf.mxu0
    %v837 = vadd.f32 %v575, %v836
    %v838 = vpop.f32.mrf.mxu0
    %v839 = vadd.f32 %v579, %v838
    %v840 = vpop.f32.mrf.mxu0
    %v841 = vadd.f32 %v575, %v840
    %v842 = vpop.f32.mrf.mxu0
    %v843 = vadd.f32 %v579, %v842
    %844 = vmatprep.mubr.bf16.mxu0 0
    %845 = vmatmul.mubr.bf16.gmra.mxu0 %v520
    %v846 = vpop.f32.mrf.mxu0
    %v847 = vadd.f32 %v575, %v846
    %v848 = vpop.f32.mrf.mxu0
    %v849 = vadd.f32 %v579, %v848
    %v850 = vpop.f32.mrf.mxu0
    %v851 = vadd.f32 %v575, %v850
    %v852 = vpop.f32.mrf.mxu0
    %v853 = vadd.f32 %v579, %v852
    %854 = vmatprep.mubr.bf16.mxu0 0
    %855 = vmatmul.mubr.bf16.gmra.mxu0 %v521
    %v856 = vpop.f32.mrf.mxu0
    %v857 = vadd.f32 %v575, %v856
    %v858 = vpop.f32.mrf.mxu0
    %v859 = vadd.f32 %v579, %v858
    %v860 = vpop.f32.mrf.mxu0
    %v861 = vadd.f32 %v575, %v860
    %v862 = vpop.f32.mrf.mxu0
    %v863 = vadd.f32 %v579, %v862
    %864 = vmatprep.mubr.bf16.mxu0 0
    %865 = vmatmul.mubr.bf16.gmra.mxu0 %v522
    %v866 = vpop.f32.mrf.mxu0
    %v867 = vadd.f32 %v575, %v866
    %v868 = vpop.f32.mrf.mxu0
    %v869 = vadd.f32 %v579, %v868
    %v870 = vpop.f32.mrf.mxu0
    %v871 = vadd.f32 %v575, %v870
    %v872 = vpop.f32.mrf.mxu0
    %v873 = vadd.f32 %v579, %v872
    %874 = vmatprep.mubr.bf16.mxu0 0
    %875 = vmatmul.mubr.bf16.gmra.mxu0 %v523
    %v876 = vpop.f32.mrf.mxu0
    %v877 = vadd.f32 %v575, %v876
    %v878 = vpop.f32.mrf.mxu0
    %v879 = vadd.f32 %v579, %v878
    %v880 = vpop.f32.mrf.mxu0
    %v881 = vadd.f32 %v575, %v880
    %v882 = vpop.f32.mrf.mxu0
    %v883 = vadd.f32 %v579, %v882
    %884 = vmatprep.mubr.bf16.mxu0 0
    %885 = vmatmul.mubr.bf16.gmra.mxu0 %v524
    %v886 = vpop.f32.mrf.mxu0
    %v887 = vadd.f32 %v575, %v886
    %v888 = vpop.f32.mrf.mxu0
    %v889 = vadd.f32 %v579, %v888
    %v890 = vpop.f32.mrf.mxu0
    %v891 = vadd.f32 %v575, %v890
    %v892 = vpop.f32.mrf.mxu0
    %v893 = vadd.f32 %v579, %v892
    %894 = vmatprep.mubr.bf16.mxu0 0
    %895 = vmatmul.mubr.bf16.gmra.mxu0 %v525
    %v896 = vpop.f32.mrf.mxu0
    %v897 = vadd.f32 %v575, %v896
    %v898 = vpop.f32.mrf.mxu0
    %v899 = vadd.f32 %v579, %v898
    %v900 = vpop.f32.mrf.mxu0
    %v901 = vadd.f32 %v575, %v900
    %v902 = vpop.f32.mrf.mxu0
    %v903 = vadd.f32 %v579, %v902
    %904 = vmatprep.mubr.bf16.mxu0 0
    %905 = vmatmul.mubr.bf16.gmra.mxu0 %v526
    %v906 = vpop.f32.mrf.mxu0
    %v907 = vadd.f32 %v575, %v906
    %v908 = vpop.f32.mrf.mxu0
    %v909 = vadd.f32 %v579, %v908
    %v910 = vpop.f32.mrf.mxu0
    %v911 = vadd.f32 %v575, %v910
    %v912 = vpop.f32.mrf.mxu0
    %v913 = vadd.f32 %v579, %v912
    %914 = vmatprep.mubr.bf16.mxu0 0
    %915 = vmatmul.mubr.bf16.gmra.mxu0 %v527
    %v916 = vpop.f32.mrf.mxu0
    %v917 = vadd.f32 %v575, %v916
    %v918 = vpop.f32.mrf.mxu0
    %v919 = vadd.f32 %v579, %v918
    %v920 = vpop.f32.mrf.mxu0
    %v921 = vadd.f32 %v575, %v920
    %v922 = vpop.f32.mrf.mxu0
    %v923 = vadd.f32 %v579, %v922
    %924 = vmatprep.mubr.bf16.mxu0 0
    %925 = vmatmul.mubr.bf16.gmra.mxu0 %v528
    %v926 = vpop.f32.mrf.mxu0
    %v927 = vadd.f32 %v575, %v926
    %v928 = vpop.f32.mrf.mxu0
    %v929 = vadd.f32 %v579, %v928
    %v930 = vpop.f32.mrf.mxu0
    %v931 = vadd.f32 %v575, %v930
    %v932 = vpop.f32.mrf.mxu0
    %v933 = vadd.f32 %v579, %v932
    %934 = vmatprep.mubr.bf16.mxu0 0
    %935 = vmatmul.mubr.bf16.gmra.mxu0 %v529
    %v936 = vpop.f32.mrf.mxu0
    %v937 = vadd.f32 %v575, %v936
    %v938 = vpop.f32.mrf.mxu0
    %v939 = vadd.f32 %v579, %v938
    %v940 = vpop.f32.mrf.mxu0
    %v941 = vadd.f32 %v575, %v940
    %v942 = vpop.f32.mrf.mxu0
    %v943 = vadd.f32 %v579, %v942
    %944 = vmatprep.mubr.bf16.mxu0 0
    %945 = vmatmul.mubr.bf16.gmra.mxu0 %v530
    %v946 = vpop.f32.mrf.mxu0
    %v947 = vadd.f32 %v575, %v946
    %v948 = vpop.f32.mrf.mxu0
    %v949 = vadd.f32 %v579, %v948
    %v950 = vpop.f32.mrf.mxu0
    %v951 = vadd.f32 %v575, %v950
    %v952 = vpop.f32.mrf.mxu0
    %v953 = vadd.f32 %v579, %v952
    %954 = vmatprep.mubr.bf16.mxu0 0
    %955 = vmatmul.mubr.bf16.gmra.mxu0 %v531
    %v956 = vpop.f32.mrf.mxu0
    %v957 = vadd.f32 %v575, %v956
    %v958 = vpop.f32.mrf.mxu0
    %v959 = vadd.f32 %v579, %v958
    %v960 = vpop.f32.mrf.mxu0
    %v961 = vadd.f32 %v575, %v960
    %v962 = vpop.f32.mrf.mxu0
    %v963 = vadd.f32 %v579, %v962
    %964 = vmatprep.mubr.bf16.mxu0 0
    %965 = vmatmul.mubr.bf16.gmra.mxu0 %v532
    %v966 = vpop.f32.mrf.mxu0
    %v967 = vadd.f32 %v575, %v966
    %v968 = vpop.f32.mrf.mxu0
    %v969 = vadd.f32 %v579, %v968
    %v970 = vpop.f32.mrf.mxu0
    %v971 = vadd.f32 %v575, %v970
    %v972 = vpop.f32.mrf.mxu0
    %v973 = vadd.f32 %v579, %v972
    %974 = vmatprep.mubr.bf16.mxu0 0
    %975 = vmatmul.mubr.bf16.gmra.mxu0 %v533
    %v976 = vpop.f32.mrf.mxu0
    %v977 = vadd.f32 %v575, %v976
    %v978 = vpop.f32.mrf.mxu0
    %v979 = vadd.f32 %v579, %v978
    %v980 = vpop.f32.mrf.mxu0
    %v981 = vadd.f32 %v575, %v980
    %v982 = vpop.f32.mrf.mxu0
    %v983 = vadd.f32 %v579, %v982
    %984 = vmatprep.mubr.bf16.mxu0 0
    %985 = vmatmul.mubr.bf16.gmra.mxu0 %v534
    %v986 = vpop.f32.mrf.mxu0
    %v987 = vadd.f32 %v575, %v986
    %v988 = vpop.f32.mrf.mxu0
    %v989 = vadd.f32 %v579, %v988
    %v990 = vpop.f32.mrf.mxu0
    %v991 = vadd.f32 %v575, %v990
    %v992 = vpop.f32.mrf.mxu0
    %v993 = vadd.f32 %v579, %v992
    %994 = vmatprep.mubr.bf16.mxu0 0
    %995 = vmatmul.mubr.bf16.gmra.mxu0 %v535
    %v996 = vpop.f32.mrf.mxu0
    %v997 = vadd.f32 %v575, %v996
    %v998 = vpop.f32.mrf.mxu0
    %v999 = vadd.f32 %v579, %v998
    %v1000 = vpop.f32.mrf.mxu0
    %v1001 = vadd.f32 %v575, %v1000
    %v1002 = vpop.f32.mrf.mxu0
    %v1003 = vadd.f32 %v579, %v1002
    %1004 = vmatprep.mubr.bf16.mxu0 0
    %1005 = vmatmul.mubr.bf16.gmra.mxu0 %v536
    %v1006 = vpop.f32.mrf.mxu0
    %v1007 = vadd.f32 %v575, %v1006
    %v1008 = vpop.f32.mrf.mxu0
    %v1009 = vadd.f32 %v579, %v1008
    %v1010 = vpop.f32.mrf.mxu0
    %v1011 = vadd.f32 %v575, %v1010
    %v1012 = vpop.f32.mrf.mxu0
    %v1013 = vadd.f32 %v579, %v1012
    %1014 = vmatprep.mubr.bf16.mxu0 0
    %1015 = vmatmul.mubr.bf16.gmra.mxu0 %v537
    %v1016 = vpop.f32.mrf.mxu0
    %v1017 = vadd.f32 %v575, %v1016
    %v1018 = vpop.f32.mrf.mxu0
    %v1019 = vadd.f32 %v579, %v1018
    %v1020 = vpop.f32.mrf.mxu0
    %v1021 = vadd.f32 %v575, %v1020
    %v1022 = vpop.f32.mrf.mxu0
    %v1023 = vadd.f32 %v579, %v1022
    %1024 = vdwg.mxu0
    %1025 = vmatprep.subr.bf16.mxu0 %v719
    %1026 = vmatpush1.bf16.msra.mxu0 %v718
    %1027 = vmatprep.subr.bf16.mxu0 %v715
    %1028 = vmatpush1.bf16.msra.mxu0 %v714
    %1029 = vmatprep.subr.bf16.mxu0 %v711
    %1030 = vmatpush1.bf16.msra.mxu0 %v710
    %1031 = vmatprep.subr.bf16.mxu0 %v707
    %1032 = vmatpush1.bf16.msra.mxu0 %v706
    %1033 = vmatprep.subr.bf16.mxu0 %v703
    %1034 = vmatpush1.bf16.msra.mxu0 %v702
    %1035 = vmatprep.subr.bf16.mxu0 %v699
    %1036 = vmatpush1.bf16.msra.mxu0 %v698
    %1037 = vmatprep.subr.bf16.mxu0 %v695
    %1038 = vmatpush1.bf16.msra.mxu0 %v694
    %1039 = vmatprep.subr.bf16.mxu0 %v691
    %1040 = vmatpush1.bf16.msra.mxu0 %v690
    %1041 = vmatprep.subr.bf16.mxu0 0
    %1042 = vmatpush2.bf16.msra.mxu0 0
    %1043 = vmatprep.subr.bf16.mxu0 0
    %1044 = vmatpush2.bf16.msra.mxu0 0
    %1045 = vmatprep.subr.bf16.mxu0 0
    %1046 = vmatpush2.bf16.msra.mxu0 0
    %1047 = vmatprep.subr.bf16.mxu0 0
    %1048 = vmatpush2.bf16.msra.mxu0 0
    %1049 = vmatprep.subr.bf16.mxu0 0
    %1050 = vmatpush2.bf16.msra.mxu0 0
    %1051 = vmatprep.subr.bf16.mxu0 0
    %1052 = vmatpush2.bf16.msra.mxu0 0
    %1053 = vmatprep.subr.bf16.mxu0 0
    %1054 = vmatpush2.bf16.msra.mxu0 0
    %1055 = vmatprep.subr.bf16.mxu0 0
    %1056 = vmatpush2.bf16.msra.mxu0 0
    %1057 = vmatprep.mubr.bf16.mxu0 0
    %1058 = vmatmul.mubr.bf16.gmra.mxu0 %v514
    %v1059 = vpop.f32.mrf.mxu0
    %v1060 = vadd.f32 %v583, %v1059
    %v1061 = vpop.f32.mrf.mxu0
    %v1062 = vadd.f32 %v587, %v1061
    %v1063 = vpop.f32.mrf.mxu0
    %v1064 = vadd.f32 %v583, %v1063
    %v1065 = vpop.f32.mrf.mxu0
    %v1066 = vadd.f32 %v587, %v1065
    %1067 = vmatprep.mubr.bf16.mxu0 0
    %1068 = vmatmul.mubr.bf16.gmra.mxu0 %v515
    %v1069 = vpop.f32.mrf.mxu0
    %v1070 = vadd.f32 %v583, %v1069
    %v1071 = vpop.f32.mrf.mxu0
    %v1072 = vadd.f32 %v587, %v1071
    %v1073 = vpop.f32.mrf.mxu0
    %v1074 = vadd.f32 %v583, %v1073
    %v1075 = vpop.f32.mrf.mxu0
    %v1076 = vadd.f32 %v587, %v1075
    %1077 = vmatprep.mubr.bf16.mxu0 0
    %1078 = vmatmul.mubr.bf16.gmra.mxu0 %v516
    %v1079 = vpop.f32.mrf.mxu0
    %v1080 = vadd.f32 %v583, %v1079
    %v1081 = vpop.f32.mrf.mxu0
    %v1082 = vadd.f32 %v587, %v1081
    %v1083 = vpop.f32.mrf.mxu0
    %v1084 = vadd.f32 %v583, %v1083
    %v1085 = vpop.f32.mrf.mxu0
    %v1086 = vadd.f32 %v587, %v1085
    %1087 = vmatprep.mubr.bf16.mxu0 0
    %1088 = vmatmul.mubr.bf16.gmra.mxu0 %v517
    %v1089 = vpop.f32.mrf.mxu0
    %v1090 = vadd.f32 %v583, %v1089
    %v1091 = vpop.f32.mrf.mxu0
    %v1092 = vadd.f32 %v587, %v1091
    %v1093 = vpop.f32.mrf.mxu0
    %v1094 = vadd.f32 %v583, %v1093
    %v1095 = vpop.f32.mrf.mxu0
    %v1096 = vadd.f32 %v587, %v1095
    %1097 = vmatprep.mubr.bf16.mxu0 0
    %1098 = vmatmul.mubr.bf16.gmra.mxu0 %v518
    %v1099 = vpop.f32.mrf.mxu0
    %v1100 = vadd.f32 %v583, %v1099
    %v1101 = vpop.f32.mrf.mxu0
    %v1102 = vadd.f32 %v587, %v1101
    %v1103 = vpop.f32.mrf.mxu0
    %v1104 = vadd.f32 %v583, %v1103
    %v1105 = vpop.f32.mrf.mxu0
    %v1106 = vadd.f32 %v587, %v1105
    %1107 = vmatprep.mubr.bf16.mxu0 0
    %1108 = vmatmul.mubr.bf16.gmra.mxu0 %v519
    %v1109 = vpop.f32.mrf.mxu0
    %v1110 = vadd.f32 %v583, %v1109
    %v1111 = vpop.f32.mrf.mxu0
    %v1112 = vadd.f32 %v587, %v1111
    %v1113 = vpop.f32.mrf.mxu0
    %v1114 = vadd.f32 %v583, %v1113
    %v1115 = vpop.f32.mrf.mxu0
    %v1116 = vadd.f32 %v587, %v1115
    %1117 = vmatprep.mubr.bf16.mxu0 0
    %1118 = vmatmul.mubr.bf16.gmra.mxu0 %v520
    %v1119 = vpop.f32.mrf.mxu0
    %v1120 = vadd.f32 %v583, %v1119
    %v1121 = vpop.f32.mrf.mxu0
    %v1122 = vadd.f32 %v587, %v1121
    %v1123 = vpop.f32.mrf.mxu0
    %v1124 = vadd.f32 %v583, %v1123
    %v1125 = vpop.f32.mrf.mxu0
    %v1126 = vadd.f32 %v587, %v1125
    %1127 = vmatprep.mubr.bf16.mxu0 0
    %1128 = vmatmul.mubr.bf16.gmra.mxu0 %v521
    %v1129 = vpop.f32.mrf.mxu0
    %v1130 = vadd.f32 %v583, %v1129
    %v1131 = vpop.f32.mrf.mxu0
    %v1132 = vadd.f32 %v587, %v1131
    %v1133 = vpop.f32.mrf.mxu0
    %v1134 = vadd.f32 %v583, %v1133
    %v1135 = vpop.f32.mrf.mxu0
    %v1136 = vadd.f32 %v587, %v1135
    %1137 = vmatprep.mubr.bf16.mxu0 0
    %1138 = vmatmul.mubr.bf16.gmra.mxu0 %v522
    %v1139 = vpop.f32.mrf.mxu0
    %v1140 = vadd.f32 %v583, %v1139
    %v1141 = vpop.f32.mrf.mxu0
    %v1142 = vadd.f32 %v587, %v1141
    %v1143 = vpop.f32.mrf.mxu0
    %v1144 = vadd.f32 %v583, %v1143
    %v1145 = vpop.f32.mrf.mxu0
    %v1146 = vadd.f32 %v587, %v1145
    %1147 = vmatprep.mubr.bf16.mxu0 0
    %1148 = vmatmul.mubr.bf16.gmra.mxu0 %v523
    %v1149 = vpop.f32.mrf.mxu0
    %v1150 = vadd.f32 %v583, %v1149
    %v1151 = vpop.f32.mrf.mxu0
    %v1152 = vadd.f32 %v587, %v1151
    %v1153 = vpop.f32.mrf.mxu0
    %v1154 = vadd.f32 %v583, %v1153
    %v1155 = vpop.f32.mrf.mxu0
    %v1156 = vadd.f32 %v587, %v1155
    %1157 = vmatprep.mubr.bf16.mxu0 0
    %1158 = vmatmul.mubr.bf16.gmra.mxu0 %v524
    %v1159 = vpop.f32.mrf.mxu0
    %v1160 = vadd.f32 %v583, %v1159
    %v1161 = vpop.f32.mrf.mxu0
    %v1162 = vadd.f32 %v587, %v1161
    %v1163 = vpop.f32.mrf.mxu0
    %v1164 = vadd.f32 %v583, %v1163
    %v1165 = vpop.f32.mrf.mxu0
    %v1166 = vadd.f32 %v587, %v1165
    %1167 = vmatprep.mubr.bf16.mxu0 0
    %1168 = vmatmul.mubr.bf16.gmra.mxu0 %v525
    %v1169 = vpop.f32.mrf.mxu0
    %v1170 = vadd.f32 %v583, %v1169
    %v1171 = vpop.f32.mrf.mxu0
    %v1172 = vadd.f32 %v587, %v1171
    %v1173 = vpop.f32.mrf.mxu0
    %v1174 = vadd.f32 %v583, %v1173
    %v1175 = vpop.f32.mrf.mxu0
    %v1176 = vadd.f32 %v587, %v1175
    %1177 = vmatprep.mubr.bf16.mxu0 0
    %1178 = vmatmul.mubr.bf16.gmra.mxu0 %v526
    %v1179 = vpop.f32.mrf.mxu0
    %v1180 = vadd.f32 %v583, %v1179
    %v1181 = vpop.f32.mrf.mxu0
    %v1182 = vadd.f32 %v587, %v1181
    %v1183 = vpop.f32.mrf.mxu0
    %v1184 = vadd.f32 %v583, %v1183
    %v1185 = vpop.f32.mrf.mxu0
    %v1186 = vadd.f32 %v587, %v1185
    %1187 = vmatprep.mubr.bf16.mxu0 0
    %1188 = vmatmul.mubr.bf16.gmra.mxu0 %v527
    %v1189 = vpop.f32.mrf.mxu0
    %v1190 = vadd.f32 %v583, %v1189
    %v1191 = vpop.f32.mrf.mxu0
    %v1192 = vadd.f32 %v587, %v1191
    %v1193 = vpop.f32.mrf.mxu0
    %v1194 = vadd.f32 %v583, %v1193
    %v1195 = vpop.f32.mrf.mxu0
    %v1196 = vadd.f32 %v587, %v1195
    %1197 = vmatprep.mubr.bf16.mxu0 0
    %1198 = vmatmul.mubr.bf16.gmra.mxu0 %v528
    %v1199 = vpop.f32.mrf.mxu0
    %v1200 = vadd.f32 %v583, %v1199
    %v1201 = vpop.f32.mrf.mxu0
    %v1202 = vadd.f32 %v587, %v1201
    %v1203 = vpop.f32.mrf.mxu0
    %v1204 = vadd.f32 %v583, %v1203
    %v1205 = vpop.f32.mrf.mxu0
    %v1206 = vadd.f32 %v587, %v1205
    %1207 = vmatprep.mubr.bf16.mxu0 0
    %1208 = vmatmul.mubr.bf16.gmra.mxu0 %v529
    %v1209 = vpop.f32.mrf.mxu0
    %v1210 = vadd.f32 %v583, %v1209
    %v1211 = vpop.f32.mrf.mxu0
    %v1212 = vadd.f32 %v587, %v1211
    %v1213 = vpop.f32.mrf.mxu0
    %v1214 = vadd.f32 %v583, %v1213
    %v1215 = vpop.f32.mrf.mxu0
    %v1216 = vadd.f32 %v587, %v1215
    %1217 = vmatprep.mubr.bf16.mxu0 0
    %1218 = vmatmul.mubr.bf16.gmra.mxu0 %v530
    %v1219 = vpop.f32.mrf.mxu0
    %v1220 = vadd.f32 %v583, %v1219
    %v1221 = vpop.f32.mrf.mxu0
    %v1222 = vadd.f32 %v587, %v1221
    %v1223 = vpop.f32.mrf.mxu0
    %v1224 = vadd.f32 %v583, %v1223
    %v1225 = vpop.f32.mrf.mxu0
    %v1226 = vadd.f32 %v587, %v1225
    %1227 = vmatprep.mubr.bf16.mxu0 0
    %1228 = vmatmul.mubr.bf16.gmra.mxu0 %v531
    %v1229 = vpop.f32.mrf.mxu0
    %v1230 = vadd.f32 %v583, %v1229
    %v1231 = vpop.f32.mrf.mxu0
    %v1232 = vadd.f32 %v587, %v1231
    %v1233 = vpop.f32.mrf.mxu0
    %v1234 = vadd.f32 %v583, %v1233
    %v1235 = vpop.f32.mrf.mxu0
    %v1236 = vadd.f32 %v587, %v1235
    %1237 = vmatprep.mubr.bf16.mxu0 0
    %1238 = vmatmul.mubr.bf16.gmra.mxu0 %v532
    %v1239 = vpop.f32.mrf.mxu0
    %v1240 = vadd.f32 %v583, %v1239
    %v1241 = vpop.f32.mrf.mxu0
    %v1242 = vadd.f32 %v587, %v1241
    %v1243 = vpop.f32.mrf.mxu0
    %v1244 = vadd.f32 %v583, %v1243
    %v1245 = vpop.f32.mrf.mxu0
    %v1246 = vadd.f32 %v587, %v1245
    %1247 = vmatprep.mubr.bf16.mxu0 0
    %1248 = vmatmul.mubr.bf16.gmra.mxu0 %v533
    %v1249 = vpop.f32.mrf.mxu0
    %v1250 = vadd.f32 %v583, %v1249
    %v1251 = vpop.f32.mrf.mxu0
    %v1252 = vadd.f32 %v587, %v1251
    %v1253 = vpop.f32.mrf.mxu0
    %v1254 = vadd.f32 %v583, %v1253
    %v1255 = vpop.f32.mrf.mxu0
    %v1256 = vadd.f32 %v587, %v1255
    %1257 = vmatprep.mubr.bf16.mxu0 0
    %1258 = vmatmul.mubr.bf16.gmra.mxu0 %v534
    %v1259 = vpop.f32.mrf.mxu0
    %v1260 = vadd.f32 %v583, %v1259
    %v1261 = vpop.f32.mrf.mxu0
    %v1262 = vadd.f32 %v587, %v1261
    %v1263 = vpop.f32.mrf.mxu0
    %v1264 = vadd.f32 %v583, %v1263
    %v1265 = vpop.f32.mrf.mxu0
    %v1266 = vadd.f32 %v587, %v1265
    %1267 = vmatprep.mubr.bf16.mxu0 0
    %1268 = vmatmul.mubr.bf16.gmra.mxu0 %v535
    %v1269 = vpop.f32.mrf.mxu0
    %v1270 = vadd.f32 %v583, %v1269
    %v1271 = vpop.f32.mrf.mxu0
    %v1272 = vadd.f32 %v587, %v1271
    %v1273 = vpop.f32.mrf.mxu0
    %v1274 = vadd.f32 %v583, %v1273
    %v1275 = vpop.f32.mrf.mxu0
    %v1276 = vadd.f32 %v587, %v1275
    %1277 = vmatprep.mubr.bf16.mxu0 0
    %1278 = vmatmul.mubr.bf16.gmra.mxu0 %v536
    %v1279 = vpop.f32.mrf.mxu0
    %v1280 = vadd.f32 %v583, %v1279
    %v1281 = vpop.f32.mrf.mxu0
    %v1282 = vadd.f32 %v587, %v1281
    %v1283 = vpop.f32.mrf.mxu0
    %v1284 = vadd.f32 %v583, %v1283
    %v1285 = vpop.f32.mrf.mxu0
    %v1286 = vadd.f32 %v587, %v1285
    %1287 = vmatprep.mubr.bf16.mxu0 0
    %1288 = vmatmul.mubr.bf16.gmra.mxu0 %v537
    %v1289 = vpop.f32.mrf.mxu0
    %v1290 = vadd.f32 %v583, %v1289
    %v1291 = vpop.f32.mrf.mxu0
    %v1292 = vadd.f32 %v587, %v1291
    %v1293 = vpop.f32.mrf.mxu0
    %v1294 = vadd.f32 %v583, %v1293
    %v1295 = vpop.f32.mrf.mxu0
    %v1296 = vadd.f32 %v587, %v1295
    %1297 = vdwg.mxu0
    %v1298 = vmax.f32 %v787, 0.0
    %v1299 = vmax.f32 %v789, 0.0
    %v1300 = vmax.f32 %v1060, 0.0
    %v1301 = vmax.f32 %v1062, 0.0
    %v1302 = vmax.f32 %v791, 0.0
    %v1303 = vmax.f32 %v793, 0.0
    %v1304 = vmax.f32 %v1064, 0.0
    %v1305 = vmax.f32 %v1066, 0.0
    %v1306 = vmax.f32 %v797, 0.0
    %v1307 = vmax.f32 %v799, 0.0
    %v1308 = vmax.f32 %v1070, 0.0
    %v1309 = vmax.f32 %v1072, 0.0
    %v1310 = vmax.f32 %v801, 0.0
    %v1311 = vmax.f32 %v803, 0.0
    %v1312 = vmax.f32 %v1074, 0.0
    %v1313 = vmax.f32 %v1076, 0.0
    %v1314 = vmax.f32 %v807, 0.0
    %v1315 = vmax.f32 %v809, 0.0
    %v1316 = vmax.f32 %v1080, 0.0
    %v1317 = vmax.f32 %v1082, 0.0
    %v1318 = vmax.f32 %v811, 0.0
    %v1319 = vmax.f32 %v813, 0.0
    %v1320 = vmax.f32 %v1084, 0.0
    %v1321 = vmax.f32 %v1086, 0.0
    %v1322 = vmax.f32 %v817, 0.0
    %v1323 = vmax.f32 %v819, 0.0
    %v1324 = vmax.f32 %v1090, 0.0
    %v1325 = vmax.f32 %v1092, 0.0
    %v1326 = vmax.f32 %v821, 0.0
    %v1327 = vmax.f32 %v823, 0.0
    %v1328 = vmax.f32 %v1094, 0.0
    %v1329 = vmax.f32 %v1096, 0.0
    %v1330 = vmax.f32 %v827, 0.0
    %v1331 = vmax.f32 %v829, 0.0
    %v1332 = vmax.f32 %v1100, 0.0
    %v1333 = vmax.f32 %v1102, 0.0
    %v1334 = vmax.f32 %v831, 0.0
    %v1335 = vmax.f32 %v833, 0.0
    %v1336 = vmax.f32 %v1104, 0.0
    %v1337 = vmax.f32 %v1106, 0.0
    %v1338 = vmax.f32 %v837, 0.0
    %v1339 = vmax.f32 %v839, 0.0
    %v1340 = vmax.f32 %v1110, 0.0
    %v1341 = vmax.f32 %v1112, 0.0
    %v1342 = vmax.f32 %v841, 0.0
    %v1343 = vmax.f32 %v843, 0.0
    %v1344 = vmax.f32 %v1114, 0.0
    %v1345 = vmax.f32 %v1116, 0.0
    %v1346 = vmax.f32 %v847, 0.0
    %v1347 = vmax.f32 %v849, 0.0
    %v1348 = vmax.f32 %v1120, 0.0
    %v1349 = vmax.f32 %v1122, 0.0
    %v1350 = vmax.f32 %v851, 0.0
    %v1351 = vmax.f32 %v853, 0.0
    %v1352 = vmax.f32 %v1124, 0.0
    %v1353 = vmax.f32 %v1126, 0.0
    %v1354 = vmax.f32 %v857, 0.0
    %v1355 = vmax.f32 %v859, 0.0
    %v1356 = vmax.f32 %v1130, 0.0
    %v1357 = vmax.f32 %v1132, 0.0
    %v1358 = vmax.f32 %v861, 0.0
    %v1359 = vmax.f32 %v863, 0.0
    %v1360 = vmax.f32 %v1134, 0.0
    %v1361 = vmax.f32 %v1136, 0.0
    %v1362 = vmax.f32 %v867, 0.0
    %v1363 = vmax.f32 %v869, 0.0
    %v1364 = vmax.f32 %v1140, 0.0
    %v1365 = vmax.f32 %v1142, 0.0
    %v1366 = vmax.f32 %v871, 0.0
    %v1367 = vmax.f32 %v873, 0.0
    %v1368 = vmax.f32 %v1144, 0.0
    %v1369 = vmax.f32 %v1146, 0.0
    %v1370 = vmax.f32 %v877, 0.0
    %v1371 = vmax.f32 %v879, 0.0
    %v1372 = vmax.f32 %v1150, 0.0
    %v1373 = vmax.f32 %v1152, 0.0
    %v1374 = vmax.f32 %v881, 0.0
    %v1375 = vmax.f32 %v883, 0.0
    %v1376 = vmax.f32 %v1154, 0.0
    %v1377 = vmax.f32 %v1156, 0.0
    %v1378 = vmax.f32 %v887, 0.0
    %v1379 = vmax.f32 %v889, 0.0
    %v1380 = vmax.f32 %v1160, 0.0
    %v1381 = vmax.f32 %v1162, 0.0
    %v1382 = vmax.f32 %v891, 0.0
    %v1383 = vmax.f32 %v893, 0.0
    %v1384 = vmax.f32 %v1164, 0.0
    %v1385 = vmax.f32 %v1166, 0.0
    %v1386 = vmax.f32 %v897, 0.0
    %v1387 = vmax.f32 %v899, 0.0
    %v1388 = vmax.f32 %v1170, 0.0
    %v1389 = vmax.f32 %v1172, 0.0
    %v1390 = vmax.f32 %v901, 0.0
    %v1391 = vmax.f32 %v903, 0.0
    %v1392 = vmax.f32 %v1174, 0.0
    %v1393 = vmax.f32 %v1176, 0.0
    %v1394 = vmax.f32 %v907, 0.0
    %v1395 = vmax.f32 %v909, 0.0
    %v1396 = vmax.f32 %v1180, 0.0
    %v1397 = vmax.f32 %v1182, 0.0
    %v1398 = vmax.f32 %v911, 0.0
    %v1399 = vmax.f32 %v913, 0.0
    %v1400 = vmax.f32 %v1184, 0.0
    %v1401 = vmax.f32 %v1186, 0.0
    %v1402 = vmax.f32 %v917, 0.0
    %v1403 = vmax.f32 %v919, 0.0
    %v1404 = vmax.f32 %v1190, 0.0
    %v1405 = vmax.f32 %v1192, 0.0
    %v1406 = vmax.f32 %v921, 0.0
    %v1407 = vmax.f32 %v923, 0.0
    %v1408 = vmax.f32 %v1194, 0.0
    %v1409 = vmax.f32 %v1196, 0.0
    %v1410 = vmax.f32 %v927, 0.0
    %v1411 = vmax.f32 %v929, 0.0
    %v1412 = vmax.f32 %v1200, 0.0
    %v1413 = vmax.f32 %v1202, 0.0
    %v1414 = vmax.f32 %v931, 0.0
    %v1415 = vmax.f32 %v933, 0.0
    %v1416 = vmax.f32 %v1204, 0.0
    %v1417 = vmax.f32 %v1206, 0.0
    %v1418 = vmax.f32 %v937, 0.0
    %v1419 = vmax.f32 %v939, 0.0
    %v1420 = vmax.f32 %v1210, 0.0
    %v1421 = vmax.f32 %v1212, 0.0
    %v1422 = vmax.f32 %v941, 0.0
    %v1423 = vmax.f32 %v943, 0.0
    %v1424 = vmax.f32 %v1214, 0.0
    %v1425 = vmax.f32 %v1216, 0.0
    %v1426 = vmax.f32 %v947, 0.0
    %v1427 = vmax.f32 %v949, 0.0
    %v1428 = vmax.f32 %v1220, 0.0
    %v1429 = vmax.f32 %v1222, 0.0
    %v1430 = vmax.f32 %v951, 0.0
    %v1431 = vmax.f32 %v953, 0.0
    %v1432 = vmax.f32 %v1224, 0.0
    %v1433 = vmax.f32 %v1226, 0.0
    %v1434 = vmax.f32 %v957, 0.0
    %v1435 = vmax.f32 %v959, 0.0
    %v1436 = vmax.f32 %v1230, 0.0
    %v1437 = vmax.f32 %v1232, 0.0
    %v1438 = vmax.f32 %v961, 0.0
    %v1439 = vmax.f32 %v963, 0.0
    %v1440 = vmax.f32 %v1234, 0.0
    %v1441 = vmax.f32 %v1236, 0.0
    %v1442 = vmax.f32 %v967, 0.0
    %v1443 = vmax.f32 %v969, 0.0
    %v1444 = vmax.f32 %v1240, 0.0
    %v1445 = vmax.f32 %v1242, 0.0
    %v1446 = vmax.f32 %v971, 0.0
    %v1447 = vmax.f32 %v973, 0.0
    %v1448 = vmax.f32 %v1244, 0.0
    %v1449 = vmax.f32 %v1246, 0.0
    %v1450 = vmax.f32 %v977, 0.0
    %v1451 = vmax.f32 %v979, 0.0
    %v1452 = vmax.f32 %v1250, 0.0
    %v1453 = vmax.f32 %v1252, 0.0
    %v1454 = vmax.f32 %v981, 0.0
    %v1455 = vmax.f32 %v983, 0.0
    %v1456 = vmax.f32 %v1254, 0.0
    %v1457 = vmax.f32 %v1256, 0.0
    %v1458 = vmax.f32 %v987, 0.0
    %v1459 = vmax.f32 %v989, 0.0
    %v1460 = vmax.f32 %v1260, 0.0
    %v1461 = vmax.f32 %v1262, 0.0
    %v1462 = vmax.f32 %v991, 0.0
    %v1463 = vmax.f32 %v993, 0.0
    %v1464 = vmax.f32 %v1264, 0.0
    %v1465 = vmax.f32 %v1266, 0.0
    %v1466 = vmax.f32 %v997, 0.0
    %v1467 = vmax.f32 %v999, 0.0
    %v1468 = vmax.f32 %v1270, 0.0
    %v1469 = vmax.f32 %v1272, 0.0
    %v1470 = vmax.f32 %v1001, 0.0
    %v1471 = vmax.f32 %v1003, 0.0
    %v1472 = vmax.f32 %v1274, 0.0
    %v1473 = vmax.f32 %v1276, 0.0
    %v1474 = vmax.f32 %v1007, 0.0
    %v1475 = vmax.f32 %v1009, 0.0
    %v1476 = vmax.f32 %v1280, 0.0
    %v1477 = vmax.f32 %v1282, 0.0
    %v1478 = vmax.f32 %v1011, 0.0
    %v1479 = vmax.f32 %v1013, 0.0
    %v1480 = vmax.f32 %v1284, 0.0
    %v1481 = vmax.f32 %v1286, 0.0
    %v1482 = vmax.f32 %v1017, 0.0
    %v1483 = vmax.f32 %v1019, 0.0
    %v1484 = vmax.f32 %v1290, 0.0
    %v1485 = vmax.f32 %v1292, 0.0
    %v1486 = vmax.f32 %v1021, 0.0
    %v1487 = vmax.f32 %v1023, 0.0
    %v1488 = vmax.f32 %v1294, 0.0
    %v1489 = vmax.f32 %v1296, 0.0
    %v1490 = vpack.c.bf16 %v1302, %v1298
    %v1491 = vpack.c.bf16 %v1303, %v1299
    %v1492 = vpack.c.bf16 %v1304, %v1300
    %v1493 = vpack.c.bf16 %v1305, %v1301
    %v1494 = vpack.c.bf16 %v1310, %v1306
    %v1495 = vpack.c.bf16 %v1311, %v1307
    %v1496 = vpack.c.bf16 %v1312, %v1308
    %v1497 = vpack.c.bf16 %v1313, %v1309
    %v1498 = vpack.c.bf16 %v1318, %v1314
    %v1499 = vpack.c.bf16 %v1319, %v1315
    %v1500 = vpack.c.bf16 %v1320, %v1316
    %v1501 = vpack.c.bf16 %v1321, %v1317
    %v1502 = vpack.c.bf16 %v1326, %v1322
    %v1503 = vpack.c.bf16 %v1327, %v1323
    %v1504 = vpack.c.bf16 %v1328, %v1324
    %v1505 = vpack.c.bf16 %v1329, %v1325
    %v1506 = vpack.c.bf16 %v1334, %v1330
    %v1507 = vpack.c.bf16 %v1335, %v1331
    %v1508 = vpack.c.bf16 %v1336, %v1332
    %v1509 = vpack.c.bf16 %v1337, %v1333
    %v1510 = vpack.c.bf16 %v1342, %v1338
    %v1511 = vpack.c.bf16 %v1343, %v1339
    %v1512 = vpack.c.bf16 %v1344, %v1340
    %v1513 = vpack.c.bf16 %v1345, %v1341
    %v1514 = vpack.c.bf16 %v1350, %v1346
    %v1515 = vpack.c.bf16 %v1351, %v1347
    %v1516 = vpack.c.bf16 %v1352, %v1348
    %v1517 = vpack.c.bf16 %v1353, %v1349
    %v1518 = vpack.c.bf16 %v1358, %v1354
    %v1519 = vpack.c.bf16 %v1359, %v1355
    %v1520 = vpack.c.bf16 %v1360, %v1356
    %v1521 = vpack.c.bf16 %v1361, %v1357
    %v1522 = vpack.c.bf16 %v1366, %v1362
    %v1523 = vpack.c.bf16 %v1367, %v1363
    %v1524 = vpack.c.bf16 %v1368, %v1364
    %v1525 = vpack.c.bf16 %v1369, %v1365
    %v1526 = vpack.c.bf16 %v1374, %v1370
    %v1527 = vpack.c.bf16 %v1375, %v1371
    %v1528 = vpack.c.bf16 %v1376, %v1372
    %v1529 = vpack.c.bf16 %v1377, %v1373
    %v1530 = vpack.c.bf16 %v1382, %v1378
    %v1531 = vpack.c.bf16 %v1383, %v1379
    %v1532 = vpack.c.bf16 %v1384, %v1380
    %v1533 = vpack.c.bf16 %v1385, %v1381
    %v1534 = vpack.c.bf16 %v1390, %v1386
    %v1535 = vpack.c.bf16 %v1391, %v1387
    %v1536 = vpack.c.bf16 %v1392, %v1388
    %v1537 = vpack.c.bf16 %v1393, %v1389
    %v1538 = vpack.c.bf16 %v1398, %v1394
    %v1539 = vpack.c.bf16 %v1399, %v1395
    %v1540 = vpack.c.bf16 %v1400, %v1396
    %v1541 = vpack.c.bf16 %v1401, %v1397
    %v1542 = vpack.c.bf16 %v1406, %v1402
    %v1543 = vpack.c.bf16 %v1407, %v1403
    %v1544 = vpack.c.bf16 %v1408, %v1404
    %v1545 = vpack.c.bf16 %v1409, %v1405
    %v1546 = vpack.c.bf16 %v1414, %v1410
    %v1547 = vpack.c.bf16 %v1415, %v1411
    %v1548 = vpack.c.bf16 %v1416, %v1412
    %v1549 = vpack.c.bf16 %v1417, %v1413
    %v1550 = vpack.c.bf16 %v1422, %v1418
    %v1551 = vpack.c.bf16 %v1423, %v1419
    %v1552 = vpack.c.bf16 %v1424, %v1420
    %v1553 = vpack.c.bf16 %v1425, %v1421
    %v1554 = vpack.c.bf16 %v1430, %v1426
    %v1555 = vpack.c.bf16 %v1431, %v1427
    %v1556 = vpack.c.bf16 %v1432, %v1428
    %v1557 = vpack.c.bf16 %v1433, %v1429
    %v1558 = vpack.c.bf16 %v1438, %v1434
    %v1559 = vpack.c.bf16 %v1439, %v1435
    %v1560 = vpack.c.bf16 %v1440, %v1436
    %v1561 = vpack.c.bf16 %v1441, %v1437
    %v1562 = vpack.c.bf16 %v1446, %v1442
    %v1563 = vpack.c.bf16 %v1447, %v1443
    %v1564 = vpack.c.bf16 %v1448, %v1444
    %v1565 = vpack.c.bf16 %v1449, %v1445
    %v1566 = vpack.c.bf16 %v1454, %v1450
    %v1567 = vpack.c.bf16 %v1455, %v1451
    %v1568 = vpack.c.bf16 %v1456, %v1452
    %v1569 = vpack.c.bf16 %v1457, %v1453
    %v1570 = vpack.c.bf16 %v1462, %v1458
    %v1571 = vpack.c.bf16 %v1463, %v1459
    %v1572 = vpack.c.bf16 %v1464, %v1460
    %v1573 = vpack.c.bf16 %v1465, %v1461
    %v1574 = vpack.c.bf16 %v1470, %v1466
    %v1575 = vpack.c.bf16 %v1471, %v1467
    %v1576 = vpack.c.bf16 %v1472, %v1468
    %v1577 = vpack.c.bf16 %v1473, %v1469
    %v1578 = vpack.c.bf16 %v1478, %v1474
    %v1579 = vpack.c.bf16 %v1479, %v1475
    %v1580 = vpack.c.bf16 %v1480, %v1476
    %v1581 = vpack.c.bf16 %v1481, %v1477
    %v1582 = vpack.c.bf16 %v1486, %v1482
    %v1583 = vpack.c.bf16 %v1487, %v1483
    %v1584 = vpack.c.bf16 %v1488, %v1484
    %v1585 = vpack.c.bf16 %v1489, %v1485
    %v1586 = vld [vmem:[#allocation2] sm:$0xff]
    %v1587 = vld [vmem:[#allocation2 + $0x8] sm:$0xff]
    %v1588 = vld [vmem:[#allocation2 + $0x10] sm:$0xff]
    %v1589 = vld [vmem:[#allocation2 + $0x18] sm:$0xff]
    %v1590 = vld [vmem:[#allocation2 + $0x20] sm:$0xff]
    %v1591 = vld [vmem:[#allocation2 + $0x28] sm:$0xff]
    %v1592 = vld [vmem:[#allocation2 + $0x30] sm:$0xff]
    %v1593 = vld [vmem:[#allocation2 + $0x38] sm:$0xff]
    %v1594 = vld [vmem:[#allocation2 + $0x40] sm:$0xff]
    %v1595 = vld [vmem:[#allocation2 + $0x48] sm:$0xff]
    %v1596 = vld [vmem:[#allocation2 + $0x50] sm:$0xff]
    %v1597 = vld [vmem:[#allocation2 + $0x58] sm:$0xff]
    %v1598 = vld [vmem:[#allocation2 + $0x60] sm:$0xff]
    %v1599 = vld [vmem:[#allocation2 + $0x68] sm:$0xff]
    %v1600 = vld [vmem:[#allocation2 + $0x70] sm:$0xff]
    %v1601 = vld [vmem:[#allocation2 + $0x78] sm:$0xff]
    %v1602 = vld [vmem:[#allocation2 + $0x80] sm:$0xff]
    %v1603 = vld [vmem:[#allocation2 + $0x88] sm:$0xff]
    %v1604 = vld [vmem:[#allocation2 + $0x90] sm:$0xff]
    %v1605 = vld [vmem:[#allocation2 + $0x98] sm:$0xff]
    %v1606 = vld [vmem:[#allocation2 + $0xa0] sm:$0xff]
    %v1607 = vld [vmem:[#allocation2 + $0xa8] sm:$0xff]
    %v1608 = vld [vmem:[#allocation2 + $0xb0] sm:$0xff]
    %v1609 = vld [vmem:[#allocation2 + $0xb8] sm:$0xff]
    %v1610 = vld [vmem:[#allocation2 + $0xc0] sm:$0xff]
    %v1611 = vld [vmem:[#allocation2 + $0xc8] sm:$0xff]
    %v1612 = vld [vmem:[#allocation2 + $0xd0] sm:$0xff]
    %v1613 = vld [vmem:[#allocation2 + $0xd8] sm:$0xff]
    %v1614 = vld [vmem:[#allocation2 + $0xe0] sm:$0xff]
    %v1615 = vld [vmem:[#allocation2 + $0xe8] sm:$0xff]
    %v1616 = vld [vmem:[#allocation2 + $0xf0] sm:$0xff]
    %v1617 = vld [vmem:[#allocation2 + $0xf8] sm:$0xff]
    %v1618 = vld [vmem:[#allocation2 + $0x100] sm:$0xff]
    %v1619 = vld [vmem:[#allocation2 + $0x108] sm:$0xff]
    %v1620 = vld [vmem:[#allocation2 + $0x110] sm:$0xff]
    %v1621 = vld [vmem:[#allocation2 + $0x118] sm:$0xff]
    %v1622 = vld [vmem:[#allocation2 + $0x120] sm:$0xff]
    %v1623 = vld [vmem:[#allocation2 + $0x128] sm:$0xff]
    %v1624 = vld [vmem:[#allocation2 + $0x130] sm:$0xff]
    %v1625 = vld [vmem:[#allocation2 + $0x138] sm:$0xff]
    %v1626 = vld [vmem:[#allocation2 + $0x140] sm:$0xff]
    %v1627 = vld [vmem:[#allocation2 + $0x148] sm:$0xff]
    %v1628 = vld [vmem:[#allocation2 + $0x150] sm:$0xff]
    %v1629 = vld [vmem:[#allocation2 + $0x158] sm:$0xff]
    %v1630 = vld [vmem:[#allocation2 + $0x160] sm:$0xff]
    %v1631 = vld [vmem:[#allocation2 + $0x168] sm:$0xff]
    %v1632 = vld [vmem:[#allocation2 + $0x170] sm:$0xff]
    %v1633 = vld [vmem:[#allocation2 + $0x178] sm:$0xff]
    %v1634 = vld [vmem:[#allocation2 + $0x180] sm:$0xff]
    %v1635 = vld [vmem:[#allocation2 + $0x188] sm:$0xff]
    %v1636 = vld [vmem:[#allocation2 + $0x190] sm:$0xff]
    %v1637 = vld [vmem:[#allocation2 + $0x198] sm:$0xff]
    %v1638 = vld [vmem:[#allocation2 + $0x1a0] sm:$0xff]
    %v1639 = vld [vmem:[#allocation2 + $0x1a8] sm:$0xff]
    %v1640 = vld [vmem:[#allocation2 + $0x1b0] sm:$0xff]
    %v1641 = vld [vmem:[#allocation2 + $0x1b8] sm:$0xff]
    %v1642 = vld [vmem:[#allocation2 + $0x1c0] sm:$0xff]
    %v1643 = vld [vmem:[#allocation2 + $0x1c8] sm:$0xff]
    %v1644 = vld [vmem:[#allocation2 + $0x1d0] sm:$0xff]
    %v1645 = vld [vmem:[#allocation2 + $0x1d8] sm:$0xff]
    %v1646 = vld [vmem:[#allocation2 + $0x1e0] sm:$0xff]
    %v1647 = vld [vmem:[#allocation2 + $0x1e8] sm:$0xff]
    %v1648 = vld [vmem:[#allocation2 + $0x1f0] sm:$0xff]
    %v1649 = vld [vmem:[#allocation2 + $0x1f8] sm:$0xff]
    %v1650 = vld [vmem:[#allocation2 + $0x200] sm:$0xff]
    %v1651 = vld [vmem:[#allocation2 + $0x208] sm:$0xff]
    %v1652 = vld [vmem:[#allocation2 + $0x210] sm:$0xff]
    %v1653 = vld [vmem:[#allocation2 + $0x218] sm:$0xff]
    %v1654 = vld [vmem:[#allocation2 + $0x220] sm:$0xff]
    %v1655 = vld [vmem:[#allocation2 + $0x228] sm:$0xff]
    %v1656 = vld [vmem:[#allocation2 + $0x230] sm:$0xff]
    %v1657 = vld [vmem:[#allocation2 + $0x238] sm:$0xff]
    %v1658 = vld [vmem:[#allocation2 + $0x240] sm:$0xff]
    %v1659 = vld [vmem:[#allocation2 + $0x248] sm:$0xff]
    %v1660 = vld [vmem:[#allocation2 + $0x250] sm:$0xff]
    %v1661 = vld [vmem:[#allocation2 + $0x258] sm:$0xff]
    %v1662 = vld [vmem:[#allocation2 + $0x260] sm:$0xff]
    %v1663 = vld [vmem:[#allocation2 + $0x268] sm:$0xff]
    %v1664 = vld [vmem:[#allocation2 + $0x270] sm:$0xff]
    %v1665 = vld [vmem:[#allocation2 + $0x278] sm:$0xff]
    %v1666 = vld [vmem:[#allocation2 + $0x280] sm:$0xff]
    %v1667 = vld [vmem:[#allocation2 + $0x288] sm:$0xff]
    %v1668 = vld [vmem:[#allocation2 + $0x290] sm:$0xff]
    %v1669 = vld [vmem:[#allocation2 + $0x298] sm:$0xff]
    %v1670 = vld [vmem:[#allocation2 + $0x2a0] sm:$0xff]
    %v1671 = vld [vmem:[#allocation2 + $0x2a8] sm:$0xff]
    %v1672 = vld [vmem:[#allocation2 + $0x2b0] sm:$0xff]
    %v1673 = vld [vmem:[#allocation2 + $0x2b8] sm:$0xff]
    %v1674 = vld [vmem:[#allocation2 + $0x2c0] sm:$0xff]
    %v1675 = vld [vmem:[#allocation2 + $0x2c8] sm:$0xff]
    %v1676 = vld [vmem:[#allocation2 + $0x2d0] sm:$0xff]
    %v1677 = vld [vmem:[#allocation2 + $0x2d8] sm:$0xff]
    %v1678 = vld [vmem:[#allocation2 + $0x2e0] sm:$0xff]
    %v1679 = vld [vmem:[#allocation2 + $0x2e8] sm:$0xff]
    %v1680 = vld [vmem:[#allocation2 + $0x2f0] sm:$0xff]
    %v1681 = vld [vmem:[#allocation2 + $0x2f8] sm:$0xff]
    %v1682 = vld [vmem:[#allocation2 + $0x300] sm:$0xff]
    %v1683 = vld [vmem:[#allocation2 + $0x308] sm:$0xff]
    %v1684 = vld [vmem:[#allocation2 + $0x310] sm:$0xff]
    %v1685 = vld [vmem:[#allocation2 + $0x318] sm:$0xff]
    %v1686 = vld [vmem:[#allocation2 + $0x320] sm:$0xff]
    %v1687 = vld [vmem:[#allocation2 + $0x328] sm:$0xff]
    %v1688 = vld [vmem:[#allocation2 + $0x330] sm:$0xff]
    %v1689 = vld [vmem:[#allocation2 + $0x338] sm:$0xff]
    %v1690 = vld [vmem:[#allocation2 + $0x340] sm:$0xff]
    %v1691 = vld [vmem:[#allocation2 + $0x348] sm:$0xff]
    %v1692 = vld [vmem:[#allocation2 + $0x350] sm:$0xff]
    %v1693 = vld [vmem:[#allocation2 + $0x358] sm:$0xff]
    %v1694 = vld [vmem:[#allocation2 + $0x360] sm:$0xff]
    %v1695 = vld [vmem:[#allocation2 + $0x368] sm:$0xff]
    %v1696 = vld [vmem:[#allocation2 + $0x370] sm:$0xff]
    %v1697 = vld [vmem:[#allocation2 + $0x378] sm:$0xff]
    %v1698 = vld [vmem:[#allocation2 + $0x380] sm:$0xff]
    %v1699 = vld [vmem:[#allocation2 + $0x388] sm:$0xff]
    %v1700 = vld [vmem:[#allocation2 + $0x390] sm:$0xff]
    %v1701 = vld [vmem:[#allocation2 + $0x398] sm:$0xff]
    %v1702 = vld [vmem:[#allocation2 + $0x3a0] sm:$0xff]
    %v1703 = vld [vmem:[#allocation2 + $0x3a8] sm:$0xff]
    %v1704 = vld [vmem:[#allocation2 + $0x3b0] sm:$0xff]
    %v1705 = vld [vmem:[#allocation2 + $0x3b8] sm:$0xff]
    %v1706 = vld [vmem:[#allocation2 + $0x3c0] sm:$0xff]
    %v1707 = vld [vmem:[#allocation2 + $0x3c8] sm:$0xff]
    %v1708 = vld [vmem:[#allocation2 + $0x3d0] sm:$0xff]
    %v1709 = vld [vmem:[#allocation2 + $0x3d8] sm:$0xff]
    %v1710 = vld [vmem:[#allocation2 + $0x3e0] sm:$0xff]
    %v1711 = vld [vmem:[#allocation2 + $0x3e8] sm:$0xff]
    %v1712 = vld [vmem:[#allocation2 + $0x3f0] sm:$0xff]
    %v1713 = vld [vmem:[#allocation2 + $0x3f8] sm:$0xff]
    %v1714 = vld [vmem:[#allocation2 + $0x400] sm:$0xff]
    %v1715 = vld [vmem:[#allocation2 + $0x408] sm:$0xff]
    %v1716 = vld [vmem:[#allocation2 + $0x410] sm:$0xff]
    %v1717 = vld [vmem:[#allocation2 + $0x418] sm:$0xff]
    %v1718 = vld [vmem:[#allocation2 + $0x420] sm:$0xff]
    %v1719 = vld [vmem:[#allocation2 + $0x428] sm:$0xff]
    %v1720 = vld [vmem:[#allocation2 + $0x430] sm:$0xff]
    %v1721 = vld [vmem:[#allocation2 + $0x438] sm:$0xff]
    %v1722 = vld [vmem:[#allocation2 + $0x440] sm:$0xff]
    %v1723 = vld [vmem:[#allocation2 + $0x448] sm:$0xff]
    %v1724 = vld [vmem:[#allocation2 + $0x450] sm:$0xff]
    %v1725 = vld [vmem:[#allocation2 + $0x458] sm:$0xff]
    %v1726 = vld [vmem:[#allocation2 + $0x460] sm:$0xff]
    %v1727 = vld [vmem:[#allocation2 + $0x468] sm:$0xff]
    %v1728 = vld [vmem:[#allocation2 + $0x470] sm:$0xff]
    %v1729 = vld [vmem:[#allocation2 + $0x478] sm:$0xff]
    %v1730 = vld [vmem:[#allocation2 + $0x480] sm:$0xff]
    %v1731 = vld [vmem:[#allocation2 + $0x488] sm:$0xff]
    %v1732 = vld [vmem:[#allocation2 + $0x490] sm:$0xff]
    %v1733 = vld [vmem:[#allocation2 + $0x498] sm:$0xff]
    %v1734 = vld [vmem:[#allocation2 + $0x4a0] sm:$0xff]
    %v1735 = vld [vmem:[#allocation2 + $0x4a8] sm:$0xff]
    %v1736 = vld [vmem:[#allocation2 + $0x4b0] sm:$0xff]
    %v1737 = vld [vmem:[#allocation2 + $0x4b8] sm:$0xff]
    %v1738 = vld [vmem:[#allocation2 + $0x4c0] sm:$0xff]
    %v1739 = vld [vmem:[#allocation2 + $0x4c8] sm:$0xff]
    %v1740 = vld [vmem:[#allocation2 + $0x4d0] sm:$0xff]
    %v1741 = vld [vmem:[#allocation2 + $0x4d8] sm:$0xff]
    %v1742 = vld [vmem:[#allocation2 + $0x4e0] sm:$0xff]
    %v1743 = vld [vmem:[#allocation2 + $0x4e8] sm:$0xff]
    %v1744 = vld [vmem:[#allocation2 + $0x4f0] sm:$0xff]
    %v1745 = vld [vmem:[#allocation2 + $0x4f8] sm:$0xff]
    %v1746 = vld [vmem:[#allocation2 + $0x500] sm:$0xff]
    %v1747 = vld [vmem:[#allocation2 + $0x508] sm:$0xff]
    %v1748 = vld [vmem:[#allocation2 + $0x510] sm:$0xff]
    %v1749 = vld [vmem:[#allocation2 + $0x518] sm:$0xff]
    %v1750 = vld [vmem:[#allocation2 + $0x520] sm:$0xff]
    %v1751 = vld [vmem:[#allocation2 + $0x528] sm:$0xff]
    %v1752 = vld [vmem:[#allocation2 + $0x530] sm:$0xff]
    %v1753 = vld [vmem:[#allocation2 + $0x538] sm:$0xff]
    %v1754 = vld [vmem:[#allocation2 + $0x540] sm:$0xff]
    %v1755 = vld [vmem:[#allocation2 + $0x548] sm:$0xff]
    %v1756 = vld [vmem:[#allocation2 + $0x550] sm:$0xff]
    %v1757 = vld [vmem:[#allocation2 + $0x558] sm:$0xff]
    %v1758 = vld [vmem:[#allocation2 + $0x560] sm:$0xff]
    %v1759 = vld [vmem:[#allocation2 + $0x568] sm:$0xff]
    %v1760 = vld [vmem:[#allocation2 + $0x570] sm:$0xff]
    %v1761 = vld [vmem:[#allocation2 + $0x578] sm:$0xff]
    %v1762 = vld [vmem:[#allocation2 + $0x580] sm:$0xff]
    %v1763 = vld [vmem:[#allocation2 + $0x588] sm:$0xff]
    %v1764 = vld [vmem:[#allocation2 + $0x590] sm:$0xff]
    %v1765 = vld [vmem:[#allocation2 + $0x598] sm:$0xff]
    %v1766 = vld [vmem:[#allocation2 + $0x5a0] sm:$0xff]
    %v1767 = vld [vmem:[#allocation2 + $0x5a8] sm:$0xff]
    %v1768 = vld [vmem:[#allocation2 + $0x5b0] sm:$0xff]
    %v1769 = vld [vmem:[#allocation2 + $0x5b8] sm:$0xff]
    %v1770 = vld [vmem:[#allocation2 + $0x5c0] sm:$0xff]
    %v1771 = vld [vmem:[#allocation2 + $0x5c8] sm:$0xff]
    %v1772 = vld [vmem:[#allocation2 + $0x5d0] sm:$0xff]
    %v1773 = vld [vmem:[#allocation2 + $0x5d8] sm:$0xff]
    %v1774 = vld [vmem:[#allocation2 + $0x5e0] sm:$0xff]
    %v1775 = vld [vmem:[#allocation2 + $0x5e8] sm:$0xff]
    %v1776 = vld [vmem:[#allocation2 + $0x5f0] sm:$0xff]
    %v1777 = vld [vmem:[#allocation2 + $0x5f8] sm:$0xff]
    %v1778 = vld [vmem:[#allocation2 + $0x600] sm:$0xff]
    %v1779 = vld [vmem:[#allocation2 + $0x608] sm:$0xff]
    %v1780 = vld [vmem:[#allocation2 + $0x610] sm:$0xff]
    %v1781 = vld [vmem:[#allocation2 + $0x618] sm:$0xff]
    %v1782 = vld [vmem:[#allocation2 + $0x620] sm:$0xff]
    %v1783 = vld [vmem:[#allocation2 + $0x628] sm:$0xff]
    %v1784 = vld [vmem:[#allocation2 + $0x630] sm:$0xff]
    %v1785 = vld [vmem:[#allocation2 + $0x638] sm:$0xff]
    %v1786 = vld [vmem:[#allocation2 + $0x640] sm:$0xff]
    %v1787 = vld [vmem:[#allocation2 + $0x648] sm:$0xff]
    %v1788 = vld [vmem:[#allocation2 + $0x650] sm:$0xff]
    %v1789 = vld [vmem:[#allocation2 + $0x658] sm:$0xff]
    %v1790 = vld [vmem:[#allocation2 + $0x660] sm:$0xff]
    %v1791 = vld [vmem:[#allocation2 + $0x668] sm:$0xff]
    %v1792 = vld [vmem:[#allocation2 + $0x670] sm:$0xff]
    %v1793 = vld [vmem:[#allocation2 + $0x678] sm:$0xff]
    %v1794 = vld [vmem:[#allocation2 + $0x680] sm:$0xff]
    %v1795 = vld [vmem:[#allocation2 + $0x688] sm:$0xff]
    %v1796 = vld [vmem:[#allocation2 + $0x690] sm:$0xff]
    %v1797 = vld [vmem:[#allocation2 + $0x698] sm:$0xff]
    %v1798 = vld [vmem:[#allocation2 + $0x6a0] sm:$0xff]
    %v1799 = vld [vmem:[#allocation2 + $0x6a8] sm:$0xff]
    %v1800 = vld [vmem:[#allocation2 + $0x6b0] sm:$0xff]
    %v1801 = vld [vmem:[#allocation2 + $0x6b8] sm:$0xff]
    %v1802 = vld [vmem:[#allocation2 + $0x6c0] sm:$0xff]
    %v1803 = vld [vmem:[#allocation2 + $0x6c8] sm:$0xff]
    %v1804 = vld [vmem:[#allocation2 + $0x6d0] sm:$0xff]
    %v1805 = vld [vmem:[#allocation2 + $0x6d8] sm:$0xff]
    %v1806 = vld [vmem:[#allocation2 + $0x6e0] sm:$0xff]
    %v1807 = vld [vmem:[#allocation2 + $0x6e8] sm:$0xff]
    %v1808 = vld [vmem:[#allocation2 + $0x6f0] sm:$0xff]
    %v1809 = vld [vmem:[#allocation2 + $0x6f8] sm:$0xff]
    %v1810 = vld [vmem:[#allocation2 + $0x700] sm:$0xff]
    %v1811 = vld [vmem:[#allocation2 + $0x708] sm:$0xff]
    %v1812 = vld [vmem:[#allocation2 + $0x710] sm:$0xff]
    %v1813 = vld [vmem:[#allocation2 + $0x718] sm:$0xff]
    %v1814 = vld [vmem:[#allocation2 + $0x720] sm:$0xff]
    %v1815 = vld [vmem:[#allocation2 + $0x728] sm:$0xff]
    %v1816 = vld [vmem:[#allocation2 + $0x730] sm:$0xff]
    %v1817 = vld [vmem:[#allocation2 + $0x738] sm:$0xff]
    %v1818 = vld [vmem:[#allocation2 + $0x740] sm:$0xff]
    %v1819 = vld [vmem:[#allocation2 + $0x748] sm:$0xff]
    %v1820 = vld [vmem:[#allocation2 + $0x750] sm:$0xff]
    %v1821 = vld [vmem:[#allocation2 + $0x758] sm:$0xff]
    %v1822 = vld [vmem:[#allocation2 + $0x760] sm:$0xff]
    %v1823 = vld [vmem:[#allocation2 + $0x768] sm:$0xff]
    %v1824 = vld [vmem:[#allocation2 + $0x770] sm:$0xff]
    %v1825 = vld [vmem:[#allocation2 + $0x778] sm:$0xff]
    %v1826 = vld [vmem:[#allocation2 + $0x780] sm:$0xff]
    %v1827 = vld [vmem:[#allocation2 + $0x788] sm:$0xff]
    %v1828 = vld [vmem:[#allocation2 + $0x790] sm:$0xff]
    %v1829 = vld [vmem:[#allocation2 + $0x798] sm:$0xff]
    %v1830 = vld [vmem:[#allocation2 + $0x7a0] sm:$0xff]
    %v1831 = vld [vmem:[#allocation2 + $0x7a8] sm:$0xff]
    %v1832 = vld [vmem:[#allocation2 + $0x7b0] sm:$0xff]
    %v1833 = vld [vmem:[#allocation2 + $0x7b8] sm:$0xff]
    %v1834 = vld [vmem:[#allocation2 + $0x7c0] sm:$0xff]
    %v1835 = vld [vmem:[#allocation2 + $0x7c8] sm:$0xff]
    %v1836 = vld [vmem:[#allocation2 + $0x7d0] sm:$0xff]
    %v1837 = vld [vmem:[#allocation2 + $0x7d8] sm:$0xff]
    %v1838 = vld [vmem:[#allocation2 + $0x7e0] sm:$0xff]
    %v1839 = vld [vmem:[#allocation2 + $0x7e8] sm:$0xff]
    %v1840 = vld [vmem:[#allocation2 + $0x7f0] sm:$0xff]
    %v1841 = vld [vmem:[#allocation2 + $0x7f8] sm:$0xff]
    %v1842 = vld [vmem:[%s6] sm:$0xff]
    %v1844 = vlaneseq
    %v1845 = vshrl.u32 %v1844, 7
    %v1846 = vsub.s32 0, %v1845
    %v1847 = vrot.slane %v1842, %v1846
    %v1848 = vlaneseq
    %v1849 = vshrl.u32 %v1848, 7
    %v1850 = vsub.s32 1, %v1849
    %v1851 = vrot.slane %v1842, %v1850
    %v1852 = vlaneseq
    %v1853 = vshrl.u32 %v1852, 7
    %v1854 = vsub.s32 2, %v1853
    %v1855 = vrot.slane %v1842, %v1854
    %v1856 = vlaneseq
    %v1857 = vshrl.u32 %v1856, 7
    %v1858 = vsub.s32 3, %v1857
    %v1859 = vrot.slane %v1842, %v1858
    %v1860 = vlaneseq
    %v1861 = vshrl.u32 %v1860, 7
    %v1862 = vsub.s32 4, %v1861
    %v1863 = vrot.slane %v1842, %v1862
    %v1864 = vlaneseq
    %v1865 = vshrl.u32 %v1864, 7
    %v1866 = vsub.s32 5, %v1865
    %v1867 = vrot.slane %v1842, %v1866
    %v1868 = vlaneseq
    %v1869 = vshrl.u32 %v1868, 7
    %v1870 = vsub.s32 6, %v1869
    %v1871 = vrot.slane %v1842, %v1870
    %v1872 = vlaneseq
    %v1873 = vshrl.u32 %v1872, 7
    %v1874 = vsub.s32 7, %v1873
    %v1875 = vrot.slane %v1842, %v1874
    %v2140 = vunpack.c.l.b16 %v1586
    %v2141 = vunpack.c.h.b16 %v1586
    %v2142 = vunpack.c.l.b16 %v1587
    %v2143 = vunpack.c.h.b16 %v1587
    %v2144 = vunpack.c.l.b16 %v1588
    %v2145 = vunpack.c.h.b16 %v1588
    %v2146 = vunpack.c.l.b16 %v1589
    %v2147 = vunpack.c.h.b16 %v1589
    %v2148 = vunpack.c.l.b16 %v1590
    %v2149 = vunpack.c.h.b16 %v1590
    %v2150 = vunpack.c.l.b16 %v1591
    %v2151 = vunpack.c.h.b16 %v1591
    %v2152 = vunpack.c.l.b16 %v1592
    %v2153 = vunpack.c.h.b16 %v1592
    %v2154 = vunpack.c.l.b16 %v1593
    %v2155 = vunpack.c.h.b16 %v1593
    %v2156 = vunpack.c.l.b16 %v1594
    %v2157 = vunpack.c.h.b16 %v1594
    %v2158 = vunpack.c.l.b16 %v1595
    %v2159 = vunpack.c.h.b16 %v1595
    %v2160 = vunpack.c.l.b16 %v1596
    %v2161 = vunpack.c.h.b16 %v1596
    %v2162 = vunpack.c.l.b16 %v1597
    %v2163 = vunpack.c.h.b16 %v1597
    %v2164 = vunpack.c.l.b16 %v1598
    %v2165 = vunpack.c.h.b16 %v1598
    %v2166 = vunpack.c.l.b16 %v1599
    %v2167 = vunpack.c.h.b16 %v1599
    %v2168 = vunpack.c.l.b16 %v1600
    %v2169 = vunpack.c.h.b16 %v1600
    %v2170 = vunpack.c.l.b16 %v1601
    %v2171 = vunpack.c.h.b16 %v1601
    %v2172 = vunpack.c.l.b16 %v1602
    %v2173 = vunpack.c.h.b16 %v1602
    %v2174 = vunpack.c.l.b16 %v1603
    %v2175 = vunpack.c.h.b16 %v1603
    %v2176 = vunpack.c.l.b16 %v1604
    %v2177 = vunpack.c.h.b16 %v1604
    %v2178 = vunpack.c.l.b16 %v1605
    %v2179 = vunpack.c.h.b16 %v1605
    %v2180 = vunpack.c.l.b16 %v1606
    %v2181 = vunpack.c.h.b16 %v1606
    %v2182 = vunpack.c.l.b16 %v1607
    %v2183 = vunpack.c.h.b16 %v1607
    %v2184 = vunpack.c.l.b16 %v1608
    %v2185 = vunpack.c.h.b16 %v1608
    %v2186 = vunpack.c.l.b16 %v1609
    %v2187 = vunpack.c.h.b16 %v1609
    %v2188 = vunpack.c.l.b16 %v1610
    %v2189 = vunpack.c.h.b16 %v1610
    %v2190 = vunpack.c.l.b16 %v1611
    %v2191 = vunpack.c.h.b16 %v1611
    %v2192 = vunpack.c.l.b16 %v1612
    %v2193 = vunpack.c.h.b16 %v1612
    %v2194 = vunpack.c.l.b16 %v1613
    %v2195 = vunpack.c.h.b16 %v1613
    %v2196 = vunpack.c.l.b16 %v1614
    %v2197 = vunpack.c.h.b16 %v1614
    %v2198 = vunpack.c.l.b16 %v1615
    %v2199 = vunpack.c.h.b16 %v1615
    %v2200 = vunpack.c.l.b16 %v1616
    %v2201 = vunpack.c.h.b16 %v1616
    %v2202 = vunpack.c.l.b16 %v1617
    %v2203 = vunpack.c.h.b16 %v1617
    %v2204 = vunpack.c.l.b16 %v1618
    %v2205 = vunpack.c.h.b16 %v1618
    %v2206 = vunpack.c.l.b16 %v1619
    %v2207 = vunpack.c.h.b16 %v1619
    %v2208 = vunpack.c.l.b16 %v1620
    %v2209 = vunpack.c.h.b16 %v1620
    %v2210 = vunpack.c.l.b16 %v1621
    %v2211 = vunpack.c.h.b16 %v1621
    %v2212 = vunpack.c.l.b16 %v1622
    %v2213 = vunpack.c.h.b16 %v1622
    %v2214 = vunpack.c.l.b16 %v1623
    %v2215 = vunpack.c.h.b16 %v1623
    %v2216 = vunpack.c.l.b16 %v1624
    %v2217 = vunpack.c.h.b16 %v1624
    %v2218 = vunpack.c.l.b16 %v1625
    %v2219 = vunpack.c.h.b16 %v1625
    %v2220 = vunpack.c.l.b16 %v1626
    %v2221 = vunpack.c.h.b16 %v1626
    %v2222 = vunpack.c.l.b16 %v1627
    %v2223 = vunpack.c.h.b16 %v1627
    %v2224 = vunpack.c.l.b16 %v1628
    %v2225 = vunpack.c.h.b16 %v1628
    %v2226 = vunpack.c.l.b16 %v1629
    %v2227 = vunpack.c.h.b16 %v1629
    %v2228 = vunpack.c.l.b16 %v1630
    %v2229 = vunpack.c.h.b16 %v1630
    %v2230 = vunpack.c.l.b16 %v1631
    %v2231 = vunpack.c.h.b16 %v1631
    %v2232 = vunpack.c.l.b16 %v1632
    %v2233 = vunpack.c.h.b16 %v1632
    %v2234 = vunpack.c.l.b16 %v1633
    %v2235 = vunpack.c.h.b16 %v1633
    %v2236 = vunpack.c.l.b16 %v1634
    %v2237 = vunpack.c.h.b16 %v1634
    %v2238 = vunpack.c.l.b16 %v1635
    %v2239 = vunpack.c.h.b16 %v1635
    %v2240 = vunpack.c.l.b16 %v1636
    %v2241 = vunpack.c.h.b16 %v1636
    %v2242 = vunpack.c.l.b16 %v1637
    %v2243 = vunpack.c.h.b16 %v1637
    %v2244 = vunpack.c.l.b16 %v1638
    %v2245 = vunpack.c.h.b16 %v1638
    %v2246 = vunpack.c.l.b16 %v1639
    %v2247 = vunpack.c.h.b16 %v1639
    %v2248 = vunpack.c.l.b16 %v1640
    %v2249 = vunpack.c.h.b16 %v1640
    %v2250 = vunpack.c.l.b16 %v1641
    %v2251 = vunpack.c.h.b16 %v1641
    %v2252 = vunpack.c.l.b16 %v1642
    %v2253 = vunpack.c.h.b16 %v1642
    %v2254 = vunpack.c.l.b16 %v1643
    %v2255 = vunpack.c.h.b16 %v1643
    %v2256 = vunpack.c.l.b16 %v1644
    %v2257 = vunpack.c.h.b16 %v1644
    %v2258 = vunpack.c.l.b16 %v1645
    %v2259 = vunpack.c.h.b16 %v1645
    %v2260 = vunpack.c.l.b16 %v1646
    %v2261 = vunpack.c.h.b16 %v1646
    %v2262 = vunpack.c.l.b16 %v1647
    %v2263 = vunpack.c.h.b16 %v1647
    %v2264 = vunpack.c.l.b16 %v1648
    %v2265 = vunpack.c.h.b16 %v1648
    %v2266 = vunpack.c.l.b16 %v1649
    %v2267 = vunpack.c.h.b16 %v1649
    %v2268 = vunpack.c.l.b16 %v1650
    %v2269 = vunpack.c.h.b16 %v1650
    %v2270 = vunpack.c.l.b16 %v1651
    %v2271 = vunpack.c.h.b16 %v1651
    %v2272 = vunpack.c.l.b16 %v1652
    %v2273 = vunpack.c.h.b16 %v1652
    %v2274 = vunpack.c.l.b16 %v1653
    %v2275 = vunpack.c.h.b16 %v1653
    %v2276 = vunpack.c.l.b16 %v1654
    %v2277 = vunpack.c.h.b16 %v1654
    %v2278 = vunpack.c.l.b16 %v1655
    %v2279 = vunpack.c.h.b16 %v1655
    %v2280 = vunpack.c.l.b16 %v1656
    %v2281 = vunpack.c.h.b16 %v1656
    %v2282 = vunpack.c.l.b16 %v1657
    %v2283 = vunpack.c.h.b16 %v1657
    %v2284 = vunpack.c.l.b16 %v1658
    %v2285 = vunpack.c.h.b16 %v1658
    %v2286 = vunpack.c.l.b16 %v1659
    %v2287 = vunpack.c.h.b16 %v1659
    %v2288 = vunpack.c.l.b16 %v1660
    %v2289 = vunpack.c.h.b16 %v1660
    %v2290 = vunpack.c.l.b16 %v1661
    %v2291 = vunpack.c.h.b16 %v1661
    %v2292 = vunpack.c.l.b16 %v1662
    %v2293 = vunpack.c.h.b16 %v1662
    %v2294 = vunpack.c.l.b16 %v1663
    %v2295 = vunpack.c.h.b16 %v1663
    %v2296 = vunpack.c.l.b16 %v1664
    %v2297 = vunpack.c.h.b16 %v1664
    %v2298 = vunpack.c.l.b16 %v1665
    %v2299 = vunpack.c.h.b16 %v1665
    %v2300 = vunpack.c.l.b16 %v1666
    %v2301 = vunpack.c.h.b16 %v1666
    %v2302 = vunpack.c.l.b16 %v1667
    %v2303 = vunpack.c.h.b16 %v1667
    %v2304 = vunpack.c.l.b16 %v1668
    %v2305 = vunpack.c.h.b16 %v1668
    %v2306 = vunpack.c.l.b16 %v1669
    %v2307 = vunpack.c.h.b16 %v1669
    %v2308 = vunpack.c.l.b16 %v1670
    %v2309 = vunpack.c.h.b16 %v1670
    %v2310 = vunpack.c.l.b16 %v1671
    %v2311 = vunpack.c.h.b16 %v1671
    %v2312 = vunpack.c.l.b16 %v1672
    %v2313 = vunpack.c.h.b16 %v1672
    %v2314 = vunpack.c.l.b16 %v1673
    %v2315 = vunpack.c.h.b16 %v1673
    %v2316 = vunpack.c.l.b16 %v1674
    %v2317 = vunpack.c.h.b16 %v1674
    %v2318 = vunpack.c.l.b16 %v1675
    %v2319 = vunpack.c.h.b16 %v1675
    %v2320 = vunpack.c.l.b16 %v1676
    %v2321 = vunpack.c.h.b16 %v1676
    %v2322 = vunpack.c.l.b16 %v1677
    %v2323 = vunpack.c.h.b16 %v1677
    %v2324 = vunpack.c.l.b16 %v1678
    %v2325 = vunpack.c.h.b16 %v1678
    %v2326 = vunpack.c.l.b16 %v1679
    %v2327 = vunpack.c.h.b16 %v1679
    %v2328 = vunpack.c.l.b16 %v1680
    %v2329 = vunpack.c.h.b16 %v1680
    %v2330 = vunpack.c.l.b16 %v1681
    %v2331 = vunpack.c.h.b16 %v1681
    %v2332 = vunpack.c.l.b16 %v1682
    %v2333 = vunpack.c.h.b16 %v1682
    %v2334 = vunpack.c.l.b16 %v1683
    %v2335 = vunpack.c.h.b16 %v1683
    %v2336 = vunpack.c.l.b16 %v1684
    %v2337 = vunpack.c.h.b16 %v1684
    %v2338 = vunpack.c.l.b16 %v1685
    %v2339 = vunpack.c.h.b16 %v1685
    %v2340 = vunpack.c.l.b16 %v1686
    %v2341 = vunpack.c.h.b16 %v1686
    %v2342 = vunpack.c.l.b16 %v1687
    %v2343 = vunpack.c.h.b16 %v1687
    %v2344 = vunpack.c.l.b16 %v1688
    %v2345 = vunpack.c.h.b16 %v1688
    %v2346 = vunpack.c.l.b16 %v1689
    %v2347 = vunpack.c.h.b16 %v1689
    %v2348 = vunpack.c.l.b16 %v1690
    %v2349 = vunpack.c.h.b16 %v1690
    %v2350 = vunpack.c.l.b16 %v1691
    %v2351 = vunpack.c.h.b16 %v1691
    %v2352 = vunpack.c.l.b16 %v1692
    %v2353 = vunpack.c.h.b16 %v1692
    %v2354 = vunpack.c.l.b16 %v1693
    %v2355 = vunpack.c.h.b16 %v1693
    %v2356 = vunpack.c.l.b16 %v1694
    %v2357 = vunpack.c.h.b16 %v1694
    %v2358 = vunpack.c.l.b16 %v1695
    %v2359 = vunpack.c.h.b16 %v1695
    %v2360 = vunpack.c.l.b16 %v1696
    %v2361 = vunpack.c.h.b16 %v1696
    %v2362 = vunpack.c.l.b16 %v1697
    %v2363 = vunpack.c.h.b16 %v1697
    %v2364 = vunpack.c.l.b16 %v1698
    %v2365 = vunpack.c.h.b16 %v1698
    %v2366 = vunpack.c.l.b16 %v1699
    %v2367 = vunpack.c.h.b16 %v1699
    %v2368 = vunpack.c.l.b16 %v1700
    %v2369 = vunpack.c.h.b16 %v1700
    %v2370 = vunpack.c.l.b16 %v1701
    %v2371 = vunpack.c.h.b16 %v1701
    %v2372 = vunpack.c.l.b16 %v1702
    %v2373 = vunpack.c.h.b16 %v1702
    %v2374 = vunpack.c.l.b16 %v1703
    %v2375 = vunpack.c.h.b16 %v1703
    %v2376 = vunpack.c.l.b16 %v1704
    %v2377 = vunpack.c.h.b16 %v1704
    %v2378 = vunpack.c.l.b16 %v1705
    %v2379 = vunpack.c.h.b16 %v1705
    %v2380 = vunpack.c.l.b16 %v1706
    %v2381 = vunpack.c.h.b16 %v1706
    %v2382 = vunpack.c.l.b16 %v1707
    %v2383 = vunpack.c.h.b16 %v1707
    %v2384 = vunpack.c.l.b16 %v1708
    %v2385 = vunpack.c.h.b16 %v1708
    %v2386 = vunpack.c.l.b16 %v1709
    %v2387 = vunpack.c.h.b16 %v1709
    %v2388 = vunpack.c.l.b16 %v1710
    %v2389 = vunpack.c.h.b16 %v1710
    %v2390 = vunpack.c.l.b16 %v1711
    %v2391 = vunpack.c.h.b16 %v1711
    %v2392 = vunpack.c.l.b16 %v1712
    %v2393 = vunpack.c.h.b16 %v1712
    %v2394 = vunpack.c.l.b16 %v1713
    %v2395 = vunpack.c.h.b16 %v1713
    %v2396 = vunpack.c.l.b16 %v1714
    %v2397 = vunpack.c.h.b16 %v1714
    %v2398 = vunpack.c.l.b16 %v1715
    %v2399 = vunpack.c.h.b16 %v1715
    %v2400 = vunpack.c.l.b16 %v1716
    %v2401 = vunpack.c.h.b16 %v1716
    %v2402 = vunpack.c.l.b16 %v1717
    %v2403 = vunpack.c.h.b16 %v1717
    %v2404 = vunpack.c.l.b16 %v1718
    %v2405 = vunpack.c.h.b16 %v1718
    %v2406 = vunpack.c.l.b16 %v1719
    %v2407 = vunpack.c.h.b16 %v1719
    %v2408 = vunpack.c.l.b16 %v1720
    %v2409 = vunpack.c.h.b16 %v1720
    %v2410 = vunpack.c.l.b16 %v1721
    %v2411 = vunpack.c.h.b16 %v1721
    %v2412 = vunpack.c.l.b16 %v1722
    %v2413 = vunpack.c.h.b16 %v1722
    %v2414 = vunpack.c.l.b16 %v1723
    %v2415 = vunpack.c.h.b16 %v1723
    %v2416 = vunpack.c.l.b16 %v1724
    %v2417 = vunpack.c.h.b16 %v1724
    %v2418 = vunpack.c.l.b16 %v1725
    %v2419 = vunpack.c.h.b16 %v1725
    %v2420 = vunpack.c.l.b16 %v1726
    %v2421 = vunpack.c.h.b16 %v1726
    %v2422 = vunpack.c.l.b16 %v1727
    %v2423 = vunpack.c.h.b16 %v1727
    %v2424 = vunpack.c.l.b16 %v1728
    %v2425 = vunpack.c.h.b16 %v1728
    %v2426 = vunpack.c.l.b16 %v1729
    %v2427 = vunpack.c.h.b16 %v1729
    %v2428 = vunpack.c.l.b16 %v1730
    %v2429 = vunpack.c.h.b16 %v1730
    %v2430 = vunpack.c.l.b16 %v1731
    %v2431 = vunpack.c.h.b16 %v1731
    %v2432 = vunpack.c.l.b16 %v1732
    %v2433 = vunpack.c.h.b16 %v1732
    %v2434 = vunpack.c.l.b16 %v1733
    %v2435 = vunpack.c.h.b16 %v1733
    %v2436 = vunpack.c.l.b16 %v1734
    %v2437 = vunpack.c.h.b16 %v1734
    %v2438 = vunpack.c.l.b16 %v1735
    %v2439 = vunpack.c.h.b16 %v1735
    %v2440 = vunpack.c.l.b16 %v1736
    %v2441 = vunpack.c.h.b16 %v1736
    %v2442 = vunpack.c.l.b16 %v1737
    %v2443 = vunpack.c.h.b16 %v1737
    %v2444 = vunpack.c.l.b16 %v1738
    %v2445 = vunpack.c.h.b16 %v1738
    %v2446 = vunpack.c.l.b16 %v1739
    %v2447 = vunpack.c.h.b16 %v1739
    %v2448 = vunpack.c.l.b16 %v1740
    %v2449 = vunpack.c.h.b16 %v1740
    %v2450 = vunpack.c.l.b16 %v1741
    %v2451 = vunpack.c.h.b16 %v1741
    %v2452 = vunpack.c.l.b16 %v1742
    %v2453 = vunpack.c.h.b16 %v1742
    %v2454 = vunpack.c.l.b16 %v1743
    %v2455 = vunpack.c.h.b16 %v1743
    %v2456 = vunpack.c.l.b16 %v1744
    %v2457 = vunpack.c.h.b16 %v1744
    %v2458 = vunpack.c.l.b16 %v1745
    %v2459 = vunpack.c.h.b16 %v1745
    %v2460 = vunpack.c.l.b16 %v1746
    %v2461 = vunpack.c.h.b16 %v1746
    %v2462 = vunpack.c.l.b16 %v1747
    %v2463 = vunpack.c.h.b16 %v1747
    %v2464 = vunpack.c.l.b16 %v1748
    %v2465 = vunpack.c.h.b16 %v1748
    %v2466 = vunpack.c.l.b16 %v1749
    %v2467 = vunpack.c.h.b16 %v1749
    %v2468 = vunpack.c.l.b16 %v1750
    %v2469 = vunpack.c.h.b16 %v1750
    %v2470 = vunpack.c.l.b16 %v1751
    %v2471 = vunpack.c.h.b16 %v1751
    %v2472 = vunpack.c.l.b16 %v1752
    %v2473 = vunpack.c.h.b16 %v1752
    %v2474 = vunpack.c.l.b16 %v1753
    %v2475 = vunpack.c.h.b16 %v1753
    %v2476 = vunpack.c.l.b16 %v1754
    %v2477 = vunpack.c.h.b16 %v1754
    %v2478 = vunpack.c.l.b16 %v1755
    %v2479 = vunpack.c.h.b16 %v1755
    %v2480 = vunpack.c.l.b16 %v1756
    %v2481 = vunpack.c.h.b16 %v1756
    %v2482 = vunpack.c.l.b16 %v1757
    %v2483 = vunpack.c.h.b16 %v1757
    %v2484 = vunpack.c.l.b16 %v1758
    %v2485 = vunpack.c.h.b16 %v1758
    %v2486 = vunpack.c.l.b16 %v1759
    %v2487 = vunpack.c.h.b16 %v1759
    %v2488 = vunpack.c.l.b16 %v1760
    %v2489 = vunpack.c.h.b16 %v1760
    %v2490 = vunpack.c.l.b16 %v1761
    %v2491 = vunpack.c.h.b16 %v1761
    %v2492 = vunpack.c.l.b16 %v1762
    %v2493 = vunpack.c.h.b16 %v1762
    %v2494 = vunpack.c.l.b16 %v1763
    %v2495 = vunpack.c.h.b16 %v1763
    %v2496 = vunpack.c.l.b16 %v1764
    %v2497 = vunpack.c.h.b16 %v1764
    %v2498 = vunpack.c.l.b16 %v1765
    %v2499 = vunpack.c.h.b16 %v1765
    %v2500 = vunpack.c.l.b16 %v1766
    %v2501 = vunpack.c.h.b16 %v1766
    %v2502 = vunpack.c.l.b16 %v1767
    %v2503 = vunpack.c.h.b16 %v1767
    %v2504 = vunpack.c.l.b16 %v1768
    %v2505 = vunpack.c.h.b16 %v1768
    %v2506 = vunpack.c.l.b16 %v1769
    %v2507 = vunpack.c.h.b16 %v1769
    %v2508 = vunpack.c.l.b16 %v1770
    %v2509 = vunpack.c.h.b16 %v1770
    %v2510 = vunpack.c.l.b16 %v1771
    %v2511 = vunpack.c.h.b16 %v1771
    %v2512 = vunpack.c.l.b16 %v1772
    %v2513 = vunpack.c.h.b16 %v1772
    %v2514 = vunpack.c.l.b16 %v1773
    %v2515 = vunpack.c.h.b16 %v1773
    %v2516 = vunpack.c.l.b16 %v1774
    %v2517 = vunpack.c.h.b16 %v1774
    %v2518 = vunpack.c.l.b16 %v1775
    %v2519 = vunpack.c.h.b16 %v1775
    %v2520 = vunpack.c.l.b16 %v1776
    %v2521 = vunpack.c.h.b16 %v1776
    %v2522 = vunpack.c.l.b16 %v1777
    %v2523 = vunpack.c.h.b16 %v1777
    %v2524 = vunpack.c.l.b16 %v1778
    %v2525 = vunpack.c.h.b16 %v1778
    %v2526 = vunpack.c.l.b16 %v1779
    %v2527 = vunpack.c.h.b16 %v1779
    %v2528 = vunpack.c.l.b16 %v1780
    %v2529 = vunpack.c.h.b16 %v1780
    %v2530 = vunpack.c.l.b16 %v1781
    %v2531 = vunpack.c.h.b16 %v1781
    %v2532 = vunpack.c.l.b16 %v1782
    %v2533 = vunpack.c.h.b16 %v1782
    %v2534 = vunpack.c.l.b16 %v1783
    %v2535 = vunpack.c.h.b16 %v1783
    %v2536 = vunpack.c.l.b16 %v1784
    %v2537 = vunpack.c.h.b16 %v1784
    %v2538 = vunpack.c.l.b16 %v1785
    %v2539 = vunpack.c.h.b16 %v1785
    %v2540 = vunpack.c.l.b16 %v1786
    %v2541 = vunpack.c.h.b16 %v1786
    %v2542 = vunpack.c.l.b16 %v1787
    %v2543 = vunpack.c.h.b16 %v1787
    %v2544 = vunpack.c.l.b16 %v1788
    %v2545 = vunpack.c.h.b16 %v1788
    %v2546 = vunpack.c.l.b16 %v1789
    %v2547 = vunpack.c.h.b16 %v1789
    %v2548 = vunpack.c.l.b16 %v1790
    %v2549 = vunpack.c.h.b16 %v1790
    %v2550 = vunpack.c.l.b16 %v1791
    %v2551 = vunpack.c.h.b16 %v1791
    %v2552 = vunpack.c.l.b16 %v1792
    %v2553 = vunpack.c.h.b16 %v1792
    %v2554 = vunpack.c.l.b16 %v1793
    %v2555 = vunpack.c.h.b16 %v1793
    %v2556 = vunpack.c.l.b16 %v1794
    %v2557 = vunpack.c.h.b16 %v1794
    %v2558 = vunpack.c.l.b16 %v1795
    %v2559 = vunpack.c.h.b16 %v1795
    %v2560 = vunpack.c.l.b16 %v1796
    %v2561 = vunpack.c.h.b16 %v1796
    %v2562 = vunpack.c.l.b16 %v1797
    %v2563 = vunpack.c.h.b16 %v1797
    %v2564 = vunpack.c.l.b16 %v1798
    %v2565 = vunpack.c.h.b16 %v1798
    %v2566 = vunpack.c.l.b16 %v1799
    %v2567 = vunpack.c.h.b16 %v1799
    %v2568 = vunpack.c.l.b16 %v1800
    %v2569 = vunpack.c.h.b16 %v1800
    %v2570 = vunpack.c.l.b16 %v1801
    %v2571 = vunpack.c.h.b16 %v1801
    %v2572 = vunpack.c.l.b16 %v1802
    %v2573 = vunpack.c.h.b16 %v1802
    %v2574 = vunpack.c.l.b16 %v1803
    %v2575 = vunpack.c.h.b16 %v1803
    %v2576 = vunpack.c.l.b16 %v1804
    %v2577 = vunpack.c.h.b16 %v1804
    %v2578 = vunpack.c.l.b16 %v1805
    %v2579 = vunpack.c.h.b16 %v1805
    %v2580 = vunpack.c.l.b16 %v1806
    %v2581 = vunpack.c.h.b16 %v1806
    %v2582 = vunpack.c.l.b16 %v1807
    %v2583 = vunpack.c.h.b16 %v1807
    %v2584 = vunpack.c.l.b16 %v1808
    %v2585 = vunpack.c.h.b16 %v1808
    %v2586 = vunpack.c.l.b16 %v1809
    %v2587 = vunpack.c.h.b16 %v1809
    %v2588 = vunpack.c.l.b16 %v1810
    %v2589 = vunpack.c.h.b16 %v1810
    %v2590 = vunpack.c.l.b16 %v1811
    %v2591 = vunpack.c.h.b16 %v1811
    %v2592 = vunpack.c.l.b16 %v1812
    %v2593 = vunpack.c.h.b16 %v1812
    %v2594 = vunpack.c.l.b16 %v1813
    %v2595 = vunpack.c.h.b16 %v1813
    %v2596 = vunpack.c.l.b16 %v1814
    %v2597 = vunpack.c.h.b16 %v1814
    %v2598 = vunpack.c.l.b16 %v1815
    %v2599 = vunpack.c.h.b16 %v1815
    %v2600 = vunpack.c.l.b16 %v1816
    %v2601 = vunpack.c.h.b16 %v1816
    %v2602 = vunpack.c.l.b16 %v1817
    %v2603 = vunpack.c.h.b16 %v1817
    %v2604 = vunpack.c.l.b16 %v1818
    %v2605 = vunpack.c.h.b16 %v1818
    %v2606 = vunpack.c.l.b16 %v1819
    %v2607 = vunpack.c.h.b16 %v1819
    %v2608 = vunpack.c.l.b16 %v1820
    %v2609 = vunpack.c.h.b16 %v1820
    %v2610 = vunpack.c.l.b16 %v1821
    %v2611 = vunpack.c.h.b16 %v1821
    %v2612 = vunpack.c.l.b16 %v1822
    %v2613 = vunpack.c.h.b16 %v1822
    %v2614 = vunpack.c.l.b16 %v1823
    %v2615 = vunpack.c.h.b16 %v1823
    %v2616 = vunpack.c.l.b16 %v1824
    %v2617 = vunpack.c.h.b16 %v1824
    %v2618 = vunpack.c.l.b16 %v1825
    %v2619 = vunpack.c.h.b16 %v1825
    %v2620 = vunpack.c.l.b16 %v1826
    %v2621 = vunpack.c.h.b16 %v1826
    %v2622 = vunpack.c.l.b16 %v1827
    %v2623 = vunpack.c.h.b16 %v1827
    %v2624 = vunpack.c.l.b16 %v1828
    %v2625 = vunpack.c.h.b16 %v1828
    %v2626 = vunpack.c.l.b16 %v1829
    %v2627 = vunpack.c.h.b16 %v1829
    %v2628 = vunpack.c.l.b16 %v1830
    %v2629 = vunpack.c.h.b16 %v1830
    %v2630 = vunpack.c.l.b16 %v1831
    %v2631 = vunpack.c.h.b16 %v1831
    %v2632 = vunpack.c.l.b16 %v1832
    %v2633 = vunpack.c.h.b16 %v1832
    %v2634 = vunpack.c.l.b16 %v1833
    %v2635 = vunpack.c.h.b16 %v1833
    %v2636 = vunpack.c.l.b16 %v1834
    %v2637 = vunpack.c.h.b16 %v1834
    %v2638 = vunpack.c.l.b16 %v1835
    %v2639 = vunpack.c.h.b16 %v1835
    %v2640 = vunpack.c.l.b16 %v1836
    %v2641 = vunpack.c.h.b16 %v1836
    %v2642 = vunpack.c.l.b16 %v1837
    %v2643 = vunpack.c.h.b16 %v1837
    %v2644 = vunpack.c.l.b16 %v1838
    %v2645 = vunpack.c.h.b16 %v1838
    %v2646 = vunpack.c.l.b16 %v1839
    %v2647 = vunpack.c.h.b16 %v1839
    %v2648 = vunpack.c.l.b16 %v1840
    %v2649 = vunpack.c.h.b16 %v1840
    %v2650 = vunpack.c.l.b16 %v1841
    %v2651 = vunpack.c.h.b16 %v1841
    %v2652 = vpack.c.b16 %v2148, %v2140
    %v2653 = vpack.c.b16 %v2149, %v2141
    %v2654 = vpack.c.b16 %v2150, %v2142
    %v2655 = vpack.c.b16 %v2151, %v2143
    %v2656 = vpack.c.b16 %v2152, %v2144
    %v2657 = vpack.c.b16 %v2153, %v2145
    %v2658 = vpack.c.b16 %v2154, %v2146
    %v2659 = vpack.c.b16 %v2155, %v2147
    %v2660 = vpack.c.b16 %v2164, %v2156
    %v2661 = vpack.c.b16 %v2165, %v2157
    %v2662 = vpack.c.b16 %v2166, %v2158
    %v2663 = vpack.c.b16 %v2167, %v2159
    %v2664 = vpack.c.b16 %v2168, %v2160
    %v2665 = vpack.c.b16 %v2169, %v2161
    %v2666 = vpack.c.b16 %v2170, %v2162
    %v2667 = vpack.c.b16 %v2171, %v2163
    %v2668 = vpack.c.b16 %v2180, %v2172
    %v2669 = vpack.c.b16 %v2181, %v2173
    %v2670 = vpack.c.b16 %v2182, %v2174
    %v2671 = vpack.c.b16 %v2183, %v2175
    %v2672 = vpack.c.b16 %v2184, %v2176
    %v2673 = vpack.c.b16 %v2185, %v2177
    %v2674 = vpack.c.b16 %v2186, %v2178
    %v2675 = vpack.c.b16 %v2187, %v2179
    %v2676 = vpack.c.b16 %v2196, %v2188
    %v2677 = vpack.c.b16 %v2197, %v2189
    %v2678 = vpack.c.b16 %v2198, %v2190
    %v2679 = vpack.c.b16 %v2199, %v2191
    %v2680 = vpack.c.b16 %v2200, %v2192
    %v2681 = vpack.c.b16 %v2201, %v2193
    %v2682 = vpack.c.b16 %v2202, %v2194
    %v2683 = vpack.c.b16 %v2203, %v2195
    %v2684 = vpack.c.b16 %v2212, %v2204
    %v2685 = vpack.c.b16 %v2213, %v2205
    %v2686 = vpack.c.b16 %v2214, %v2206
    %v2687 = vpack.c.b16 %v2215, %v2207
    %v2688 = vpack.c.b16 %v2216, %v2208
    %v2689 = vpack.c.b16 %v2217, %v2209
    %v2690 = vpack.c.b16 %v2218, %v2210
    %v2691 = vpack.c.b16 %v2219, %v2211
    %v2692 = vpack.c.b16 %v2228, %v2220
    %v2693 = vpack.c.b16 %v2229, %v2221
    %v2694 = vpack.c.b16 %v2230, %v2222
    %v2695 = vpack.c.b16 %v2231, %v2223
    %v2696 = vpack.c.b16 %v2232, %v2224
    %v2697 = vpack.c.b16 %v2233, %v2225
    %v2698 = vpack.c.b16 %v2234, %v2226
    %v2699 = vpack.c.b16 %v2235, %v2227
    %v2700 = vpack.c.b16 %v2244, %v2236
    %v2701 = vpack.c.b16 %v2245, %v2237
    %v2702 = vpack.c.b16 %v2246, %v2238
    %v2703 = vpack.c.b16 %v2247, %v2239
    %v2704 = vpack.c.b16 %v2248, %v2240
    %v2705 = vpack.c.b16 %v2249, %v2241
    %v2706 = vpack.c.b16 %v2250, %v2242
    %v2707 = vpack.c.b16 %v2251, %v2243
    %v2708 = vpack.c.b16 %v2260, %v2252
    %v2709 = vpack.c.b16 %v2261, %v2253
    %v2710 = vpack.c.b16 %v2262, %v2254
    %v2711 = vpack.c.b16 %v2263, %v2255
    %v2712 = vpack.c.b16 %v2264, %v2256
    %v2713 = vpack.c.b16 %v2265, %v2257
    %v2714 = vpack.c.b16 %v2266, %v2258
    %v2715 = vpack.c.b16 %v2267, %v2259
    %v2716 = vpack.c.b16 %v2276, %v2268
    %v2717 = vpack.c.b16 %v2277, %v2269
    %v2718 = vpack.c.b16 %v2278, %v2270
    %v2719 = vpack.c.b16 %v2279, %v2271
    %v2720 = vpack.c.b16 %v2280, %v2272
    %v2721 = vpack.c.b16 %v2281, %v2273
    %v2722 = vpack.c.b16 %v2282, %v2274
    %v2723 = vpack.c.b16 %v2283, %v2275
    %v2724 = vpack.c.b16 %v2292, %v2284
    %v2725 = vpack.c.b16 %v2293, %v2285
    %v2726 = vpack.c.b16 %v2294, %v2286
    %v2727 = vpack.c.b16 %v2295, %v2287
    %v2728 = vpack.c.b16 %v2296, %v2288
    %v2729 = vpack.c.b16 %v2297, %v2289
    %v2730 = vpack.c.b16 %v2298, %v2290
    %v2731 = vpack.c.b16 %v2299, %v2291
    %v2732 = vpack.c.b16 %v2308, %v2300
    %v2733 = vpack.c.b16 %v2309, %v2301
    %v2734 = vpack.c.b16 %v2310, %v2302
    %v2735 = vpack.c.b16 %v2311, %v2303
    %v2736 = vpack.c.b16 %v2312, %v2304
    %v2737 = vpack.c.b16 %v2313, %v2305
    %v2738 = vpack.c.b16 %v2314, %v2306
    %v2739 = vpack.c.b16 %v2315, %v2307
    %v2740 = vpack.c.b16 %v2324, %v2316
    %v2741 = vpack.c.b16 %v2325, %v2317
    %v2742 = vpack.c.b16 %v2326, %v2318
    %v2743 = vpack.c.b16 %v2327, %v2319
    %v2744 = vpack.c.b16 %v2328, %v2320
    %v2745 = vpack.c.b16 %v2329, %v2321
    %v2746 = vpack.c.b16 %v2330, %v2322
    %v2747 = vpack.c.b16 %v2331, %v2323
    %v2748 = vpack.c.b16 %v2340, %v2332
    %v2749 = vpack.c.b16 %v2341, %v2333
    %v2750 = vpack.c.b16 %v2342, %v2334
    %v2751 = vpack.c.b16 %v2343, %v2335
    %v2752 = vpack.c.b16 %v2344, %v2336
    %v2753 = vpack.c.b16 %v2345, %v2337
    %v2754 = vpack.c.b16 %v2346, %v2338
    %v2755 = vpack.c.b16 %v2347, %v2339
    %v2756 = vpack.c.b16 %v2356, %v2348
    %v2757 = vpack.c.b16 %v2357, %v2349
    %v2758 = vpack.c.b16 %v2358, %v2350
    %v2759 = vpack.c.b16 %v2359, %v2351
    %v2760 = vpack.c.b16 %v2360, %v2352
    %v2761 = vpack.c.b16 %v2361, %v2353
    %v2762 = vpack.c.b16 %v2362, %v2354
    %v2763 = vpack.c.b16 %v2363, %v2355
    %v2764 = vpack.c.b16 %v2372, %v2364
    %v2765 = vpack.c.b16 %v2373, %v2365
    %v2766 = vpack.c.b16 %v2374, %v2366
    %v2767 = vpack.c.b16 %v2375, %v2367
    %v2768 = vpack.c.b16 %v2376, %v2368
    %v2769 = vpack.c.b16 %v2377, %v2369
    %v2770 = vpack.c.b16 %v2378, %v2370
    %v2771 = vpack.c.b16 %v2379, %v2371
    %v2772 = vpack.c.b16 %v2388, %v2380
    %v2773 = vpack.c.b16 %v2389, %v2381
    %v2774 = vpack.c.b16 %v2390, %v2382
    %v2775 = vpack.c.b16 %v2391, %v2383
    %v2776 = vpack.c.b16 %v2392, %v2384
    %v2777 = vpack.c.b16 %v2393, %v2385
    %v2778 = vpack.c.b16 %v2394, %v2386
    %v2779 = vpack.c.b16 %v2395, %v2387
    %v2780 = vpack.c.b16 %v2404, %v2396
    %v2781 = vpack.c.b16 %v2405, %v2397
    %v2782 = vpack.c.b16 %v2406, %v2398
    %v2783 = vpack.c.b16 %v2407, %v2399
    %v2784 = vpack.c.b16 %v2408, %v2400
    %v2785 = vpack.c.b16 %v2409, %v2401
    %v2786 = vpack.c.b16 %v2410, %v2402
    %v2787 = vpack.c.b16 %v2411, %v2403
    %v2788 = vpack.c.b16 %v2420, %v2412
    %v2789 = vpack.c.b16 %v2421, %v2413
    %v2790 = vpack.c.b16 %v2422, %v2414
    %v2791 = vpack.c.b16 %v2423, %v2415
    %v2792 = vpack.c.b16 %v2424, %v2416
    %v2793 = vpack.c.b16 %v2425, %v2417
    %v2794 = vpack.c.b16 %v2426, %v2418
    %v2795 = vpack.c.b16 %v2427, %v2419
    %v2796 = vpack.c.b16 %v2436, %v2428
    %v2797 = vpack.c.b16 %v2437, %v2429
    %v2798 = vpack.c.b16 %v2438, %v2430
    %v2799 = vpack.c.b16 %v2439, %v2431
    %v2800 = vpack.c.b16 %v2440, %v2432
    %v2801 = vpack.c.b16 %v2441, %v2433
    %v2802 = vpack.c.b16 %v2442, %v2434
    %v2803 = vpack.c.b16 %v2443, %v2435
    %v2804 = vpack.c.b16 %v2452, %v2444
    %v2805 = vpack.c.b16 %v2453, %v2445
    %v2806 = vpack.c.b16 %v2454, %v2446
    %v2807 = vpack.c.b16 %v2455, %v2447
    %v2808 = vpack.c.b16 %v2456, %v2448
    %v2809 = vpack.c.b16 %v2457, %v2449
    %v2810 = vpack.c.b16 %v2458, %v2450
    %v2811 = vpack.c.b16 %v2459, %v2451
    %v2812 = vpack.c.b16 %v2468, %v2460
    %v2813 = vpack.c.b16 %v2469, %v2461
    %v2814 = vpack.c.b16 %v2470, %v2462
    %v2815 = vpack.c.b16 %v2471, %v2463
    %v2816 = vpack.c.b16 %v2472, %v2464
    %v2817 = vpack.c.b16 %v2473, %v2465
    %v2818 = vpack.c.b16 %v2474, %v2466
    %v2819 = vpack.c.b16 %v2475, %v2467
    %v2820 = vpack.c.b16 %v2484, %v2476
    %v2821 = vpack.c.b16 %v2485, %v2477
    %v2822 = vpack.c.b16 %v2486, %v2478
    %v2823 = vpack.c.b16 %v2487, %v2479
    %v2824 = vpack.c.b16 %v2488, %v2480
    %v2825 = vpack.c.b16 %v2489, %v2481
    %v2826 = vpack.c.b16 %v2490, %v2482
    %v2827 = vpack.c.b16 %v2491, %v2483
    %v2828 = vpack.c.b16 %v2500, %v2492
    %v2829 = vpack.c.b16 %v2501, %v2493
    %v2830 = vpack.c.b16 %v2502, %v2494
    %v2831 = vpack.c.b16 %v2503, %v2495
    %v2832 = vpack.c.b16 %v2504, %v2496
    %v2833 = vpack.c.b16 %v2505, %v2497
    %v2834 = vpack.c.b16 %v2506, %v2498
    %v2835 = vpack.c.b16 %v2507, %v2499
    %v2836 = vpack.c.b16 %v2516, %v2508
    %v2837 = vpack.c.b16 %v2517, %v2509
    %v2838 = vpack.c.b16 %v2518, %v2510
    %v2839 = vpack.c.b16 %v2519, %v2511
    %v2840 = vpack.c.b16 %v2520, %v2512
    %v2841 = vpack.c.b16 %v2521, %v2513
    %v2842 = vpack.c.b16 %v2522, %v2514
    %v2843 = vpack.c.b16 %v2523, %v2515
    %v2844 = vpack.c.b16 %v2532, %v2524
    %v2845 = vpack.c.b16 %v2533, %v2525
    %v2846 = vpack.c.b16 %v2534, %v2526
    %v2847 = vpack.c.b16 %v2535, %v2527
    %v2848 = vpack.c.b16 %v2536, %v2528
    %v2849 = vpack.c.b16 %v2537, %v2529
    %v2850 = vpack.c.b16 %v2538, %v2530
    %v2851 = vpack.c.b16 %v2539, %v2531
    %v2852 = vpack.c.b16 %v2548, %v2540
    %v2853 = vpack.c.b16 %v2549, %v2541
    %v2854 = vpack.c.b16 %v2550, %v2542
    %v2855 = vpack.c.b16 %v2551, %v2543
    %v2856 = vpack.c.b16 %v2552, %v2544
    %v2857 = vpack.c.b16 %v2553, %v2545
    %v2858 = vpack.c.b16 %v2554, %v2546
    %v2859 = vpack.c.b16 %v2555, %v2547
    %v2860 = vpack.c.b16 %v2564, %v2556
    %v2861 = vpack.c.b16 %v2565, %v2557
    %v2862 = vpack.c.b16 %v2566, %v2558
    %v2863 = vpack.c.b16 %v2567, %v2559
    %v2864 = vpack.c.b16 %v2568, %v2560
    %v2865 = vpack.c.b16 %v2569, %v2561
    %v2866 = vpack.c.b16 %v2570, %v2562
    %v2867 = vpack.c.b16 %v2571, %v2563
    %v2868 = vpack.c.b16 %v2580, %v2572
    %v2869 = vpack.c.b16 %v2581, %v2573
    %v2870 = vpack.c.b16 %v2582, %v2574
    %v2871 = vpack.c.b16 %v2583, %v2575
    %v2872 = vpack.c.b16 %v2584, %v2576
    %v2873 = vpack.c.b16 %v2585, %v2577
    %v2874 = vpack.c.b16 %v2586, %v2578
    %v2875 = vpack.c.b16 %v2587, %v2579
    %v2876 = vpack.c.b16 %v2596, %v2588
    %v2877 = vpack.c.b16 %v2597, %v2589
    %v2878 = vpack.c.b16 %v2598, %v2590
    %v2879 = vpack.c.b16 %v2599, %v2591
    %v2880 = vpack.c.b16 %v2600, %v2592
    %v2881 = vpack.c.b16 %v2601, %v2593
    %v2882 = vpack.c.b16 %v2602, %v2594
    %v2883 = vpack.c.b16 %v2603, %v2595
    %v2884 = vpack.c.b16 %v2612, %v2604
    %v2885 = vpack.c.b16 %v2613, %v2605
    %v2886 = vpack.c.b16 %v2614, %v2606
    %v2887 = vpack.c.b16 %v2615, %v2607
    %v2888 = vpack.c.b16 %v2616, %v2608
    %v2889 = vpack.c.b16 %v2617, %v2609
    %v2890 = vpack.c.b16 %v2618, %v2610
    %v2891 = vpack.c.b16 %v2619, %v2611
    %v2892 = vpack.c.b16 %v2628, %v2620
    %v2893 = vpack.c.b16 %v2629, %v2621
    %v2894 = vpack.c.b16 %v2630, %v2622
    %v2895 = vpack.c.b16 %v2631, %v2623
    %v2896 = vpack.c.b16 %v2632, %v2624
    %v2897 = vpack.c.b16 %v2633, %v2625
    %v2898 = vpack.c.b16 %v2634, %v2626
    %v2899 = vpack.c.b16 %v2635, %v2627
    %v2900 = vpack.c.b16 %v2644, %v2636
    %v2901 = vpack.c.b16 %v2645, %v2637
    %v2902 = vpack.c.b16 %v2646, %v2638
    %v2903 = vpack.c.b16 %v2647, %v2639
    %v2904 = vpack.c.b16 %v2648, %v2640
    %v2905 = vpack.c.b16 %v2649, %v2641
    %v2906 = vpack.c.b16 %v2650, %v2642
    %v2907 = vpack.c.b16 %v2651, %v2643
    %3164 = vmatprep.subr.bf16.mxu0 %v2709
    %3165 = vmatpush1.bf16.msra.mxu0 %v2708
    %3166 = vmatprep.subr.bf16.mxu0 %v2701
    %3167 = vmatpush1.bf16.msra.mxu0 %v2700
    %3168 = vmatprep.subr.bf16.mxu0 %v2693
    %3169 = vmatpush1.bf16.msra.mxu0 %v2692
    %3170 = vmatprep.subr.bf16.mxu0 %v2685
    %3171 = vmatpush1.bf16.msra.mxu0 %v2684
    %3172 = vmatprep.subr.bf16.mxu0 %v2677
    %3173 = vmatpush1.bf16.msra.mxu0 %v2676
    %3174 = vmatprep.subr.bf16.mxu0 %v2669
    %3175 = vmatpush1.bf16.msra.mxu0 %v2668
    %3176 = vmatprep.subr.bf16.mxu0 %v2661
    %3177 = vmatpush1.bf16.msra.mxu0 %v2660
    %3178 = vmatprep.subr.bf16.mxu0 %v2653
    %3179 = vmatpush1.bf16.msra.mxu0 %v2652
    %3180 = vmatprep.subr.bf16.mxu0 %v2773
    %3181 = vmatpush2.bf16.msra.mxu0 %v2772
    %3182 = vmatprep.subr.bf16.mxu0 %v2765
    %3183 = vmatpush2.bf16.msra.mxu0 %v2764
    %3184 = vmatprep.subr.bf16.mxu0 %v2757
    %3185 = vmatpush2.bf16.msra.mxu0 %v2756
    %3186 = vmatprep.subr.bf16.mxu0 %v2749
    %3187 = vmatpush2.bf16.msra.mxu0 %v2748
    %3188 = vmatprep.subr.bf16.mxu0 %v2741
    %3189 = vmatpush2.bf16.msra.mxu0 %v2740
    %3190 = vmatprep.subr.bf16.mxu0 %v2733
    %3191 = vmatpush2.bf16.msra.mxu0 %v2732
    %3192 = vmatprep.subr.bf16.mxu0 %v2725
    %3193 = vmatpush2.bf16.msra.mxu0 %v2724
    %3194 = vmatprep.subr.bf16.mxu0 %v2717
    %3195 = vmatpush2.bf16.msra.mxu0 %v2716
    %3196 = vmatprep.mubr.bf16.mxu0 %v1491
    %3197 = vmatmul.mubr.bf16.gmra.mxu0 %v1490
    %v3198 = vpop.f32.mrf.mxu0
    %v3199 = vadd.f32 %v1847, %v3198
    %v3200 = vpop.f32.mrf.mxu0
    %v3201 = vadd.f32 %v1851, %v3200
    %v3202 = vpop.f32.mrf.mxu0
    %v3203 = vadd.f32 %v1847, %v3202
    %v3204 = vpop.f32.mrf.mxu0
    %v3205 = vadd.f32 %v1851, %v3204
    %3206 = vmatprep.mubr.bf16.mxu0 %v1495
    %3207 = vmatmul.mubr.bf16.gmra.mxu0 %v1494
    %v3208 = vpop.f32.mrf.mxu0
    %v3209 = vadd.f32 %v1847, %v3208
    %v3210 = vpop.f32.mrf.mxu0
    %v3211 = vadd.f32 %v1851, %v3210
    %v3212 = vpop.f32.mrf.mxu0
    %v3213 = vadd.f32 %v1847, %v3212
    %v3214 = vpop.f32.mrf.mxu0
    %v3215 = vadd.f32 %v1851, %v3214
    %3216 = vmatprep.mubr.bf16.mxu0 %v1499
    %3217 = vmatmul.mubr.bf16.gmra.mxu0 %v1498
    %v3218 = vpop.f32.mrf.mxu0
    %v3219 = vadd.f32 %v1847, %v3218
    %v3220 = vpop.f32.mrf.mxu0
    %v3221 = vadd.f32 %v1851, %v3220
    %v3222 = vpop.f32.mrf.mxu0
    %v3223 = vadd.f32 %v1847, %v3222
    %v3224 = vpop.f32.mrf.mxu0
    %v3225 = vadd.f32 %v1851, %v3224
    %3226 = vmatprep.mubr.bf16.mxu0 %v1503
    %3227 = vmatmul.mubr.bf16.gmra.mxu0 %v1502
    %v3228 = vpop.f32.mrf.mxu0
    %v3229 = vadd.f32 %v1847, %v3228
    %v3230 = vpop.f32.mrf.mxu0
    %v3231 = vadd.f32 %v1851, %v3230
    %v3232 = vpop.f32.mrf.mxu0
    %v3233 = vadd.f32 %v1847, %v3232
    %v3234 = vpop.f32.mrf.mxu0
    %v3235 = vadd.f32 %v1851, %v3234
    %3236 = vmatprep.mubr.bf16.mxu0 %v1507
    %3237 = vmatmul.mubr.bf16.gmra.mxu0 %v1506
    %v3238 = vpop.f32.mrf.mxu0
    %v3239 = vadd.f32 %v1847, %v3238
    %v3240 = vpop.f32.mrf.mxu0
    %v3241 = vadd.f32 %v1851, %v3240
    %v3242 = vpop.f32.mrf.mxu0
    %v3243 = vadd.f32 %v1847, %v3242
    %v3244 = vpop.f32.mrf.mxu0
    %v3245 = vadd.f32 %v1851, %v3244
    %3246 = vmatprep.mubr.bf16.mxu0 %v1511
    %3247 = vmatmul.mubr.bf16.gmra.mxu0 %v1510
    %v3248 = vpop.f32.mrf.mxu0
    %v3249 = vadd.f32 %v1847, %v3248
    %v3250 = vpop.f32.mrf.mxu0
    %v3251 = vadd.f32 %v1851, %v3250
    %v3252 = vpop.f32.mrf.mxu0
    %v3253 = vadd.f32 %v1847, %v3252
    %v3254 = vpop.f32.mrf.mxu0
    %v3255 = vadd.f32 %v1851, %v3254
    %3256 = vmatprep.mubr.bf16.mxu0 %v1515
    %3257 = vmatmul.mubr.bf16.gmra.mxu0 %v1514
    %v3258 = vpop.f32.mrf.mxu0
    %v3259 = vadd.f32 %v1847, %v3258
    %v3260 = vpop.f32.mrf.mxu0
    %v3261 = vadd.f32 %v1851, %v3260
    %v3262 = vpop.f32.mrf.mxu0
    %v3263 = vadd.f32 %v1847, %v3262
    %v3264 = vpop.f32.mrf.mxu0
    %v3265 = vadd.f32 %v1851, %v3264
    %3266 = vmatprep.mubr.bf16.mxu0 %v1519
    %3267 = vmatmul.mubr.bf16.gmra.mxu0 %v1518
    %v3268 = vpop.f32.mrf.mxu0
    %v3269 = vadd.f32 %v1847, %v3268
    %v3270 = vpop.f32.mrf.mxu0
    %v3271 = vadd.f32 %v1851, %v3270
    %v3272 = vpop.f32.mrf.mxu0
    %v3273 = vadd.f32 %v1847, %v3272
    %v3274 = vpop.f32.mrf.mxu0
    %v3275 = vadd.f32 %v1851, %v3274
    %3276 = vmatprep.mubr.bf16.mxu0 %v1523
    %3277 = vmatmul.mubr.bf16.gmra.mxu0 %v1522
    %v3278 = vpop.f32.mrf.mxu0
    %v3279 = vadd.f32 %v1847, %v3278
    %v3280 = vpop.f32.mrf.mxu0
    %v3281 = vadd.f32 %v1851, %v3280
    %v3282 = vpop.f32.mrf.mxu0
    %v3283 = vadd.f32 %v1847, %v3282
    %v3284 = vpop.f32.mrf.mxu0
    %v3285 = vadd.f32 %v1851, %v3284
    %3286 = vmatprep.mubr.bf16.mxu0 %v1527
    %3287 = vmatmul.mubr.bf16.gmra.mxu0 %v1526
    %v3288 = vpop.f32.mrf.mxu0
    %v3289 = vadd.f32 %v1847, %v3288
    %v3290 = vpop.f32.mrf.mxu0
    %v3291 = vadd.f32 %v1851, %v3290
    %v3292 = vpop.f32.mrf.mxu0
    %v3293 = vadd.f32 %v1847, %v3292
    %v3294 = vpop.f32.mrf.mxu0
    %v3295 = vadd.f32 %v1851, %v3294
    %3296 = vmatprep.mubr.bf16.mxu0 %v1531
    %3297 = vmatmul.mubr.bf16.gmra.mxu0 %v1530
    %v3298 = vpop.f32.mrf.mxu0
    %v3299 = vadd.f32 %v1847, %v3298
    %v3300 = vpop.f32.mrf.mxu0
    %v3301 = vadd.f32 %v1851, %v3300
    %v3302 = vpop.f32.mrf.mxu0
    %v3303 = vadd.f32 %v1847, %v3302
    %v3304 = vpop.f32.mrf.mxu0
    %v3305 = vadd.f32 %v1851, %v3304
    %3306 = vmatprep.mubr.bf16.mxu0 %v1535
    %3307 = vmatmul.mubr.bf16.gmra.mxu0 %v1534
    %v3308 = vpop.f32.mrf.mxu0
    %v3309 = vadd.f32 %v1847, %v3308
    %v3310 = vpop.f32.mrf.mxu0
    %v3311 = vadd.f32 %v1851, %v3310
    %v3312 = vpop.f32.mrf.mxu0
    %v3313 = vadd.f32 %v1847, %v3312
    %v3314 = vpop.f32.mrf.mxu0
    %v3315 = vadd.f32 %v1851, %v3314
    %3316 = vmatprep.mubr.bf16.mxu0 %v1539
    %3317 = vmatmul.mubr.bf16.gmra.mxu0 %v1538
    %v3318 = vpop.f32.mrf.mxu0
    %v3319 = vadd.f32 %v1847, %v3318
    %v3320 = vpop.f32.mrf.mxu0
    %v3321 = vadd.f32 %v1851, %v3320
    %v3322 = vpop.f32.mrf.mxu0
    %v3323 = vadd.f32 %v1847, %v3322
    %v3324 = vpop.f32.mrf.mxu0
    %v3325 = vadd.f32 %v1851, %v3324
    %3326 = vmatprep.mubr.bf16.mxu0 %v1543
    %3327 = vmatmul.mubr.bf16.gmra.mxu0 %v1542
    %v3328 = vpop.f32.mrf.mxu0
    %v3329 = vadd.f32 %v1847, %v3328
    %v3330 = vpop.f32.mrf.mxu0
    %v3331 = vadd.f32 %v1851, %v3330
    %v3332 = vpop.f32.mrf.mxu0
    %v3333 = vadd.f32 %v1847, %v3332
    %v3334 = vpop.f32.mrf.mxu0
    %v3335 = vadd.f32 %v1851, %v3334
    %3336 = vmatprep.mubr.bf16.mxu0 %v1547
    %3337 = vmatmul.mubr.bf16.gmra.mxu0 %v1546
    %v3338 = vpop.f32.mrf.mxu0
    %v3339 = vadd.f32 %v1847, %v3338
    %v3340 = vpop.f32.mrf.mxu0
    %v3341 = vadd.f32 %v1851, %v3340
    %v3342 = vpop.f32.mrf.mxu0
    %v3343 = vadd.f32 %v1847, %v3342
    %v3344 = vpop.f32.mrf.mxu0
    %v3345 = vadd.f32 %v1851, %v3344
    %3346 = vmatprep.mubr.bf16.mxu0 %v1551
    %3347 = vmatmul.mubr.bf16.gmra.mxu0 %v1550
    %v3348 = vpop.f32.mrf.mxu0
    %v3349 = vadd.f32 %v1847, %v3348
    %v3350 = vpop.f32.mrf.mxu0
    %v3351 = vadd.f32 %v1851, %v3350
    %v3352 = vpop.f32.mrf.mxu0
    %v3353 = vadd.f32 %v1847, %v3352
    %v3354 = vpop.f32.mrf.mxu0
    %v3355 = vadd.f32 %v1851, %v3354
    %3356 = vmatprep.mubr.bf16.mxu0 %v1555
    %3357 = vmatmul.mubr.bf16.gmra.mxu0 %v1554
    %v3358 = vpop.f32.mrf.mxu0
    %v3359 = vadd.f32 %v1847, %v3358
    %v3360 = vpop.f32.mrf.mxu0
    %v3361 = vadd.f32 %v1851, %v3360
    %v3362 = vpop.f32.mrf.mxu0
    %v3363 = vadd.f32 %v1847, %v3362
    %v3364 = vpop.f32.mrf.mxu0
    %v3365 = vadd.f32 %v1851, %v3364
    %3366 = vmatprep.mubr.bf16.mxu0 %v1559
    %3367 = vmatmul.mubr.bf16.gmra.mxu0 %v1558
    %v3368 = vpop.f32.mrf.mxu0
    %v3369 = vadd.f32 %v1847, %v3368
    %v3370 = vpop.f32.mrf.mxu0
    %v3371 = vadd.f32 %v1851, %v3370
    %v3372 = vpop.f32.mrf.mxu0
    %v3373 = vadd.f32 %v1847, %v3372
    %v3374 = vpop.f32.mrf.mxu0
    %v3375 = vadd.f32 %v1851, %v3374
    %3376 = vmatprep.mubr.bf16.mxu0 %v1563
    %3377 = vmatmul.mubr.bf16.gmra.mxu0 %v1562
    %v3378 = vpop.f32.mrf.mxu0
    %v3379 = vadd.f32 %v1847, %v3378
    %v3380 = vpop.f32.mrf.mxu0
    %v3381 = vadd.f32 %v1851, %v3380
    %v3382 = vpop.f32.mrf.mxu0
    %v3383 = vadd.f32 %v1847, %v3382
    %v3384 = vpop.f32.mrf.mxu0
    %v3385 = vadd.f32 %v1851, %v3384
    %3386 = vmatprep.mubr.bf16.mxu0 %v1567
    %3387 = vmatmul.mubr.bf16.gmra.mxu0 %v1566
    %v3388 = vpop.f32.mrf.mxu0
    %v3389 = vadd.f32 %v1847, %v3388
    %v3390 = vpop.f32.mrf.mxu0
    %v3391 = vadd.f32 %v1851, %v3390
    %v3392 = vpop.f32.mrf.mxu0
    %v3393 = vadd.f32 %v1847, %v3392
    %v3394 = vpop.f32.mrf.mxu0
    %v3395 = vadd.f32 %v1851, %v3394
    %3396 = vmatprep.mubr.bf16.mxu0 %v1571
    %3397 = vmatmul.mubr.bf16.gmra.mxu0 %v1570
    %v3398 = vpop.f32.mrf.mxu0
    %v3399 = vadd.f32 %v1847, %v3398
    %v3400 = vpop.f32.mrf.mxu0
    %v3401 = vadd.f32 %v1851, %v3400
    %v3402 = vpop.f32.mrf.mxu0
    %v3403 = vadd.f32 %v1847, %v3402
    %v3404 = vpop.f32.mrf.mxu0
    %v3405 = vadd.f32 %v1851, %v3404
    %3406 = vmatprep.mubr.bf16.mxu0 %v1575
    %3407 = vmatmul.mubr.bf16.gmra.mxu0 %v1574
    %v3408 = vpop.f32.mrf.mxu0
    %v3409 = vadd.f32 %v1847, %v3408
    %v3410 = vpop.f32.mrf.mxu0
    %v3411 = vadd.f32 %v1851, %v3410
    %v3412 = vpop.f32.mrf.mxu0
    %v3413 = vadd.f32 %v1847, %v3412
    %v3414 = vpop.f32.mrf.mxu0
    %v3415 = vadd.f32 %v1851, %v3414
    %3416 = vmatprep.mubr.bf16.mxu0 %v1579
    %3417 = vmatmul.mubr.bf16.gmra.mxu0 %v1578
    %v3418 = vpop.f32.mrf.mxu0
    %v3419 = vadd.f32 %v1847, %v3418
    %v3420 = vpop.f32.mrf.mxu0
    %v3421 = vadd.f32 %v1851, %v3420
    %v3422 = vpop.f32.mrf.mxu0
    %v3423 = vadd.f32 %v1847, %v3422
    %v3424 = vpop.f32.mrf.mxu0
    %v3425 = vadd.f32 %v1851, %v3424
    %3426 = vmatprep.mubr.bf16.mxu0 %v1583
    %3427 = vmatmul.mubr.bf16.gmra.mxu0 %v1582
    %v3428 = vpop.f32.mrf.mxu0
    %v3429 = vadd.f32 %v1847, %v3428
    %v3430 = vpop.f32.mrf.mxu0
    %v3431 = vadd.f32 %v1851, %v3430
    %v3432 = vpop.f32.mrf.mxu0
    %v3433 = vadd.f32 %v1847, %v3432
    %v3434 = vpop.f32.mrf.mxu0
    %v3435 = vadd.f32 %v1851, %v3434
    %3436 = vdwg.mxu0
    %3437 = vmatprep.subr.bf16.mxu0 %v2837
    %3438 = vmatpush1.bf16.msra.mxu0 %v2836
    %3439 = vmatprep.subr.bf16.mxu0 %v2829
    %3440 = vmatpush1.bf16.msra.mxu0 %v2828
    %3441 = vmatprep.subr.bf16.mxu0 %v2821
    %3442 = vmatpush1.bf16.msra.mxu0 %v2820
    %3443 = vmatprep.subr.bf16.mxu0 %v2813
    %3444 = vmatpush1.bf16.msra.mxu0 %v2812
    %3445 = vmatprep.subr.bf16.mxu0 %v2805
    %3446 = vmatpush1.bf16.msra.mxu0 %v2804
    %3447 = vmatprep.subr.bf16.mxu0 %v2797
    %3448 = vmatpush1.bf16.msra.mxu0 %v2796
    %3449 = vmatprep.subr.bf16.mxu0 %v2789
    %3450 = vmatpush1.bf16.msra.mxu0 %v2788
    %3451 = vmatprep.subr.bf16.mxu0 %v2781
    %3452 = vmatpush1.bf16.msra.mxu0 %v2780
    %3453 = vmatprep.subr.bf16.mxu0 %v2901
    %3454 = vmatpush2.bf16.msra.mxu0 %v2900
    %3455 = vmatprep.subr.bf16.mxu0 %v2893
    %3456 = vmatpush2.bf16.msra.mxu0 %v2892
    %3457 = vmatprep.subr.bf16.mxu0 %v2885
    %3458 = vmatpush2.bf16.msra.mxu0 %v2884
    %3459 = vmatprep.subr.bf16.mxu0 %v2877
    %3460 = vmatpush2.bf16.msra.mxu0 %v2876
    %3461 = vmatprep.subr.bf16.mxu0 %v2869
    %3462 = vmatpush2.bf16.msra.mxu0 %v2868
    %3463 = vmatprep.subr.bf16.mxu0 %v2861
    %3464 = vmatpush2.bf16.msra.mxu0 %v2860
    %3465 = vmatprep.subr.bf16.mxu0 %v2853
    %3466 = vmatpush2.bf16.msra.mxu0 %v2852
    %3467 = vmatprep.subr.bf16.mxu0 %v2845
    %3468 = vmatpush2.bf16.msra.mxu0 %v2844
    %3469 = vmatprep.mubr.bf16.mxu0 %v1493
    %3470 = vmatmul.mubr.bf16.gmra.mxu0 %v1492
    %v3471 = vpop.f32.mrf.mxu0
    %v3472 = vadd.f32 %v3199, %v3471
    %v3473 = vpop.f32.mrf.mxu0
    %v3474 = vadd.f32 %v3201, %v3473
    %v3475 = vpop.f32.mrf.mxu0
    %v3476 = vadd.f32 %v3203, %v3475
    %v3477 = vpop.f32.mrf.mxu0
    %v3478 = vadd.f32 %v3205, %v3477
    %3479 = vmatprep.mubr.bf16.mxu0 %v1497
    %3480 = vmatmul.mubr.bf16.gmra.mxu0 %v1496
    %v3481 = vpop.f32.mrf.mxu0
    %v3482 = vadd.f32 %v3209, %v3481
    %v3483 = vpop.f32.mrf.mxu0
    %v3484 = vadd.f32 %v3211, %v3483
    %v3485 = vpop.f32.mrf.mxu0
    %v3486 = vadd.f32 %v3213, %v3485
    %v3487 = vpop.f32.mrf.mxu0
    %v3488 = vadd.f32 %v3215, %v3487
    %3489 = vmatprep.mubr.bf16.mxu0 %v1501
    %3490 = vmatmul.mubr.bf16.gmra.mxu0 %v1500
    %v3491 = vpop.f32.mrf.mxu0
    %v3492 = vadd.f32 %v3219, %v3491
    %v3493 = vpop.f32.mrf.mxu0
    %v3494 = vadd.f32 %v3221, %v3493
    %v3495 = vpop.f32.mrf.mxu0
    %v3496 = vadd.f32 %v3223, %v3495
    %v3497 = vpop.f32.mrf.mxu0
    %v3498 = vadd.f32 %v3225, %v3497
    %3499 = vmatprep.mubr.bf16.mxu0 %v1505
    %3500 = vmatmul.mubr.bf16.gmra.mxu0 %v1504
    %v3501 = vpop.f32.mrf.mxu0
    %v3502 = vadd.f32 %v3229, %v3501
    %v3503 = vpop.f32.mrf.mxu0
    %v3504 = vadd.f32 %v3231, %v3503
    %v3505 = vpop.f32.mrf.mxu0
    %v3506 = vadd.f32 %v3233, %v3505
    %v3507 = vpop.f32.mrf.mxu0
    %v3508 = vadd.f32 %v3235, %v3507
    %3509 = vmatprep.mubr.bf16.mxu0 %v1509
    %3510 = vmatmul.mubr.bf16.gmra.mxu0 %v1508
    %v3511 = vpop.f32.mrf.mxu0
    %v3512 = vadd.f32 %v3239, %v3511
    %v3513 = vpop.f32.mrf.mxu0
    %v3514 = vadd.f32 %v3241, %v3513
    %v3515 = vpop.f32.mrf.mxu0
    %v3516 = vadd.f32 %v3243, %v3515
    %v3517 = vpop.f32.mrf.mxu0
    %v3518 = vadd.f32 %v3245, %v3517
    %3519 = vmatprep.mubr.bf16.mxu0 %v1513
    %3520 = vmatmul.mubr.bf16.gmra.mxu0 %v1512
    %v3521 = vpop.f32.mrf.mxu0
    %v3522 = vadd.f32 %v3249, %v3521
    %v3523 = vpop.f32.mrf.mxu0
    %v3524 = vadd.f32 %v3251, %v3523
    %v3525 = vpop.f32.mrf.mxu0
    %v3526 = vadd.f32 %v3253, %v3525
    %v3527 = vpop.f32.mrf.mxu0
    %v3528 = vadd.f32 %v3255, %v3527
    %3529 = vmatprep.mubr.bf16.mxu0 %v1517
    %3530 = vmatmul.mubr.bf16.gmra.mxu0 %v1516
    %v3531 = vpop.f32.mrf.mxu0
    %v3532 = vadd.f32 %v3259, %v3531
    %v3533 = vpop.f32.mrf.mxu0
    %v3534 = vadd.f32 %v3261, %v3533
    %v3535 = vpop.f32.mrf.mxu0
    %v3536 = vadd.f32 %v3263, %v3535
    %v3537 = vpop.f32.mrf.mxu0
    %v3538 = vadd.f32 %v3265, %v3537
    %3539 = vmatprep.mubr.bf16.mxu0 %v1521
    %3540 = vmatmul.mubr.bf16.gmra.mxu0 %v1520
    %v3541 = vpop.f32.mrf.mxu0
    %v3542 = vadd.f32 %v3269, %v3541
    %v3543 = vpop.f32.mrf.mxu0
    %v3544 = vadd.f32 %v3271, %v3543
    %v3545 = vpop.f32.mrf.mxu0
    %v3546 = vadd.f32 %v3273, %v3545
    %v3547 = vpop.f32.mrf.mxu0
    %v3548 = vadd.f32 %v3275, %v3547
    %3549 = vmatprep.mubr.bf16.mxu0 %v1525
    %3550 = vmatmul.mubr.bf16.gmra.mxu0 %v1524
    %v3551 = vpop.f32.mrf.mxu0
    %v3552 = vadd.f32 %v3279, %v3551
    %v3553 = vpop.f32.mrf.mxu0
    %v3554 = vadd.f32 %v3281, %v3553
    %v3555 = vpop.f32.mrf.mxu0
    %v3556 = vadd.f32 %v3283, %v3555
    %v3557 = vpop.f32.mrf.mxu0
    %v3558 = vadd.f32 %v3285, %v3557
    %3559 = vmatprep.mubr.bf16.mxu0 %v1529
    %3560 = vmatmul.mubr.bf16.gmra.mxu0 %v1528
    %v3561 = vpop.f32.mrf.mxu0
    %v3562 = vadd.f32 %v3289, %v3561
    %v3563 = vpop.f32.mrf.mxu0
    %v3564 = vadd.f32 %v3291, %v3563
    %v3565 = vpop.f32.mrf.mxu0
    %v3566 = vadd.f32 %v3293, %v3565
    %v3567 = vpop.f32.mrf.mxu0
    %v3568 = vadd.f32 %v3295, %v3567
    %3569 = vmatprep.mubr.bf16.mxu0 %v1533
    %3570 = vmatmul.mubr.bf16.gmra.mxu0 %v1532
    %v3571 = vpop.f32.mrf.mxu0
    %v3572 = vadd.f32 %v3299, %v3571
    %v3573 = vpop.f32.mrf.mxu0
    %v3574 = vadd.f32 %v3301, %v3573
    %v3575 = vpop.f32.mrf.mxu0
    %v3576 = vadd.f32 %v3303, %v3575
    %v3577 = vpop.f32.mrf.mxu0
    %v3578 = vadd.f32 %v3305, %v3577
    %3579 = vmatprep.mubr.bf16.mxu0 %v1537
    %3580 = vmatmul.mubr.bf16.gmra.mxu0 %v1536
    %v3581 = vpop.f32.mrf.mxu0
    %v3582 = vadd.f32 %v3309, %v3581
    %v3583 = vpop.f32.mrf.mxu0
    %v3584 = vadd.f32 %v3311, %v3583
    %v3585 = vpop.f32.mrf.mxu0
    %v3586 = vadd.f32 %v3313, %v3585
    %v3587 = vpop.f32.mrf.mxu0
    %v3588 = vadd.f32 %v3315, %v3587
    %3589 = vmatprep.mubr.bf16.mxu0 %v1541
    %3590 = vmatmul.mubr.bf16.gmra.mxu0 %v1540
    %v3591 = vpop.f32.mrf.mxu0
    %v3592 = vadd.f32 %v3319, %v3591
    %v3593 = vpop.f32.mrf.mxu0
    %v3594 = vadd.f32 %v3321, %v3593
    %v3595 = vpop.f32.mrf.mxu0
    %v3596 = vadd.f32 %v3323, %v3595
    %v3597 = vpop.f32.mrf.mxu0
    %v3598 = vadd.f32 %v3325, %v3597
    %3599 = vmatprep.mubr.bf16.mxu0 %v1545
    %3600 = vmatmul.mubr.bf16.gmra.mxu0 %v1544
    %v3601 = vpop.f32.mrf.mxu0
    %v3602 = vadd.f32 %v3329, %v3601
    %v3603 = vpop.f32.mrf.mxu0
    %v3604 = vadd.f32 %v3331, %v3603
    %v3605 = vpop.f32.mrf.mxu0
    %v3606 = vadd.f32 %v3333, %v3605
    %v3607 = vpop.f32.mrf.mxu0
    %v3608 = vadd.f32 %v3335, %v3607
    %3609 = vmatprep.mubr.bf16.mxu0 %v1549
    %3610 = vmatmul.mubr.bf16.gmra.mxu0 %v1548
    %v3611 = vpop.f32.mrf.mxu0
    %v3612 = vadd.f32 %v3339, %v3611
    %v3613 = vpop.f32.mrf.mxu0
    %v3614 = vadd.f32 %v3341, %v3613
    %v3615 = vpop.f32.mrf.mxu0
    %v3616 = vadd.f32 %v3343, %v3615
    %v3617 = vpop.f32.mrf.mxu0
    %v3618 = vadd.f32 %v3345, %v3617
    %3619 = vmatprep.mubr.bf16.mxu0 %v1553
    %3620 = vmatmul.mubr.bf16.gmra.mxu0 %v1552
    %v3621 = vpop.f32.mrf.mxu0
    %v3622 = vadd.f32 %v3349, %v3621
    %v3623 = vpop.f32.mrf.mxu0
    %v3624 = vadd.f32 %v3351, %v3623
    %v3625 = vpop.f32.mrf.mxu0
    %v3626 = vadd.f32 %v3353, %v3625
    %v3627 = vpop.f32.mrf.mxu0
    %v3628 = vadd.f32 %v3355, %v3627
    %3629 = vmatprep.mubr.bf16.mxu0 %v1557
    %3630 = vmatmul.mubr.bf16.gmra.mxu0 %v1556
    %v3631 = vpop.f32.mrf.mxu0
    %v3632 = vadd.f32 %v3359, %v3631
    %v3633 = vpop.f32.mrf.mxu0
    %v3634 = vadd.f32 %v3361, %v3633
    %v3635 = vpop.f32.mrf.mxu0
    %v3636 = vadd.f32 %v3363, %v3635
    %v3637 = vpop.f32.mrf.mxu0
    %v3638 = vadd.f32 %v3365, %v3637
    %3639 = vmatprep.mubr.bf16.mxu0 %v1561
    %3640 = vmatmul.mubr.bf16.gmra.mxu0 %v1560
    %v3641 = vpop.f32.mrf.mxu0
    %v3642 = vadd.f32 %v3369, %v3641
    %v3643 = vpop.f32.mrf.mxu0
    %v3644 = vadd.f32 %v3371, %v3643
    %v3645 = vpop.f32.mrf.mxu0
    %v3646 = vadd.f32 %v3373, %v3645
    %v3647 = vpop.f32.mrf.mxu0
    %v3648 = vadd.f32 %v3375, %v3647
    %3649 = vmatprep.mubr.bf16.mxu0 %v1565
    %3650 = vmatmul.mubr.bf16.gmra.mxu0 %v1564
    %v3651 = vpop.f32.mrf.mxu0
    %v3652 = vadd.f32 %v3379, %v3651
    %v3653 = vpop.f32.mrf.mxu0
    %v3654 = vadd.f32 %v3381, %v3653
    %v3655 = vpop.f32.mrf.mxu0
    %v3656 = vadd.f32 %v3383, %v3655
    %v3657 = vpop.f32.mrf.mxu0
    %v3658 = vadd.f32 %v3385, %v3657
    %3659 = vmatprep.mubr.bf16.mxu0 %v1569
    %3660 = vmatmul.mubr.bf16.gmra.mxu0 %v1568
    %v3661 = vpop.f32.mrf.mxu0
    %v3662 = vadd.f32 %v3389, %v3661
    %v3663 = vpop.f32.mrf.mxu0
    %v3664 = vadd.f32 %v3391, %v3663
    %v3665 = vpop.f32.mrf.mxu0
    %v3666 = vadd.f32 %v3393, %v3665
    %v3667 = vpop.f32.mrf.mxu0
    %v3668 = vadd.f32 %v3395, %v3667
    %3669 = vmatprep.mubr.bf16.mxu0 %v1573
    %3670 = vmatmul.mubr.bf16.gmra.mxu0 %v1572
    %v3671 = vpop.f32.mrf.mxu0
    %v3672 = vadd.f32 %v3399, %v3671
    %v3673 = vpop.f32.mrf.mxu0
    %v3674 = vadd.f32 %v3401, %v3673
    %v3675 = vpop.f32.mrf.mxu0
    %v3676 = vadd.f32 %v3403, %v3675
    %v3677 = vpop.f32.mrf.mxu0
    %v3678 = vadd.f32 %v3405, %v3677
    %3679 = vmatprep.mubr.bf16.mxu0 %v1577
    %3680 = vmatmul.mubr.bf16.gmra.mxu0 %v1576
    %v3681 = vpop.f32.mrf.mxu0
    %v3682 = vadd.f32 %v3409, %v3681
    %v3683 = vpop.f32.mrf.mxu0
    %v3684 = vadd.f32 %v3411, %v3683
    %v3685 = vpop.f32.mrf.mxu0
    %v3686 = vadd.f32 %v3413, %v3685
    %v3687 = vpop.f32.mrf.mxu0
    %v3688 = vadd.f32 %v3415, %v3687
    %3689 = vmatprep.mubr.bf16.mxu0 %v1581
    %3690 = vmatmul.mubr.bf16.gmra.mxu0 %v1580
    %v3691 = vpop.f32.mrf.mxu0
    %v3692 = vadd.f32 %v3419, %v3691
    %v3693 = vpop.f32.mrf.mxu0
    %v3694 = vadd.f32 %v3421, %v3693
    %v3695 = vpop.f32.mrf.mxu0
    %v3696 = vadd.f32 %v3423, %v3695
    %v3697 = vpop.f32.mrf.mxu0
    %v3698 = vadd.f32 %v3425, %v3697
    %3699 = vmatprep.mubr.bf16.mxu0 %v1585
    %3700 = vmatmul.mubr.bf16.gmra.mxu0 %v1584
    %v3701 = vpop.f32.mrf.mxu0
    %v3702 = vadd.f32 %v3429, %v3701
    %v3703 = vpop.f32.mrf.mxu0
    %v3704 = vadd.f32 %v3431, %v3703
    %v3705 = vpop.f32.mrf.mxu0
    %v3706 = vadd.f32 %v3433, %v3705
    %v3707 = vpop.f32.mrf.mxu0
    %v3708 = vadd.f32 %v3435, %v3707
    %3709 = vdwg.mxu0
    %3710 = vmatprep.subr.bf16.mxu0 %v2711
    %3711 = vmatpush1.bf16.msra.mxu0 %v2710
    %3712 = vmatprep.subr.bf16.mxu0 %v2703
    %3713 = vmatpush1.bf16.msra.mxu0 %v2702
    %3714 = vmatprep.subr.bf16.mxu0 %v2695
    %3715 = vmatpush1.bf16.msra.mxu0 %v2694
    %3716 = vmatprep.subr.bf16.mxu0 %v2687
    %3717 = vmatpush1.bf16.msra.mxu0 %v2686
    %3718 = vmatprep.subr.bf16.mxu0 %v2679
    %3719 = vmatpush1.bf16.msra.mxu0 %v2678
    %3720 = vmatprep.subr.bf16.mxu0 %v2671
    %3721 = vmatpush1.bf16.msra.mxu0 %v2670
    %3722 = vmatprep.subr.bf16.mxu0 %v2663
    %3723 = vmatpush1.bf16.msra.mxu0 %v2662
    %3724 = vmatprep.subr.bf16.mxu0 %v2655
    %3725 = vmatpush1.bf16.msra.mxu0 %v2654
    %3726 = vmatprep.subr.bf16.mxu0 %v2775
    %3727 = vmatpush2.bf16.msra.mxu0 %v2774
    %3728 = vmatprep.subr.bf16.mxu0 %v2767
    %3729 = vmatpush2.bf16.msra.mxu0 %v2766
    %3730 = vmatprep.subr.bf16.mxu0 %v2759
    %3731 = vmatpush2.bf16.msra.mxu0 %v2758
    %3732 = vmatprep.subr.bf16.mxu0 %v2751
    %3733 = vmatpush2.bf16.msra.mxu0 %v2750
    %3734 = vmatprep.subr.bf16.mxu0 %v2743
    %3735 = vmatpush2.bf16.msra.mxu0 %v2742
    %3736 = vmatprep.subr.bf16.mxu0 %v2735
    %3737 = vmatpush2.bf16.msra.mxu0 %v2734
    %3738 = vmatprep.subr.bf16.mxu0 %v2727
    %3739 = vmatpush2.bf16.msra.mxu0 %v2726
    %3740 = vmatprep.subr.bf16.mxu0 %v2719
    %3741 = vmatpush2.bf16.msra.mxu0 %v2718
    %3742 = vmatprep.mubr.bf16.mxu0 %v1491
    %3743 = vmatmul.mubr.bf16.gmra.mxu0 %v1490
    %v3744 = vpop.f32.mrf.mxu0
    %v3745 = vadd.f32 %v1855, %v3744
    %v3746 = vpop.f32.mrf.mxu0
    %v3747 = vadd.f32 %v1859, %v3746
    %v3748 = vpop.f32.mrf.mxu0
    %v3749 = vadd.f32 %v1855, %v3748
    %v3750 = vpop.f32.mrf.mxu0
    %v3751 = vadd.f32 %v1859, %v3750
    %3752 = vmatprep.mubr.bf16.mxu0 %v1495
    %3753 = vmatmul.mubr.bf16.gmra.mxu0 %v1494
    %v3754 = vpop.f32.mrf.mxu0
    %v3755 = vadd.f32 %v1855, %v3754
    %v3756 = vpop.f32.mrf.mxu0
    %v3757 = vadd.f32 %v1859, %v3756
    %v3758 = vpop.f32.mrf.mxu0
    %v3759 = vadd.f32 %v1855, %v3758
    %v3760 = vpop.f32.mrf.mxu0
    %v3761 = vadd.f32 %v1859, %v3760
    %3762 = vmatprep.mubr.bf16.mxu0 %v1499
    %3763 = vmatmul.mubr.bf16.gmra.mxu0 %v1498
    %v3764 = vpop.f32.mrf.mxu0
    %v3765 = vadd.f32 %v1855, %v3764
    %v3766 = vpop.f32.mrf.mxu0
    %v3767 = vadd.f32 %v1859, %v3766
    %v3768 = vpop.f32.mrf.mxu0
    %v3769 = vadd.f32 %v1855, %v3768
    %v3770 = vpop.f32.mrf.mxu0
    %v3771 = vadd.f32 %v1859, %v3770
    %3772 = vmatprep.mubr.bf16.mxu0 %v1503
    %3773 = vmatmul.mubr.bf16.gmra.mxu0 %v1502
    %v3774 = vpop.f32.mrf.mxu0
    %v3775 = vadd.f32 %v1855, %v3774
    %v3776 = vpop.f32.mrf.mxu0
    %v3777 = vadd.f32 %v1859, %v3776
    %v3778 = vpop.f32.mrf.mxu0
    %v3779 = vadd.f32 %v1855, %v3778
    %v3780 = vpop.f32.mrf.mxu0
    %v3781 = vadd.f32 %v1859, %v3780
    %3782 = vmatprep.mubr.bf16.mxu0 %v1507
    %3783 = vmatmul.mubr.bf16.gmra.mxu0 %v1506
    %v3784 = vpop.f32.mrf.mxu0
    %v3785 = vadd.f32 %v1855, %v3784
    %v3786 = vpop.f32.mrf.mxu0
    %v3787 = vadd.f32 %v1859, %v3786
    %v3788 = vpop.f32.mrf.mxu0
    %v3789 = vadd.f32 %v1855, %v3788
    %v3790 = vpop.f32.mrf.mxu0
    %v3791 = vadd.f32 %v1859, %v3790
    %3792 = vmatprep.mubr.bf16.mxu0 %v1511
    %3793 = vmatmul.mubr.bf16.gmra.mxu0 %v1510
    %v3794 = vpop.f32.mrf.mxu0
    %v3795 = vadd.f32 %v1855, %v3794
    %v3796 = vpop.f32.mrf.mxu0
    %v3797 = vadd.f32 %v1859, %v3796
    %v3798 = vpop.f32.mrf.mxu0
    %v3799 = vadd.f32 %v1855, %v3798
    %v3800 = vpop.f32.mrf.mxu0
    %v3801 = vadd.f32 %v1859, %v3800
    %3802 = vmatprep.mubr.bf16.mxu0 %v1515
    %3803 = vmatmul.mubr.bf16.gmra.mxu0 %v1514
    %v3804 = vpop.f32.mrf.mxu0
    %v3805 = vadd.f32 %v1855, %v3804
    %v3806 = vpop.f32.mrf.mxu0
    %v3807 = vadd.f32 %v1859, %v3806
    %v3808 = vpop.f32.mrf.mxu0
    %v3809 = vadd.f32 %v1855, %v3808
    %v3810 = vpop.f32.mrf.mxu0
    %v3811 = vadd.f32 %v1859, %v3810
    %3812 = vmatprep.mubr.bf16.mxu0 %v1519
    %3813 = vmatmul.mubr.bf16.gmra.mxu0 %v1518
    %v3814 = vpop.f32.mrf.mxu0
    %v3815 = vadd.f32 %v1855, %v3814
    %v3816 = vpop.f32.mrf.mxu0
    %v3817 = vadd.f32 %v1859, %v3816
    %v3818 = vpop.f32.mrf.mxu0
    %v3819 = vadd.f32 %v1855, %v3818
    %v3820 = vpop.f32.mrf.mxu0
    %v3821 = vadd.f32 %v1859, %v3820
    %3822 = vmatprep.mubr.bf16.mxu0 %v1523
    %3823 = vmatmul.mubr.bf16.gmra.mxu0 %v1522
    %v3824 = vpop.f32.mrf.mxu0
    %v3825 = vadd.f32 %v1855, %v3824
    %v3826 = vpop.f32.mrf.mxu0
    %v3827 = vadd.f32 %v1859, %v3826
    %v3828 = vpop.f32.mrf.mxu0
    %v3829 = vadd.f32 %v1855, %v3828
    %v3830 = vpop.f32.mrf.mxu0
    %v3831 = vadd.f32 %v1859, %v3830
    %3832 = vmatprep.mubr.bf16.mxu0 %v1527
    %3833 = vmatmul.mubr.bf16.gmra.mxu0 %v1526
    %v3834 = vpop.f32.mrf.mxu0
    %v3835 = vadd.f32 %v1855, %v3834
    %v3836 = vpop.f32.mrf.mxu0
    %v3837 = vadd.f32 %v1859, %v3836
    %v3838 = vpop.f32.mrf.mxu0
    %v3839 = vadd.f32 %v1855, %v3838
    %v3840 = vpop.f32.mrf.mxu0
    %v3841 = vadd.f32 %v1859, %v3840
    %3842 = vmatprep.mubr.bf16.mxu0 %v1531
    %3843 = vmatmul.mubr.bf16.gmra.mxu0 %v1530
    %v3844 = vpop.f32.mrf.mxu0
    %v3845 = vadd.f32 %v1855, %v3844
    %v3846 = vpop.f32.mrf.mxu0
    %v3847 = vadd.f32 %v1859, %v3846
    %v3848 = vpop.f32.mrf.mxu0
    %v3849 = vadd.f32 %v1855, %v3848
    %v3850 = vpop.f32.mrf.mxu0
    %v3851 = vadd.f32 %v1859, %v3850
    %3852 = vmatprep.mubr.bf16.mxu0 %v1535
    %3853 = vmatmul.mubr.bf16.gmra.mxu0 %v1534
    %v3854 = vpop.f32.mrf.mxu0
    %v3855 = vadd.f32 %v1855, %v3854
    %v3856 = vpop.f32.mrf.mxu0
    %v3857 = vadd.f32 %v1859, %v3856
    %v3858 = vpop.f32.mrf.mxu0
    %v3859 = vadd.f32 %v1855, %v3858
    %v3860 = vpop.f32.mrf.mxu0
    %v3861 = vadd.f32 %v1859, %v3860
    %3862 = vmatprep.mubr.bf16.mxu0 %v1539
    %3863 = vmatmul.mubr.bf16.gmra.mxu0 %v1538
    %v3864 = vpop.f32.mrf.mxu0
    %v3865 = vadd.f32 %v1855, %v3864
    %v3866 = vpop.f32.mrf.mxu0
    %v3867 = vadd.f32 %v1859, %v3866
    %v3868 = vpop.f32.mrf.mxu0
    %v3869 = vadd.f32 %v1855, %v3868
    %v3870 = vpop.f32.mrf.mxu0
    %v3871 = vadd.f32 %v1859, %v3870
    %3872 = vmatprep.mubr.bf16.mxu0 %v1543
    %3873 = vmatmul.mubr.bf16.gmra.mxu0 %v1542
    %v3874 = vpop.f32.mrf.mxu0
    %v3875 = vadd.f32 %v1855, %v3874
    %v3876 = vpop.f32.mrf.mxu0
    %v3877 = vadd.f32 %v1859, %v3876
    %v3878 = vpop.f32.mrf.mxu0
    %v3879 = vadd.f32 %v1855, %v3878
    %v3880 = vpop.f32.mrf.mxu0
    %v3881 = vadd.f32 %v1859, %v3880
    %3882 = vmatprep.mubr.bf16.mxu0 %v1547
    %3883 = vmatmul.mubr.bf16.gmra.mxu0 %v1546
    %v3884 = vpop.f32.mrf.mxu0
    %v3885 = vadd.f32 %v1855, %v3884
    %v3886 = vpop.f32.mrf.mxu0
    %v3887 = vadd.f32 %v1859, %v3886
    %v3888 = vpop.f32.mrf.mxu0
    %v3889 = vadd.f32 %v1855, %v3888
    %v3890 = vpop.f32.mrf.mxu0
    %v3891 = vadd.f32 %v1859, %v3890
    %3892 = vmatprep.mubr.bf16.mxu0 %v1551
    %3893 = vmatmul.mubr.bf16.gmra.mxu0 %v1550
    %v3894 = vpop.f32.mrf.mxu0
    %v3895 = vadd.f32 %v1855, %v3894
    %v3896 = vpop.f32.mrf.mxu0
    %v3897 = vadd.f32 %v1859, %v3896
    %v3898 = vpop.f32.mrf.mxu0
    %v3899 = vadd.f32 %v1855, %v3898
    %v3900 = vpop.f32.mrf.mxu0
    %v3901 = vadd.f32 %v1859, %v3900
    %3902 = vmatprep.mubr.bf16.mxu0 %v1555
    %3903 = vmatmul.mubr.bf16.gmra.mxu0 %v1554
    %v3904 = vpop.f32.mrf.mxu0
    %v3905 = vadd.f32 %v1855, %v3904
    %v3906 = vpop.f32.mrf.mxu0
    %v3907 = vadd.f32 %v1859, %v3906
    %v3908 = vpop.f32.mrf.mxu0
    %v3909 = vadd.f32 %v1855, %v3908
    %v3910 = vpop.f32.mrf.mxu0
    %v3911 = vadd.f32 %v1859, %v3910
    %3912 = vmatprep.mubr.bf16.mxu0 %v1559
    %3913 = vmatmul.mubr.bf16.gmra.mxu0 %v1558
    %v3914 = vpop.f32.mrf.mxu0
    %v3915 = vadd.f32 %v1855, %v3914
    %v3916 = vpop.f32.mrf.mxu0
    %v3917 = vadd.f32 %v1859, %v3916
    %v3918 = vpop.f32.mrf.mxu0
    %v3919 = vadd.f32 %v1855, %v3918
    %v3920 = vpop.f32.mrf.mxu0
    %v3921 = vadd.f32 %v1859, %v3920
    %3922 = vmatprep.mubr.bf16.mxu0 %v1563
    %3923 = vmatmul.mubr.bf16.gmra.mxu0 %v1562
    %v3924 = vpop.f32.mrf.mxu0
    %v3925 = vadd.f32 %v1855, %v3924
    %v3926 = vpop.f32.mrf.mxu0
    %v3927 = vadd.f32 %v1859, %v3926
    %v3928 = vpop.f32.mrf.mxu0
    %v3929 = vadd.f32 %v1855, %v3928
    %v3930 = vpop.f32.mrf.mxu0
    %v3931 = vadd.f32 %v1859, %v3930
    %3932 = vmatprep.mubr.bf16.mxu0 %v1567
    %3933 = vmatmul.mubr.bf16.gmra.mxu0 %v1566
    %v3934 = vpop.f32.mrf.mxu0
    %v3935 = vadd.f32 %v1855, %v3934
    %v3936 = vpop.f32.mrf.mxu0
    %v3937 = vadd.f32 %v1859, %v3936
    %v3938 = vpop.f32.mrf.mxu0
    %v3939 = vadd.f32 %v1855, %v3938
    %v3940 = vpop.f32.mrf.mxu0
    %v3941 = vadd.f32 %v1859, %v3940
    %3942 = vmatprep.mubr.bf16.mxu0 %v1571
    %3943 = vmatmul.mubr.bf16.gmra.mxu0 %v1570
    %v3944 = vpop.f32.mrf.mxu0
    %v3945 = vadd.f32 %v1855, %v3944
    %v3946 = vpop.f32.mrf.mxu0
    %v3947 = vadd.f32 %v1859, %v3946
    %v3948 = vpop.f32.mrf.mxu0
    %v3949 = vadd.f32 %v1855, %v3948
    %v3950 = vpop.f32.mrf.mxu0
    %v3951 = vadd.f32 %v1859, %v3950
    %3952 = vmatprep.mubr.bf16.mxu0 %v1575
    %3953 = vmatmul.mubr.bf16.gmra.mxu0 %v1574
    %v3954 = vpop.f32.mrf.mxu0
    %v3955 = vadd.f32 %v1855, %v3954
    %v3956 = vpop.f32.mrf.mxu0
    %v3957 = vadd.f32 %v1859, %v3956
    %v3958 = vpop.f32.mrf.mxu0
    %v3959 = vadd.f32 %v1855, %v3958
    %v3960 = vpop.f32.mrf.mxu0
    %v3961 = vadd.f32 %v1859, %v3960
    %3962 = vmatprep.mubr.bf16.mxu0 %v1579
    %3963 = vmatmul.mubr.bf16.gmra.mxu0 %v1578
    %v3964 = vpop.f32.mrf.mxu0
    %v3965 = vadd.f32 %v1855, %v3964
    %v3966 = vpop.f32.mrf.mxu0
    %v3967 = vadd.f32 %v1859, %v3966
    %v3968 = vpop.f32.mrf.mxu0
    %v3969 = vadd.f32 %v1855, %v3968
    %v3970 = vpop.f32.mrf.mxu0
    %v3971 = vadd.f32 %v1859, %v3970
    %3972 = vmatprep.mubr.bf16.mxu0 %v1583
    %3973 = vmatmul.mubr.bf16.gmra.mxu0 %v1582
    %v3974 = vpop.f32.mrf.mxu0
    %v3975 = vadd.f32 %v1855, %v3974
    %v3976 = vpop.f32.mrf.mxu0
    %v3977 = vadd.f32 %v1859, %v3976
    %v3978 = vpop.f32.mrf.mxu0
    %v3979 = vadd.f32 %v1855, %v3978
    %v3980 = vpop.f32.mrf.mxu0
    %v3981 = vadd.f32 %v1859, %v3980
    %3982 = vdwg.mxu0
    %3983 = vmatprep.subr.bf16.mxu0 %v2839
    %3984 = vmatpush1.bf16.msra.mxu0 %v2838
    %3985 = vmatprep.subr.bf16.mxu0 %v2831
    %3986 = vmatpush1.bf16.msra.mxu0 %v2830
    %3987 = vmatprep.subr.bf16.mxu0 %v2823
    %3988 = vmatpush1.bf16.msra.mxu0 %v2822
    %3989 = vmatprep.subr.bf16.mxu0 %v2815
    %3990 = vmatpush1.bf16.msra.mxu0 %v2814
    %3991 = vmatprep.subr.bf16.mxu0 %v2807
    %3992 = vmatpush1.bf16.msra.mxu0 %v2806
    %3993 = vmatprep.subr.bf16.mxu0 %v2799
    %3994 = vmatpush1.bf16.msra.mxu0 %v2798
    %3995 = vmatprep.subr.bf16.mxu0 %v2791
    %3996 = vmatpush1.bf16.msra.mxu0 %v2790
    %3997 = vmatprep.subr.bf16.mxu0 %v2783
    %3998 = vmatpush1.bf16.msra.mxu0 %v2782
    %3999 = vmatprep.subr.bf16.mxu0 %v2903
    %4000 = vmatpush2.bf16.msra.mxu0 %v2902
    %4001 = vmatprep.subr.bf16.mxu0 %v2895
    %4002 = vmatpush2.bf16.msra.mxu0 %v2894
    %4003 = vmatprep.subr.bf16.mxu0 %v2887
    %4004 = vmatpush2.bf16.msra.mxu0 %v2886
    %4005 = vmatprep.subr.bf16.mxu0 %v2879
    %4006 = vmatpush2.bf16.msra.mxu0 %v2878
    %4007 = vmatprep.subr.bf16.mxu0 %v2871
    %4008 = vmatpush2.bf16.msra.mxu0 %v2870
    %4009 = vmatprep.subr.bf16.mxu0 %v2863
    %4010 = vmatpush2.bf16.msra.mxu0 %v2862
    %4011 = vmatprep.subr.bf16.mxu0 %v2855
    %4012 = vmatpush2.bf16.msra.mxu0 %v2854
    %4013 = vmatprep.subr.bf16.mxu0 %v2847
    %4014 = vmatpush2.bf16.msra.mxu0 %v2846
    %4015 = vmatprep.mubr.bf16.mxu0 %v1493
    %4016 = vmatmul.mubr.bf16.gmra.mxu0 %v1492
    %v4017 = vpop.f32.mrf.mxu0
    %v4018 = vadd.f32 %v3745, %v4017
    %v4019 = vpop.f32.mrf.mxu0
    %v4020 = vadd.f32 %v3747, %v4019
    %v4021 = vpop.f32.mrf.mxu0
    %v4022 = vadd.f32 %v3749, %v4021
    %v4023 = vpop.f32.mrf.mxu0
    %v4024 = vadd.f32 %v3751, %v4023
    %4025 = vmatprep.mubr.bf16.mxu0 %v1497
    %4026 = vmatmul.mubr.bf16.gmra.mxu0 %v1496
    %v4027 = vpop.f32.mrf.mxu0
    %v4028 = vadd.f32 %v3755, %v4027
    %v4029 = vpop.f32.mrf.mxu0
    %v4030 = vadd.f32 %v3757, %v4029
    %v4031 = vpop.f32.mrf.mxu0
    %v4032 = vadd.f32 %v3759, %v4031
    %v4033 = vpop.f32.mrf.mxu0
    %v4034 = vadd.f32 %v3761, %v4033
    %4035 = vmatprep.mubr.bf16.mxu0 %v1501
    %4036 = vmatmul.mubr.bf16.gmra.mxu0 %v1500
    %v4037 = vpop.f32.mrf.mxu0
    %v4038 = vadd.f32 %v3765, %v4037
    %v4039 = vpop.f32.mrf.mxu0
    %v4040 = vadd.f32 %v3767, %v4039
    %v4041 = vpop.f32.mrf.mxu0
    %v4042 = vadd.f32 %v3769, %v4041
    %v4043 = vpop.f32.mrf.mxu0
    %v4044 = vadd.f32 %v3771, %v4043
    %4045 = vmatprep.mubr.bf16.mxu0 %v1505
    %4046 = vmatmul.mubr.bf16.gmra.mxu0 %v1504
    %v4047 = vpop.f32.mrf.mxu0
    %v4048 = vadd.f32 %v3775, %v4047
    %v4049 = vpop.f32.mrf.mxu0
    %v4050 = vadd.f32 %v3777, %v4049
    %v4051 = vpop.f32.mrf.mxu0
    %v4052 = vadd.f32 %v3779, %v4051
    %v4053 = vpop.f32.mrf.mxu0
    %v4054 = vadd.f32 %v3781, %v4053
    %4055 = vmatprep.mubr.bf16.mxu0 %v1509
    %4056 = vmatmul.mubr.bf16.gmra.mxu0 %v1508
    %v4057 = vpop.f32.mrf.mxu0
    %v4058 = vadd.f32 %v3785, %v4057
    %v4059 = vpop.f32.mrf.mxu0
    %v4060 = vadd.f32 %v3787, %v4059
    %v4061 = vpop.f32.mrf.mxu0
    %v4062 = vadd.f32 %v3789, %v4061
    %v4063 = vpop.f32.mrf.mxu0
    %v4064 = vadd.f32 %v3791, %v4063
    %4065 = vmatprep.mubr.bf16.mxu0 %v1513
    %4066 = vmatmul.mubr.bf16.gmra.mxu0 %v1512
    %v4067 = vpop.f32.mrf.mxu0
    %v4068 = vadd.f32 %v3795, %v4067
    %v4069 = vpop.f32.mrf.mxu0
    %v4070 = vadd.f32 %v3797, %v4069
    %v4071 = vpop.f32.mrf.mxu0
    %v4072 = vadd.f32 %v3799, %v4071
    %v4073 = vpop.f32.mrf.mxu0
    %v4074 = vadd.f32 %v3801, %v4073
    %4075 = vmatprep.mubr.bf16.mxu0 %v1517
    %4076 = vmatmul.mubr.bf16.gmra.mxu0 %v1516
    %v4077 = vpop.f32.mrf.mxu0
    %v4078 = vadd.f32 %v3805, %v4077
    %v4079 = vpop.f32.mrf.mxu0
    %v4080 = vadd.f32 %v3807, %v4079
    %v4081 = vpop.f32.mrf.mxu0
    %v4082 = vadd.f32 %v3809, %v4081
    %v4083 = vpop.f32.mrf.mxu0
    %v4084 = vadd.f32 %v3811, %v4083
    %4085 = vmatprep.mubr.bf16.mxu0 %v1521
    %4086 = vmatmul.mubr.bf16.gmra.mxu0 %v1520
    %v4087 = vpop.f32.mrf.mxu0
    %v4088 = vadd.f32 %v3815, %v4087
    %v4089 = vpop.f32.mrf.mxu0
    %v4090 = vadd.f32 %v3817, %v4089
    %v4091 = vpop.f32.mrf.mxu0
    %v4092 = vadd.f32 %v3819, %v4091
    %v4093 = vpop.f32.mrf.mxu0
    %v4094 = vadd.f32 %v3821, %v4093
    %4095 = vmatprep.mubr.bf16.mxu0 %v1525
    %4096 = vmatmul.mubr.bf16.gmra.mxu0 %v1524
    %v4097 = vpop.f32.mrf.mxu0
    %v4098 = vadd.f32 %v3825, %v4097
    %v4099 = vpop.f32.mrf.mxu0
    %v4100 = vadd.f32 %v3827, %v4099
    %v4101 = vpop.f32.mrf.mxu0
    %v4102 = vadd.f32 %v3829, %v4101
    %v4103 = vpop.f32.mrf.mxu0
    %v4104 = vadd.f32 %v3831, %v4103
    %4105 = vmatprep.mubr.bf16.mxu0 %v1529
    %4106 = vmatmul.mubr.bf16.gmra.mxu0 %v1528
    %v4107 = vpop.f32.mrf.mxu0
    %v4108 = vadd.f32 %v3835, %v4107
    %v4109 = vpop.f32.mrf.mxu0
    %v4110 = vadd.f32 %v3837, %v4109
    %v4111 = vpop.f32.mrf.mxu0
    %v4112 = vadd.f32 %v3839, %v4111
    %v4113 = vpop.f32.mrf.mxu0
    %v4114 = vadd.f32 %v3841, %v4113
    %4115 = vmatprep.mubr.bf16.mxu0 %v1533
    %4116 = vmatmul.mubr.bf16.gmra.mxu0 %v1532
    %v4117 = vpop.f32.mrf.mxu0
    %v4118 = vadd.f32 %v3845, %v4117
    %v4119 = vpop.f32.mrf.mxu0
    %v4120 = vadd.f32 %v3847, %v4119
    %v4121 = vpop.f32.mrf.mxu0
    %v4122 = vadd.f32 %v3849, %v4121
    %v4123 = vpop.f32.mrf.mxu0
    %v4124 = vadd.f32 %v3851, %v4123
    %4125 = vmatprep.mubr.bf16.mxu0 %v1537
    %4126 = vmatmul.mubr.bf16.gmra.mxu0 %v1536
    %v4127 = vpop.f32.mrf.mxu0
    %v4128 = vadd.f32 %v3855, %v4127
    %v4129 = vpop.f32.mrf.mxu0
    %v4130 = vadd.f32 %v3857, %v4129
    %v4131 = vpop.f32.mrf.mxu0
    %v4132 = vadd.f32 %v3859, %v4131
    %v4133 = vpop.f32.mrf.mxu0
    %v4134 = vadd.f32 %v3861, %v4133
    %4135 = vmatprep.mubr.bf16.mxu0 %v1541
    %4136 = vmatmul.mubr.bf16.gmra.mxu0 %v1540
    %v4137 = vpop.f32.mrf.mxu0
    %v4138 = vadd.f32 %v3865, %v4137
    %v4139 = vpop.f32.mrf.mxu0
    %v4140 = vadd.f32 %v3867, %v4139
    %v4141 = vpop.f32.mrf.mxu0
    %v4142 = vadd.f32 %v3869, %v4141
    %v4143 = vpop.f32.mrf.mxu0
    %v4144 = vadd.f32 %v3871, %v4143
    %4145 = vmatprep.mubr.bf16.mxu0 %v1545
    %4146 = vmatmul.mubr.bf16.gmra.mxu0 %v1544
    %v4147 = vpop.f32.mrf.mxu0
    %v4148 = vadd.f32 %v3875, %v4147
    %v4149 = vpop.f32.mrf.mxu0
    %v4150 = vadd.f32 %v3877, %v4149
    %v4151 = vpop.f32.mrf.mxu0
    %v4152 = vadd.f32 %v3879, %v4151
    %v4153 = vpop.f32.mrf.mxu0
    %v4154 = vadd.f32 %v3881, %v4153
    %4155 = vmatprep.mubr.bf16.mxu0 %v1549
    %4156 = vmatmul.mubr.bf16.gmra.mxu0 %v1548
    %v4157 = vpop.f32.mrf.mxu0
    %v4158 = vadd.f32 %v3885, %v4157
    %v4159 = vpop.f32.mrf.mxu0
    %v4160 = vadd.f32 %v3887, %v4159
    %v4161 = vpop.f32.mrf.mxu0
    %v4162 = vadd.f32 %v3889, %v4161
    %v4163 = vpop.f32.mrf.mxu0
    %v4164 = vadd.f32 %v3891, %v4163
    %4165 = vmatprep.mubr.bf16.mxu0 %v1553
    %4166 = vmatmul.mubr.bf16.gmra.mxu0 %v1552
    %v4167 = vpop.f32.mrf.mxu0
    %v4168 = vadd.f32 %v3895, %v4167
    %v4169 = vpop.f32.mrf.mxu0
    %v4170 = vadd.f32 %v3897, %v4169
    %v4171 = vpop.f32.mrf.mxu0
    %v4172 = vadd.f32 %v3899, %v4171
    %v4173 = vpop.f32.mrf.mxu0
    %v4174 = vadd.f32 %v3901, %v4173
    %4175 = vmatprep.mubr.bf16.mxu0 %v1557
    %4176 = vmatmul.mubr.bf16.gmra.mxu0 %v1556
    %v4177 = vpop.f32.mrf.mxu0
    %v4178 = vadd.f32 %v3905, %v4177
    %v4179 = vpop.f32.mrf.mxu0
    %v4180 = vadd.f32 %v3907, %v4179
    %v4181 = vpop.f32.mrf.mxu0
    %v4182 = vadd.f32 %v3909, %v4181
    %v4183 = vpop.f32.mrf.mxu0
    %v4184 = vadd.f32 %v3911, %v4183
    %4185 = vmatprep.mubr.bf16.mxu0 %v1561
    %4186 = vmatmul.mubr.bf16.gmra.mxu0 %v1560
    %v4187 = vpop.f32.mrf.mxu0
    %v4188 = vadd.f32 %v3915, %v4187
    %v4189 = vpop.f32.mrf.mxu0
    %v4190 = vadd.f32 %v3917, %v4189
    %v4191 = vpop.f32.mrf.mxu0
    %v4192 = vadd.f32 %v3919, %v4191
    %v4193 = vpop.f32.mrf.mxu0
    %v4194 = vadd.f32 %v3921, %v4193
    %4195 = vmatprep.mubr.bf16.mxu0 %v1565
    %4196 = vmatmul.mubr.bf16.gmra.mxu0 %v1564
    %v4197 = vpop.f32.mrf.mxu0
    %v4198 = vadd.f32 %v3925, %v4197
    %v4199 = vpop.f32.mrf.mxu0
    %v4200 = vadd.f32 %v3927, %v4199
    %v4201 = vpop.f32.mrf.mxu0
    %v4202 = vadd.f32 %v3929, %v4201
    %v4203 = vpop.f32.mrf.mxu0
    %v4204 = vadd.f32 %v3931, %v4203
    %4205 = vmatprep.mubr.bf16.mxu0 %v1569
    %4206 = vmatmul.mubr.bf16.gmra.mxu0 %v1568
    %v4207 = vpop.f32.mrf.mxu0
    %v4208 = vadd.f32 %v3935, %v4207
    %v4209 = vpop.f32.mrf.mxu0
    %v4210 = vadd.f32 %v3937, %v4209
    %v4211 = vpop.f32.mrf.mxu0
    %v4212 = vadd.f32 %v3939, %v4211
    %v4213 = vpop.f32.mrf.mxu0
    %v4214 = vadd.f32 %v3941, %v4213
    %4215 = vmatprep.mubr.bf16.mxu0 %v1573
    %4216 = vmatmul.mubr.bf16.gmra.mxu0 %v1572
    %v4217 = vpop.f32.mrf.mxu0
    %v4218 = vadd.f32 %v3945, %v4217
    %v4219 = vpop.f32.mrf.mxu0
    %v4220 = vadd.f32 %v3947, %v4219
    %v4221 = vpop.f32.mrf.mxu0
    %v4222 = vadd.f32 %v3949, %v4221
    %v4223 = vpop.f32.mrf.mxu0
    %v4224 = vadd.f32 %v3951, %v4223
    %4225 = vmatprep.mubr.bf16.mxu0 %v1577
    %4226 = vmatmul.mubr.bf16.gmra.mxu0 %v1576
    %v4227 = vpop.f32.mrf.mxu0
    %v4228 = vadd.f32 %v3955, %v4227
    %v4229 = vpop.f32.mrf.mxu0
    %v4230 = vadd.f32 %v3957, %v4229
    %v4231 = vpop.f32.mrf.mxu0
    %v4232 = vadd.f32 %v3959, %v4231
    %v4233 = vpop.f32.mrf.mxu0
    %v4234 = vadd.f32 %v3961, %v4233
    %4235 = vmatprep.mubr.bf16.mxu0 %v1581
    %4236 = vmatmul.mubr.bf16.gmra.mxu0 %v1580
    %v4237 = vpop.f32.mrf.mxu0
    %v4238 = vadd.f32 %v3965, %v4237
    %v4239 = vpop.f32.mrf.mxu0
    %v4240 = vadd.f32 %v3967, %v4239
    %v4241 = vpop.f32.mrf.mxu0
    %v4242 = vadd.f32 %v3969, %v4241
    %v4243 = vpop.f32.mrf.mxu0
    %v4244 = vadd.f32 %v3971, %v4243
    %4245 = vmatprep.mubr.bf16.mxu0 %v1585
    %4246 = vmatmul.mubr.bf16.gmra.mxu0 %v1584
    %v4247 = vpop.f32.mrf.mxu0
    %v4248 = vadd.f32 %v3975, %v4247
    %v4249 = vpop.f32.mrf.mxu0
    %v4250 = vadd.f32 %v3977, %v4249
    %v4251 = vpop.f32.mrf.mxu0
    %v4252 = vadd.f32 %v3979, %v4251
    %v4253 = vpop.f32.mrf.mxu0
    %v4254 = vadd.f32 %v3981, %v4253
    %4255 = vdwg.mxu0
    %4256 = vmatprep.subr.bf16.mxu0 %v2713
    %4257 = vmatpush1.bf16.msra.mxu0 %v2712
    %4258 = vmatprep.subr.bf16.mxu0 %v2705
    %4259 = vmatpush1.bf16.msra.mxu0 %v2704
    %4260 = vmatprep.subr.bf16.mxu0 %v2697
    %4261 = vmatpush1.bf16.msra.mxu0 %v2696
    %4262 = vmatprep.subr.bf16.mxu0 %v2689
    %4263 = vmatpush1.bf16.msra.mxu0 %v2688
    %4264 = vmatprep.subr.bf16.mxu0 %v2681
    %4265 = vmatpush1.bf16.msra.mxu0 %v2680
    %4266 = vmatprep.subr.bf16.mxu0 %v2673
    %4267 = vmatpush1.bf16.msra.mxu0 %v2672
    %4268 = vmatprep.subr.bf16.mxu0 %v2665
    %4269 = vmatpush1.bf16.msra.mxu0 %v2664
    %4270 = vmatprep.subr.bf16.mxu0 %v2657
    %4271 = vmatpush1.bf16.msra.mxu0 %v2656
    %4272 = vmatprep.subr.bf16.mxu0 %v2777
    %4273 = vmatpush2.bf16.msra.mxu0 %v2776
    %4274 = vmatprep.subr.bf16.mxu0 %v2769
    %4275 = vmatpush2.bf16.msra.mxu0 %v2768
    %4276 = vmatprep.subr.bf16.mxu0 %v2761
    %4277 = vmatpush2.bf16.msra.mxu0 %v2760
    %4278 = vmatprep.subr.bf16.mxu0 %v2753
    %4279 = vmatpush2.bf16.msra.mxu0 %v2752
    %4280 = vmatprep.subr.bf16.mxu0 %v2745
    %4281 = vmatpush2.bf16.msra.mxu0 %v2744
    %4282 = vmatprep.subr.bf16.mxu0 %v2737
    %4283 = vmatpush2.bf16.msra.mxu0 %v2736
    %4284 = vmatprep.subr.bf16.mxu0 %v2729
    %4285 = vmatpush2.bf16.msra.mxu0 %v2728
    %4286 = vmatprep.subr.bf16.mxu0 %v2721
    %4287 = vmatpush2.bf16.msra.mxu0 %v2720
    %4288 = vmatprep.mubr.bf16.mxu0 %v1491
    %4289 = vmatmul.mubr.bf16.gmra.mxu0 %v1490
    %v4290 = vpop.f32.mrf.mxu0
    %v4291 = vadd.f32 %v1863, %v4290
    %v4292 = vpop.f32.mrf.mxu0
    %v4293 = vadd.f32 %v1867, %v4292
    %v4294 = vpop.f32.mrf.mxu0
    %v4295 = vadd.f32 %v1863, %v4294
    %v4296 = vpop.f32.mrf.mxu0
    %v4297 = vadd.f32 %v1867, %v4296
    %4298 = vmatprep.mubr.bf16.mxu0 %v1495
    %4299 = vmatmul.mubr.bf16.gmra.mxu0 %v1494
    %v4300 = vpop.f32.mrf.mxu0
    %v4301 = vadd.f32 %v1863, %v4300
    %v4302 = vpop.f32.mrf.mxu0
    %v4303 = vadd.f32 %v1867, %v4302
    %v4304 = vpop.f32.mrf.mxu0
    %v4305 = vadd.f32 %v1863, %v4304
    %v4306 = vpop.f32.mrf.mxu0
    %v4307 = vadd.f32 %v1867, %v4306
    %4308 = vmatprep.mubr.bf16.mxu0 %v1499
    %4309 = vmatmul.mubr.bf16.gmra.mxu0 %v1498
    %v4310 = vpop.f32.mrf.mxu0
    %v4311 = vadd.f32 %v1863, %v4310
    %v4312 = vpop.f32.mrf.mxu0
    %v4313 = vadd.f32 %v1867, %v4312
    %v4314 = vpop.f32.mrf.mxu0
    %v4315 = vadd.f32 %v1863, %v4314
    %v4316 = vpop.f32.mrf.mxu0
    %v4317 = vadd.f32 %v1867, %v4316
    %4318 = vmatprep.mubr.bf16.mxu0 %v1503
    %4319 = vmatmul.mubr.bf16.gmra.mxu0 %v1502
    %v4320 = vpop.f32.mrf.mxu0
    %v4321 = vadd.f32 %v1863, %v4320
    %v4322 = vpop.f32.mrf.mxu0
    %v4323 = vadd.f32 %v1867, %v4322
    %v4324 = vpop.f32.mrf.mxu0
    %v4325 = vadd.f32 %v1863, %v4324
    %v4326 = vpop.f32.mrf.mxu0
    %v4327 = vadd.f32 %v1867, %v4326
    %4328 = vmatprep.mubr.bf16.mxu0 %v1507
    %4329 = vmatmul.mubr.bf16.gmra.mxu0 %v1506
    %v4330 = vpop.f32.mrf.mxu0
    %v4331 = vadd.f32 %v1863, %v4330
    %v4332 = vpop.f32.mrf.mxu0
    %v4333 = vadd.f32 %v1867, %v4332
    %v4334 = vpop.f32.mrf.mxu0
    %v4335 = vadd.f32 %v1863, %v4334
    %v4336 = vpop.f32.mrf.mxu0
    %v4337 = vadd.f32 %v1867, %v4336
    %4338 = vmatprep.mubr.bf16.mxu0 %v1511
    %4339 = vmatmul.mubr.bf16.gmra.mxu0 %v1510
    %v4340 = vpop.f32.mrf.mxu0
    %v4341 = vadd.f32 %v1863, %v4340
    %v4342 = vpop.f32.mrf.mxu0
    %v4343 = vadd.f32 %v1867, %v4342
    %v4344 = vpop.f32.mrf.mxu0
    %v4345 = vadd.f32 %v1863, %v4344
    %v4346 = vpop.f32.mrf.mxu0
    %v4347 = vadd.f32 %v1867, %v4346
    %4348 = vmatprep.mubr.bf16.mxu0 %v1515
    %4349 = vmatmul.mubr.bf16.gmra.mxu0 %v1514
    %v4350 = vpop.f32.mrf.mxu0
    %v4351 = vadd.f32 %v1863, %v4350
    %v4352 = vpop.f32.mrf.mxu0
    %v4353 = vadd.f32 %v1867, %v4352
    %v4354 = vpop.f32.mrf.mxu0
    %v4355 = vadd.f32 %v1863, %v4354
    %v4356 = vpop.f32.mrf.mxu0
    %v4357 = vadd.f32 %v1867, %v4356
    %4358 = vmatprep.mubr.bf16.mxu0 %v1519
    %4359 = vmatmul.mubr.bf16.gmra.mxu0 %v1518
    %v4360 = vpop.f32.mrf.mxu0
    %v4361 = vadd.f32 %v1863, %v4360
    %v4362 = vpop.f32.mrf.mxu0
    %v4363 = vadd.f32 %v1867, %v4362
    %v4364 = vpop.f32.mrf.mxu0
    %v4365 = vadd.f32 %v1863, %v4364
    %v4366 = vpop.f32.mrf.mxu0
    %v4367 = vadd.f32 %v1867, %v4366
    %4368 = vmatprep.mubr.bf16.mxu0 %v1523
    %4369 = vmatmul.mubr.bf16.gmra.mxu0 %v1522
    %v4370 = vpop.f32.mrf.mxu0
    %v4371 = vadd.f32 %v1863, %v4370
    %v4372 = vpop.f32.mrf.mxu0
    %v4373 = vadd.f32 %v1867, %v4372
    %v4374 = vpop.f32.mrf.mxu0
    %v4375 = vadd.f32 %v1863, %v4374
    %v4376 = vpop.f32.mrf.mxu0
    %v4377 = vadd.f32 %v1867, %v4376
    %4378 = vmatprep.mubr.bf16.mxu0 %v1527
    %4379 = vmatmul.mubr.bf16.gmra.mxu0 %v1526
    %v4380 = vpop.f32.mrf.mxu0
    %v4381 = vadd.f32 %v1863, %v4380
    %v4382 = vpop.f32.mrf.mxu0
    %v4383 = vadd.f32 %v1867, %v4382
    %v4384 = vpop.f32.mrf.mxu0
    %v4385 = vadd.f32 %v1863, %v4384
    %v4386 = vpop.f32.mrf.mxu0
    %v4387 = vadd.f32 %v1867, %v4386
    %4388 = vmatprep.mubr.bf16.mxu0 %v1531
    %4389 = vmatmul.mubr.bf16.gmra.mxu0 %v1530
    %v4390 = vpop.f32.mrf.mxu0
    %v4391 = vadd.f32 %v1863, %v4390
    %v4392 = vpop.f32.mrf.mxu0
    %v4393 = vadd.f32 %v1867, %v4392
    %v4394 = vpop.f32.mrf.mxu0
    %v4395 = vadd.f32 %v1863, %v4394
    %v4396 = vpop.f32.mrf.mxu0
    %v4397 = vadd.f32 %v1867, %v4396
    %4398 = vmatprep.mubr.bf16.mxu0 %v1535
    %4399 = vmatmul.mubr.bf16.gmra.mxu0 %v1534
    %v4400 = vpop.f32.mrf.mxu0
    %v4401 = vadd.f32 %v1863, %v4400
    %v4402 = vpop.f32.mrf.mxu0
    %v4403 = vadd.f32 %v1867, %v4402
    %v4404 = vpop.f32.mrf.mxu0
    %v4405 = vadd.f32 %v1863, %v4404
    %v4406 = vpop.f32.mrf.mxu0
    %v4407 = vadd.f32 %v1867, %v4406
    %4408 = vmatprep.mubr.bf16.mxu0 %v1539
    %4409 = vmatmul.mubr.bf16.gmra.mxu0 %v1538
    %v4410 = vpop.f32.mrf.mxu0
    %v4411 = vadd.f32 %v1863, %v4410
    %v4412 = vpop.f32.mrf.mxu0
    %v4413 = vadd.f32 %v1867, %v4412
    %v4414 = vpop.f32.mrf.mxu0
    %v4415 = vadd.f32 %v1863, %v4414
    %v4416 = vpop.f32.mrf.mxu0
    %v4417 = vadd.f32 %v1867, %v4416
    %4418 = vmatprep.mubr.bf16.mxu0 %v1543
    %4419 = vmatmul.mubr.bf16.gmra.mxu0 %v1542
    %v4420 = vpop.f32.mrf.mxu0
    %v4421 = vadd.f32 %v1863, %v4420
    %v4422 = vpop.f32.mrf.mxu0
    %v4423 = vadd.f32 %v1867, %v4422
    %v4424 = vpop.f32.mrf.mxu0
    %v4425 = vadd.f32 %v1863, %v4424
    %v4426 = vpop.f32.mrf.mxu0
    %v4427 = vadd.f32 %v1867, %v4426
    %4428 = vmatprep.mubr.bf16.mxu0 %v1547
    %4429 = vmatmul.mubr.bf16.gmra.mxu0 %v1546
    %v4430 = vpop.f32.mrf.mxu0
    %v4431 = vadd.f32 %v1863, %v4430
    %v4432 = vpop.f32.mrf.mxu0
    %v4433 = vadd.f32 %v1867, %v4432
    %v4434 = vpop.f32.mrf.mxu0
    %v4435 = vadd.f32 %v1863, %v4434
    %v4436 = vpop.f32.mrf.mxu0
    %v4437 = vadd.f32 %v1867, %v4436
    %4438 = vmatprep.mubr.bf16.mxu0 %v1551
    %4439 = vmatmul.mubr.bf16.gmra.mxu0 %v1550
    %v4440 = vpop.f32.mrf.mxu0
    %v4441 = vadd.f32 %v1863, %v4440
    %v4442 = vpop.f32.mrf.mxu0
    %v4443 = vadd.f32 %v1867, %v4442
    %v4444 = vpop.f32.mrf.mxu0
    %v4445 = vadd.f32 %v1863, %v4444
    %v4446 = vpop.f32.mrf.mxu0
    %v4447 = vadd.f32 %v1867, %v4446
    %4448 = vmatprep.mubr.bf16.mxu0 %v1555
    %4449 = vmatmul.mubr.bf16.gmra.mxu0 %v1554
    %v4450 = vpop.f32.mrf.mxu0
    %v4451 = vadd.f32 %v1863, %v4450
    %v4452 = vpop.f32.mrf.mxu0
    %v4453 = vadd.f32 %v1867, %v4452
    %v4454 = vpop.f32.mrf.mxu0
    %v4455 = vadd.f32 %v1863, %v4454
    %v4456 = vpop.f32.mrf.mxu0
    %v4457 = vadd.f32 %v1867, %v4456
    %4458 = vmatprep.mubr.bf16.mxu0 %v1559
    %4459 = vmatmul.mubr.bf16.gmra.mxu0 %v1558
    %v4460 = vpop.f32.mrf.mxu0
    %v4461 = vadd.f32 %v1863, %v4460
    %v4462 = vpop.f32.mrf.mxu0
    %v4463 = vadd.f32 %v1867, %v4462
    %v4464 = vpop.f32.mrf.mxu0
    %v4465 = vadd.f32 %v1863, %v4464
    %v4466 = vpop.f32.mrf.mxu0
    %v4467 = vadd.f32 %v1867, %v4466
    %4468 = vmatprep.mubr.bf16.mxu0 %v1563
    %4469 = vmatmul.mubr.bf16.gmra.mxu0 %v1562
    %v4470 = vpop.f32.mrf.mxu0
    %v4471 = vadd.f32 %v1863, %v4470
    %v4472 = vpop.f32.mrf.mxu0
    %v4473 = vadd.f32 %v1867, %v4472
    %v4474 = vpop.f32.mrf.mxu0
    %v4475 = vadd.f32 %v1863, %v4474
    %v4476 = vpop.f32.mrf.mxu0
    %v4477 = vadd.f32 %v1867, %v4476
    %4478 = vmatprep.mubr.bf16.mxu0 %v1567
    %4479 = vmatmul.mubr.bf16.gmra.mxu0 %v1566
    %v4480 = vpop.f32.mrf.mxu0
    %v4481 = vadd.f32 %v1863, %v4480
    %v4482 = vpop.f32.mrf.mxu0
    %v4483 = vadd.f32 %v1867, %v4482
    %v4484 = vpop.f32.mrf.mxu0
    %v4485 = vadd.f32 %v1863, %v4484
    %v4486 = vpop.f32.mrf.mxu0
    %v4487 = vadd.f32 %v1867, %v4486
    %4488 = vmatprep.mubr.bf16.mxu0 %v1571
    %4489 = vmatmul.mubr.bf16.gmra.mxu0 %v1570
    %v4490 = vpop.f32.mrf.mxu0
    %v4491 = vadd.f32 %v1863, %v4490
    %v4492 = vpop.f32.mrf.mxu0
    %v4493 = vadd.f32 %v1867, %v4492
    %v4494 = vpop.f32.mrf.mxu0
    %v4495 = vadd.f32 %v1863, %v4494
    %v4496 = vpop.f32.mrf.mxu0
    %v4497 = vadd.f32 %v1867, %v4496
    %4498 = vmatprep.mubr.bf16.mxu0 %v1575
    %4499 = vmatmul.mubr.bf16.gmra.mxu0 %v1574
    %v4500 = vpop.f32.mrf.mxu0
    %v4501 = vadd.f32 %v1863, %v4500
    %v4502 = vpop.f32.mrf.mxu0
    %v4503 = vadd.f32 %v1867, %v4502
    %v4504 = vpop.f32.mrf.mxu0
    %v4505 = vadd.f32 %v1863, %v4504
    %v4506 = vpop.f32.mrf.mxu0
    %v4507 = vadd.f32 %v1867, %v4506
    %4508 = vmatprep.mubr.bf16.mxu0 %v1579
    %4509 = vmatmul.mubr.bf16.gmra.mxu0 %v1578
    %v4510 = vpop.f32.mrf.mxu0
    %v4511 = vadd.f32 %v1863, %v4510
    %v4512 = vpop.f32.mrf.mxu0
    %v4513 = vadd.f32 %v1867, %v4512
    %v4514 = vpop.f32.mrf.mxu0
    %v4515 = vadd.f32 %v1863, %v4514
    %v4516 = vpop.f32.mrf.mxu0
    %v4517 = vadd.f32 %v1867, %v4516
    %4518 = vmatprep.mubr.bf16.mxu0 %v1583
    %4519 = vmatmul.mubr.bf16.gmra.mxu0 %v1582
    %v4520 = vpop.f32.mrf.mxu0
    %v4521 = vadd.f32 %v1863, %v4520
    %v4522 = vpop.f32.mrf.mxu0
    %v4523 = vadd.f32 %v1867, %v4522
    %v4524 = vpop.f32.mrf.mxu0
    %v4525 = vadd.f32 %v1863, %v4524
    %v4526 = vpop.f32.mrf.mxu0
    %v4527 = vadd.f32 %v1867, %v4526
    %4528 = vdwg.mxu0
    %4529 = vmatprep.subr.bf16.mxu0 %v2841
    %4530 = vmatpush1.bf16.msra.mxu0 %v2840
    %4531 = vmatprep.subr.bf16.mxu0 %v2833
    %4532 = vmatpush1.bf16.msra.mxu0 %v2832
    %4533 = vmatprep.subr.bf16.mxu0 %v2825
    %4534 = vmatpush1.bf16.msra.mxu0 %v2824
    %4535 = vmatprep.subr.bf16.mxu0 %v2817
    %4536 = vmatpush1.bf16.msra.mxu0 %v2816
    %4537 = vmatprep.subr.bf16.mxu0 %v2809
    %4538 = vmatpush1.bf16.msra.mxu0 %v2808
    %4539 = vmatprep.subr.bf16.mxu0 %v2801
    %4540 = vmatpush1.bf16.msra.mxu0 %v2800
    %4541 = vmatprep.subr.bf16.mxu0 %v2793
    %4542 = vmatpush1.bf16.msra.mxu0 %v2792
    %4543 = vmatprep.subr.bf16.mxu0 %v2785
    %4544 = vmatpush1.bf16.msra.mxu0 %v2784
    %4545 = vmatprep.subr.bf16.mxu0 %v2905
    %4546 = vmatpush2.bf16.msra.mxu0 %v2904
    %4547 = vmatprep.subr.bf16.mxu0 %v2897
    %4548 = vmatpush2.bf16.msra.mxu0 %v2896
    %4549 = vmatprep.subr.bf16.mxu0 %v2889
    %4550 = vmatpush2.bf16.msra.mxu0 %v2888
    %4551 = vmatprep.subr.bf16.mxu0 %v2881
    %4552 = vmatpush2.bf16.msra.mxu0 %v2880
    %4553 = vmatprep.subr.bf16.mxu0 %v2873
    %4554 = vmatpush2.bf16.msra.mxu0 %v2872
    %4555 = vmatprep.subr.bf16.mxu0 %v2865
    %4556 = vmatpush2.bf16.msra.mxu0 %v2864
    %4557 = vmatprep.subr.bf16.mxu0 %v2857
    %4558 = vmatpush2.bf16.msra.mxu0 %v2856
    %4559 = vmatprep.subr.bf16.mxu0 %v2849
    %4560 = vmatpush2.bf16.msra.mxu0 %v2848
    %4561 = vmatprep.mubr.bf16.mxu0 %v1493
    %4562 = vmatmul.mubr.bf16.gmra.mxu0 %v1492
    %v4563 = vpop.f32.mrf.mxu0
    %v4564 = vadd.f32 %v4291, %v4563
    %v4565 = vpop.f32.mrf.mxu0
    %v4566 = vadd.f32 %v4293, %v4565
    %v4567 = vpop.f32.mrf.mxu0
    %v4568 = vadd.f32 %v4295, %v4567
    %v4569 = vpop.f32.mrf.mxu0
    %v4570 = vadd.f32 %v4297, %v4569
    %4571 = vmatprep.mubr.bf16.mxu0 %v1497
    %4572 = vmatmul.mubr.bf16.gmra.mxu0 %v1496
    %v4573 = vpop.f32.mrf.mxu0
    %v4574 = vadd.f32 %v4301, %v4573
    %v4575 = vpop.f32.mrf.mxu0
    %v4576 = vadd.f32 %v4303, %v4575
    %v4577 = vpop.f32.mrf.mxu0
    %v4578 = vadd.f32 %v4305, %v4577
    %v4579 = vpop.f32.mrf.mxu0
    %v4580 = vadd.f32 %v4307, %v4579
    %4581 = vmatprep.mubr.bf16.mxu0 %v1501
    %4582 = vmatmul.mubr.bf16.gmra.mxu0 %v1500
    %v4583 = vpop.f32.mrf.mxu0
    %v4584 = vadd.f32 %v4311, %v4583
    %v4585 = vpop.f32.mrf.mxu0
    %v4586 = vadd.f32 %v4313, %v4585
    %v4587 = vpop.f32.mrf.mxu0
    %v4588 = vadd.f32 %v4315, %v4587
    %v4589 = vpop.f32.mrf.mxu0
    %v4590 = vadd.f32 %v4317, %v4589
    %4591 = vmatprep.mubr.bf16.mxu0 %v1505
    %4592 = vmatmul.mubr.bf16.gmra.mxu0 %v1504
    %v4593 = vpop.f32.mrf.mxu0
    %v4594 = vadd.f32 %v4321, %v4593
    %v4595 = vpop.f32.mrf.mxu0
    %v4596 = vadd.f32 %v4323, %v4595
    %v4597 = vpop.f32.mrf.mxu0
    %v4598 = vadd.f32 %v4325, %v4597
    %v4599 = vpop.f32.mrf.mxu0
    %v4600 = vadd.f32 %v4327, %v4599
    %4601 = vmatprep.mubr.bf16.mxu0 %v1509
    %4602 = vmatmul.mubr.bf16.gmra.mxu0 %v1508
    %v4603 = vpop.f32.mrf.mxu0
    %v4604 = vadd.f32 %v4331, %v4603
    %v4605 = vpop.f32.mrf.mxu0
    %v4606 = vadd.f32 %v4333, %v4605
    %v4607 = vpop.f32.mrf.mxu0
    %v4608 = vadd.f32 %v4335, %v4607
    %v4609 = vpop.f32.mrf.mxu0
    %v4610 = vadd.f32 %v4337, %v4609
    %4611 = vmatprep.mubr.bf16.mxu0 %v1513
    %4612 = vmatmul.mubr.bf16.gmra.mxu0 %v1512
    %v4613 = vpop.f32.mrf.mxu0
    %v4614 = vadd.f32 %v4341, %v4613
    %v4615 = vpop.f32.mrf.mxu0
    %v4616 = vadd.f32 %v4343, %v4615
    %v4617 = vpop.f32.mrf.mxu0
    %v4618 = vadd.f32 %v4345, %v4617
    %v4619 = vpop.f32.mrf.mxu0
    %v4620 = vadd.f32 %v4347, %v4619
    %4621 = vmatprep.mubr.bf16.mxu0 %v1517
    %4622 = vmatmul.mubr.bf16.gmra.mxu0 %v1516
    %v4623 = vpop.f32.mrf.mxu0
    %v4624 = vadd.f32 %v4351, %v4623
    %v4625 = vpop.f32.mrf.mxu0
    %v4626 = vadd.f32 %v4353, %v4625
    %v4627 = vpop.f32.mrf.mxu0
    %v4628 = vadd.f32 %v4355, %v4627
    %v4629 = vpop.f32.mrf.mxu0
    %v4630 = vadd.f32 %v4357, %v4629
    %4631 = vmatprep.mubr.bf16.mxu0 %v1521
    %4632 = vmatmul.mubr.bf16.gmra.mxu0 %v1520
    %v4633 = vpop.f32.mrf.mxu0
    %v4634 = vadd.f32 %v4361, %v4633
    %v4635 = vpop.f32.mrf.mxu0
    %v4636 = vadd.f32 %v4363, %v4635
    %v4637 = vpop.f32.mrf.mxu0
    %v4638 = vadd.f32 %v4365, %v4637
    %v4639 = vpop.f32.mrf.mxu0
    %v4640 = vadd.f32 %v4367, %v4639
    %4641 = vmatprep.mubr.bf16.mxu0 %v1525
    %4642 = vmatmul.mubr.bf16.gmra.mxu0 %v1524
    %v4643 = vpop.f32.mrf.mxu0
    %v4644 = vadd.f32 %v4371, %v4643
    %v4645 = vpop.f32.mrf.mxu0
    %v4646 = vadd.f32 %v4373, %v4645
    %v4647 = vpop.f32.mrf.mxu0
    %v4648 = vadd.f32 %v4375, %v4647
    %v4649 = vpop.f32.mrf.mxu0
    %v4650 = vadd.f32 %v4377, %v4649
    %4651 = vmatprep.mubr.bf16.mxu0 %v1529
    %4652 = vmatmul.mubr.bf16.gmra.mxu0 %v1528
    %v4653 = vpop.f32.mrf.mxu0
    %v4654 = vadd.f32 %v4381, %v4653
    %v4655 = vpop.f32.mrf.mxu0
    %v4656 = vadd.f32 %v4383, %v4655
    %v4657 = vpop.f32.mrf.mxu0
    %v4658 = vadd.f32 %v4385, %v4657
    %v4659 = vpop.f32.mrf.mxu0
    %v4660 = vadd.f32 %v4387, %v4659
    %4661 = vmatprep.mubr.bf16.mxu0 %v1533
    %4662 = vmatmul.mubr.bf16.gmra.mxu0 %v1532
    %v4663 = vpop.f32.mrf.mxu0
    %v4664 = vadd.f32 %v4391, %v4663
    %v4665 = vpop.f32.mrf.mxu0
    %v4666 = vadd.f32 %v4393, %v4665
    %v4667 = vpop.f32.mrf.mxu0
    %v4668 = vadd.f32 %v4395, %v4667
    %v4669 = vpop.f32.mrf.mxu0
    %v4670 = vadd.f32 %v4397, %v4669
    %4671 = vmatprep.mubr.bf16.mxu0 %v1537
    %4672 = vmatmul.mubr.bf16.gmra.mxu0 %v1536
    %v4673 = vpop.f32.mrf.mxu0
    %v4674 = vadd.f32 %v4401, %v4673
    %v4675 = vpop.f32.mrf.mxu0
    %v4676 = vadd.f32 %v4403, %v4675
    %v4677 = vpop.f32.mrf.mxu0
    %v4678 = vadd.f32 %v4405, %v4677
    %v4679 = vpop.f32.mrf.mxu0
    %v4680 = vadd.f32 %v4407, %v4679
    %4681 = vmatprep.mubr.bf16.mxu0 %v1541
    %4682 = vmatmul.mubr.bf16.gmra.mxu0 %v1540
    %v4683 = vpop.f32.mrf.mxu0
    %v4684 = vadd.f32 %v4411, %v4683
    %v4685 = vpop.f32.mrf.mxu0
    %v4686 = vadd.f32 %v4413, %v4685
    %v4687 = vpop.f32.mrf.mxu0
    %v4688 = vadd.f32 %v4415, %v4687
    %v4689 = vpop.f32.mrf.mxu0
    %v4690 = vadd.f32 %v4417, %v4689
    %4691 = vmatprep.mubr.bf16.mxu0 %v1545
    %4692 = vmatmul.mubr.bf16.gmra.mxu0 %v1544
    %v4693 = vpop.f32.mrf.mxu0
    %v4694 = vadd.f32 %v4421, %v4693
    %v4695 = vpop.f32.mrf.mxu0
    %v4696 = vadd.f32 %v4423, %v4695
    %v4697 = vpop.f32.mrf.mxu0
    %v4698 = vadd.f32 %v4425, %v4697
    %v4699 = vpop.f32.mrf.mxu0
    %v4700 = vadd.f32 %v4427, %v4699
    %4701 = vmatprep.mubr.bf16.mxu0 %v1549
    %4702 = vmatmul.mubr.bf16.gmra.mxu0 %v1548
    %v4703 = vpop.f32.mrf.mxu0
    %v4704 = vadd.f32 %v4431, %v4703
    %v4705 = vpop.f32.mrf.mxu0
    %v4706 = vadd.f32 %v4433, %v4705
    %v4707 = vpop.f32.mrf.mxu0
    %v4708 = vadd.f32 %v4435, %v4707
    %v4709 = vpop.f32.mrf.mxu0
    %v4710 = vadd.f32 %v4437, %v4709
    %4711 = vmatprep.mubr.bf16.mxu0 %v1553
    %4712 = vmatmul.mubr.bf16.gmra.mxu0 %v1552
    %v4713 = vpop.f32.mrf.mxu0
    %v4714 = vadd.f32 %v4441, %v4713
    %v4715 = vpop.f32.mrf.mxu0
    %v4716 = vadd.f32 %v4443, %v4715
    %v4717 = vpop.f32.mrf.mxu0
    %v4718 = vadd.f32 %v4445, %v4717
    %v4719 = vpop.f32.mrf.mxu0
    %v4720 = vadd.f32 %v4447, %v4719
    %4721 = vmatprep.mubr.bf16.mxu0 %v1557
    %4722 = vmatmul.mubr.bf16.gmra.mxu0 %v1556
    %v4723 = vpop.f32.mrf.mxu0
    %v4724 = vadd.f32 %v4451, %v4723
    %v4725 = vpop.f32.mrf.mxu0
    %v4726 = vadd.f32 %v4453, %v4725
    %v4727 = vpop.f32.mrf.mxu0
    %v4728 = vadd.f32 %v4455, %v4727
    %v4729 = vpop.f32.mrf.mxu0
    %v4730 = vadd.f32 %v4457, %v4729
    %4731 = vmatprep.mubr.bf16.mxu0 %v1561
    %4732 = vmatmul.mubr.bf16.gmra.mxu0 %v1560
    %v4733 = vpop.f32.mrf.mxu0
    %v4734 = vadd.f32 %v4461, %v4733
    %v4735 = vpop.f32.mrf.mxu0
    %v4736 = vadd.f32 %v4463, %v4735
    %v4737 = vpop.f32.mrf.mxu0
    %v4738 = vadd.f32 %v4465, %v4737
    %v4739 = vpop.f32.mrf.mxu0
    %v4740 = vadd.f32 %v4467, %v4739
    %4741 = vmatprep.mubr.bf16.mxu0 %v1565
    %4742 = vmatmul.mubr.bf16.gmra.mxu0 %v1564
    %v4743 = vpop.f32.mrf.mxu0
    %v4744 = vadd.f32 %v4471, %v4743
    %v4745 = vpop.f32.mrf.mxu0
    %v4746 = vadd.f32 %v4473, %v4745
    %v4747 = vpop.f32.mrf.mxu0
    %v4748 = vadd.f32 %v4475, %v4747
    %v4749 = vpop.f32.mrf.mxu0
    %v4750 = vadd.f32 %v4477, %v4749
    %4751 = vmatprep.mubr.bf16.mxu0 %v1569
    %4752 = vmatmul.mubr.bf16.gmra.mxu0 %v1568
    %v4753 = vpop.f32.mrf.mxu0
    %v4754 = vadd.f32 %v4481, %v4753
    %v4755 = vpop.f32.mrf.mxu0
    %v4756 = vadd.f32 %v4483, %v4755
    %v4757 = vpop.f32.mrf.mxu0
    %v4758 = vadd.f32 %v4485, %v4757
    %v4759 = vpop.f32.mrf.mxu0
    %v4760 = vadd.f32 %v4487, %v4759
    %4761 = vmatprep.mubr.bf16.mxu0 %v1573
    %4762 = vmatmul.mubr.bf16.gmra.mxu0 %v1572
    %v4763 = vpop.f32.mrf.mxu0
    %v4764 = vadd.f32 %v4491, %v4763
    %v4765 = vpop.f32.mrf.mxu0
    %v4766 = vadd.f32 %v4493, %v4765
    %v4767 = vpop.f32.mrf.mxu0
    %v4768 = vadd.f32 %v4495, %v4767
    %v4769 = vpop.f32.mrf.mxu0
    %v4770 = vadd.f32 %v4497, %v4769
    %4771 = vmatprep.mubr.bf16.mxu0 %v1577
    %4772 = vmatmul.mubr.bf16.gmra.mxu0 %v1576
    %v4773 = vpop.f32.mrf.mxu0
    %v4774 = vadd.f32 %v4501, %v4773
    %v4775 = vpop.f32.mrf.mxu0
    %v4776 = vadd.f32 %v4503, %v4775
    %v4777 = vpop.f32.mrf.mxu0
    %v4778 = vadd.f32 %v4505, %v4777
    %v4779 = vpop.f32.mrf.mxu0
    %v4780 = vadd.f32 %v4507, %v4779
    %4781 = vmatprep.mubr.bf16.mxu0 %v1581
    %4782 = vmatmul.mubr.bf16.gmra.mxu0 %v1580
    %v4783 = vpop.f32.mrf.mxu0
    %v4784 = vadd.f32 %v4511, %v4783
    %v4785 = vpop.f32.mrf.mxu0
    %v4786 = vadd.f32 %v4513, %v4785
    %v4787 = vpop.f32.mrf.mxu0
    %v4788 = vadd.f32 %v4515, %v4787
    %v4789 = vpop.f32.mrf.mxu0
    %v4790 = vadd.f32 %v4517, %v4789
    %4791 = vmatprep.mubr.bf16.mxu0 %v1585
    %4792 = vmatmul.mubr.bf16.gmra.mxu0 %v1584
    %v4793 = vpop.f32.mrf.mxu0
    %v4794 = vadd.f32 %v4521, %v4793
    %v4795 = vpop.f32.mrf.mxu0
    %v4796 = vadd.f32 %v4523, %v4795
    %v4797 = vpop.f32.mrf.mxu0
    %v4798 = vadd.f32 %v4525, %v4797
    %v4799 = vpop.f32.mrf.mxu0
    %v4800 = vadd.f32 %v4527, %v4799
    %4801 = vdwg.mxu0
    %4802 = vmatprep.subr.bf16.mxu0 %v2715
    %4803 = vmatpush1.bf16.msra.mxu0 %v2714
    %4804 = vmatprep.subr.bf16.mxu0 %v2707
    %4805 = vmatpush1.bf16.msra.mxu0 %v2706
    %4806 = vmatprep.subr.bf16.mxu0 %v2699
    %4807 = vmatpush1.bf16.msra.mxu0 %v2698
    %4808 = vmatprep.subr.bf16.mxu0 %v2691
    %4809 = vmatpush1.bf16.msra.mxu0 %v2690
    %4810 = vmatprep.subr.bf16.mxu0 %v2683
    %4811 = vmatpush1.bf16.msra.mxu0 %v2682
    %4812 = vmatprep.subr.bf16.mxu0 %v2675
    %4813 = vmatpush1.bf16.msra.mxu0 %v2674
    %4814 = vmatprep.subr.bf16.mxu0 %v2667
    %4815 = vmatpush1.bf16.msra.mxu0 %v2666
    %4816 = vmatprep.subr.bf16.mxu0 %v2659
    %4817 = vmatpush1.bf16.msra.mxu0 %v2658
    %4818 = vmatprep.subr.bf16.mxu0 %v2779
    %4819 = vmatpush2.bf16.msra.mxu0 %v2778
    %4820 = vmatprep.subr.bf16.mxu0 %v2771
    %4821 = vmatpush2.bf16.msra.mxu0 %v2770
    %4822 = vmatprep.subr.bf16.mxu0 %v2763
    %4823 = vmatpush2.bf16.msra.mxu0 %v2762
    %4824 = vmatprep.subr.bf16.mxu0 %v2755
    %4825 = vmatpush2.bf16.msra.mxu0 %v2754
    %4826 = vmatprep.subr.bf16.mxu0 %v2747
    %4827 = vmatpush2.bf16.msra.mxu0 %v2746
    %4828 = vmatprep.subr.bf16.mxu0 %v2739
    %4829 = vmatpush2.bf16.msra.mxu0 %v2738
    %4830 = vmatprep.subr.bf16.mxu0 %v2731
    %4831 = vmatpush2.bf16.msra.mxu0 %v2730
    %4832 = vmatprep.subr.bf16.mxu0 %v2723
    %4833 = vmatpush2.bf16.msra.mxu0 %v2722
    %4834 = vmatprep.mubr.bf16.mxu0 %v1491
    %4835 = vmatmul.mubr.bf16.gmra.mxu0 %v1490
    %v4836 = vpop.f32.mrf.mxu0
    %v4837 = vadd.f32 %v1871, %v4836
    %v4838 = vpop.f32.mrf.mxu0
    %v4839 = vadd.f32 %v1875, %v4838
    %v4840 = vpop.f32.mrf.mxu0
    %v4841 = vadd.f32 %v1871, %v4840
    %v4842 = vpop.f32.mrf.mxu0
    %v4843 = vadd.f32 %v1875, %v4842
    %4844 = vmatprep.mubr.bf16.mxu0 %v1495
    %4845 = vmatmul.mubr.bf16.gmra.mxu0 %v1494
    %v4846 = vpop.f32.mrf.mxu0
    %v4847 = vadd.f32 %v1871, %v4846
    %v4848 = vpop.f32.mrf.mxu0
    %v4849 = vadd.f32 %v1875, %v4848
    %v4850 = vpop.f32.mrf.mxu0
    %v4851 = vadd.f32 %v1871, %v4850
    %v4852 = vpop.f32.mrf.mxu0
    %v4853 = vadd.f32 %v1875, %v4852
    %4854 = vmatprep.mubr.bf16.mxu0 %v1499
    %4855 = vmatmul.mubr.bf16.gmra.mxu0 %v1498
    %v4856 = vpop.f32.mrf.mxu0
    %v4857 = vadd.f32 %v1871, %v4856
    %v4858 = vpop.f32.mrf.mxu0
    %v4859 = vadd.f32 %v1875, %v4858
    %v4860 = vpop.f32.mrf.mxu0
    %v4861 = vadd.f32 %v1871, %v4860
    %v4862 = vpop.f32.mrf.mxu0
    %v4863 = vadd.f32 %v1875, %v4862
    %4864 = vmatprep.mubr.bf16.mxu0 %v1503
    %4865 = vmatmul.mubr.bf16.gmra.mxu0 %v1502
    %v4866 = vpop.f32.mrf.mxu0
    %v4867 = vadd.f32 %v1871, %v4866
    %v4868 = vpop.f32.mrf.mxu0
    %v4869 = vadd.f32 %v1875, %v4868
    %v4870 = vpop.f32.mrf.mxu0
    %v4871 = vadd.f32 %v1871, %v4870
    %v4872 = vpop.f32.mrf.mxu0
    %v4873 = vadd.f32 %v1875, %v4872
    %4874 = vmatprep.mubr.bf16.mxu0 %v1507
    %4875 = vmatmul.mubr.bf16.gmra.mxu0 %v1506
    %v4876 = vpop.f32.mrf.mxu0
    %v4877 = vadd.f32 %v1871, %v4876
    %v4878 = vpop.f32.mrf.mxu0
    %v4879 = vadd.f32 %v1875, %v4878
    %v4880 = vpop.f32.mrf.mxu0
    %v4881 = vadd.f32 %v1871, %v4880
    %v4882 = vpop.f32.mrf.mxu0
    %v4883 = vadd.f32 %v1875, %v4882
    %4884 = vmatprep.mubr.bf16.mxu0 %v1511
    %4885 = vmatmul.mubr.bf16.gmra.mxu0 %v1510
    %v4886 = vpop.f32.mrf.mxu0
    %v4887 = vadd.f32 %v1871, %v4886
    %v4888 = vpop.f32.mrf.mxu0
    %v4889 = vadd.f32 %v1875, %v4888
    %v4890 = vpop.f32.mrf.mxu0
    %v4891 = vadd.f32 %v1871, %v4890
    %v4892 = vpop.f32.mrf.mxu0
    %v4893 = vadd.f32 %v1875, %v4892
    %4894 = vmatprep.mubr.bf16.mxu0 %v1515
    %4895 = vmatmul.mubr.bf16.gmra.mxu0 %v1514
    %v4896 = vpop.f32.mrf.mxu0
    %v4897 = vadd.f32 %v1871, %v4896
    %v4898 = vpop.f32.mrf.mxu0
    %v4899 = vadd.f32 %v1875, %v4898
    %v4900 = vpop.f32.mrf.mxu0
    %v4901 = vadd.f32 %v1871, %v4900
    %v4902 = vpop.f32.mrf.mxu0
    %v4903 = vadd.f32 %v1875, %v4902
    %4904 = vmatprep.mubr.bf16.mxu0 %v1519
    %4905 = vmatmul.mubr.bf16.gmra.mxu0 %v1518
    %v4906 = vpop.f32.mrf.mxu0
    %v4907 = vadd.f32 %v1871, %v4906
    %v4908 = vpop.f32.mrf.mxu0
    %v4909 = vadd.f32 %v1875, %v4908
    %v4910 = vpop.f32.mrf.mxu0
    %v4911 = vadd.f32 %v1871, %v4910
    %v4912 = vpop.f32.mrf.mxu0
    %v4913 = vadd.f32 %v1875, %v4912
    %4914 = vmatprep.mubr.bf16.mxu0 %v1523
    %4915 = vmatmul.mubr.bf16.gmra.mxu0 %v1522
    %v4916 = vpop.f32.mrf.mxu0
    %v4917 = vadd.f32 %v1871, %v4916
    %v4918 = vpop.f32.mrf.mxu0
    %v4919 = vadd.f32 %v1875, %v4918
    %v4920 = vpop.f32.mrf.mxu0
    %v4921 = vadd.f32 %v1871, %v4920
    %v4922 = vpop.f32.mrf.mxu0
    %v4923 = vadd.f32 %v1875, %v4922
    %4924 = vmatprep.mubr.bf16.mxu0 %v1527
    %4925 = vmatmul.mubr.bf16.gmra.mxu0 %v1526
    %v4926 = vpop.f32.mrf.mxu0
    %v4927 = vadd.f32 %v1871, %v4926
    %v4928 = vpop.f32.mrf.mxu0
    %v4929 = vadd.f32 %v1875, %v4928
    %v4930 = vpop.f32.mrf.mxu0
    %v4931 = vadd.f32 %v1871, %v4930
    %v4932 = vpop.f32.mrf.mxu0
    %v4933 = vadd.f32 %v1875, %v4932
    %4934 = vmatprep.mubr.bf16.mxu0 %v1531
    %4935 = vmatmul.mubr.bf16.gmra.mxu0 %v1530
    %v4936 = vpop.f32.mrf.mxu0
    %v4937 = vadd.f32 %v1871, %v4936
    %v4938 = vpop.f32.mrf.mxu0
    %v4939 = vadd.f32 %v1875, %v4938
    %v4940 = vpop.f32.mrf.mxu0
    %v4941 = vadd.f32 %v1871, %v4940
    %v4942 = vpop.f32.mrf.mxu0
    %v4943 = vadd.f32 %v1875, %v4942
    %4944 = vmatprep.mubr.bf16.mxu0 %v1535
    %4945 = vmatmul.mubr.bf16.gmra.mxu0 %v1534
    %v4946 = vpop.f32.mrf.mxu0
    %v4947 = vadd.f32 %v1871, %v4946
    %v4948 = vpop.f32.mrf.mxu0
    %v4949 = vadd.f32 %v1875, %v4948
    %v4950 = vpop.f32.mrf.mxu0
    %v4951 = vadd.f32 %v1871, %v4950
    %v4952 = vpop.f32.mrf.mxu0
    %v4953 = vadd.f32 %v1875, %v4952
    %4954 = vmatprep.mubr.bf16.mxu0 %v1539
    %4955 = vmatmul.mubr.bf16.gmra.mxu0 %v1538
    %v4956 = vpop.f32.mrf.mxu0
    %v4957 = vadd.f32 %v1871, %v4956
    %v4958 = vpop.f32.mrf.mxu0
    %v4959 = vadd.f32 %v1875, %v4958
    %v4960 = vpop.f32.mrf.mxu0
    %v4961 = vadd.f32 %v1871, %v4960
    %v4962 = vpop.f32.mrf.mxu0
    %v4963 = vadd.f32 %v1875, %v4962
    %4964 = vmatprep.mubr.bf16.mxu0 %v1543
    %4965 = vmatmul.mubr.bf16.gmra.mxu0 %v1542
    %v4966 = vpop.f32.mrf.mxu0
    %v4967 = vadd.f32 %v1871, %v4966
    %v4968 = vpop.f32.mrf.mxu0
    %v4969 = vadd.f32 %v1875, %v4968
    %v4970 = vpop.f32.mrf.mxu0
    %v4971 = vadd.f32 %v1871, %v4970
    %v4972 = vpop.f32.mrf.mxu0
    %v4973 = vadd.f32 %v1875, %v4972
    %4974 = vmatprep.mubr.bf16.mxu0 %v1547
    %4975 = vmatmul.mubr.bf16.gmra.mxu0 %v1546
    %v4976 = vpop.f32.mrf.mxu0
    %v4977 = vadd.f32 %v1871, %v4976
    %v4978 = vpop.f32.mrf.mxu0
    %v4979 = vadd.f32 %v1875, %v4978
    %v4980 = vpop.f32.mrf.mxu0
    %v4981 = vadd.f32 %v1871, %v4980
    %v4982 = vpop.f32.mrf.mxu0
    %v4983 = vadd.f32 %v1875, %v4982
    %4984 = vmatprep.mubr.bf16.mxu0 %v1551
    %4985 = vmatmul.mubr.bf16.gmra.mxu0 %v1550
    %v4986 = vpop.f32.mrf.mxu0
    %v4987 = vadd.f32 %v1871, %v4986
    %v4988 = vpop.f32.mrf.mxu0
    %v4989 = vadd.f32 %v1875, %v4988
    %v4990 = vpop.f32.mrf.mxu0
    %v4991 = vadd.f32 %v1871, %v4990
    %v4992 = vpop.f32.mrf.mxu0
    %v4993 = vadd.f32 %v1875, %v4992
    %4994 = vmatprep.mubr.bf16.mxu0 %v1555
    %4995 = vmatmul.mubr.bf16.gmra.mxu0 %v1554
    %v4996 = vpop.f32.mrf.mxu0
    %v4997 = vadd.f32 %v1871, %v4996
    %v4998 = vpop.f32.mrf.mxu0
    %v4999 = vadd.f32 %v1875, %v4998
    %v5000 = vpop.f32.mrf.mxu0
    %v5001 = vadd.f32 %v1871, %v5000
    %v5002 = vpop.f32.mrf.mxu0
    %v5003 = vadd.f32 %v1875, %v5002
    %5004 = vmatprep.mubr.bf16.mxu0 %v1559
    %5005 = vmatmul.mubr.bf16.gmra.mxu0 %v1558
    %v5006 = vpop.f32.mrf.mxu0
    %v5007 = vadd.f32 %v1871, %v5006
    %v5008 = vpop.f32.mrf.mxu0
    %v5009 = vadd.f32 %v1875, %v5008
    %v5010 = vpop.f32.mrf.mxu0
    %v5011 = vadd.f32 %v1871, %v5010
    %v5012 = vpop.f32.mrf.mxu0
    %v5013 = vadd.f32 %v1875, %v5012
    %5014 = vmatprep.mubr.bf16.mxu0 %v1563
    %5015 = vmatmul.mubr.bf16.gmra.mxu0 %v1562
    %v5016 = vpop.f32.mrf.mxu0
    %v5017 = vadd.f32 %v1871, %v5016
    %v5018 = vpop.f32.mrf.mxu0
    %v5019 = vadd.f32 %v1875, %v5018
    %v5020 = vpop.f32.mrf.mxu0
    %v5021 = vadd.f32 %v1871, %v5020
    %v5022 = vpop.f32.mrf.mxu0
    %v5023 = vadd.f32 %v1875, %v5022
    %5024 = vmatprep.mubr.bf16.mxu0 %v1567
    %5025 = vmatmul.mubr.bf16.gmra.mxu0 %v1566
    %v5026 = vpop.f32.mrf.mxu0
    %v5027 = vadd.f32 %v1871, %v5026
    %v5028 = vpop.f32.mrf.mxu0
    %v5029 = vadd.f32 %v1875, %v5028
    %v5030 = vpop.f32.mrf.mxu0
    %v5031 = vadd.f32 %v1871, %v5030
    %v5032 = vpop.f32.mrf.mxu0
    %v5033 = vadd.f32 %v1875, %v5032
    %5034 = vmatprep.mubr.bf16.mxu0 %v1571
    %5035 = vmatmul.mubr.bf16.gmra.mxu0 %v1570
    %v5036 = vpop.f32.mrf.mxu0
    %v5037 = vadd.f32 %v1871, %v5036
    %v5038 = vpop.f32.mrf.mxu0
    %v5039 = vadd.f32 %v1875, %v5038
    %v5040 = vpop.f32.mrf.mxu0
    %v5041 = vadd.f32 %v1871, %v5040
    %v5042 = vpop.f32.mrf.mxu0
    %v5043 = vadd.f32 %v1875, %v5042
    %5044 = vmatprep.mubr.bf16.mxu0 %v1575
    %5045 = vmatmul.mubr.bf16.gmra.mxu0 %v1574
    %v5046 = vpop.f32.mrf.mxu0
    %v5047 = vadd.f32 %v1871, %v5046
    %v5048 = vpop.f32.mrf.mxu0
    %v5049 = vadd.f32 %v1875, %v5048
    %v5050 = vpop.f32.mrf.mxu0
    %v5051 = vadd.f32 %v1871, %v5050
    %v5052 = vpop.f32.mrf.mxu0
    %v5053 = vadd.f32 %v1875, %v5052
    %5054 = vmatprep.mubr.bf16.mxu0 %v1579
    %5055 = vmatmul.mubr.bf16.gmra.mxu0 %v1578
    %v5056 = vpop.f32.mrf.mxu0
    %v5057 = vadd.f32 %v1871, %v5056
    %v5058 = vpop.f32.mrf.mxu0
    %v5059 = vadd.f32 %v1875, %v5058
    %v5060 = vpop.f32.mrf.mxu0
    %v5061 = vadd.f32 %v1871, %v5060
    %v5062 = vpop.f32.mrf.mxu0
    %v5063 = vadd.f32 %v1875, %v5062
    %5064 = vmatprep.mubr.bf16.mxu0 %v1583
    %5065 = vmatmul.mubr.bf16.gmra.mxu0 %v1582
    %v5066 = vpop.f32.mrf.mxu0
    %v5067 = vadd.f32 %v1871, %v5066
    %v5068 = vpop.f32.mrf.mxu0
    %v5069 = vadd.f32 %v1875, %v5068
    %v5070 = vpop.f32.mrf.mxu0
    %v5071 = vadd.f32 %v1871, %v5070
    %v5072 = vpop.f32.mrf.mxu0
    %v5073 = vadd.f32 %v1875, %v5072
    %5074 = vdwg.mxu0
    %5075 = vmatprep.subr.bf16.mxu0 %v2843
    %5076 = vmatpush1.bf16.msra.mxu0 %v2842
    %5077 = vmatprep.subr.bf16.mxu0 %v2835
    %5078 = vmatpush1.bf16.msra.mxu0 %v2834
    %5079 = vmatprep.subr.bf16.mxu0 %v2827
    %5080 = vmatpush1.bf16.msra.mxu0 %v2826
    %5081 = vmatprep.subr.bf16.mxu0 %v2819
    %5082 = vmatpush1.bf16.msra.mxu0 %v2818
    %5083 = vmatprep.subr.bf16.mxu0 %v2811
    %5084 = vmatpush1.bf16.msra.mxu0 %v2810
    %5085 = vmatprep.subr.bf16.mxu0 %v2803
    %5086 = vmatpush1.bf16.msra.mxu0 %v2802
    %5087 = vmatprep.subr.bf16.mxu0 %v2795
    %5088 = vmatpush1.bf16.msra.mxu0 %v2794
    %5089 = vmatprep.subr.bf16.mxu0 %v2787
    %5090 = vmatpush1.bf16.msra.mxu0 %v2786
    %5091 = vmatprep.subr.bf16.mxu0 %v2907
    %5092 = vmatpush2.bf16.msra.mxu0 %v2906
    %5093 = vmatprep.subr.bf16.mxu0 %v2899
    %5094 = vmatpush2.bf16.msra.mxu0 %v2898
    %5095 = vmatprep.subr.bf16.mxu0 %v2891
    %5096 = vmatpush2.bf16.msra.mxu0 %v2890
    %5097 = vmatprep.subr.bf16.mxu0 %v2883
    %5098 = vmatpush2.bf16.msra.mxu0 %v2882
    %5099 = vmatprep.subr.bf16.mxu0 %v2875
    %5100 = vmatpush2.bf16.msra.mxu0 %v2874
    %5101 = vmatprep.subr.bf16.mxu0 %v2867
    %5102 = vmatpush2.bf16.msra.mxu0 %v2866
    %5103 = vmatprep.subr.bf16.mxu0 %v2859
    %5104 = vmatpush2.bf16.msra.mxu0 %v2858
    %5105 = vmatprep.subr.bf16.mxu0 %v2851
    %5106 = vmatpush2.bf16.msra.mxu0 %v2850
    %5107 = vmatprep.mubr.bf16.mxu0 %v1493
    %5108 = vmatmul.mubr.bf16.gmra.mxu0 %v1492
    %v5109 = vpop.f32.mrf.mxu0
    %v5110 = vadd.f32 %v4837, %v5109
    %v5111 = vpop.f32.mrf.mxu0
    %v5112 = vadd.f32 %v4839, %v5111
    %v5113 = vpop.f32.mrf.mxu0
    %v5114 = vadd.f32 %v4841, %v5113
    %v5115 = vpop.f32.mrf.mxu0
    %v5116 = vadd.f32 %v4843, %v5115
    %5117 = vmatprep.mubr.bf16.mxu0 %v1497
    %5118 = vmatmul.mubr.bf16.gmra.mxu0 %v1496
    %v5119 = vpop.f32.mrf.mxu0
    %v5120 = vadd.f32 %v4847, %v5119
    %v5121 = vpop.f32.mrf.mxu0
    %v5122 = vadd.f32 %v4849, %v5121
    %v5123 = vpop.f32.mrf.mxu0
    %v5124 = vadd.f32 %v4851, %v5123
    %v5125 = vpop.f32.mrf.mxu0
    %v5126 = vadd.f32 %v4853, %v5125
    %5127 = vmatprep.mubr.bf16.mxu0 %v1501
    %5128 = vmatmul.mubr.bf16.gmra.mxu0 %v1500
    %v5129 = vpop.f32.mrf.mxu0
    %v5130 = vadd.f32 %v4857, %v5129
    %v5131 = vpop.f32.mrf.mxu0
    %v5132 = vadd.f32 %v4859, %v5131
    %v5133 = vpop.f32.mrf.mxu0
    %v5134 = vadd.f32 %v4861, %v5133
    %v5135 = vpop.f32.mrf.mxu0
    %v5136 = vadd.f32 %v4863, %v5135
    %5137 = vmatprep.mubr.bf16.mxu0 %v1505
    %5138 = vmatmul.mubr.bf16.gmra.mxu0 %v1504
    %v5139 = vpop.f32.mrf.mxu0
    %v5140 = vadd.f32 %v4867, %v5139
    %v5141 = vpop.f32.mrf.mxu0
    %v5142 = vadd.f32 %v4869, %v5141
    %v5143 = vpop.f32.mrf.mxu0
    %v5144 = vadd.f32 %v4871, %v5143
    %v5145 = vpop.f32.mrf.mxu0
    %v5146 = vadd.f32 %v4873, %v5145
    %5147 = vmatprep.mubr.bf16.mxu0 %v1509
    %5148 = vmatmul.mubr.bf16.gmra.mxu0 %v1508
    %v5149 = vpop.f32.mrf.mxu0
    %v5150 = vadd.f32 %v4877, %v5149
    %v5151 = vpop.f32.mrf.mxu0
    %v5152 = vadd.f32 %v4879, %v5151
    %v5153 = vpop.f32.mrf.mxu0
    %v5154 = vadd.f32 %v4881, %v5153
    %v5155 = vpop.f32.mrf.mxu0
    %v5156 = vadd.f32 %v4883, %v5155
    %5157 = vmatprep.mubr.bf16.mxu0 %v1513
    %5158 = vmatmul.mubr.bf16.gmra.mxu0 %v1512
    %v5159 = vpop.f32.mrf.mxu0
    %v5160 = vadd.f32 %v4887, %v5159
    %v5161 = vpop.f32.mrf.mxu0
    %v5162 = vadd.f32 %v4889, %v5161
    %v5163 = vpop.f32.mrf.mxu0
    %v5164 = vadd.f32 %v4891, %v5163
    %v5165 = vpop.f32.mrf.mxu0
    %v5166 = vadd.f32 %v4893, %v5165
    %5167 = vmatprep.mubr.bf16.mxu0 %v1517
    %5168 = vmatmul.mubr.bf16.gmra.mxu0 %v1516
    %v5169 = vpop.f32.mrf.mxu0
    %v5170 = vadd.f32 %v4897, %v5169
    %v5171 = vpop.f32.mrf.mxu0
    %v5172 = vadd.f32 %v4899, %v5171
    %v5173 = vpop.f32.mrf.mxu0
    %v5174 = vadd.f32 %v4901, %v5173
    %v5175 = vpop.f32.mrf.mxu0
    %v5176 = vadd.f32 %v4903, %v5175
    %5177 = vmatprep.mubr.bf16.mxu0 %v1521
    %5178 = vmatmul.mubr.bf16.gmra.mxu0 %v1520
    %v5179 = vpop.f32.mrf.mxu0
    %v5180 = vadd.f32 %v4907, %v5179
    %v5181 = vpop.f32.mrf.mxu0
    %v5182 = vadd.f32 %v4909, %v5181
    %v5183 = vpop.f32.mrf.mxu0
    %v5184 = vadd.f32 %v4911, %v5183
    %v5185 = vpop.f32.mrf.mxu0
    %v5186 = vadd.f32 %v4913, %v5185
    %5187 = vmatprep.mubr.bf16.mxu0 %v1525
    %5188 = vmatmul.mubr.bf16.gmra.mxu0 %v1524
    %v5189 = vpop.f32.mrf.mxu0
    %v5190 = vadd.f32 %v4917, %v5189
    %v5191 = vpop.f32.mrf.mxu0
    %v5192 = vadd.f32 %v4919, %v5191
    %v5193 = vpop.f32.mrf.mxu0
    %v5194 = vadd.f32 %v4921, %v5193
    %v5195 = vpop.f32.mrf.mxu0
    %v5196 = vadd.f32 %v4923, %v5195
    %5197 = vmatprep.mubr.bf16.mxu0 %v1529
    %5198 = vmatmul.mubr.bf16.gmra.mxu0 %v1528
    %v5199 = vpop.f32.mrf.mxu0
    %v5200 = vadd.f32 %v4927, %v5199
    %v5201 = vpop.f32.mrf.mxu0
    %v5202 = vadd.f32 %v4929, %v5201
    %v5203 = vpop.f32.mrf.mxu0
    %v5204 = vadd.f32 %v4931, %v5203
    %v5205 = vpop.f32.mrf.mxu0
    %v5206 = vadd.f32 %v4933, %v5205
    %5207 = vmatprep.mubr.bf16.mxu0 %v1533
    %5208 = vmatmul.mubr.bf16.gmra.mxu0 %v1532
    %v5209 = vpop.f32.mrf.mxu0
    %v5210 = vadd.f32 %v4937, %v5209
    %v5211 = vpop.f32.mrf.mxu0
    %v5212 = vadd.f32 %v4939, %v5211
    %v5213 = vpop.f32.mrf.mxu0
    %v5214 = vadd.f32 %v4941, %v5213
    %v5215 = vpop.f32.mrf.mxu0
    %v5216 = vadd.f32 %v4943, %v5215
    %5217 = vmatprep.mubr.bf16.mxu0 %v1537
    %5218 = vmatmul.mubr.bf16.gmra.mxu0 %v1536
    %v5219 = vpop.f32.mrf.mxu0
    %v5220 = vadd.f32 %v4947, %v5219
    %v5221 = vpop.f32.mrf.mxu0
    %v5222 = vadd.f32 %v4949, %v5221
    %v5223 = vpop.f32.mrf.mxu0
    %v5224 = vadd.f32 %v4951, %v5223
    %v5225 = vpop.f32.mrf.mxu0
    %v5226 = vadd.f32 %v4953, %v5225
    %5227 = vmatprep.mubr.bf16.mxu0 %v1541
    %5228 = vmatmul.mubr.bf16.gmra.mxu0 %v1540
    %v5229 = vpop.f32.mrf.mxu0
    %v5230 = vadd.f32 %v4957, %v5229
    %v5231 = vpop.f32.mrf.mxu0
    %v5232 = vadd.f32 %v4959, %v5231
    %v5233 = vpop.f32.mrf.mxu0
    %v5234 = vadd.f32 %v4961, %v5233
    %v5235 = vpop.f32.mrf.mxu0
    %v5236 = vadd.f32 %v4963, %v5235
    %5237 = vmatprep.mubr.bf16.mxu0 %v1545
    %5238 = vmatmul.mubr.bf16.gmra.mxu0 %v1544
    %v5239 = vpop.f32.mrf.mxu0
    %v5240 = vadd.f32 %v4967, %v5239
    %v5241 = vpop.f32.mrf.mxu0
    %v5242 = vadd.f32 %v4969, %v5241
    %v5243 = vpop.f32.mrf.mxu0
    %v5244 = vadd.f32 %v4971, %v5243
    %v5245 = vpop.f32.mrf.mxu0
    %v5246 = vadd.f32 %v4973, %v5245
    %5247 = vmatprep.mubr.bf16.mxu0 %v1549
    %5248 = vmatmul.mubr.bf16.gmra.mxu0 %v1548
    %v5249 = vpop.f32.mrf.mxu0
    %v5250 = vadd.f32 %v4977, %v5249
    %v5251 = vpop.f32.mrf.mxu0
    %v5252 = vadd.f32 %v4979, %v5251
    %v5253 = vpop.f32.mrf.mxu0
    %v5254 = vadd.f32 %v4981, %v5253
    %v5255 = vpop.f32.mrf.mxu0
    %v5256 = vadd.f32 %v4983, %v5255
    %5257 = vmatprep.mubr.bf16.mxu0 %v1553
    %5258 = vmatmul.mubr.bf16.gmra.mxu0 %v1552
    %v5259 = vpop.f32.mrf.mxu0
    %v5260 = vadd.f32 %v4987, %v5259
    %v5261 = vpop.f32.mrf.mxu0
    %v5262 = vadd.f32 %v4989, %v5261
    %v5263 = vpop.f32.mrf.mxu0
    %v5264 = vadd.f32 %v4991, %v5263
    %v5265 = vpop.f32.mrf.mxu0
    %v5266 = vadd.f32 %v4993, %v5265
    %5267 = vmatprep.mubr.bf16.mxu0 %v1557
    %5268 = vmatmul.mubr.bf16.gmra.mxu0 %v1556
    %v5269 = vpop.f32.mrf.mxu0
    %v5270 = vadd.f32 %v4997, %v5269
    %v5271 = vpop.f32.mrf.mxu0
    %v5272 = vadd.f32 %v4999, %v5271
    %v5273 = vpop.f32.mrf.mxu0
    %v5274 = vadd.f32 %v5001, %v5273
    %v5275 = vpop.f32.mrf.mxu0
    %v5276 = vadd.f32 %v5003, %v5275
    %5277 = vmatprep.mubr.bf16.mxu0 %v1561
    %5278 = vmatmul.mubr.bf16.gmra.mxu0 %v1560
    %v5279 = vpop.f32.mrf.mxu0
    %v5280 = vadd.f32 %v5007, %v5279
    %v5281 = vpop.f32.mrf.mxu0
    %v5282 = vadd.f32 %v5009, %v5281
    %v5283 = vpop.f32.mrf.mxu0
    %v5284 = vadd.f32 %v5011, %v5283
    %v5285 = vpop.f32.mrf.mxu0
    %v5286 = vadd.f32 %v5013, %v5285
    %5287 = vmatprep.mubr.bf16.mxu0 %v1565
    %5288 = vmatmul.mubr.bf16.gmra.mxu0 %v1564
    %v5289 = vpop.f32.mrf.mxu0
    %v5290 = vadd.f32 %v5017, %v5289
    %v5291 = vpop.f32.mrf.mxu0
    %v5292 = vadd.f32 %v5019, %v5291
    %v5293 = vpop.f32.mrf.mxu0
    %v5294 = vadd.f32 %v5021, %v5293
    %v5295 = vpop.f32.mrf.mxu0
    %v5296 = vadd.f32 %v5023, %v5295
    %5297 = vmatprep.mubr.bf16.mxu0 %v1569
    %5298 = vmatmul.mubr.bf16.gmra.mxu0 %v1568
    %v5299 = vpop.f32.mrf.mxu0
    %v5300 = vadd.f32 %v5027, %v5299
    %v5301 = vpop.f32.mrf.mxu0
    %v5302 = vadd.f32 %v5029, %v5301
    %v5303 = vpop.f32.mrf.mxu0
    %v5304 = vadd.f32 %v5031, %v5303
    %v5305 = vpop.f32.mrf.mxu0
    %v5306 = vadd.f32 %v5033, %v5305
    %5307 = vmatprep.mubr.bf16.mxu0 %v1573
    %5308 = vmatmul.mubr.bf16.gmra.mxu0 %v1572
    %v5309 = vpop.f32.mrf.mxu0
    %v5310 = vadd.f32 %v5037, %v5309
    %v5311 = vpop.f32.mrf.mxu0
    %v5312 = vadd.f32 %v5039, %v5311
    %v5313 = vpop.f32.mrf.mxu0
    %v5314 = vadd.f32 %v5041, %v5313
    %v5315 = vpop.f32.mrf.mxu0
    %v5316 = vadd.f32 %v5043, %v5315
    %5317 = vmatprep.mubr.bf16.mxu0 %v1577
    %5318 = vmatmul.mubr.bf16.gmra.mxu0 %v1576
    %v5319 = vpop.f32.mrf.mxu0
    %v5320 = vadd.f32 %v5047, %v5319
    %v5321 = vpop.f32.mrf.mxu0
    %v5322 = vadd.f32 %v5049, %v5321
    %v5323 = vpop.f32.mrf.mxu0
    %v5324 = vadd.f32 %v5051, %v5323
    %v5325 = vpop.f32.mrf.mxu0
    %v5326 = vadd.f32 %v5053, %v5325
    %5327 = vmatprep.mubr.bf16.mxu0 %v1581
    %5328 = vmatmul.mubr.bf16.gmra.mxu0 %v1580
    %v5329 = vpop.f32.mrf.mxu0
    %v5330 = vadd.f32 %v5057, %v5329
    %v5331 = vpop.f32.mrf.mxu0
    %v5332 = vadd.f32 %v5059, %v5331
    %v5333 = vpop.f32.mrf.mxu0
    %v5334 = vadd.f32 %v5061, %v5333
    %v5335 = vpop.f32.mrf.mxu0
    %v5336 = vadd.f32 %v5063, %v5335
    %5337 = vmatprep.mubr.bf16.mxu0 %v1585
    %5338 = vmatmul.mubr.bf16.gmra.mxu0 %v1584
    %v5339 = vpop.f32.mrf.mxu0
    %v5340 = vadd.f32 %v5067, %v5339
    %v5341 = vpop.f32.mrf.mxu0
    %v5342 = vadd.f32 %v5069, %v5341
    %v5343 = vpop.f32.mrf.mxu0
    %v5344 = vadd.f32 %v5071, %v5343
    %v5345 = vpop.f32.mrf.mxu0
    %v5346 = vadd.f32 %v5073, %v5345
    %5347 = vdwg.mxu0
    %v5348 = vmax.f32 %v3472, 0.0
    %v5349 = vmax.f32 %v3474, 0.0
    %v5350 = vmax.f32 %v4018, 0.0
    %v5351 = vmax.f32 %v4020, 0.0
    %v5352 = vmax.f32 %v4564, 0.0
    %v5353 = vmax.f32 %v4566, 0.0
    %v5354 = vmax.f32 %v5110, 0.0
    %v5355 = vmax.f32 %v5112, 0.0
    %v5356 = vmax.f32 %v3476, 0.0
    %v5357 = vmax.f32 %v3478, 0.0
    %v5358 = vmax.f32 %v4022, 0.0
    %v5359 = vmax.f32 %v4024, 0.0
    %v5360 = vmax.f32 %v4568, 0.0
    %v5361 = vmax.f32 %v4570, 0.0
    %v5362 = vmax.f32 %v5114, 0.0
    %v5363 = vmax.f32 %v5116, 0.0
    %v5364 = vmax.f32 %v3482, 0.0
    %v5365 = vmax.f32 %v3484, 0.0
    %v5366 = vmax.f32 %v4028, 0.0
    %v5367 = vmax.f32 %v4030, 0.0
    %v5368 = vmax.f32 %v4574, 0.0
    %v5369 = vmax.f32 %v4576, 0.0
    %v5370 = vmax.f32 %v5120, 0.0
    %v5371 = vmax.f32 %v5122, 0.0
    %v5372 = vmax.f32 %v3486, 0.0
    %v5373 = vmax.f32 %v3488, 0.0
    %v5374 = vmax.f32 %v4032, 0.0
    %v5375 = vmax.f32 %v4034, 0.0
    %v5376 = vmax.f32 %v4578, 0.0
    %v5377 = vmax.f32 %v4580, 0.0
    %v5378 = vmax.f32 %v5124, 0.0
    %v5379 = vmax.f32 %v5126, 0.0
    %v5380 = vmax.f32 %v3492, 0.0
    %v5381 = vmax.f32 %v3494, 0.0
    %v5382 = vmax.f32 %v4038, 0.0
    %v5383 = vmax.f32 %v4040, 0.0
    %v5384 = vmax.f32 %v4584, 0.0
    %v5385 = vmax.f32 %v4586, 0.0
    %v5386 = vmax.f32 %v5130, 0.0
    %v5387 = vmax.f32 %v5132, 0.0
    %v5388 = vmax.f32 %v3496, 0.0
    %v5389 = vmax.f32 %v3498, 0.0
    %v5390 = vmax.f32 %v4042, 0.0
    %v5391 = vmax.f32 %v4044, 0.0
    %v5392 = vmax.f32 %v4588, 0.0
    %v5393 = vmax.f32 %v4590, 0.0
    %v5394 = vmax.f32 %v5134, 0.0
    %v5395 = vmax.f32 %v5136, 0.0
    %v5396 = vmax.f32 %v3502, 0.0
    %v5397 = vmax.f32 %v3504, 0.0
    %v5398 = vmax.f32 %v4048, 0.0
    %v5399 = vmax.f32 %v4050, 0.0
    %v5400 = vmax.f32 %v4594, 0.0
    %v5401 = vmax.f32 %v4596, 0.0
    %v5402 = vmax.f32 %v5140, 0.0
    %v5403 = vmax.f32 %v5142, 0.0
    %v5404 = vmax.f32 %v3506, 0.0
    %v5405 = vmax.f32 %v3508, 0.0
    %v5406 = vmax.f32 %v4052, 0.0
    %v5407 = vmax.f32 %v4054, 0.0
    %v5408 = vmax.f32 %v4598, 0.0
    %v5409 = vmax.f32 %v4600, 0.0
    %v5410 = vmax.f32 %v5144, 0.0
    %v5411 = vmax.f32 %v5146, 0.0
    %v5412 = vmax.f32 %v3512, 0.0
    %v5413 = vmax.f32 %v3514, 0.0
    %v5414 = vmax.f32 %v4058, 0.0
    %v5415 = vmax.f32 %v4060, 0.0
    %v5416 = vmax.f32 %v4604, 0.0
    %v5417 = vmax.f32 %v4606, 0.0
    %v5418 = vmax.f32 %v5150, 0.0
    %v5419 = vmax.f32 %v5152, 0.0
    %v5420 = vmax.f32 %v3516, 0.0
    %v5421 = vmax.f32 %v3518, 0.0
    %v5422 = vmax.f32 %v4062, 0.0
    %v5423 = vmax.f32 %v4064, 0.0
    %v5424 = vmax.f32 %v4608, 0.0
    %v5425 = vmax.f32 %v4610, 0.0
    %v5426 = vmax.f32 %v5154, 0.0
    %v5427 = vmax.f32 %v5156, 0.0
    %v5428 = vmax.f32 %v3522, 0.0
    %v5429 = vmax.f32 %v3524, 0.0
    %v5430 = vmax.f32 %v4068, 0.0
    %v5431 = vmax.f32 %v4070, 0.0
    %v5432 = vmax.f32 %v4614, 0.0
    %v5433 = vmax.f32 %v4616, 0.0
    %v5434 = vmax.f32 %v5160, 0.0
    %v5435 = vmax.f32 %v5162, 0.0
    %v5436 = vmax.f32 %v3526, 0.0
    %v5437 = vmax.f32 %v3528, 0.0
    %v5438 = vmax.f32 %v4072, 0.0
    %v5439 = vmax.f32 %v4074, 0.0
    %v5440 = vmax.f32 %v4618, 0.0
    %v5441 = vmax.f32 %v4620, 0.0
    %v5442 = vmax.f32 %v5164, 0.0
    %v5443 = vmax.f32 %v5166, 0.0
    %v5444 = vmax.f32 %v3532, 0.0
    %v5445 = vmax.f32 %v3534, 0.0
    %v5446 = vmax.f32 %v4078, 0.0
    %v5447 = vmax.f32 %v4080, 0.0
    %v5448 = vmax.f32 %v4624, 0.0
    %v5449 = vmax.f32 %v4626, 0.0
    %v5450 = vmax.f32 %v5170, 0.0
    %v5451 = vmax.f32 %v5172, 0.0
    %v5452 = vmax.f32 %v3536, 0.0
    %v5453 = vmax.f32 %v3538, 0.0
    %v5454 = vmax.f32 %v4082, 0.0
    %v5455 = vmax.f32 %v4084, 0.0
    %v5456 = vmax.f32 %v4628, 0.0
    %v5457 = vmax.f32 %v4630, 0.0
    %v5458 = vmax.f32 %v5174, 0.0
    %v5459 = vmax.f32 %v5176, 0.0
    %v5460 = vmax.f32 %v3542, 0.0
    %v5461 = vmax.f32 %v3544, 0.0
    %v5462 = vmax.f32 %v4088, 0.0
    %v5463 = vmax.f32 %v4090, 0.0
    %v5464 = vmax.f32 %v4634, 0.0
    %v5465 = vmax.f32 %v4636, 0.0
    %v5466 = vmax.f32 %v5180, 0.0
    %v5467 = vmax.f32 %v5182, 0.0
    %v5468 = vmax.f32 %v3546, 0.0
    %v5469 = vmax.f32 %v3548, 0.0
    %v5470 = vmax.f32 %v4092, 0.0
    %v5471 = vmax.f32 %v4094, 0.0
    %v5472 = vmax.f32 %v4638, 0.0
    %v5473 = vmax.f32 %v4640, 0.0
    %v5474 = vmax.f32 %v5184, 0.0
    %v5475 = vmax.f32 %v5186, 0.0
    %v5476 = vmax.f32 %v3552, 0.0
    %v5477 = vmax.f32 %v3554, 0.0
    %v5478 = vmax.f32 %v4098, 0.0
    %v5479 = vmax.f32 %v4100, 0.0
    %v5480 = vmax.f32 %v4644, 0.0
    %v5481 = vmax.f32 %v4646, 0.0
    %v5482 = vmax.f32 %v5190, 0.0
    %v5483 = vmax.f32 %v5192, 0.0
    %v5484 = vmax.f32 %v3556, 0.0
    %v5485 = vmax.f32 %v3558, 0.0
    %v5486 = vmax.f32 %v4102, 0.0
    %v5487 = vmax.f32 %v4104, 0.0
    %v5488 = vmax.f32 %v4648, 0.0
    %v5489 = vmax.f32 %v4650, 0.0
    %v5490 = vmax.f32 %v5194, 0.0
    %v5491 = vmax.f32 %v5196, 0.0
    %v5492 = vmax.f32 %v3562, 0.0
    %v5493 = vmax.f32 %v3564, 0.0
    %v5494 = vmax.f32 %v4108, 0.0
    %v5495 = vmax.f32 %v4110, 0.0
    %v5496 = vmax.f32 %v4654, 0.0
    %v5497 = vmax.f32 %v4656, 0.0
    %v5498 = vmax.f32 %v5200, 0.0
    %v5499 = vmax.f32 %v5202, 0.0
    %v5500 = vmax.f32 %v3566, 0.0
    %v5501 = vmax.f32 %v3568, 0.0
    %v5502 = vmax.f32 %v4112, 0.0
    %v5503 = vmax.f32 %v4114, 0.0
    %v5504 = vmax.f32 %v4658, 0.0
    %v5505 = vmax.f32 %v4660, 0.0
    %v5506 = vmax.f32 %v5204, 0.0
    %v5507 = vmax.f32 %v5206, 0.0
    %v5508 = vmax.f32 %v3572, 0.0
    %v5509 = vmax.f32 %v3574, 0.0
    %v5510 = vmax.f32 %v4118, 0.0
    %v5511 = vmax.f32 %v4120, 0.0
    %v5512 = vmax.f32 %v4664, 0.0
    %v5513 = vmax.f32 %v4666, 0.0
    %v5514 = vmax.f32 %v5210, 0.0
    %v5515 = vmax.f32 %v5212, 0.0
    %v5516 = vmax.f32 %v3576, 0.0
    %v5517 = vmax.f32 %v3578, 0.0
    %v5518 = vmax.f32 %v4122, 0.0
    %v5519 = vmax.f32 %v4124, 0.0
    %v5520 = vmax.f32 %v4668, 0.0
    %v5521 = vmax.f32 %v4670, 0.0
    %v5522 = vmax.f32 %v5214, 0.0
    %v5523 = vmax.f32 %v5216, 0.0
    %v5524 = vmax.f32 %v3582, 0.0
    %v5525 = vmax.f32 %v3584, 0.0
    %v5526 = vmax.f32 %v4128, 0.0
    %v5527 = vmax.f32 %v4130, 0.0
    %v5528 = vmax.f32 %v4674, 0.0
    %v5529 = vmax.f32 %v4676, 0.0
    %v5530 = vmax.f32 %v5220, 0.0
    %v5531 = vmax.f32 %v5222, 0.0
    %v5532 = vmax.f32 %v3586, 0.0
    %v5533 = vmax.f32 %v3588, 0.0
    %v5534 = vmax.f32 %v4132, 0.0
    %v5535 = vmax.f32 %v4134, 0.0
    %v5536 = vmax.f32 %v4678, 0.0
    %v5537 = vmax.f32 %v4680, 0.0
    %v5538 = vmax.f32 %v5224, 0.0
    %v5539 = vmax.f32 %v5226, 0.0
    %v5540 = vmax.f32 %v3592, 0.0
    %v5541 = vmax.f32 %v3594, 0.0
    %v5542 = vmax.f32 %v4138, 0.0
    %v5543 = vmax.f32 %v4140, 0.0
    %v5544 = vmax.f32 %v4684, 0.0
    %v5545 = vmax.f32 %v4686, 0.0
    %v5546 = vmax.f32 %v5230, 0.0
    %v5547 = vmax.f32 %v5232, 0.0
    %v5548 = vmax.f32 %v3596, 0.0
    %v5549 = vmax.f32 %v3598, 0.0
    %v5550 = vmax.f32 %v4142, 0.0
    %v5551 = vmax.f32 %v4144, 0.0
    %v5552 = vmax.f32 %v4688, 0.0
    %v5553 = vmax.f32 %v4690, 0.0
    %v5554 = vmax.f32 %v5234, 0.0
    %v5555 = vmax.f32 %v5236, 0.0
    %v5556 = vmax.f32 %v3602, 0.0
    %v5557 = vmax.f32 %v3604, 0.0
    %v5558 = vmax.f32 %v4148, 0.0
    %v5559 = vmax.f32 %v4150, 0.0
    %v5560 = vmax.f32 %v4694, 0.0
    %v5561 = vmax.f32 %v4696, 0.0
    %v5562 = vmax.f32 %v5240, 0.0
    %v5563 = vmax.f32 %v5242, 0.0
    %v5564 = vmax.f32 %v3606, 0.0
    %v5565 = vmax.f32 %v3608, 0.0
    %v5566 = vmax.f32 %v4152, 0.0
    %v5567 = vmax.f32 %v4154, 0.0
    %v5568 = vmax.f32 %v4698, 0.0
    %v5569 = vmax.f32 %v4700, 0.0
    %v5570 = vmax.f32 %v5244, 0.0
    %v5571 = vmax.f32 %v5246, 0.0
    %v5572 = vmax.f32 %v3612, 0.0
    %v5573 = vmax.f32 %v3614, 0.0
    %v5574 = vmax.f32 %v4158, 0.0
    %v5575 = vmax.f32 %v4160, 0.0
    %v5576 = vmax.f32 %v4704, 0.0
    %v5577 = vmax.f32 %v4706, 0.0
    %v5578 = vmax.f32 %v5250, 0.0
    %v5579 = vmax.f32 %v5252, 0.0
    %v5580 = vmax.f32 %v3616, 0.0
    %v5581 = vmax.f32 %v3618, 0.0
    %v5582 = vmax.f32 %v4162, 0.0
    %v5583 = vmax.f32 %v4164, 0.0
    %v5584 = vmax.f32 %v4708, 0.0
    %v5585 = vmax.f32 %v4710, 0.0
    %v5586 = vmax.f32 %v5254, 0.0
    %v5587 = vmax.f32 %v5256, 0.0
    %v5588 = vmax.f32 %v3622, 0.0
    %v5589 = vmax.f32 %v3624, 0.0
    %v5590 = vmax.f32 %v4168, 0.0
    %v5591 = vmax.f32 %v4170, 0.0
    %v5592 = vmax.f32 %v4714, 0.0
    %v5593 = vmax.f32 %v4716, 0.0
    %v5594 = vmax.f32 %v5260, 0.0
    %v5595 = vmax.f32 %v5262, 0.0
    %v5596 = vmax.f32 %v3626, 0.0
    %v5597 = vmax.f32 %v3628, 0.0
    %v5598 = vmax.f32 %v4172, 0.0
    %v5599 = vmax.f32 %v4174, 0.0
    %v5600 = vmax.f32 %v4718, 0.0
    %v5601 = vmax.f32 %v4720, 0.0
    %v5602 = vmax.f32 %v5264, 0.0
    %v5603 = vmax.f32 %v5266, 0.0
    %v5604 = vmax.f32 %v3632, 0.0
    %v5605 = vmax.f32 %v3634, 0.0
    %v5606 = vmax.f32 %v4178, 0.0
    %v5607 = vmax.f32 %v4180, 0.0
    %v5608 = vmax.f32 %v4724, 0.0
    %v5609 = vmax.f32 %v4726, 0.0
    %v5610 = vmax.f32 %v5270, 0.0
    %v5611 = vmax.f32 %v5272, 0.0
    %v5612 = vmax.f32 %v3636, 0.0
    %v5613 = vmax.f32 %v3638, 0.0
    %v5614 = vmax.f32 %v4182, 0.0
    %v5615 = vmax.f32 %v4184, 0.0
    %v5616 = vmax.f32 %v4728, 0.0
    %v5617 = vmax.f32 %v4730, 0.0
    %v5618 = vmax.f32 %v5274, 0.0
    %v5619 = vmax.f32 %v5276, 0.0
    %v5620 = vmax.f32 %v3642, 0.0
    %v5621 = vmax.f32 %v3644, 0.0
    %v5622 = vmax.f32 %v4188, 0.0
    %v5623 = vmax.f32 %v4190, 0.0
    %v5624 = vmax.f32 %v4734, 0.0
    %v5625 = vmax.f32 %v4736, 0.0
    %v5626 = vmax.f32 %v5280, 0.0
    %v5627 = vmax.f32 %v5282, 0.0
    %v5628 = vmax.f32 %v3646, 0.0
    %v5629 = vmax.f32 %v3648, 0.0
    %v5630 = vmax.f32 %v4192, 0.0
    %v5631 = vmax.f32 %v4194, 0.0
    %v5632 = vmax.f32 %v4738, 0.0
    %v5633 = vmax.f32 %v4740, 0.0
    %v5634 = vmax.f32 %v5284, 0.0
    %v5635 = vmax.f32 %v5286, 0.0
    %v5636 = vmax.f32 %v3652, 0.0
    %v5637 = vmax.f32 %v3654, 0.0
    %v5638 = vmax.f32 %v4198, 0.0
    %v5639 = vmax.f32 %v4200, 0.0
    %v5640 = vmax.f32 %v4744, 0.0
    %v5641 = vmax.f32 %v4746, 0.0
    %v5642 = vmax.f32 %v5290, 0.0
    %v5643 = vmax.f32 %v5292, 0.0
    %v5644 = vmax.f32 %v3656, 0.0
    %v5645 = vmax.f32 %v3658, 0.0
    %v5646 = vmax.f32 %v4202, 0.0
    %v5647 = vmax.f32 %v4204, 0.0
    %v5648 = vmax.f32 %v4748, 0.0
    %v5649 = vmax.f32 %v4750, 0.0
    %v5650 = vmax.f32 %v5294, 0.0
    %v5651 = vmax.f32 %v5296, 0.0
    %v5652 = vmax.f32 %v3662, 0.0
    %v5653 = vmax.f32 %v3664, 0.0
    %v5654 = vmax.f32 %v4208, 0.0
    %v5655 = vmax.f32 %v4210, 0.0
    %v5656 = vmax.f32 %v4754, 0.0
    %v5657 = vmax.f32 %v4756, 0.0
    %v5658 = vmax.f32 %v5300, 0.0
    %v5659 = vmax.f32 %v5302, 0.0
    %v5660 = vmax.f32 %v3666, 0.0
    %v5661 = vmax.f32 %v3668, 0.0
    %v5662 = vmax.f32 %v4212, 0.0
    %v5663 = vmax.f32 %v4214, 0.0
    %v5664 = vmax.f32 %v4758, 0.0
    %v5665 = vmax.f32 %v4760, 0.0
    %v5666 = vmax.f32 %v5304, 0.0
    %v5667 = vmax.f32 %v5306, 0.0
    %v5668 = vmax.f32 %v3672, 0.0
    %v5669 = vmax.f32 %v3674, 0.0
    %v5670 = vmax.f32 %v4218, 0.0
    %v5671 = vmax.f32 %v4220, 0.0
    %v5672 = vmax.f32 %v4764, 0.0
    %v5673 = vmax.f32 %v4766, 0.0
    %v5674 = vmax.f32 %v5310, 0.0
    %v5675 = vmax.f32 %v5312, 0.0
    %v5676 = vmax.f32 %v3676, 0.0
    %v5677 = vmax.f32 %v3678, 0.0
    %v5678 = vmax.f32 %v4222, 0.0
    %v5679 = vmax.f32 %v4224, 0.0
    %v5680 = vmax.f32 %v4768, 0.0
    %v5681 = vmax.f32 %v4770, 0.0
    %v5682 = vmax.f32 %v5314, 0.0
    %v5683 = vmax.f32 %v5316, 0.0
    %v5684 = vmax.f32 %v3682, 0.0
    %v5685 = vmax.f32 %v3684, 0.0
    %v5686 = vmax.f32 %v4228, 0.0
    %v5687 = vmax.f32 %v4230, 0.0
    %v5688 = vmax.f32 %v4774, 0.0
    %v5689 = vmax.f32 %v4776, 0.0
    %v5690 = vmax.f32 %v5320, 0.0
    %v5691 = vmax.f32 %v5322, 0.0
    %v5692 = vmax.f32 %v3686, 0.0
    %v5693 = vmax.f32 %v3688, 0.0
    %v5694 = vmax.f32 %v4232, 0.0
    %v5695 = vmax.f32 %v4234, 0.0
    %v5696 = vmax.f32 %v4778, 0.0
    %v5697 = vmax.f32 %v4780, 0.0
    %v5698 = vmax.f32 %v5324, 0.0
    %v5699 = vmax.f32 %v5326, 0.0
    %v5700 = vmax.f32 %v3692, 0.0
    %v5701 = vmax.f32 %v3694, 0.0
    %v5702 = vmax.f32 %v4238, 0.0
    %v5703 = vmax.f32 %v4240, 0.0
    %v5704 = vmax.f32 %v4784, 0.0
    %v5705 = vmax.f32 %v4786, 0.0
    %v5706 = vmax.f32 %v5330, 0.0
    %v5707 = vmax.f32 %v5332, 0.0
    %v5708 = vmax.f32 %v3696, 0.0
    %v5709 = vmax.f32 %v3698, 0.0
    %v5710 = vmax.f32 %v4242, 0.0
    %v5711 = vmax.f32 %v4244, 0.0
    %v5712 = vmax.f32 %v4788, 0.0
    %v5713 = vmax.f32 %v4790, 0.0
    %v5714 = vmax.f32 %v5334, 0.0
    %v5715 = vmax.f32 %v5336, 0.0
    %v5716 = vmax.f32 %v3702, 0.0
    %v5717 = vmax.f32 %v3704, 0.0
    %v5718 = vmax.f32 %v4248, 0.0
    %v5719 = vmax.f32 %v4250, 0.0
    %v5720 = vmax.f32 %v4794, 0.0
    %v5721 = vmax.f32 %v4796, 0.0
    %v5722 = vmax.f32 %v5340, 0.0
    %v5723 = vmax.f32 %v5342, 0.0
    %v5724 = vmax.f32 %v3706, 0.0
    %v5725 = vmax.f32 %v3708, 0.0
    %v5726 = vmax.f32 %v4252, 0.0
    %v5727 = vmax.f32 %v4254, 0.0
    %v5728 = vmax.f32 %v4798, 0.0
    %v5729 = vmax.f32 %v4800, 0.0
    %v5730 = vmax.f32 %v5344, 0.0
    %v5731 = vmax.f32 %v5346, 0.0
    %v5732 = vpack.c.bf16 %v5356, %v5348
    %v5733 = vpack.c.bf16 %v5357, %v5349
    %v5734 = vpack.c.bf16 %v5358, %v5350
    %v5735 = vpack.c.bf16 %v5359, %v5351
    %v5736 = vpack.c.bf16 %v5360, %v5352
    %v5737 = vpack.c.bf16 %v5361, %v5353
    %v5738 = vpack.c.bf16 %v5362, %v5354
    %v5739 = vpack.c.bf16 %v5363, %v5355
    %v5740 = vpack.c.bf16 %v5372, %v5364
    %v5741 = vpack.c.bf16 %v5373, %v5365
    %v5742 = vpack.c.bf16 %v5374, %v5366
    %v5743 = vpack.c.bf16 %v5375, %v5367
    %v5744 = vpack.c.bf16 %v5376, %v5368
    %v5745 = vpack.c.bf16 %v5377, %v5369
    %v5746 = vpack.c.bf16 %v5378, %v5370
    %v5747 = vpack.c.bf16 %v5379, %v5371
    %v5748 = vpack.c.bf16 %v5388, %v5380
    %v5749 = vpack.c.bf16 %v5389, %v5381
    %v5750 = vpack.c.bf16 %v5390, %v5382
    %v5751 = vpack.c.bf16 %v5391, %v5383
    %v5752 = vpack.c.bf16 %v5392, %v5384
    %v5753 = vpack.c.bf16 %v5393, %v5385
    %v5754 = vpack.c.bf16 %v5394, %v5386
    %v5755 = vpack.c.bf16 %v5395, %v5387
    %v5756 = vpack.c.bf16 %v5404, %v5396
    %v5757 = vpack.c.bf16 %v5405, %v5397
    %v5758 = vpack.c.bf16 %v5406, %v5398
    %v5759 = vpack.c.bf16 %v5407, %v5399
    %v5760 = vpack.c.bf16 %v5408, %v5400
    %v5761 = vpack.c.bf16 %v5409, %v5401
    %v5762 = vpack.c.bf16 %v5410, %v5402
    %v5763 = vpack.c.bf16 %v5411, %v5403
    %v5764 = vpack.c.bf16 %v5420, %v5412
    %v5765 = vpack.c.bf16 %v5421, %v5413
    %v5766 = vpack.c.bf16 %v5422, %v5414
    %v5767 = vpack.c.bf16 %v5423, %v5415
    %v5768 = vpack.c.bf16 %v5424, %v5416
    %v5769 = vpack.c.bf16 %v5425, %v5417
    %v5770 = vpack.c.bf16 %v5426, %v5418
    %v5771 = vpack.c.bf16 %v5427, %v5419
    %v5772 = vpack.c.bf16 %v5436, %v5428
    %v5773 = vpack.c.bf16 %v5437, %v5429
    %v5774 = vpack.c.bf16 %v5438, %v5430
    %v5775 = vpack.c.bf16 %v5439, %v5431
    %v5776 = vpack.c.bf16 %v5440, %v5432
    %v5777 = vpack.c.bf16 %v5441, %v5433
    %v5778 = vpack.c.bf16 %v5442, %v5434
    %v5779 = vpack.c.bf16 %v5443, %v5435
    %v5780 = vpack.c.bf16 %v5452, %v5444
    %v5781 = vpack.c.bf16 %v5453, %v5445
    %v5782 = vpack.c.bf16 %v5454, %v5446
    %v5783 = vpack.c.bf16 %v5455, %v5447
    %v5784 = vpack.c.bf16 %v5456, %v5448
    %v5785 = vpack.c.bf16 %v5457, %v5449
    %v5786 = vpack.c.bf16 %v5458, %v5450
    %v5787 = vpack.c.bf16 %v5459, %v5451
    %v5788 = vpack.c.bf16 %v5468, %v5460
    %v5789 = vpack.c.bf16 %v5469, %v5461
    %v5790 = vpack.c.bf16 %v5470, %v5462
    %v5791 = vpack.c.bf16 %v5471, %v5463
    %v5792 = vpack.c.bf16 %v5472, %v5464
    %v5793 = vpack.c.bf16 %v5473, %v5465
    %v5794 = vpack.c.bf16 %v5474, %v5466
    %v5795 = vpack.c.bf16 %v5475, %v5467
    %v5796 = vpack.c.bf16 %v5484, %v5476
    %v5797 = vpack.c.bf16 %v5485, %v5477
    %v5798 = vpack.c.bf16 %v5486, %v5478
    %v5799 = vpack.c.bf16 %v5487, %v5479
    %v5800 = vpack.c.bf16 %v5488, %v5480
    %v5801 = vpack.c.bf16 %v5489, %v5481
    %v5802 = vpack.c.bf16 %v5490, %v5482
    %v5803 = vpack.c.bf16 %v5491, %v5483
    %v5804 = vpack.c.bf16 %v5500, %v5492
    %v5805 = vpack.c.bf16 %v5501, %v5493
    %v5806 = vpack.c.bf16 %v5502, %v5494
    %v5807 = vpack.c.bf16 %v5503, %v5495
    %v5808 = vpack.c.bf16 %v5504, %v5496
    %v5809 = vpack.c.bf16 %v5505, %v5497
    %v5810 = vpack.c.bf16 %v5506, %v5498
    %v5811 = vpack.c.bf16 %v5507, %v5499
    %v5812 = vpack.c.bf16 %v5516, %v5508
    %v5813 = vpack.c.bf16 %v5517, %v5509
    %v5814 = vpack.c.bf16 %v5518, %v5510
    %v5815 = vpack.c.bf16 %v5519, %v5511
    %v5816 = vpack.c.bf16 %v5520, %v5512
    %v5817 = vpack.c.bf16 %v5521, %v5513
    %v5818 = vpack.c.bf16 %v5522, %v5514
    %v5819 = vpack.c.bf16 %v5523, %v5515
    %v5820 = vpack.c.bf16 %v5532, %v5524
    %v5821 = vpack.c.bf16 %v5533, %v5525
    %v5822 = vpack.c.bf16 %v5534, %v5526
    %v5823 = vpack.c.bf16 %v5535, %v5527
    %v5824 = vpack.c.bf16 %v5536, %v5528
    %v5825 = vpack.c.bf16 %v5537, %v5529
    %v5826 = vpack.c.bf16 %v5538, %v5530
    %v5827 = vpack.c.bf16 %v5539, %v5531
    %v5828 = vpack.c.bf16 %v5548, %v5540
    %v5829 = vpack.c.bf16 %v5549, %v5541
    %v5830 = vpack.c.bf16 %v5550, %v5542
    %v5831 = vpack.c.bf16 %v5551, %v5543
    %v5832 = vpack.c.bf16 %v5552, %v5544
    %v5833 = vpack.c.bf16 %v5553, %v5545
    %v5834 = vpack.c.bf16 %v5554, %v5546
    %v5835 = vpack.c.bf16 %v5555, %v5547
    %v5836 = vpack.c.bf16 %v5564, %v5556
    %v5837 = vpack.c.bf16 %v5565, %v5557
    %v5838 = vpack.c.bf16 %v5566, %v5558
    %v5839 = vpack.c.bf16 %v5567, %v5559
    %v5840 = vpack.c.bf16 %v5568, %v5560
    %v5841 = vpack.c.bf16 %v5569, %v5561
    %v5842 = vpack.c.bf16 %v5570, %v5562
    %v5843 = vpack.c.bf16 %v5571, %v5563
    %v5844 = vpack.c.bf16 %v5580, %v5572
    %v5845 = vpack.c.bf16 %v5581, %v5573
    %v5846 = vpack.c.bf16 %v5582, %v5574
    %v5847 = vpack.c.bf16 %v5583, %v5575
    %v5848 = vpack.c.bf16 %v5584, %v5576
    %v5849 = vpack.c.bf16 %v5585, %v5577
    %v5850 = vpack.c.bf16 %v5586, %v5578
    %v5851 = vpack.c.bf16 %v5587, %v5579
    %v5852 = vpack.c.bf16 %v5596, %v5588
    %v5853 = vpack.c.bf16 %v5597, %v5589
    %v5854 = vpack.c.bf16 %v5598, %v5590
    %v5855 = vpack.c.bf16 %v5599, %v5591
    %v5856 = vpack.c.bf16 %v5600, %v5592
    %v5857 = vpack.c.bf16 %v5601, %v5593
    %v5858 = vpack.c.bf16 %v5602, %v5594
    %v5859 = vpack.c.bf16 %v5603, %v5595
    %v5860 = vpack.c.bf16 %v5612, %v5604
    %v5861 = vpack.c.bf16 %v5613, %v5605
    %v5862 = vpack.c.bf16 %v5614, %v5606
    %v5863 = vpack.c.bf16 %v5615, %v5607
    %v5864 = vpack.c.bf16 %v5616, %v5608
    %v5865 = vpack.c.bf16 %v5617, %v5609
    %v5866 = vpack.c.bf16 %v5618, %v5610
    %v5867 = vpack.c.bf16 %v5619, %v5611
    %v5868 = vpack.c.bf16 %v5628, %v5620
    %v5869 = vpack.c.bf16 %v5629, %v5621
    %v5870 = vpack.c.bf16 %v5630, %v5622
    %v5871 = vpack.c.bf16 %v5631, %v5623
    %v5872 = vpack.c.bf16 %v5632, %v5624
    %v5873 = vpack.c.bf16 %v5633, %v5625
    %v5874 = vpack.c.bf16 %v5634, %v5626
    %v5875 = vpack.c.bf16 %v5635, %v5627
    %v5876 = vpack.c.bf16 %v5644, %v5636
    %v5877 = vpack.c.bf16 %v5645, %v5637
    %v5878 = vpack.c.bf16 %v5646, %v5638
    %v5879 = vpack.c.bf16 %v5647, %v5639
    %v5880 = vpack.c.bf16 %v5648, %v5640
    %v5881 = vpack.c.bf16 %v5649, %v5641
    %v5882 = vpack.c.bf16 %v5650, %v5642
    %v5883 = vpack.c.bf16 %v5651, %v5643
    %v5884 = vpack.c.bf16 %v5660, %v5652
    %v5885 = vpack.c.bf16 %v5661, %v5653
    %v5886 = vpack.c.bf16 %v5662, %v5654
    %v5887 = vpack.c.bf16 %v5663, %v5655
    %v5888 = vpack.c.bf16 %v5664, %v5656
    %v5889 = vpack.c.bf16 %v5665, %v5657
    %v5890 = vpack.c.bf16 %v5666, %v5658
    %v5891 = vpack.c.bf16 %v5667, %v5659
    %v5892 = vpack.c.bf16 %v5676, %v5668
    %v5893 = vpack.c.bf16 %v5677, %v5669
    %v5894 = vpack.c.bf16 %v5678, %v5670
    %v5895 = vpack.c.bf16 %v5679, %v5671
    %v5896 = vpack.c.bf16 %v5680, %v5672
    %v5897 = vpack.c.bf16 %v5681, %v5673
    %v5898 = vpack.c.bf16 %v5682, %v5674
    %v5899 = vpack.c.bf16 %v5683, %v5675
    %v5900 = vpack.c.bf16 %v5692, %v5684
    %v5901 = vpack.c.bf16 %v5693, %v5685
    %v5902 = vpack.c.bf16 %v5694, %v5686
    %v5903 = vpack.c.bf16 %v5695, %v5687
    %v5904 = vpack.c.bf16 %v5696, %v5688
    %v5905 = vpack.c.bf16 %v5697, %v5689
    %v5906 = vpack.c.bf16 %v5698, %v5690
    %v5907 = vpack.c.bf16 %v5699, %v5691
    %v5908 = vpack.c.bf16 %v5708, %v5700
    %v5909 = vpack.c.bf16 %v5709, %v5701
    %v5910 = vpack.c.bf16 %v5710, %v5702
    %v5911 = vpack.c.bf16 %v5711, %v5703
    %v5912 = vpack.c.bf16 %v5712, %v5704
    %v5913 = vpack.c.bf16 %v5713, %v5705
    %v5914 = vpack.c.bf16 %v5714, %v5706
    %v5915 = vpack.c.bf16 %v5715, %v5707
    %v5916 = vpack.c.bf16 %v5724, %v5716
    %v5917 = vpack.c.bf16 %v5725, %v5717
    %v5918 = vpack.c.bf16 %v5726, %v5718
    %v5919 = vpack.c.bf16 %v5727, %v5719
    %v5920 = vpack.c.bf16 %v5728, %v5720
    %v5921 = vpack.c.bf16 %v5729, %v5721
    %v5922 = vpack.c.bf16 %v5730, %v5722
    %v5923 = vpack.c.bf16 %v5731, %v5723
    %v5924 = vld [vmem:[#allocation4] sm:$0xff]
    %v5925 = vld [vmem:[#allocation4 + $0x8] sm:$0xff]
    %v5926 = vld [vmem:[#allocation4 + $0x10] sm:$0xff]
    %v5927 = vld [vmem:[#allocation4 + $0x18] sm:$0xff]
    %v5928 = vld [vmem:[#allocation4 + $0x20] sm:$0xff]
    %v5929 = vld [vmem:[#allocation4 + $0x28] sm:$0xff]
    %v5930 = vld [vmem:[#allocation4 + $0x30] sm:$0xff]
    %v5931 = vld [vmem:[#allocation4 + $0x38] sm:$0xff]
    %v5932 = vld [vmem:[#allocation4 + $0x40] sm:$0xff]
    %v5933 = vld [vmem:[#allocation4 + $0x48] sm:$0xff]
    %v5934 = vld [vmem:[#allocation4 + $0x50] sm:$0xff]
    %v5935 = vld [vmem:[#allocation4 + $0x58] sm:$0xff]
    %v5936 = vld [vmem:[#allocation4 + $0x60] sm:$0xff]
    %v5937 = vld [vmem:[#allocation4 + $0x68] sm:$0xff]
    %v5938 = vld [vmem:[#allocation4 + $0x70] sm:$0xff]
    %v5939 = vld [vmem:[#allocation4 + $0x78] sm:$0xff]
    %v5940 = vld [vmem:[#allocation4 + $0x80] sm:$0xff]
    %v5941 = vld [vmem:[#allocation4 + $0x88] sm:$0xff]
    %v5942 = vld [vmem:[#allocation4 + $0x90] sm:$0xff]
    %v5943 = vld [vmem:[#allocation4 + $0x98] sm:$0xff]
    %v5944 = vld [vmem:[#allocation4 + $0xa0] sm:$0xff]
    %v5945 = vld [vmem:[#allocation4 + $0xa8] sm:$0xff]
    %v5946 = vld [vmem:[#allocation4 + $0xb0] sm:$0xff]
    %v5947 = vld [vmem:[#allocation4 + $0xb8] sm:$0xff]
    %v5948 = vld [vmem:[#allocation4 + $0xc0] sm:$0xff]
    %v5949 = vld [vmem:[#allocation4 + $0xc8] sm:$0xff]
    %v5950 = vld [vmem:[#allocation4 + $0xd0] sm:$0xff]
    %v5951 = vld [vmem:[#allocation4 + $0xd8] sm:$0xff]
    %v5952 = vld [vmem:[#allocation4 + $0xe0] sm:$0xff]
    %v5953 = vld [vmem:[#allocation4 + $0xe8] sm:$0xff]
    %v5954 = vld [vmem:[#allocation4 + $0xf0] sm:$0xff]
    %v5955 = vld [vmem:[#allocation4 + $0xf8] sm:$0xff]
    %v5956 = vld [vmem:[#allocation4 + $0x100] sm:$0xff]
    %v5957 = vld [vmem:[#allocation4 + $0x108] sm:$0xff]
    %v5958 = vld [vmem:[#allocation4 + $0x110] sm:$0xff]
    %v5959 = vld [vmem:[#allocation4 + $0x118] sm:$0xff]
    %v5960 = vld [vmem:[#allocation4 + $0x120] sm:$0xff]
    %v5961 = vld [vmem:[#allocation4 + $0x128] sm:$0xff]
    %v5962 = vld [vmem:[#allocation4 + $0x130] sm:$0xff]
    %v5963 = vld [vmem:[#allocation4 + $0x138] sm:$0xff]
    %v5964 = vld [vmem:[#allocation4 + $0x140] sm:$0xff]
    %v5965 = vld [vmem:[#allocation4 + $0x148] sm:$0xff]
    %v5966 = vld [vmem:[#allocation4 + $0x150] sm:$0xff]
    %v5967 = vld [vmem:[#allocation4 + $0x158] sm:$0xff]
    %v5968 = vld [vmem:[#allocation4 + $0x160] sm:$0xff]
    %v5969 = vld [vmem:[#allocation4 + $0x168] sm:$0xff]
    %v5970 = vld [vmem:[#allocation4 + $0x170] sm:$0xff]
    %v5971 = vld [vmem:[#allocation4 + $0x178] sm:$0xff]
    %v5972 = vld [vmem:[#allocation4 + $0x180] sm:$0xff]
    %v5973 = vld [vmem:[#allocation4 + $0x188] sm:$0xff]
    %v5974 = vld [vmem:[#allocation4 + $0x190] sm:$0xff]
    %v5975 = vld [vmem:[#allocation4 + $0x198] sm:$0xff]
    %v5976 = vld [vmem:[#allocation4 + $0x1a0] sm:$0xff]
    %v5977 = vld [vmem:[#allocation4 + $0x1a8] sm:$0xff]
    %v5978 = vld [vmem:[#allocation4 + $0x1b0] sm:$0xff]
    %v5979 = vld [vmem:[#allocation4 + $0x1b8] sm:$0xff]
    %v5980 = vld [vmem:[#allocation4 + $0x1c0] sm:$0xff]
    %v5981 = vld [vmem:[#allocation4 + $0x1c8] sm:$0xff]
    %v5982 = vld [vmem:[#allocation4 + $0x1d0] sm:$0xff]
    %v5983 = vld [vmem:[#allocation4 + $0x1d8] sm:$0xff]
    %v5984 = vld [vmem:[#allocation4 + $0x1e0] sm:$0xff]
    %v5985 = vld [vmem:[#allocation4 + $0x1e8] sm:$0xff]
    %v5986 = vld [vmem:[#allocation4 + $0x1f0] sm:$0xff]
    %v5987 = vld [vmem:[#allocation4 + $0x1f8] sm:$0xff]
    %v5988 = vld [vmem:[#allocation4 + $0x200] sm:$0xff]
    %v5989 = vld [vmem:[#allocation4 + $0x208] sm:$0xff]
    %v5990 = vld [vmem:[#allocation4 + $0x210] sm:$0xff]
    %v5991 = vld [vmem:[#allocation4 + $0x218] sm:$0xff]
    %v5992 = vld [vmem:[#allocation4 + $0x220] sm:$0xff]
    %v5993 = vld [vmem:[#allocation4 + $0x228] sm:$0xff]
    %v5994 = vld [vmem:[#allocation4 + $0x230] sm:$0xff]
    %v5995 = vld [vmem:[#allocation4 + $0x238] sm:$0xff]
    %v5996 = vld [vmem:[#allocation4 + $0x240] sm:$0xff]
    %v5997 = vld [vmem:[#allocation4 + $0x248] sm:$0xff]
    %v5998 = vld [vmem:[#allocation4 + $0x250] sm:$0xff]
    %v5999 = vld [vmem:[#allocation4 + $0x258] sm:$0xff]
    %v6000 = vld [vmem:[#allocation4 + $0x260] sm:$0xff]
    %v6001 = vld [vmem:[#allocation4 + $0x268] sm:$0xff]
    %v6002 = vld [vmem:[#allocation4 + $0x270] sm:$0xff]
    %v6003 = vld [vmem:[#allocation4 + $0x278] sm:$0xff]
    %v6004 = vld [vmem:[#allocation4 + $0x280] sm:$0xff]
    %v6005 = vld [vmem:[#allocation4 + $0x288] sm:$0xff]
    %v6006 = vld [vmem:[#allocation4 + $0x290] sm:$0xff]
    %v6007 = vld [vmem:[#allocation4 + $0x298] sm:$0xff]
    %v6008 = vld [vmem:[#allocation4 + $0x2a0] sm:$0xff]
    %v6009 = vld [vmem:[#allocation4 + $0x2a8] sm:$0xff]
    %v6010 = vld [vmem:[#allocation4 + $0x2b0] sm:$0xff]
    %v6011 = vld [vmem:[#allocation4 + $0x2b8] sm:$0xff]
    %v6012 = vld [vmem:[#allocation4 + $0x2c0] sm:$0xff]
    %v6013 = vld [vmem:[#allocation4 + $0x2c8] sm:$0xff]
    %v6014 = vld [vmem:[#allocation4 + $0x2d0] sm:$0xff]
    %v6015 = vld [vmem:[#allocation4 + $0x2d8] sm:$0xff]
    %v6016 = vld [vmem:[#allocation4 + $0x2e0] sm:$0xff]
    %v6017 = vld [vmem:[#allocation4 + $0x2e8] sm:$0xff]
    %v6018 = vld [vmem:[#allocation4 + $0x2f0] sm:$0xff]
    %v6019 = vld [vmem:[#allocation4 + $0x2f8] sm:$0xff]
    %v6020 = vld [vmem:[#allocation4 + $0x300] sm:$0xff]
    %v6021 = vld [vmem:[#allocation4 + $0x308] sm:$0xff]
    %v6022 = vld [vmem:[#allocation4 + $0x310] sm:$0xff]
    %v6023 = vld [vmem:[#allocation4 + $0x318] sm:$0xff]
    %v6024 = vld [vmem:[#allocation4 + $0x320] sm:$0xff]
    %v6025 = vld [vmem:[#allocation4 + $0x328] sm:$0xff]
    %v6026 = vld [vmem:[#allocation4 + $0x330] sm:$0xff]
    %v6027 = vld [vmem:[#allocation4 + $0x338] sm:$0xff]
    %v6028 = vld [vmem:[#allocation4 + $0x340] sm:$0xff]
    %v6029 = vld [vmem:[#allocation4 + $0x348] sm:$0xff]
    %v6030 = vld [vmem:[#allocation4 + $0x350] sm:$0xff]
    %v6031 = vld [vmem:[#allocation4 + $0x358] sm:$0xff]
    %v6032 = vld [vmem:[#allocation4 + $0x360] sm:$0xff]
    %v6033 = vld [vmem:[#allocation4 + $0x368] sm:$0xff]
    %v6034 = vld [vmem:[#allocation4 + $0x370] sm:$0xff]
    %v6035 = vld [vmem:[#allocation4 + $0x378] sm:$0xff]
    %v6036 = vld [vmem:[#allocation4 + $0x380] sm:$0xff]
    %v6037 = vld [vmem:[#allocation4 + $0x388] sm:$0xff]
    %v6038 = vld [vmem:[#allocation4 + $0x390] sm:$0xff]
    %v6039 = vld [vmem:[#allocation4 + $0x398] sm:$0xff]
    %v6040 = vld [vmem:[#allocation4 + $0x3a0] sm:$0xff]
    %v6041 = vld [vmem:[#allocation4 + $0x3a8] sm:$0xff]
    %v6042 = vld [vmem:[#allocation4 + $0x3b0] sm:$0xff]
    %v6043 = vld [vmem:[#allocation4 + $0x3b8] sm:$0xff]
    %v6044 = vld [vmem:[#allocation4 + $0x3c0] sm:$0xff]
    %v6045 = vld [vmem:[#allocation4 + $0x3c8] sm:$0xff]
    %v6046 = vld [vmem:[#allocation4 + $0x3d0] sm:$0xff]
    %v6047 = vld [vmem:[#allocation4 + $0x3d8] sm:$0xff]
    %v6048 = vld [vmem:[#allocation4 + $0x3e0] sm:$0xff]
    %v6049 = vld [vmem:[#allocation4 + $0x3e8] sm:$0xff]
    %v6050 = vld [vmem:[#allocation4 + $0x3f0] sm:$0xff]
    %v6051 = vld [vmem:[#allocation4 + $0x3f8] sm:$0xff]
    %v6052 = vld [vmem:[#allocation4 + $0x400] sm:$0xff]
    %v6053 = vld [vmem:[#allocation4 + $0x408] sm:$0xff]
    %v6054 = vld [vmem:[#allocation4 + $0x410] sm:$0xff]
    %v6055 = vld [vmem:[#allocation4 + $0x418] sm:$0xff]
    %v6056 = vld [vmem:[#allocation4 + $0x420] sm:$0xff]
    %v6057 = vld [vmem:[#allocation4 + $0x428] sm:$0xff]
    %v6058 = vld [vmem:[#allocation4 + $0x430] sm:$0xff]
    %v6059 = vld [vmem:[#allocation4 + $0x438] sm:$0xff]
    %v6060 = vld [vmem:[#allocation4 + $0x440] sm:$0xff]
    %v6061 = vld [vmem:[#allocation4 + $0x448] sm:$0xff]
    %v6062 = vld [vmem:[#allocation4 + $0x450] sm:$0xff]
    %v6063 = vld [vmem:[#allocation4 + $0x458] sm:$0xff]
    %v6064 = vld [vmem:[#allocation4 + $0x460] sm:$0xff]
    %v6065 = vld [vmem:[#allocation4 + $0x468] sm:$0xff]
    %v6066 = vld [vmem:[#allocation4 + $0x470] sm:$0xff]
    %v6067 = vld [vmem:[#allocation4 + $0x478] sm:$0xff]
    %v6068 = vld [vmem:[#allocation4 + $0x480] sm:$0xff]
    %v6069 = vld [vmem:[#allocation4 + $0x488] sm:$0xff]
    %v6070 = vld [vmem:[#allocation4 + $0x490] sm:$0xff]
    %v6071 = vld [vmem:[#allocation4 + $0x498] sm:$0xff]
    %v6072 = vld [vmem:[#allocation4 + $0x4a0] sm:$0xff]
    %v6073 = vld [vmem:[#allocation4 + $0x4a8] sm:$0xff]
    %v6074 = vld [vmem:[#allocation4 + $0x4b0] sm:$0xff]
    %v6075 = vld [vmem:[#allocation4 + $0x4b8] sm:$0xff]
    %v6076 = vld [vmem:[#allocation4 + $0x4c0] sm:$0xff]
    %v6077 = vld [vmem:[#allocation4 + $0x4c8] sm:$0xff]
    %v6078 = vld [vmem:[#allocation4 + $0x4d0] sm:$0xff]
    %v6079 = vld [vmem:[#allocation4 + $0x4d8] sm:$0xff]
    %v6080 = vld [vmem:[#allocation4 + $0x4e0] sm:$0xff]
    %v6081 = vld [vmem:[#allocation4 + $0x4e8] sm:$0xff]
    %v6082 = vld [vmem:[#allocation4 + $0x4f0] sm:$0xff]
    %v6083 = vld [vmem:[#allocation4 + $0x4f8] sm:$0xff]
    %v6084 = vld [vmem:[#allocation4 + $0x500] sm:$0xff]
    %v6085 = vld [vmem:[#allocation4 + $0x508] sm:$0xff]
    %v6086 = vld [vmem:[#allocation4 + $0x510] sm:$0xff]
    %v6087 = vld [vmem:[#allocation4 + $0x518] sm:$0xff]
    %v6088 = vld [vmem:[#allocation4 + $0x520] sm:$0xff]
    %v6089 = vld [vmem:[#allocation4 + $0x528] sm:$0xff]
    %v6090 = vld [vmem:[#allocation4 + $0x530] sm:$0xff]
    %v6091 = vld [vmem:[#allocation4 + $0x538] sm:$0xff]
    %v6092 = vld [vmem:[#allocation4 + $0x540] sm:$0xff]
    %v6093 = vld [vmem:[#allocation4 + $0x548] sm:$0xff]
    %v6094 = vld [vmem:[#allocation4 + $0x550] sm:$0xff]
    %v6095 = vld [vmem:[#allocation4 + $0x558] sm:$0xff]
    %v6096 = vld [vmem:[#allocation4 + $0x560] sm:$0xff]
    %v6097 = vld [vmem:[#allocation4 + $0x568] sm:$0xff]
    %v6098 = vld [vmem:[#allocation4 + $0x570] sm:$0xff]
    %v6099 = vld [vmem:[#allocation4 + $0x578] sm:$0xff]
    %v6100 = vld [vmem:[#allocation4 + $0x580] sm:$0xff]
    %v6101 = vld [vmem:[#allocation4 + $0x588] sm:$0xff]
    %v6102 = vld [vmem:[#allocation4 + $0x590] sm:$0xff]
    %v6103 = vld [vmem:[#allocation4 + $0x598] sm:$0xff]
    %v6104 = vld [vmem:[#allocation4 + $0x5a0] sm:$0xff]
    %v6105 = vld [vmem:[#allocation4 + $0x5a8] sm:$0xff]
    %v6106 = vld [vmem:[#allocation4 + $0x5b0] sm:$0xff]
    %v6107 = vld [vmem:[#allocation4 + $0x5b8] sm:$0xff]
    %v6108 = vld [vmem:[#allocation4 + $0x5c0] sm:$0xff]
    %v6109 = vld [vmem:[#allocation4 + $0x5c8] sm:$0xff]
    %v6110 = vld [vmem:[#allocation4 + $0x5d0] sm:$0xff]
    %v6111 = vld [vmem:[#allocation4 + $0x5d8] sm:$0xff]
    %v6112 = vld [vmem:[#allocation4 + $0x5e0] sm:$0xff]
    %v6113 = vld [vmem:[#allocation4 + $0x5e8] sm:$0xff]
    %v6114 = vld [vmem:[#allocation4 + $0x5f0] sm:$0xff]
    %v6115 = vld [vmem:[#allocation4 + $0x5f8] sm:$0xff]
    %v6116 = vld [vmem:[#allocation4 + $0x600] sm:$0xff]
    %v6117 = vld [vmem:[#allocation4 + $0x608] sm:$0xff]
    %v6118 = vld [vmem:[#allocation4 + $0x610] sm:$0xff]
    %v6119 = vld [vmem:[#allocation4 + $0x618] sm:$0xff]
    %v6120 = vld [vmem:[#allocation4 + $0x620] sm:$0xff]
    %v6121 = vld [vmem:[#allocation4 + $0x628] sm:$0xff]
    %v6122 = vld [vmem:[#allocation4 + $0x630] sm:$0xff]
    %v6123 = vld [vmem:[#allocation4 + $0x638] sm:$0xff]
    %v6124 = vld [vmem:[#allocation4 + $0x640] sm:$0xff]
    %v6125 = vld [vmem:[#allocation4 + $0x648] sm:$0xff]
    %v6126 = vld [vmem:[#allocation4 + $0x650] sm:$0xff]
    %v6127 = vld [vmem:[#allocation4 + $0x658] sm:$0xff]
    %v6128 = vld [vmem:[#allocation4 + $0x660] sm:$0xff]
    %v6129 = vld [vmem:[#allocation4 + $0x668] sm:$0xff]
    %v6130 = vld [vmem:[#allocation4 + $0x670] sm:$0xff]
    %v6131 = vld [vmem:[#allocation4 + $0x678] sm:$0xff]
    %v6132 = vld [vmem:[#allocation4 + $0x680] sm:$0xff]
    %v6133 = vld [vmem:[#allocation4 + $0x688] sm:$0xff]
    %v6134 = vld [vmem:[#allocation4 + $0x690] sm:$0xff]
    %v6135 = vld [vmem:[#allocation4 + $0x698] sm:$0xff]
    %v6136 = vld [vmem:[#allocation4 + $0x6a0] sm:$0xff]
    %v6137 = vld [vmem:[#allocation4 + $0x6a8] sm:$0xff]
    %v6138 = vld [vmem:[#allocation4 + $0x6b0] sm:$0xff]
    %v6139 = vld [vmem:[#allocation4 + $0x6b8] sm:$0xff]
    %v6140 = vld [vmem:[#allocation4 + $0x6c0] sm:$0xff]
    %v6141 = vld [vmem:[#allocation4 + $0x6c8] sm:$0xff]
    %v6142 = vld [vmem:[#allocation4 + $0x6d0] sm:$0xff]
    %v6143 = vld [vmem:[#allocation4 + $0x6d8] sm:$0xff]
    %v6144 = vld [vmem:[#allocation4 + $0x6e0] sm:$0xff]
    %v6145 = vld [vmem:[#allocation4 + $0x6e8] sm:$0xff]
    %v6146 = vld [vmem:[#allocation4 + $0x6f0] sm:$0xff]
    %v6147 = vld [vmem:[#allocation4 + $0x6f8] sm:$0xff]
    %v6148 = vld [vmem:[#allocation4 + $0x700] sm:$0xff]
    %v6149 = vld [vmem:[#allocation4 + $0x708] sm:$0xff]
    %v6150 = vld [vmem:[#allocation4 + $0x710] sm:$0xff]
    %v6151 = vld [vmem:[#allocation4 + $0x718] sm:$0xff]
    %v6152 = vld [vmem:[#allocation4 + $0x720] sm:$0xff]
    %v6153 = vld [vmem:[#allocation4 + $0x728] sm:$0xff]
    %v6154 = vld [vmem:[#allocation4 + $0x730] sm:$0xff]
    %v6155 = vld [vmem:[#allocation4 + $0x738] sm:$0xff]
    %v6156 = vld [vmem:[#allocation4 + $0x740] sm:$0xff]
    %v6157 = vld [vmem:[#allocation4 + $0x748] sm:$0xff]
    %v6158 = vld [vmem:[#allocation4 + $0x750] sm:$0xff]
    %v6159 = vld [vmem:[#allocation4 + $0x758] sm:$0xff]
    %v6160 = vld [vmem:[#allocation4 + $0x760] sm:$0xff]
    %v6161 = vld [vmem:[#allocation4 + $0x768] sm:$0xff]
    %v6162 = vld [vmem:[#allocation4 + $0x770] sm:$0xff]
    %v6163 = vld [vmem:[#allocation4 + $0x778] sm:$0xff]
    %v6164 = vld [vmem:[#allocation4 + $0x780] sm:$0xff]
    %v6165 = vld [vmem:[#allocation4 + $0x788] sm:$0xff]
    %v6166 = vld [vmem:[#allocation4 + $0x790] sm:$0xff]
    %v6167 = vld [vmem:[#allocation4 + $0x798] sm:$0xff]
    %v6168 = vld [vmem:[#allocation4 + $0x7a0] sm:$0xff]
    %v6169 = vld [vmem:[#allocation4 + $0x7a8] sm:$0xff]
    %v6170 = vld [vmem:[#allocation4 + $0x7b0] sm:$0xff]
    %v6171 = vld [vmem:[#allocation4 + $0x7b8] sm:$0xff]
    %v6172 = vld [vmem:[#allocation4 + $0x7c0] sm:$0xff]
    %v6173 = vld [vmem:[#allocation4 + $0x7c8] sm:$0xff]
    %v6174 = vld [vmem:[#allocation4 + $0x7d0] sm:$0xff]
    %v6175 = vld [vmem:[#allocation4 + $0x7d8] sm:$0xff]
    %v6176 = vld [vmem:[#allocation4 + $0x7e0] sm:$0xff]
    %v6177 = vld [vmem:[#allocation4 + $0x7e8] sm:$0xff]
    %v6178 = vld [vmem:[#allocation4 + $0x7f0] sm:$0xff]
    %v6179 = vld [vmem:[#allocation4 + $0x7f8] sm:$0xff]
    %v6180 = vld [vmem:[%s8] sm:$0xf]
    %v6182 = vlaneseq
    %v6183 = vshrl.u32 %v6182, 7
    %v6184 = vsub.s32 0, %v6183
    %v6185 = vrot.slane %v6180, %v6184
    %v6186 = vlaneseq
    %v6187 = vshrl.u32 %v6186, 7
    %v6188 = vsub.s32 1, %v6187
    %v6189 = vrot.slane %v6180, %v6188
    %v6190 = vlaneseq
    %v6191 = vshrl.u32 %v6190, 7
    %v6192 = vsub.s32 2, %v6191
    %v6193 = vrot.slane %v6180, %v6192
    %v6194 = vlaneseq
    %v6195 = vshrl.u32 %v6194, 7
    %v6196 = vsub.s32 3, %v6195
    %v6197 = vrot.slane %v6180, %v6196
    %v6458 = vunpack.c.l.b16 %v5924
    %v6459 = vunpack.c.h.b16 %v5924
    %v6460 = vunpack.c.l.b16 %v5925
    %v6461 = vunpack.c.h.b16 %v5925
    %v6462 = vunpack.c.l.b16 %v5926
    %v6463 = vunpack.c.h.b16 %v5926
    %v6464 = vunpack.c.l.b16 %v5927
    %v6465 = vunpack.c.h.b16 %v5927
    %v6466 = vunpack.c.l.b16 %v5928
    %v6467 = vunpack.c.h.b16 %v5928
    %v6468 = vunpack.c.l.b16 %v5929
    %v6469 = vunpack.c.h.b16 %v5929
    %v6470 = vunpack.c.l.b16 %v5930
    %v6471 = vunpack.c.h.b16 %v5930
    %v6472 = vunpack.c.l.b16 %v5931
    %v6473 = vunpack.c.h.b16 %v5931
    %v6474 = vunpack.c.l.b16 %v5932
    %v6475 = vunpack.c.h.b16 %v5932
    %v6476 = vunpack.c.l.b16 %v5933
    %v6477 = vunpack.c.h.b16 %v5933
    %v6478 = vunpack.c.l.b16 %v5934
    %v6479 = vunpack.c.h.b16 %v5934
    %v6480 = vunpack.c.l.b16 %v5935
    %v6481 = vunpack.c.h.b16 %v5935
    %v6482 = vunpack.c.l.b16 %v5936
    %v6483 = vunpack.c.h.b16 %v5936
    %v6484 = vunpack.c.l.b16 %v5937
    %v6485 = vunpack.c.h.b16 %v5937
    %v6486 = vunpack.c.l.b16 %v5938
    %v6487 = vunpack.c.h.b16 %v5938
    %v6488 = vunpack.c.l.b16 %v5939
    %v6489 = vunpack.c.h.b16 %v5939
    %v6490 = vunpack.c.l.b16 %v5940
    %v6491 = vunpack.c.h.b16 %v5940
    %v6492 = vunpack.c.l.b16 %v5941
    %v6493 = vunpack.c.h.b16 %v5941
    %v6494 = vunpack.c.l.b16 %v5942
    %v6495 = vunpack.c.h.b16 %v5942
    %v6496 = vunpack.c.l.b16 %v5943
    %v6497 = vunpack.c.h.b16 %v5943
    %v6498 = vunpack.c.l.b16 %v5944
    %v6499 = vunpack.c.h.b16 %v5944
    %v6500 = vunpack.c.l.b16 %v5945
    %v6501 = vunpack.c.h.b16 %v5945
    %v6502 = vunpack.c.l.b16 %v5946
    %v6503 = vunpack.c.h.b16 %v5946
    %v6504 = vunpack.c.l.b16 %v5947
    %v6505 = vunpack.c.h.b16 %v5947
    %v6506 = vunpack.c.l.b16 %v5948
    %v6507 = vunpack.c.h.b16 %v5948
    %v6508 = vunpack.c.l.b16 %v5949
    %v6509 = vunpack.c.h.b16 %v5949
    %v6510 = vunpack.c.l.b16 %v5950
    %v6511 = vunpack.c.h.b16 %v5950
    %v6512 = vunpack.c.l.b16 %v5951
    %v6513 = vunpack.c.h.b16 %v5951
    %v6514 = vunpack.c.l.b16 %v5952
    %v6515 = vunpack.c.h.b16 %v5952
    %v6516 = vunpack.c.l.b16 %v5953
    %v6517 = vunpack.c.h.b16 %v5953
    %v6518 = vunpack.c.l.b16 %v5954
    %v6519 = vunpack.c.h.b16 %v5954
    %v6520 = vunpack.c.l.b16 %v5955
    %v6521 = vunpack.c.h.b16 %v5955
    %v6522 = vunpack.c.l.b16 %v5956
    %v6523 = vunpack.c.h.b16 %v5956
    %v6524 = vunpack.c.l.b16 %v5957
    %v6525 = vunpack.c.h.b16 %v5957
    %v6526 = vunpack.c.l.b16 %v5958
    %v6527 = vunpack.c.h.b16 %v5958
    %v6528 = vunpack.c.l.b16 %v5959
    %v6529 = vunpack.c.h.b16 %v5959
    %v6530 = vunpack.c.l.b16 %v5960
    %v6531 = vunpack.c.h.b16 %v5960
    %v6532 = vunpack.c.l.b16 %v5961
    %v6533 = vunpack.c.h.b16 %v5961
    %v6534 = vunpack.c.l.b16 %v5962
    %v6535 = vunpack.c.h.b16 %v5962
    %v6536 = vunpack.c.l.b16 %v5963
    %v6537 = vunpack.c.h.b16 %v5963
    %v6538 = vunpack.c.l.b16 %v5964
    %v6539 = vunpack.c.h.b16 %v5964
    %v6540 = vunpack.c.l.b16 %v5965
    %v6541 = vunpack.c.h.b16 %v5965
    %v6542 = vunpack.c.l.b16 %v5966
    %v6543 = vunpack.c.h.b16 %v5966
    %v6544 = vunpack.c.l.b16 %v5967
    %v6545 = vunpack.c.h.b16 %v5967
    %v6546 = vunpack.c.l.b16 %v5968
    %v6547 = vunpack.c.h.b16 %v5968
    %v6548 = vunpack.c.l.b16 %v5969
    %v6549 = vunpack.c.h.b16 %v5969
    %v6550 = vunpack.c.l.b16 %v5970
    %v6551 = vunpack.c.h.b16 %v5970
    %v6552 = vunpack.c.l.b16 %v5971
    %v6553 = vunpack.c.h.b16 %v5971
    %v6554 = vunpack.c.l.b16 %v5972
    %v6555 = vunpack.c.h.b16 %v5972
    %v6556 = vunpack.c.l.b16 %v5973
    %v6557 = vunpack.c.h.b16 %v5973
    %v6558 = vunpack.c.l.b16 %v5974
    %v6559 = vunpack.c.h.b16 %v5974
    %v6560 = vunpack.c.l.b16 %v5975
    %v6561 = vunpack.c.h.b16 %v5975
    %v6562 = vunpack.c.l.b16 %v5976
    %v6563 = vunpack.c.h.b16 %v5976
    %v6564 = vunpack.c.l.b16 %v5977
    %v6565 = vunpack.c.h.b16 %v5977
    %v6566 = vunpack.c.l.b16 %v5978
    %v6567 = vunpack.c.h.b16 %v5978
    %v6568 = vunpack.c.l.b16 %v5979
    %v6569 = vunpack.c.h.b16 %v5979
    %v6570 = vunpack.c.l.b16 %v5980
    %v6571 = vunpack.c.h.b16 %v5980
    %v6572 = vunpack.c.l.b16 %v5981
    %v6573 = vunpack.c.h.b16 %v5981
    %v6574 = vunpack.c.l.b16 %v5982
    %v6575 = vunpack.c.h.b16 %v5982
    %v6576 = vunpack.c.l.b16 %v5983
    %v6577 = vunpack.c.h.b16 %v5983
    %v6578 = vunpack.c.l.b16 %v5984
    %v6579 = vunpack.c.h.b16 %v5984
    %v6580 = vunpack.c.l.b16 %v5985
    %v6581 = vunpack.c.h.b16 %v5985
    %v6582 = vunpack.c.l.b16 %v5986
    %v6583 = vunpack.c.h.b16 %v5986
    %v6584 = vunpack.c.l.b16 %v5987
    %v6585 = vunpack.c.h.b16 %v5987
    %v6586 = vunpack.c.l.b16 %v5988
    %v6587 = vunpack.c.h.b16 %v5988
    %v6588 = vunpack.c.l.b16 %v5989
    %v6589 = vunpack.c.h.b16 %v5989
    %v6590 = vunpack.c.l.b16 %v5990
    %v6591 = vunpack.c.h.b16 %v5990
    %v6592 = vunpack.c.l.b16 %v5991
    %v6593 = vunpack.c.h.b16 %v5991
    %v6594 = vunpack.c.l.b16 %v5992
    %v6595 = vunpack.c.h.b16 %v5992
    %v6596 = vunpack.c.l.b16 %v5993
    %v6597 = vunpack.c.h.b16 %v5993
    %v6598 = vunpack.c.l.b16 %v5994
    %v6599 = vunpack.c.h.b16 %v5994
    %v6600 = vunpack.c.l.b16 %v5995
    %v6601 = vunpack.c.h.b16 %v5995
    %v6602 = vunpack.c.l.b16 %v5996
    %v6603 = vunpack.c.h.b16 %v5996
    %v6604 = vunpack.c.l.b16 %v5997
    %v6605 = vunpack.c.h.b16 %v5997
    %v6606 = vunpack.c.l.b16 %v5998
    %v6607 = vunpack.c.h.b16 %v5998
    %v6608 = vunpack.c.l.b16 %v5999
    %v6609 = vunpack.c.h.b16 %v5999
    %v6610 = vunpack.c.l.b16 %v6000
    %v6611 = vunpack.c.h.b16 %v6000
    %v6612 = vunpack.c.l.b16 %v6001
    %v6613 = vunpack.c.h.b16 %v6001
    %v6614 = vunpack.c.l.b16 %v6002
    %v6615 = vunpack.c.h.b16 %v6002
    %v6616 = vunpack.c.l.b16 %v6003
    %v6617 = vunpack.c.h.b16 %v6003
    %v6618 = vunpack.c.l.b16 %v6004
    %v6619 = vunpack.c.h.b16 %v6004
    %v6620 = vunpack.c.l.b16 %v6005
    %v6621 = vunpack.c.h.b16 %v6005
    %v6622 = vunpack.c.l.b16 %v6006
    %v6623 = vunpack.c.h.b16 %v6006
    %v6624 = vunpack.c.l.b16 %v6007
    %v6625 = vunpack.c.h.b16 %v6007
    %v6626 = vunpack.c.l.b16 %v6008
    %v6627 = vunpack.c.h.b16 %v6008
    %v6628 = vunpack.c.l.b16 %v6009
    %v6629 = vunpack.c.h.b16 %v6009
    %v6630 = vunpack.c.l.b16 %v6010
    %v6631 = vunpack.c.h.b16 %v6010
    %v6632 = vunpack.c.l.b16 %v6011
    %v6633 = vunpack.c.h.b16 %v6011
    %v6634 = vunpack.c.l.b16 %v6012
    %v6635 = vunpack.c.h.b16 %v6012
    %v6636 = vunpack.c.l.b16 %v6013
    %v6637 = vunpack.c.h.b16 %v6013
    %v6638 = vunpack.c.l.b16 %v6014
    %v6639 = vunpack.c.h.b16 %v6014
    %v6640 = vunpack.c.l.b16 %v6015
    %v6641 = vunpack.c.h.b16 %v6015
    %v6642 = vunpack.c.l.b16 %v6016
    %v6643 = vunpack.c.h.b16 %v6016
    %v6644 = vunpack.c.l.b16 %v6017
    %v6645 = vunpack.c.h.b16 %v6017
    %v6646 = vunpack.c.l.b16 %v6018
    %v6647 = vunpack.c.h.b16 %v6018
    %v6648 = vunpack.c.l.b16 %v6019
    %v6649 = vunpack.c.h.b16 %v6019
    %v6650 = vunpack.c.l.b16 %v6020
    %v6651 = vunpack.c.h.b16 %v6020
    %v6652 = vunpack.c.l.b16 %v6021
    %v6653 = vunpack.c.h.b16 %v6021
    %v6654 = vunpack.c.l.b16 %v6022
    %v6655 = vunpack.c.h.b16 %v6022
    %v6656 = vunpack.c.l.b16 %v6023
    %v6657 = vunpack.c.h.b16 %v6023
    %v6658 = vunpack.c.l.b16 %v6024
    %v6659 = vunpack.c.h.b16 %v6024
    %v6660 = vunpack.c.l.b16 %v6025
    %v6661 = vunpack.c.h.b16 %v6025
    %v6662 = vunpack.c.l.b16 %v6026
    %v6663 = vunpack.c.h.b16 %v6026
    %v6664 = vunpack.c.l.b16 %v6027
    %v6665 = vunpack.c.h.b16 %v6027
    %v6666 = vunpack.c.l.b16 %v6028
    %v6667 = vunpack.c.h.b16 %v6028
    %v6668 = vunpack.c.l.b16 %v6029
    %v6669 = vunpack.c.h.b16 %v6029
    %v6670 = vunpack.c.l.b16 %v6030
    %v6671 = vunpack.c.h.b16 %v6030
    %v6672 = vunpack.c.l.b16 %v6031
    %v6673 = vunpack.c.h.b16 %v6031
    %v6674 = vunpack.c.l.b16 %v6032
    %v6675 = vunpack.c.h.b16 %v6032
    %v6676 = vunpack.c.l.b16 %v6033
    %v6677 = vunpack.c.h.b16 %v6033
    %v6678 = vunpack.c.l.b16 %v6034
    %v6679 = vunpack.c.h.b16 %v6034
    %v6680 = vunpack.c.l.b16 %v6035
    %v6681 = vunpack.c.h.b16 %v6035
    %v6682 = vunpack.c.l.b16 %v6036
    %v6683 = vunpack.c.h.b16 %v6036
    %v6684 = vunpack.c.l.b16 %v6037
    %v6685 = vunpack.c.h.b16 %v6037
    %v6686 = vunpack.c.l.b16 %v6038
    %v6687 = vunpack.c.h.b16 %v6038
    %v6688 = vunpack.c.l.b16 %v6039
    %v6689 = vunpack.c.h.b16 %v6039
    %v6690 = vunpack.c.l.b16 %v6040
    %v6691 = vunpack.c.h.b16 %v6040
    %v6692 = vunpack.c.l.b16 %v6041
    %v6693 = vunpack.c.h.b16 %v6041
    %v6694 = vunpack.c.l.b16 %v6042
    %v6695 = vunpack.c.h.b16 %v6042
    %v6696 = vunpack.c.l.b16 %v6043
    %v6697 = vunpack.c.h.b16 %v6043
    %v6698 = vunpack.c.l.b16 %v6044
    %v6699 = vunpack.c.h.b16 %v6044
    %v6700 = vunpack.c.l.b16 %v6045
    %v6701 = vunpack.c.h.b16 %v6045
    %v6702 = vunpack.c.l.b16 %v6046
    %v6703 = vunpack.c.h.b16 %v6046
    %v6704 = vunpack.c.l.b16 %v6047
    %v6705 = vunpack.c.h.b16 %v6047
    %v6706 = vunpack.c.l.b16 %v6048
    %v6707 = vunpack.c.h.b16 %v6048
    %v6708 = vunpack.c.l.b16 %v6049
    %v6709 = vunpack.c.h.b16 %v6049
    %v6710 = vunpack.c.l.b16 %v6050
    %v6711 = vunpack.c.h.b16 %v6050
    %v6712 = vunpack.c.l.b16 %v6051
    %v6713 = vunpack.c.h.b16 %v6051
    %v6714 = vunpack.c.l.b16 %v6052
    %v6715 = vunpack.c.h.b16 %v6052
    %v6716 = vunpack.c.l.b16 %v6053
    %v6717 = vunpack.c.h.b16 %v6053
    %v6718 = vunpack.c.l.b16 %v6054
    %v6719 = vunpack.c.h.b16 %v6054
    %v6720 = vunpack.c.l.b16 %v6055
    %v6721 = vunpack.c.h.b16 %v6055
    %v6722 = vunpack.c.l.b16 %v6056
    %v6723 = vunpack.c.h.b16 %v6056
    %v6724 = vunpack.c.l.b16 %v6057
    %v6725 = vunpack.c.h.b16 %v6057
    %v6726 = vunpack.c.l.b16 %v6058
    %v6727 = vunpack.c.h.b16 %v6058
    %v6728 = vunpack.c.l.b16 %v6059
    %v6729 = vunpack.c.h.b16 %v6059
    %v6730 = vunpack.c.l.b16 %v6060
    %v6731 = vunpack.c.h.b16 %v6060
    %v6732 = vunpack.c.l.b16 %v6061
    %v6733 = vunpack.c.h.b16 %v6061
    %v6734 = vunpack.c.l.b16 %v6062
    %v6735 = vunpack.c.h.b16 %v6062
    %v6736 = vunpack.c.l.b16 %v6063
    %v6737 = vunpack.c.h.b16 %v6063
    %v6738 = vunpack.c.l.b16 %v6064
    %v6739 = vunpack.c.h.b16 %v6064
    %v6740 = vunpack.c.l.b16 %v6065
    %v6741 = vunpack.c.h.b16 %v6065
    %v6742 = vunpack.c.l.b16 %v6066
    %v6743 = vunpack.c.h.b16 %v6066
    %v6744 = vunpack.c.l.b16 %v6067
    %v6745 = vunpack.c.h.b16 %v6067
    %v6746 = vunpack.c.l.b16 %v6068
    %v6747 = vunpack.c.h.b16 %v6068
    %v6748 = vunpack.c.l.b16 %v6069
    %v6749 = vunpack.c.h.b16 %v6069
    %v6750 = vunpack.c.l.b16 %v6070
    %v6751 = vunpack.c.h.b16 %v6070
    %v6752 = vunpack.c.l.b16 %v6071
    %v6753 = vunpack.c.h.b16 %v6071
    %v6754 = vunpack.c.l.b16 %v6072
    %v6755 = vunpack.c.h.b16 %v6072
    %v6756 = vunpack.c.l.b16 %v6073
    %v6757 = vunpack.c.h.b16 %v6073
    %v6758 = vunpack.c.l.b16 %v6074
    %v6759 = vunpack.c.h.b16 %v6074
    %v6760 = vunpack.c.l.b16 %v6075
    %v6761 = vunpack.c.h.b16 %v6075
    %v6762 = vunpack.c.l.b16 %v6076
    %v6763 = vunpack.c.h.b16 %v6076
    %v6764 = vunpack.c.l.b16 %v6077
    %v6765 = vunpack.c.h.b16 %v6077
    %v6766 = vunpack.c.l.b16 %v6078
    %v6767 = vunpack.c.h.b16 %v6078
    %v6768 = vunpack.c.l.b16 %v6079
    %v6769 = vunpack.c.h.b16 %v6079
    %v6770 = vunpack.c.l.b16 %v6080
    %v6771 = vunpack.c.h.b16 %v6080
    %v6772 = vunpack.c.l.b16 %v6081
    %v6773 = vunpack.c.h.b16 %v6081
    %v6774 = vunpack.c.l.b16 %v6082
    %v6775 = vunpack.c.h.b16 %v6082
    %v6776 = vunpack.c.l.b16 %v6083
    %v6777 = vunpack.c.h.b16 %v6083
    %v6778 = vunpack.c.l.b16 %v6084
    %v6779 = vunpack.c.h.b16 %v6084
    %v6780 = vunpack.c.l.b16 %v6085
    %v6781 = vunpack.c.h.b16 %v6085
    %v6782 = vunpack.c.l.b16 %v6086
    %v6783 = vunpack.c.h.b16 %v6086
    %v6784 = vunpack.c.l.b16 %v6087
    %v6785 = vunpack.c.h.b16 %v6087
    %v6786 = vunpack.c.l.b16 %v6088
    %v6787 = vunpack.c.h.b16 %v6088
    %v6788 = vunpack.c.l.b16 %v6089
    %v6789 = vunpack.c.h.b16 %v6089
    %v6790 = vunpack.c.l.b16 %v6090
    %v6791 = vunpack.c.h.b16 %v6090
    %v6792 = vunpack.c.l.b16 %v6091
    %v6793 = vunpack.c.h.b16 %v6091
    %v6794 = vunpack.c.l.b16 %v6092
    %v6795 = vunpack.c.h.b16 %v6092
    %v6796 = vunpack.c.l.b16 %v6093
    %v6797 = vunpack.c.h.b16 %v6093
    %v6798 = vunpack.c.l.b16 %v6094
    %v6799 = vunpack.c.h.b16 %v6094
    %v6800 = vunpack.c.l.b16 %v6095
    %v6801 = vunpack.c.h.b16 %v6095
    %v6802 = vunpack.c.l.b16 %v6096
    %v6803 = vunpack.c.h.b16 %v6096
    %v6804 = vunpack.c.l.b16 %v6097
    %v6805 = vunpack.c.h.b16 %v6097
    %v6806 = vunpack.c.l.b16 %v6098
    %v6807 = vunpack.c.h.b16 %v6098
    %v6808 = vunpack.c.l.b16 %v6099
    %v6809 = vunpack.c.h.b16 %v6099
    %v6810 = vunpack.c.l.b16 %v6100
    %v6811 = vunpack.c.h.b16 %v6100
    %v6812 = vunpack.c.l.b16 %v6101
    %v6813 = vunpack.c.h.b16 %v6101
    %v6814 = vunpack.c.l.b16 %v6102
    %v6815 = vunpack.c.h.b16 %v6102
    %v6816 = vunpack.c.l.b16 %v6103
    %v6817 = vunpack.c.h.b16 %v6103
    %v6818 = vunpack.c.l.b16 %v6104
    %v6819 = vunpack.c.h.b16 %v6104
    %v6820 = vunpack.c.l.b16 %v6105
    %v6821 = vunpack.c.h.b16 %v6105
    %v6822 = vunpack.c.l.b16 %v6106
    %v6823 = vunpack.c.h.b16 %v6106
    %v6824 = vunpack.c.l.b16 %v6107
    %v6825 = vunpack.c.h.b16 %v6107
    %v6826 = vunpack.c.l.b16 %v6108
    %v6827 = vunpack.c.h.b16 %v6108
    %v6828 = vunpack.c.l.b16 %v6109
    %v6829 = vunpack.c.h.b16 %v6109
    %v6830 = vunpack.c.l.b16 %v6110
    %v6831 = vunpack.c.h.b16 %v6110
    %v6832 = vunpack.c.l.b16 %v6111
    %v6833 = vunpack.c.h.b16 %v6111
    %v6834 = vunpack.c.l.b16 %v6112
    %v6835 = vunpack.c.h.b16 %v6112
    %v6836 = vunpack.c.l.b16 %v6113
    %v6837 = vunpack.c.h.b16 %v6113
    %v6838 = vunpack.c.l.b16 %v6114
    %v6839 = vunpack.c.h.b16 %v6114
    %v6840 = vunpack.c.l.b16 %v6115
    %v6841 = vunpack.c.h.b16 %v6115
    %v6842 = vunpack.c.l.b16 %v6116
    %v6843 = vunpack.c.h.b16 %v6116
    %v6844 = vunpack.c.l.b16 %v6117
    %v6845 = vunpack.c.h.b16 %v6117
    %v6846 = vunpack.c.l.b16 %v6118
    %v6847 = vunpack.c.h.b16 %v6118
    %v6848 = vunpack.c.l.b16 %v6119
    %v6849 = vunpack.c.h.b16 %v6119
    %v6850 = vunpack.c.l.b16 %v6120
    %v6851 = vunpack.c.h.b16 %v6120
    %v6852 = vunpack.c.l.b16 %v6121
    %v6853 = vunpack.c.h.b16 %v6121
    %v6854 = vunpack.c.l.b16 %v6122
    %v6855 = vunpack.c.h.b16 %v6122
    %v6856 = vunpack.c.l.b16 %v6123
    %v6857 = vunpack.c.h.b16 %v6123
    %v6858 = vunpack.c.l.b16 %v6124
    %v6859 = vunpack.c.h.b16 %v6124
    %v6860 = vunpack.c.l.b16 %v6125
    %v6861 = vunpack.c.h.b16 %v6125
    %v6862 = vunpack.c.l.b16 %v6126
    %v6863 = vunpack.c.h.b16 %v6126
    %v6864 = vunpack.c.l.b16 %v6127
    %v6865 = vunpack.c.h.b16 %v6127
    %v6866 = vunpack.c.l.b16 %v6128
    %v6867 = vunpack.c.h.b16 %v6128
    %v6868 = vunpack.c.l.b16 %v6129
    %v6869 = vunpack.c.h.b16 %v6129
    %v6870 = vunpack.c.l.b16 %v6130
    %v6871 = vunpack.c.h.b16 %v6130
    %v6872 = vunpack.c.l.b16 %v6131
    %v6873 = vunpack.c.h.b16 %v6131
    %v6874 = vunpack.c.l.b16 %v6132
    %v6875 = vunpack.c.h.b16 %v6132
    %v6876 = vunpack.c.l.b16 %v6133
    %v6877 = vunpack.c.h.b16 %v6133
    %v6878 = vunpack.c.l.b16 %v6134
    %v6879 = vunpack.c.h.b16 %v6134
    %v6880 = vunpack.c.l.b16 %v6135
    %v6881 = vunpack.c.h.b16 %v6135
    %v6882 = vunpack.c.l.b16 %v6136
    %v6883 = vunpack.c.h.b16 %v6136
    %v6884 = vunpack.c.l.b16 %v6137
    %v6885 = vunpack.c.h.b16 %v6137
    %v6886 = vunpack.c.l.b16 %v6138
    %v6887 = vunpack.c.h.b16 %v6138
    %v6888 = vunpack.c.l.b16 %v6139
    %v6889 = vunpack.c.h.b16 %v6139
    %v6890 = vunpack.c.l.b16 %v6140
    %v6891 = vunpack.c.h.b16 %v6140
    %v6892 = vunpack.c.l.b16 %v6141
    %v6893 = vunpack.c.h.b16 %v6141
    %v6894 = vunpack.c.l.b16 %v6142
    %v6895 = vunpack.c.h.b16 %v6142
    %v6896 = vunpack.c.l.b16 %v6143
    %v6897 = vunpack.c.h.b16 %v6143
    %v6898 = vunpack.c.l.b16 %v6144
    %v6899 = vunpack.c.h.b16 %v6144
    %v6900 = vunpack.c.l.b16 %v6145
    %v6901 = vunpack.c.h.b16 %v6145
    %v6902 = vunpack.c.l.b16 %v6146
    %v6903 = vunpack.c.h.b16 %v6146
    %v6904 = vunpack.c.l.b16 %v6147
    %v6905 = vunpack.c.h.b16 %v6147
    %v6906 = vunpack.c.l.b16 %v6148
    %v6907 = vunpack.c.h.b16 %v6148
    %v6908 = vunpack.c.l.b16 %v6149
    %v6909 = vunpack.c.h.b16 %v6149
    %v6910 = vunpack.c.l.b16 %v6150
    %v6911 = vunpack.c.h.b16 %v6150
    %v6912 = vunpack.c.l.b16 %v6151
    %v6913 = vunpack.c.h.b16 %v6151
    %v6914 = vunpack.c.l.b16 %v6152
    %v6915 = vunpack.c.h.b16 %v6152
    %v6916 = vunpack.c.l.b16 %v6153
    %v6917 = vunpack.c.h.b16 %v6153
    %v6918 = vunpack.c.l.b16 %v6154
    %v6919 = vunpack.c.h.b16 %v6154
    %v6920 = vunpack.c.l.b16 %v6155
    %v6921 = vunpack.c.h.b16 %v6155
    %v6922 = vunpack.c.l.b16 %v6156
    %v6923 = vunpack.c.h.b16 %v6156
    %v6924 = vunpack.c.l.b16 %v6157
    %v6925 = vunpack.c.h.b16 %v6157
    %v6926 = vunpack.c.l.b16 %v6158
    %v6927 = vunpack.c.h.b16 %v6158
    %v6928 = vunpack.c.l.b16 %v6159
    %v6929 = vunpack.c.h.b16 %v6159
    %v6930 = vunpack.c.l.b16 %v6160
    %v6931 = vunpack.c.h.b16 %v6160
    %v6932 = vunpack.c.l.b16 %v6161
    %v6933 = vunpack.c.h.b16 %v6161
    %v6934 = vunpack.c.l.b16 %v6162
    %v6935 = vunpack.c.h.b16 %v6162
    %v6936 = vunpack.c.l.b16 %v6163
    %v6937 = vunpack.c.h.b16 %v6163
    %v6938 = vunpack.c.l.b16 %v6164
    %v6939 = vunpack.c.h.b16 %v6164
    %v6940 = vunpack.c.l.b16 %v6165
    %v6941 = vunpack.c.h.b16 %v6165
    %v6942 = vunpack.c.l.b16 %v6166
    %v6943 = vunpack.c.h.b16 %v6166
    %v6944 = vunpack.c.l.b16 %v6167
    %v6945 = vunpack.c.h.b16 %v6167
    %v6946 = vunpack.c.l.b16 %v6168
    %v6947 = vunpack.c.h.b16 %v6168
    %v6948 = vunpack.c.l.b16 %v6169
    %v6949 = vunpack.c.h.b16 %v6169
    %v6950 = vunpack.c.l.b16 %v6170
    %v6951 = vunpack.c.h.b16 %v6170
    %v6952 = vunpack.c.l.b16 %v6171
    %v6953 = vunpack.c.h.b16 %v6171
    %v6954 = vunpack.c.l.b16 %v6172
    %v6955 = vunpack.c.h.b16 %v6172
    %v6956 = vunpack.c.l.b16 %v6173
    %v6957 = vunpack.c.h.b16 %v6173
    %v6958 = vunpack.c.l.b16 %v6174
    %v6959 = vunpack.c.h.b16 %v6174
    %v6960 = vunpack.c.l.b16 %v6175
    %v6961 = vunpack.c.h.b16 %v6175
    %v6962 = vunpack.c.l.b16 %v6176
    %v6963 = vunpack.c.h.b16 %v6176
    %v6964 = vunpack.c.l.b16 %v6177
    %v6965 = vunpack.c.h.b16 %v6177
    %v6966 = vunpack.c.l.b16 %v6178
    %v6967 = vunpack.c.h.b16 %v6178
    %v6968 = vunpack.c.l.b16 %v6179
    %v6969 = vunpack.c.h.b16 %v6179
    %v6970 = vpack.c.b16 %v6462, %v6458
    %v6971 = vpack.c.b16 %v6463, %v6459
    %v6972 = vpack.c.b16 %v6464, %v6460
    %v6973 = vpack.c.b16 %v6465, %v6461
    %v6974 = vpack.c.b16 %v6470, %v6466
    %v6975 = vpack.c.b16 %v6471, %v6467
    %v6976 = vpack.c.b16 %v6472, %v6468
    %v6977 = vpack.c.b16 %v6473, %v6469
    %v6978 = vpack.c.b16 %v6478, %v6474
    %v6979 = vpack.c.b16 %v6479, %v6475
    %v6980 = vpack.c.b16 %v6480, %v6476
    %v6981 = vpack.c.b16 %v6481, %v6477
    %v6982 = vpack.c.b16 %v6486, %v6482
    %v6983 = vpack.c.b16 %v6487, %v6483
    %v6984 = vpack.c.b16 %v6488, %v6484
    %v6985 = vpack.c.b16 %v6489, %v6485
    %v6986 = vpack.c.b16 %v6494, %v6490
    %v6987 = vpack.c.b16 %v6495, %v6491
    %v6988 = vpack.c.b16 %v6496, %v6492
    %v6989 = vpack.c.b16 %v6497, %v6493
    %v6990 = vpack.c.b16 %v6502, %v6498
    %v6991 = vpack.c.b16 %v6503, %v6499
    %v6992 = vpack.c.b16 %v6504, %v6500
    %v6993 = vpack.c.b16 %v6505, %v6501
    %v6994 = vpack.c.b16 %v6510, %v6506
    %v6995 = vpack.c.b16 %v6511, %v6507
    %v6996 = vpack.c.b16 %v6512, %v6508
    %v6997 = vpack.c.b16 %v6513, %v6509
    %v6998 = vpack.c.b16 %v6518, %v6514
    %v6999 = vpack.c.b16 %v6519, %v6515
    %v7000 = vpack.c.b16 %v6520, %v6516
    %v7001 = vpack.c.b16 %v6521, %v6517
    %v7002 = vpack.c.b16 %v6526, %v6522
    %v7003 = vpack.c.b16 %v6527, %v6523
    %v7004 = vpack.c.b16 %v6528, %v6524
    %v7005 = vpack.c.b16 %v6529, %v6525
    %v7006 = vpack.c.b16 %v6534, %v6530
    %v7007 = vpack.c.b16 %v6535, %v6531
    %v7008 = vpack.c.b16 %v6536, %v6532
    %v7009 = vpack.c.b16 %v6537, %v6533
    %v7010 = vpack.c.b16 %v6542, %v6538
    %v7011 = vpack.c.b16 %v6543, %v6539
    %v7012 = vpack.c.b16 %v6544, %v6540
    %v7013 = vpack.c.b16 %v6545, %v6541
    %v7014 = vpack.c.b16 %v6550, %v6546
    %v7015 = vpack.c.b16 %v6551, %v6547
    %v7016 = vpack.c.b16 %v6552, %v6548
    %v7017 = vpack.c.b16 %v6553, %v6549
    %v7018 = vpack.c.b16 %v6558, %v6554
    %v7019 = vpack.c.b16 %v6559, %v6555
    %v7020 = vpack.c.b16 %v6560, %v6556
    %v7021 = vpack.c.b16 %v6561, %v6557
    %v7022 = vpack.c.b16 %v6566, %v6562
    %v7023 = vpack.c.b16 %v6567, %v6563
    %v7024 = vpack.c.b16 %v6568, %v6564
    %v7025 = vpack.c.b16 %v6569, %v6565
    %v7026 = vpack.c.b16 %v6574, %v6570
    %v7027 = vpack.c.b16 %v6575, %v6571
    %v7028 = vpack.c.b16 %v6576, %v6572
    %v7029 = vpack.c.b16 %v6577, %v6573
    %v7030 = vpack.c.b16 %v6582, %v6578
    %v7031 = vpack.c.b16 %v6583, %v6579
    %v7032 = vpack.c.b16 %v6584, %v6580
    %v7033 = vpack.c.b16 %v6585, %v6581
    %v7034 = vpack.c.b16 %v6590, %v6586
    %v7035 = vpack.c.b16 %v6591, %v6587
    %v7036 = vpack.c.b16 %v6592, %v6588
    %v7037 = vpack.c.b16 %v6593, %v6589
    %v7038 = vpack.c.b16 %v6598, %v6594
    %v7039 = vpack.c.b16 %v6599, %v6595
    %v7040 = vpack.c.b16 %v6600, %v6596
    %v7041 = vpack.c.b16 %v6601, %v6597
    %v7042 = vpack.c.b16 %v6606, %v6602
    %v7043 = vpack.c.b16 %v6607, %v6603
    %v7044 = vpack.c.b16 %v6608, %v6604
    %v7045 = vpack.c.b16 %v6609, %v6605
    %v7046 = vpack.c.b16 %v6614, %v6610
    %v7047 = vpack.c.b16 %v6615, %v6611
    %v7048 = vpack.c.b16 %v6616, %v6612
    %v7049 = vpack.c.b16 %v6617, %v6613
    %v7050 = vpack.c.b16 %v6622, %v6618
    %v7051 = vpack.c.b16 %v6623, %v6619
    %v7052 = vpack.c.b16 %v6624, %v6620
    %v7053 = vpack.c.b16 %v6625, %v6621
    %v7054 = vpack.c.b16 %v6630, %v6626
    %v7055 = vpack.c.b16 %v6631, %v6627
    %v7056 = vpack.c.b16 %v6632, %v6628
    %v7057 = vpack.c.b16 %v6633, %v6629
    %v7058 = vpack.c.b16 %v6638, %v6634
    %v7059 = vpack.c.b16 %v6639, %v6635
    %v7060 = vpack.c.b16 %v6640, %v6636
    %v7061 = vpack.c.b16 %v6641, %v6637
    %v7062 = vpack.c.b16 %v6646, %v6642
    %v7063 = vpack.c.b16 %v6647, %v6643
    %v7064 = vpack.c.b16 %v6648, %v6644
    %v7065 = vpack.c.b16 %v6649, %v6645
    %v7066 = vpack.c.b16 %v6654, %v6650
    %v7067 = vpack.c.b16 %v6655, %v6651
    %v7068 = vpack.c.b16 %v6656, %v6652
    %v7069 = vpack.c.b16 %v6657, %v6653
    %v7070 = vpack.c.b16 %v6662, %v6658
    %v7071 = vpack.c.b16 %v6663, %v6659
    %v7072 = vpack.c.b16 %v6664, %v6660
    %v7073 = vpack.c.b16 %v6665, %v6661
    %v7074 = vpack.c.b16 %v6670, %v6666
    %v7075 = vpack.c.b16 %v6671, %v6667
    %v7076 = vpack.c.b16 %v6672, %v6668
    %v7077 = vpack.c.b16 %v6673, %v6669
    %v7078 = vpack.c.b16 %v6678, %v6674
    %v7079 = vpack.c.b16 %v6679, %v6675
    %v7080 = vpack.c.b16 %v6680, %v6676
    %v7081 = vpack.c.b16 %v6681, %v6677
    %v7082 = vpack.c.b16 %v6686, %v6682
    %v7083 = vpack.c.b16 %v6687, %v6683
    %v7084 = vpack.c.b16 %v6688, %v6684
    %v7085 = vpack.c.b16 %v6689, %v6685
    %v7086 = vpack.c.b16 %v6694, %v6690
    %v7087 = vpack.c.b16 %v6695, %v6691
    %v7088 = vpack.c.b16 %v6696, %v6692
    %v7089 = vpack.c.b16 %v6697, %v6693
    %v7090 = vpack.c.b16 %v6702, %v6698
    %v7091 = vpack.c.b16 %v6703, %v6699
    %v7092 = vpack.c.b16 %v6704, %v6700
    %v7093 = vpack.c.b16 %v6705, %v6701
    %v7094 = vpack.c.b16 %v6710, %v6706
    %v7095 = vpack.c.b16 %v6711, %v6707
    %v7096 = vpack.c.b16 %v6712, %v6708
    %v7097 = vpack.c.b16 %v6713, %v6709
    %v7098 = vpack.c.b16 %v6718, %v6714
    %v7099 = vpack.c.b16 %v6719, %v6715
    %v7100 = vpack.c.b16 %v6720, %v6716
    %v7101 = vpack.c.b16 %v6721, %v6717
    %v7102 = vpack.c.b16 %v6726, %v6722
    %v7103 = vpack.c.b16 %v6727, %v6723
    %v7104 = vpack.c.b16 %v6728, %v6724
    %v7105 = vpack.c.b16 %v6729, %v6725
    %v7106 = vpack.c.b16 %v6734, %v6730
    %v7107 = vpack.c.b16 %v6735, %v6731
    %v7108 = vpack.c.b16 %v6736, %v6732
    %v7109 = vpack.c.b16 %v6737, %v6733
    %v7110 = vpack.c.b16 %v6742, %v6738
    %v7111 = vpack.c.b16 %v6743, %v6739
    %v7112 = vpack.c.b16 %v6744, %v6740
    %v7113 = vpack.c.b16 %v6745, %v6741
    %v7114 = vpack.c.b16 %v6750, %v6746
    %v7115 = vpack.c.b16 %v6751, %v6747
    %v7116 = vpack.c.b16 %v6752, %v6748
    %v7117 = vpack.c.b16 %v6753, %v6749
    %v7118 = vpack.c.b16 %v6758, %v6754
    %v7119 = vpack.c.b16 %v6759, %v6755
    %v7120 = vpack.c.b16 %v6760, %v6756
    %v7121 = vpack.c.b16 %v6761, %v6757
    %v7122 = vpack.c.b16 %v6766, %v6762
    %v7123 = vpack.c.b16 %v6767, %v6763
    %v7124 = vpack.c.b16 %v6768, %v6764
    %v7125 = vpack.c.b16 %v6769, %v6765
    %v7126 = vpack.c.b16 %v6774, %v6770
    %v7127 = vpack.c.b16 %v6775, %v6771
    %v7128 = vpack.c.b16 %v6776, %v6772
    %v7129 = vpack.c.b16 %v6777, %v6773
    %v7130 = vpack.c.b16 %v6782, %v6778
    %v7131 = vpack.c.b16 %v6783, %v6779
    %v7132 = vpack.c.b16 %v6784, %v6780
    %v7133 = vpack.c.b16 %v6785, %v6781
    %v7134 = vpack.c.b16 %v6790, %v6786
    %v7135 = vpack.c.b16 %v6791, %v6787
    %v7136 = vpack.c.b16 %v6792, %v6788
    %v7137 = vpack.c.b16 %v6793, %v6789
    %v7138 = vpack.c.b16 %v6798, %v6794
    %v7139 = vpack.c.b16 %v6799, %v6795
    %v7140 = vpack.c.b16 %v6800, %v6796
    %v7141 = vpack.c.b16 %v6801, %v6797
    %v7142 = vpack.c.b16 %v6806, %v6802
    %v7143 = vpack.c.b16 %v6807, %v6803
    %v7144 = vpack.c.b16 %v6808, %v6804
    %v7145 = vpack.c.b16 %v6809, %v6805
    %v7146 = vpack.c.b16 %v6814, %v6810
    %v7147 = vpack.c.b16 %v6815, %v6811
    %v7148 = vpack.c.b16 %v6816, %v6812
    %v7149 = vpack.c.b16 %v6817, %v6813
    %v7150 = vpack.c.b16 %v6822, %v6818
    %v7151 = vpack.c.b16 %v6823, %v6819
    %v7152 = vpack.c.b16 %v6824, %v6820
    %v7153 = vpack.c.b16 %v6825, %v6821
    %v7154 = vpack.c.b16 %v6830, %v6826
    %v7155 = vpack.c.b16 %v6831, %v6827
    %v7156 = vpack.c.b16 %v6832, %v6828
    %v7157 = vpack.c.b16 %v6833, %v6829
    %v7158 = vpack.c.b16 %v6838, %v6834
    %v7159 = vpack.c.b16 %v6839, %v6835
    %v7160 = vpack.c.b16 %v6840, %v6836
    %v7161 = vpack.c.b16 %v6841, %v6837
    %v7162 = vpack.c.b16 %v6846, %v6842
    %v7163 = vpack.c.b16 %v6847, %v6843
    %v7164 = vpack.c.b16 %v6848, %v6844
    %v7165 = vpack.c.b16 %v6849, %v6845
    %v7166 = vpack.c.b16 %v6854, %v6850
    %v7167 = vpack.c.b16 %v6855, %v6851
    %v7168 = vpack.c.b16 %v6856, %v6852
    %v7169 = vpack.c.b16 %v6857, %v6853
    %v7170 = vpack.c.b16 %v6862, %v6858
    %v7171 = vpack.c.b16 %v6863, %v6859
    %v7172 = vpack.c.b16 %v6864, %v6860
    %v7173 = vpack.c.b16 %v6865, %v6861
    %v7174 = vpack.c.b16 %v6870, %v6866
    %v7175 = vpack.c.b16 %v6871, %v6867
    %v7176 = vpack.c.b16 %v6872, %v6868
    %v7177 = vpack.c.b16 %v6873, %v6869
    %v7178 = vpack.c.b16 %v6878, %v6874
    %v7179 = vpack.c.b16 %v6879, %v6875
    %v7180 = vpack.c.b16 %v6880, %v6876
    %v7181 = vpack.c.b16 %v6881, %v6877
    %v7182 = vpack.c.b16 %v6886, %v6882
    %v7183 = vpack.c.b16 %v6887, %v6883
    %v7184 = vpack.c.b16 %v6888, %v6884
    %v7185 = vpack.c.b16 %v6889, %v6885
    %v7186 = vpack.c.b16 %v6894, %v6890
    %v7187 = vpack.c.b16 %v6895, %v6891
    %v7188 = vpack.c.b16 %v6896, %v6892
    %v7189 = vpack.c.b16 %v6897, %v6893
    %v7190 = vpack.c.b16 %v6902, %v6898
    %v7191 = vpack.c.b16 %v6903, %v6899
    %v7192 = vpack.c.b16 %v6904, %v6900
    %v7193 = vpack.c.b16 %v6905, %v6901
    %v7194 = vpack.c.b16 %v6910, %v6906
    %v7195 = vpack.c.b16 %v6911, %v6907
    %v7196 = vpack.c.b16 %v6912, %v6908
    %v7197 = vpack.c.b16 %v6913, %v6909
    %v7198 = vpack.c.b16 %v6918, %v6914
    %v7199 = vpack.c.b16 %v6919, %v6915
    %v7200 = vpack.c.b16 %v6920, %v6916
    %v7201 = vpack.c.b16 %v6921, %v6917
    %v7202 = vpack.c.b16 %v6926, %v6922
    %v7203 = vpack.c.b16 %v6927, %v6923
    %v7204 = vpack.c.b16 %v6928, %v6924
    %v7205 = vpack.c.b16 %v6929, %v6925
    %v7206 = vpack.c.b16 %v6934, %v6930
    %v7207 = vpack.c.b16 %v6935, %v6931
    %v7208 = vpack.c.b16 %v6936, %v6932
    %v7209 = vpack.c.b16 %v6937, %v6933
    %v7210 = vpack.c.b16 %v6942, %v6938
    %v7211 = vpack.c.b16 %v6943, %v6939
    %v7212 = vpack.c.b16 %v6944, %v6940
    %v7213 = vpack.c.b16 %v6945, %v6941
    %v7214 = vpack.c.b16 %v6950, %v6946
    %v7215 = vpack.c.b16 %v6951, %v6947
    %v7216 = vpack.c.b16 %v6952, %v6948
    %v7217 = vpack.c.b16 %v6953, %v6949
    %v7218 = vpack.c.b16 %v6958, %v6954
    %v7219 = vpack.c.b16 %v6959, %v6955
    %v7220 = vpack.c.b16 %v6960, %v6956
    %v7221 = vpack.c.b16 %v6961, %v6957
    %v7222 = vpack.c.b16 %v6966, %v6962
    %v7223 = vpack.c.b16 %v6967, %v6963
    %v7224 = vpack.c.b16 %v6968, %v6964
    %v7225 = vpack.c.b16 %v6969, %v6965
    %7482 = vmatprep.subr.bf16.mxu0 %v6999
    %7483 = vmatpush1.bf16.msra.mxu0 %v6998
    %7484 = vmatprep.subr.bf16.mxu0 %v6995
    %7485 = vmatpush1.bf16.msra.mxu0 %v6994
    %7486 = vmatprep.subr.bf16.mxu0 %v6991
    %7487 = vmatpush1.bf16.msra.mxu0 %v6990
    %7488 = vmatprep.subr.bf16.mxu0 %v6987
    %7489 = vmatpush1.bf16.msra.mxu0 %v6986
    %7490 = vmatprep.subr.bf16.mxu0 %v6983
    %7491 = vmatpush1.bf16.msra.mxu0 %v6982
    %7492 = vmatprep.subr.bf16.mxu0 %v6979
    %7493 = vmatpush1.bf16.msra.mxu0 %v6978
    %7494 = vmatprep.subr.bf16.mxu0 %v6975
    %7495 = vmatpush1.bf16.msra.mxu0 %v6974
    %7496 = vmatprep.subr.bf16.mxu0 %v6971
    %7497 = vmatpush1.bf16.msra.mxu0 %v6970
    %7498 = vmatprep.subr.bf16.mxu0 %v7031
    %7499 = vmatpush2.bf16.msra.mxu0 %v7030
    %7500 = vmatprep.subr.bf16.mxu0 %v7027
    %7501 = vmatpush2.bf16.msra.mxu0 %v7026
    %7502 = vmatprep.subr.bf16.mxu0 %v7023
    %7503 = vmatpush2.bf16.msra.mxu0 %v7022
    %7504 = vmatprep.subr.bf16.mxu0 %v7019
    %7505 = vmatpush2.bf16.msra.mxu0 %v7018
    %7506 = vmatprep.subr.bf16.mxu0 %v7015
    %7507 = vmatpush2.bf16.msra.mxu0 %v7014
    %7508 = vmatprep.subr.bf16.mxu0 %v7011
    %7509 = vmatpush2.bf16.msra.mxu0 %v7010
    %7510 = vmatprep.subr.bf16.mxu0 %v7007
    %7511 = vmatpush2.bf16.msra.mxu0 %v7006
    %7512 = vmatprep.subr.bf16.mxu0 %v7003
    %7513 = vmatpush2.bf16.msra.mxu0 %v7002
    %7514 = vmatprep.mubr.bf16.mxu0 %v5733
    %7515 = vmatmul.mubr.bf16.gmra.mxu0 %v5732
    %v7516 = vpop.f32.mrf.mxu0
    %v7517 = vadd.f32 %v6185, %v7516
    %v7518 = vpop.f32.mrf.mxu0
    %v7519 = vadd.f32 %v6189, %v7518
    %v7520 = vpop.f32.mrf.mxu0
    %v7521 = vadd.f32 %v6185, %v7520
    %v7522 = vpop.f32.mrf.mxu0
    %v7523 = vadd.f32 %v6189, %v7522
    %7524 = vmatprep.mubr.bf16.mxu0 %v5741
    %7525 = vmatmul.mubr.bf16.gmra.mxu0 %v5740
    %v7526 = vpop.f32.mrf.mxu0
    %v7527 = vadd.f32 %v6185, %v7526
    %v7528 = vpop.f32.mrf.mxu0
    %v7529 = vadd.f32 %v6189, %v7528
    %v7530 = vpop.f32.mrf.mxu0
    %v7531 = vadd.f32 %v6185, %v7530
    %v7532 = vpop.f32.mrf.mxu0
    %v7533 = vadd.f32 %v6189, %v7532
    %7534 = vmatprep.mubr.bf16.mxu0 %v5749
    %7535 = vmatmul.mubr.bf16.gmra.mxu0 %v5748
    %v7536 = vpop.f32.mrf.mxu0
    %v7537 = vadd.f32 %v6185, %v7536
    %v7538 = vpop.f32.mrf.mxu0
    %v7539 = vadd.f32 %v6189, %v7538
    %v7540 = vpop.f32.mrf.mxu0
    %v7541 = vadd.f32 %v6185, %v7540
    %v7542 = vpop.f32.mrf.mxu0
    %v7543 = vadd.f32 %v6189, %v7542
    %7544 = vmatprep.mubr.bf16.mxu0 %v5757
    %7545 = vmatmul.mubr.bf16.gmra.mxu0 %v5756
    %v7546 = vpop.f32.mrf.mxu0
    %v7547 = vadd.f32 %v6185, %v7546
    %v7548 = vpop.f32.mrf.mxu0
    %v7549 = vadd.f32 %v6189, %v7548
    %v7550 = vpop.f32.mrf.mxu0
    %v7551 = vadd.f32 %v6185, %v7550
    %v7552 = vpop.f32.mrf.mxu0
    %v7553 = vadd.f32 %v6189, %v7552
    %7554 = vmatprep.mubr.bf16.mxu0 %v5765
    %7555 = vmatmul.mubr.bf16.gmra.mxu0 %v5764
    %v7556 = vpop.f32.mrf.mxu0
    %v7557 = vadd.f32 %v6185, %v7556
    %v7558 = vpop.f32.mrf.mxu0
    %v7559 = vadd.f32 %v6189, %v7558
    %v7560 = vpop.f32.mrf.mxu0
    %v7561 = vadd.f32 %v6185, %v7560
    %v7562 = vpop.f32.mrf.mxu0
    %v7563 = vadd.f32 %v6189, %v7562
    %7564 = vmatprep.mubr.bf16.mxu0 %v5773
    %7565 = vmatmul.mubr.bf16.gmra.mxu0 %v5772
    %v7566 = vpop.f32.mrf.mxu0
    %v7567 = vadd.f32 %v6185, %v7566
    %v7568 = vpop.f32.mrf.mxu0
    %v7569 = vadd.f32 %v6189, %v7568
    %v7570 = vpop.f32.mrf.mxu0
    %v7571 = vadd.f32 %v6185, %v7570
    %v7572 = vpop.f32.mrf.mxu0
    %v7573 = vadd.f32 %v6189, %v7572
    %7574 = vmatprep.mubr.bf16.mxu0 %v5781
    %7575 = vmatmul.mubr.bf16.gmra.mxu0 %v5780
    %v7576 = vpop.f32.mrf.mxu0
    %v7577 = vadd.f32 %v6185, %v7576
    %v7578 = vpop.f32.mrf.mxu0
    %v7579 = vadd.f32 %v6189, %v7578
    %v7580 = vpop.f32.mrf.mxu0
    %v7581 = vadd.f32 %v6185, %v7580
    %v7582 = vpop.f32.mrf.mxu0
    %v7583 = vadd.f32 %v6189, %v7582
    %7584 = vmatprep.mubr.bf16.mxu0 %v5789
    %7585 = vmatmul.mubr.bf16.gmra.mxu0 %v5788
    %v7586 = vpop.f32.mrf.mxu0
    %v7587 = vadd.f32 %v6185, %v7586
    %v7588 = vpop.f32.mrf.mxu0
    %v7589 = vadd.f32 %v6189, %v7588
    %v7590 = vpop.f32.mrf.mxu0
    %v7591 = vadd.f32 %v6185, %v7590
    %v7592 = vpop.f32.mrf.mxu0
    %v7593 = vadd.f32 %v6189, %v7592
    %7594 = vmatprep.mubr.bf16.mxu0 %v5797
    %7595 = vmatmul.mubr.bf16.gmra.mxu0 %v5796
    %v7596 = vpop.f32.mrf.mxu0
    %v7597 = vadd.f32 %v6185, %v7596
    %v7598 = vpop.f32.mrf.mxu0
    %v7599 = vadd.f32 %v6189, %v7598
    %v7600 = vpop.f32.mrf.mxu0
    %v7601 = vadd.f32 %v6185, %v7600
    %v7602 = vpop.f32.mrf.mxu0
    %v7603 = vadd.f32 %v6189, %v7602
    %7604 = vmatprep.mubr.bf16.mxu0 %v5805
    %7605 = vmatmul.mubr.bf16.gmra.mxu0 %v5804
    %v7606 = vpop.f32.mrf.mxu0
    %v7607 = vadd.f32 %v6185, %v7606
    %v7608 = vpop.f32.mrf.mxu0
    %v7609 = vadd.f32 %v6189, %v7608
    %v7610 = vpop.f32.mrf.mxu0
    %v7611 = vadd.f32 %v6185, %v7610
    %v7612 = vpop.f32.mrf.mxu0
    %v7613 = vadd.f32 %v6189, %v7612
    %7614 = vmatprep.mubr.bf16.mxu0 %v5813
    %7615 = vmatmul.mubr.bf16.gmra.mxu0 %v5812
    %v7616 = vpop.f32.mrf.mxu0
    %v7617 = vadd.f32 %v6185, %v7616
    %v7618 = vpop.f32.mrf.mxu0
    %v7619 = vadd.f32 %v6189, %v7618
    %v7620 = vpop.f32.mrf.mxu0
    %v7621 = vadd.f32 %v6185, %v7620
    %v7622 = vpop.f32.mrf.mxu0
    %v7623 = vadd.f32 %v6189, %v7622
    %7624 = vmatprep.mubr.bf16.mxu0 %v5821
    %7625 = vmatmul.mubr.bf16.gmra.mxu0 %v5820
    %v7626 = vpop.f32.mrf.mxu0
    %v7627 = vadd.f32 %v6185, %v7626
    %v7628 = vpop.f32.mrf.mxu0
    %v7629 = vadd.f32 %v6189, %v7628
    %v7630 = vpop.f32.mrf.mxu0
    %v7631 = vadd.f32 %v6185, %v7630
    %v7632 = vpop.f32.mrf.mxu0
    %v7633 = vadd.f32 %v6189, %v7632
    %7634 = vmatprep.mubr.bf16.mxu0 %v5829
    %7635 = vmatmul.mubr.bf16.gmra.mxu0 %v5828
    %v7636 = vpop.f32.mrf.mxu0
    %v7637 = vadd.f32 %v6185, %v7636
    %v7638 = vpop.f32.mrf.mxu0
    %v7639 = vadd.f32 %v6189, %v7638
    %v7640 = vpop.f32.mrf.mxu0
    %v7641 = vadd.f32 %v6185, %v7640
    %v7642 = vpop.f32.mrf.mxu0
    %v7643 = vadd.f32 %v6189, %v7642
    %7644 = vmatprep.mubr.bf16.mxu0 %v5837
    %7645 = vmatmul.mubr.bf16.gmra.mxu0 %v5836
    %v7646 = vpop.f32.mrf.mxu0
    %v7647 = vadd.f32 %v6185, %v7646
    %v7648 = vpop.f32.mrf.mxu0
    %v7649 = vadd.f32 %v6189, %v7648
    %v7650 = vpop.f32.mrf.mxu0
    %v7651 = vadd.f32 %v6185, %v7650
    %v7652 = vpop.f32.mrf.mxu0
    %v7653 = vadd.f32 %v6189, %v7652
    %7654 = vmatprep.mubr.bf16.mxu0 %v5845
    %7655 = vmatmul.mubr.bf16.gmra.mxu0 %v5844
    %v7656 = vpop.f32.mrf.mxu0
    %v7657 = vadd.f32 %v6185, %v7656
    %v7658 = vpop.f32.mrf.mxu0
    %v7659 = vadd.f32 %v6189, %v7658
    %v7660 = vpop.f32.mrf.mxu0
    %v7661 = vadd.f32 %v6185, %v7660
    %v7662 = vpop.f32.mrf.mxu0
    %v7663 = vadd.f32 %v6189, %v7662
    %7664 = vmatprep.mubr.bf16.mxu0 %v5853
    %7665 = vmatmul.mubr.bf16.gmra.mxu0 %v5852
    %v7666 = vpop.f32.mrf.mxu0
    %v7667 = vadd.f32 %v6185, %v7666
    %v7668 = vpop.f32.mrf.mxu0
    %v7669 = vadd.f32 %v6189, %v7668
    %v7670 = vpop.f32.mrf.mxu0
    %v7671 = vadd.f32 %v6185, %v7670
    %v7672 = vpop.f32.mrf.mxu0
    %v7673 = vadd.f32 %v6189, %v7672
    %7674 = vmatprep.mubr.bf16.mxu0 %v5861
    %7675 = vmatmul.mubr.bf16.gmra.mxu0 %v5860
    %v7676 = vpop.f32.mrf.mxu0
    %v7677 = vadd.f32 %v6185, %v7676
    %v7678 = vpop.f32.mrf.mxu0
    %v7679 = vadd.f32 %v6189, %v7678
    %v7680 = vpop.f32.mrf.mxu0
    %v7681 = vadd.f32 %v6185, %v7680
    %v7682 = vpop.f32.mrf.mxu0
    %v7683 = vadd.f32 %v6189, %v7682
    %7684 = vmatprep.mubr.bf16.mxu0 %v5869
    %7685 = vmatmul.mubr.bf16.gmra.mxu0 %v5868
    %v7686 = vpop.f32.mrf.mxu0
    %v7687 = vadd.f32 %v6185, %v7686
    %v7688 = vpop.f32.mrf.mxu0
    %v7689 = vadd.f32 %v6189, %v7688
    %v7690 = vpop.f32.mrf.mxu0
    %v7691 = vadd.f32 %v6185, %v7690
    %v7692 = vpop.f32.mrf.mxu0
    %v7693 = vadd.f32 %v6189, %v7692
    %7694 = vmatprep.mubr.bf16.mxu0 %v5877
    %7695 = vmatmul.mubr.bf16.gmra.mxu0 %v5876
    %v7696 = vpop.f32.mrf.mxu0
    %v7697 = vadd.f32 %v6185, %v7696
    %v7698 = vpop.f32.mrf.mxu0
    %v7699 = vadd.f32 %v6189, %v7698
    %v7700 = vpop.f32.mrf.mxu0
    %v7701 = vadd.f32 %v6185, %v7700
    %v7702 = vpop.f32.mrf.mxu0
    %v7703 = vadd.f32 %v6189, %v7702
    %7704 = vmatprep.mubr.bf16.mxu0 %v5885
    %7705 = vmatmul.mubr.bf16.gmra.mxu0 %v5884
    %v7706 = vpop.f32.mrf.mxu0
    %v7707 = vadd.f32 %v6185, %v7706
    %v7708 = vpop.f32.mrf.mxu0
    %v7709 = vadd.f32 %v6189, %v7708
    %v7710 = vpop.f32.mrf.mxu0
    %v7711 = vadd.f32 %v6185, %v7710
    %v7712 = vpop.f32.mrf.mxu0
    %v7713 = vadd.f32 %v6189, %v7712
    %7714 = vmatprep.mubr.bf16.mxu0 %v5893
    %7715 = vmatmul.mubr.bf16.gmra.mxu0 %v5892
    %v7716 = vpop.f32.mrf.mxu0
    %v7717 = vadd.f32 %v6185, %v7716
    %v7718 = vpop.f32.mrf.mxu0
    %v7719 = vadd.f32 %v6189, %v7718
    %v7720 = vpop.f32.mrf.mxu0
    %v7721 = vadd.f32 %v6185, %v7720
    %v7722 = vpop.f32.mrf.mxu0
    %v7723 = vadd.f32 %v6189, %v7722
    %7724 = vmatprep.mubr.bf16.mxu0 %v5901
    %7725 = vmatmul.mubr.bf16.gmra.mxu0 %v5900
    %v7726 = vpop.f32.mrf.mxu0
    %v7727 = vadd.f32 %v6185, %v7726
    %v7728 = vpop.f32.mrf.mxu0
    %v7729 = vadd.f32 %v6189, %v7728
    %v7730 = vpop.f32.mrf.mxu0
    %v7731 = vadd.f32 %v6185, %v7730
    %v7732 = vpop.f32.mrf.mxu0
    %v7733 = vadd.f32 %v6189, %v7732
    %7734 = vmatprep.mubr.bf16.mxu0 %v5909
    %7735 = vmatmul.mubr.bf16.gmra.mxu0 %v5908
    %v7736 = vpop.f32.mrf.mxu0
    %v7737 = vadd.f32 %v6185, %v7736
    %v7738 = vpop.f32.mrf.mxu0
    %v7739 = vadd.f32 %v6189, %v7738
    %v7740 = vpop.f32.mrf.mxu0
    %v7741 = vadd.f32 %v6185, %v7740
    %v7742 = vpop.f32.mrf.mxu0
    %v7743 = vadd.f32 %v6189, %v7742
    %7744 = vmatprep.mubr.bf16.mxu0 %v5917
    %7745 = vmatmul.mubr.bf16.gmra.mxu0 %v5916
    %v7746 = vpop.f32.mrf.mxu0
    %v7747 = vadd.f32 %v6185, %v7746
    %v7748 = vpop.f32.mrf.mxu0
    %v7749 = vadd.f32 %v6189, %v7748
    %v7750 = vpop.f32.mrf.mxu0
    %v7751 = vadd.f32 %v6185, %v7750
    %v7752 = vpop.f32.mrf.mxu0
    %v7753 = vadd.f32 %v6189, %v7752
    %7754 = vdwg.mxu0
    %7755 = vmatprep.subr.bf16.mxu0 %v7063
    %7756 = vmatpush1.bf16.msra.mxu0 %v7062
    %7757 = vmatprep.subr.bf16.mxu0 %v7059
    %7758 = vmatpush1.bf16.msra.mxu0 %v7058
    %7759 = vmatprep.subr.bf16.mxu0 %v7055
    %7760 = vmatpush1.bf16.msra.mxu0 %v7054
    %7761 = vmatprep.subr.bf16.mxu0 %v7051
    %7762 = vmatpush1.bf16.msra.mxu0 %v7050
    %7763 = vmatprep.subr.bf16.mxu0 %v7047
    %7764 = vmatpush1.bf16.msra.mxu0 %v7046
    %7765 = vmatprep.subr.bf16.mxu0 %v7043
    %7766 = vmatpush1.bf16.msra.mxu0 %v7042
    %7767 = vmatprep.subr.bf16.mxu0 %v7039
    %7768 = vmatpush1.bf16.msra.mxu0 %v7038
    %7769 = vmatprep.subr.bf16.mxu0 %v7035
    %7770 = vmatpush1.bf16.msra.mxu0 %v7034
    %7771 = vmatprep.subr.bf16.mxu0 %v7095
    %7772 = vmatpush2.bf16.msra.mxu0 %v7094
    %7773 = vmatprep.subr.bf16.mxu0 %v7091
    %7774 = vmatpush2.bf16.msra.mxu0 %v7090
    %7775 = vmatprep.subr.bf16.mxu0 %v7087
    %7776 = vmatpush2.bf16.msra.mxu0 %v7086
    %7777 = vmatprep.subr.bf16.mxu0 %v7083
    %7778 = vmatpush2.bf16.msra.mxu0 %v7082
    %7779 = vmatprep.subr.bf16.mxu0 %v7079
    %7780 = vmatpush2.bf16.msra.mxu0 %v7078
    %7781 = vmatprep.subr.bf16.mxu0 %v7075
    %7782 = vmatpush2.bf16.msra.mxu0 %v7074
    %7783 = vmatprep.subr.bf16.mxu0 %v7071
    %7784 = vmatpush2.bf16.msra.mxu0 %v7070
    %7785 = vmatprep.subr.bf16.mxu0 %v7067
    %7786 = vmatpush2.bf16.msra.mxu0 %v7066
    %7787 = vmatprep.mubr.bf16.mxu0 %v5735
    %7788 = vmatmul.mubr.bf16.gmra.mxu0 %v5734
    %v7789 = vpop.f32.mrf.mxu0
    %v7790 = vadd.f32 %v7517, %v7789
    %v7791 = vpop.f32.mrf.mxu0
    %v7792 = vadd.f32 %v7519, %v7791
    %v7793 = vpop.f32.mrf.mxu0
    %v7794 = vadd.f32 %v7521, %v7793
    %v7795 = vpop.f32.mrf.mxu0
    %v7796 = vadd.f32 %v7523, %v7795
    %7797 = vmatprep.mubr.bf16.mxu0 %v5743
    %7798 = vmatmul.mubr.bf16.gmra.mxu0 %v5742
    %v7799 = vpop.f32.mrf.mxu0
    %v7800 = vadd.f32 %v7527, %v7799
    %v7801 = vpop.f32.mrf.mxu0
    %v7802 = vadd.f32 %v7529, %v7801
    %v7803 = vpop.f32.mrf.mxu0
    %v7804 = vadd.f32 %v7531, %v7803
    %v7805 = vpop.f32.mrf.mxu0
    %v7806 = vadd.f32 %v7533, %v7805
    %7807 = vmatprep.mubr.bf16.mxu0 %v5751
    %7808 = vmatmul.mubr.bf16.gmra.mxu0 %v5750
    %v7809 = vpop.f32.mrf.mxu0
    %v7810 = vadd.f32 %v7537, %v7809
    %v7811 = vpop.f32.mrf.mxu0
    %v7812 = vadd.f32 %v7539, %v7811
    %v7813 = vpop.f32.mrf.mxu0
    %v7814 = vadd.f32 %v7541, %v7813
    %v7815 = vpop.f32.mrf.mxu0
    %v7816 = vadd.f32 %v7543, %v7815
    %7817 = vmatprep.mubr.bf16.mxu0 %v5759
    %7818 = vmatmul.mubr.bf16.gmra.mxu0 %v5758
    %v7819 = vpop.f32.mrf.mxu0
    %v7820 = vadd.f32 %v7547, %v7819
    %v7821 = vpop.f32.mrf.mxu0
    %v7822 = vadd.f32 %v7549, %v7821
    %v7823 = vpop.f32.mrf.mxu0
    %v7824 = vadd.f32 %v7551, %v7823
    %v7825 = vpop.f32.mrf.mxu0
    %v7826 = vadd.f32 %v7553, %v7825
    %7827 = vmatprep.mubr.bf16.mxu0 %v5767
    %7828 = vmatmul.mubr.bf16.gmra.mxu0 %v5766
    %v7829 = vpop.f32.mrf.mxu0
    %v7830 = vadd.f32 %v7557, %v7829
    %v7831 = vpop.f32.mrf.mxu0
    %v7832 = vadd.f32 %v7559, %v7831
    %v7833 = vpop.f32.mrf.mxu0
    %v7834 = vadd.f32 %v7561, %v7833
    %v7835 = vpop.f32.mrf.mxu0
    %v7836 = vadd.f32 %v7563, %v7835
    %7837 = vmatprep.mubr.bf16.mxu0 %v5775
    %7838 = vmatmul.mubr.bf16.gmra.mxu0 %v5774
    %v7839 = vpop.f32.mrf.mxu0
    %v7840 = vadd.f32 %v7567, %v7839
    %v7841 = vpop.f32.mrf.mxu0
    %v7842 = vadd.f32 %v7569, %v7841
    %v7843 = vpop.f32.mrf.mxu0
    %v7844 = vadd.f32 %v7571, %v7843
    %v7845 = vpop.f32.mrf.mxu0
    %v7846 = vadd.f32 %v7573, %v7845
    %7847 = vmatprep.mubr.bf16.mxu0 %v5783
    %7848 = vmatmul.mubr.bf16.gmra.mxu0 %v5782
    %v7849 = vpop.f32.mrf.mxu0
    %v7850 = vadd.f32 %v7577, %v7849
    %v7851 = vpop.f32.mrf.mxu0
    %v7852 = vadd.f32 %v7579, %v7851
    %v7853 = vpop.f32.mrf.mxu0
    %v7854 = vadd.f32 %v7581, %v7853
    %v7855 = vpop.f32.mrf.mxu0
    %v7856 = vadd.f32 %v7583, %v7855
    %7857 = vmatprep.mubr.bf16.mxu0 %v5791
    %7858 = vmatmul.mubr.bf16.gmra.mxu0 %v5790
    %v7859 = vpop.f32.mrf.mxu0
    %v7860 = vadd.f32 %v7587, %v7859
    %v7861 = vpop.f32.mrf.mxu0
    %v7862 = vadd.f32 %v7589, %v7861
    %v7863 = vpop.f32.mrf.mxu0
    %v7864 = vadd.f32 %v7591, %v7863
    %v7865 = vpop.f32.mrf.mxu0
    %v7866 = vadd.f32 %v7593, %v7865
    %7867 = vmatprep.mubr.bf16.mxu0 %v5799
    %7868 = vmatmul.mubr.bf16.gmra.mxu0 %v5798
    %v7869 = vpop.f32.mrf.mxu0
    %v7870 = vadd.f32 %v7597, %v7869
    %v7871 = vpop.f32.mrf.mxu0
    %v7872 = vadd.f32 %v7599, %v7871
    %v7873 = vpop.f32.mrf.mxu0
    %v7874 = vadd.f32 %v7601, %v7873
    %v7875 = vpop.f32.mrf.mxu0
    %v7876 = vadd.f32 %v7603, %v7875
    %7877 = vmatprep.mubr.bf16.mxu0 %v5807
    %7878 = vmatmul.mubr.bf16.gmra.mxu0 %v5806
    %v7879 = vpop.f32.mrf.mxu0
    %v7880 = vadd.f32 %v7607, %v7879
    %v7881 = vpop.f32.mrf.mxu0
    %v7882 = vadd.f32 %v7609, %v7881
    %v7883 = vpop.f32.mrf.mxu0
    %v7884 = vadd.f32 %v7611, %v7883
    %v7885 = vpop.f32.mrf.mxu0
    %v7886 = vadd.f32 %v7613, %v7885
    %7887 = vmatprep.mubr.bf16.mxu0 %v5815
    %7888 = vmatmul.mubr.bf16.gmra.mxu0 %v5814
    %v7889 = vpop.f32.mrf.mxu0
    %v7890 = vadd.f32 %v7617, %v7889
    %v7891 = vpop.f32.mrf.mxu0
    %v7892 = vadd.f32 %v7619, %v7891
    %v7893 = vpop.f32.mrf.mxu0
    %v7894 = vadd.f32 %v7621, %v7893
    %v7895 = vpop.f32.mrf.mxu0
    %v7896 = vadd.f32 %v7623, %v7895
    %7897 = vmatprep.mubr.bf16.mxu0 %v5823
    %7898 = vmatmul.mubr.bf16.gmra.mxu0 %v5822
    %v7899 = vpop.f32.mrf.mxu0
    %v7900 = vadd.f32 %v7627, %v7899
    %v7901 = vpop.f32.mrf.mxu0
    %v7902 = vadd.f32 %v7629, %v7901
    %v7903 = vpop.f32.mrf.mxu0
    %v7904 = vadd.f32 %v7631, %v7903
    %v7905 = vpop.f32.mrf.mxu0
    %v7906 = vadd.f32 %v7633, %v7905
    %7907 = vmatprep.mubr.bf16.mxu0 %v5831
    %7908 = vmatmul.mubr.bf16.gmra.mxu0 %v5830
    %v7909 = vpop.f32.mrf.mxu0
    %v7910 = vadd.f32 %v7637, %v7909
    %v7911 = vpop.f32.mrf.mxu0
    %v7912 = vadd.f32 %v7639, %v7911
    %v7913 = vpop.f32.mrf.mxu0
    %v7914 = vadd.f32 %v7641, %v7913
    %v7915 = vpop.f32.mrf.mxu0
    %v7916 = vadd.f32 %v7643, %v7915
    %7917 = vmatprep.mubr.bf16.mxu0 %v5839
    %7918 = vmatmul.mubr.bf16.gmra.mxu0 %v5838
    %v7919 = vpop.f32.mrf.mxu0
    %v7920 = vadd.f32 %v7647, %v7919
    %v7921 = vpop.f32.mrf.mxu0
    %v7922 = vadd.f32 %v7649, %v7921
    %v7923 = vpop.f32.mrf.mxu0
    %v7924 = vadd.f32 %v7651, %v7923
    %v7925 = vpop.f32.mrf.mxu0
    %v7926 = vadd.f32 %v7653, %v7925
    %7927 = vmatprep.mubr.bf16.mxu0 %v5847
    %7928 = vmatmul.mubr.bf16.gmra.mxu0 %v5846
    %v7929 = vpop.f32.mrf.mxu0
    %v7930 = vadd.f32 %v7657, %v7929
    %v7931 = vpop.f32.mrf.mxu0
    %v7932 = vadd.f32 %v7659, %v7931
    %v7933 = vpop.f32.mrf.mxu0
    %v7934 = vadd.f32 %v7661, %v7933
    %v7935 = vpop.f32.mrf.mxu0
    %v7936 = vadd.f32 %v7663, %v7935
    %7937 = vmatprep.mubr.bf16.mxu0 %v5855
    %7938 = vmatmul.mubr.bf16.gmra.mxu0 %v5854
    %v7939 = vpop.f32.mrf.mxu0
    %v7940 = vadd.f32 %v7667, %v7939
    %v7941 = vpop.f32.mrf.mxu0
    %v7942 = vadd.f32 %v7669, %v7941
    %v7943 = vpop.f32.mrf.mxu0
    %v7944 = vadd.f32 %v7671, %v7943
    %v7945 = vpop.f32.mrf.mxu0
    %v7946 = vadd.f32 %v7673, %v7945
    %7947 = vmatprep.mubr.bf16.mxu0 %v5863
    %7948 = vmatmul.mubr.bf16.gmra.mxu0 %v5862
    %v7949 = vpop.f32.mrf.mxu0
    %v7950 = vadd.f32 %v7677, %v7949
    %v7951 = vpop.f32.mrf.mxu0
    %v7952 = vadd.f32 %v7679, %v7951
    %v7953 = vpop.f32.mrf.mxu0
    %v7954 = vadd.f32 %v7681, %v7953
    %v7955 = vpop.f32.mrf.mxu0
    %v7956 = vadd.f32 %v7683, %v7955
    %7957 = vmatprep.mubr.bf16.mxu0 %v5871
    %7958 = vmatmul.mubr.bf16.gmra.mxu0 %v5870
    %v7959 = vpop.f32.mrf.mxu0
    %v7960 = vadd.f32 %v7687, %v7959
    %v7961 = vpop.f32.mrf.mxu0
    %v7962 = vadd.f32 %v7689, %v7961
    %v7963 = vpop.f32.mrf.mxu0
    %v7964 = vadd.f32 %v7691, %v7963
    %v7965 = vpop.f32.mrf.mxu0
    %v7966 = vadd.f32 %v7693, %v7965
    %7967 = vmatprep.mubr.bf16.mxu0 %v5879
    %7968 = vmatmul.mubr.bf16.gmra.mxu0 %v5878
    %v7969 = vpop.f32.mrf.mxu0
    %v7970 = vadd.f32 %v7697, %v7969
    %v7971 = vpop.f32.mrf.mxu0
    %v7972 = vadd.f32 %v7699, %v7971
    %v7973 = vpop.f32.mrf.mxu0
    %v7974 = vadd.f32 %v7701, %v7973
    %v7975 = vpop.f32.mrf.mxu0
    %v7976 = vadd.f32 %v7703, %v7975
    %7977 = vmatprep.mubr.bf16.mxu0 %v5887
    %7978 = vmatmul.mubr.bf16.gmra.mxu0 %v5886
    %v7979 = vpop.f32.mrf.mxu0
    %v7980 = vadd.f32 %v7707, %v7979
    %v7981 = vpop.f32.mrf.mxu0
    %v7982 = vadd.f32 %v7709, %v7981
    %v7983 = vpop.f32.mrf.mxu0
    %v7984 = vadd.f32 %v7711, %v7983
    %v7985 = vpop.f32.mrf.mxu0
    %v7986 = vadd.f32 %v7713, %v7985
    %7987 = vmatprep.mubr.bf16.mxu0 %v5895
    %7988 = vmatmul.mubr.bf16.gmra.mxu0 %v5894
    %v7989 = vpop.f32.mrf.mxu0
    %v7990 = vadd.f32 %v7717, %v7989
    %v7991 = vpop.f32.mrf.mxu0
    %v7992 = vadd.f32 %v7719, %v7991
    %v7993 = vpop.f32.mrf.mxu0
    %v7994 = vadd.f32 %v7721, %v7993
    %v7995 = vpop.f32.mrf.mxu0
    %v7996 = vadd.f32 %v7723, %v7995
    %7997 = vmatprep.mubr.bf16.mxu0 %v5903
    %7998 = vmatmul.mubr.bf16.gmra.mxu0 %v5902
    %v7999 = vpop.f32.mrf.mxu0
    %v8000 = vadd.f32 %v7727, %v7999
    %v8001 = vpop.f32.mrf.mxu0
    %v8002 = vadd.f32 %v7729, %v8001
    %v8003 = vpop.f32.mrf.mxu0
    %v8004 = vadd.f32 %v7731, %v8003
    %v8005 = vpop.f32.mrf.mxu0
    %v8006 = vadd.f32 %v7733, %v8005
    %8007 = vmatprep.mubr.bf16.mxu0 %v5911
    %8008 = vmatmul.mubr.bf16.gmra.mxu0 %v5910
    %v8009 = vpop.f32.mrf.mxu0
    %v8010 = vadd.f32 %v7737, %v8009
    %v8011 = vpop.f32.mrf.mxu0
    %v8012 = vadd.f32 %v7739, %v8011
    %v8013 = vpop.f32.mrf.mxu0
    %v8014 = vadd.f32 %v7741, %v8013
    %v8015 = vpop.f32.mrf.mxu0
    %v8016 = vadd.f32 %v7743, %v8015
    %8017 = vmatprep.mubr.bf16.mxu0 %v5919
    %8018 = vmatmul.mubr.bf16.gmra.mxu0 %v5918
    %v8019 = vpop.f32.mrf.mxu0
    %v8020 = vadd.f32 %v7747, %v8019
    %v8021 = vpop.f32.mrf.mxu0
    %v8022 = vadd.f32 %v7749, %v8021
    %v8023 = vpop.f32.mrf.mxu0
    %v8024 = vadd.f32 %v7751, %v8023
    %v8025 = vpop.f32.mrf.mxu0
    %v8026 = vadd.f32 %v7753, %v8025
    %8027 = vdwg.mxu0
    %8028 = vmatprep.subr.bf16.mxu0 %v7127
    %8029 = vmatpush1.bf16.msra.mxu0 %v7126
    %8030 = vmatprep.subr.bf16.mxu0 %v7123
    %8031 = vmatpush1.bf16.msra.mxu0 %v7122
    %8032 = vmatprep.subr.bf16.mxu0 %v7119
    %8033 = vmatpush1.bf16.msra.mxu0 %v7118
    %8034 = vmatprep.subr.bf16.mxu0 %v7115
    %8035 = vmatpush1.bf16.msra.mxu0 %v7114
    %8036 = vmatprep.subr.bf16.mxu0 %v7111
    %8037 = vmatpush1.bf16.msra.mxu0 %v7110
    %8038 = vmatprep.subr.bf16.mxu0 %v7107
    %8039 = vmatpush1.bf16.msra.mxu0 %v7106
    %8040 = vmatprep.subr.bf16.mxu0 %v7103
    %8041 = vmatpush1.bf16.msra.mxu0 %v7102
    %8042 = vmatprep.subr.bf16.mxu0 %v7099
    %8043 = vmatpush1.bf16.msra.mxu0 %v7098
    %8044 = vmatprep.subr.bf16.mxu0 %v7159
    %8045 = vmatpush2.bf16.msra.mxu0 %v7158
    %8046 = vmatprep.subr.bf16.mxu0 %v7155
    %8047 = vmatpush2.bf16.msra.mxu0 %v7154
    %8048 = vmatprep.subr.bf16.mxu0 %v7151
    %8049 = vmatpush2.bf16.msra.mxu0 %v7150
    %8050 = vmatprep.subr.bf16.mxu0 %v7147
    %8051 = vmatpush2.bf16.msra.mxu0 %v7146
    %8052 = vmatprep.subr.bf16.mxu0 %v7143
    %8053 = vmatpush2.bf16.msra.mxu0 %v7142
    %8054 = vmatprep.subr.bf16.mxu0 %v7139
    %8055 = vmatpush2.bf16.msra.mxu0 %v7138
    %8056 = vmatprep.subr.bf16.mxu0 %v7135
    %8057 = vmatpush2.bf16.msra.mxu0 %v7134
    %8058 = vmatprep.subr.bf16.mxu0 %v7131
    %8059 = vmatpush2.bf16.msra.mxu0 %v7130
    %8060 = vmatprep.mubr.bf16.mxu0 %v5737
    %8061 = vmatmul.mubr.bf16.gmra.mxu0 %v5736
    %v8062 = vpop.f32.mrf.mxu0
    %v8063 = vadd.f32 %v7790, %v8062
    %v8064 = vpop.f32.mrf.mxu0
    %v8065 = vadd.f32 %v7792, %v8064
    %v8066 = vpop.f32.mrf.mxu0
    %v8067 = vadd.f32 %v7794, %v8066
    %v8068 = vpop.f32.mrf.mxu0
    %v8069 = vadd.f32 %v7796, %v8068
    %8070 = vmatprep.mubr.bf16.mxu0 %v5745
    %8071 = vmatmul.mubr.bf16.gmra.mxu0 %v5744
    %v8072 = vpop.f32.mrf.mxu0
    %v8073 = vadd.f32 %v7800, %v8072
    %v8074 = vpop.f32.mrf.mxu0
    %v8075 = vadd.f32 %v7802, %v8074
    %v8076 = vpop.f32.mrf.mxu0
    %v8077 = vadd.f32 %v7804, %v8076
    %v8078 = vpop.f32.mrf.mxu0
    %v8079 = vadd.f32 %v7806, %v8078
    %8080 = vmatprep.mubr.bf16.mxu0 %v5753
    %8081 = vmatmul.mubr.bf16.gmra.mxu0 %v5752
    %v8082 = vpop.f32.mrf.mxu0
    %v8083 = vadd.f32 %v7810, %v8082
    %v8084 = vpop.f32.mrf.mxu0
    %v8085 = vadd.f32 %v7812, %v8084
    %v8086 = vpop.f32.mrf.mxu0
    %v8087 = vadd.f32 %v7814, %v8086
    %v8088 = vpop.f32.mrf.mxu0
    %v8089 = vadd.f32 %v7816, %v8088
    %8090 = vmatprep.mubr.bf16.mxu0 %v5761
    %8091 = vmatmul.mubr.bf16.gmra.mxu0 %v5760
    %v8092 = vpop.f32.mrf.mxu0
    %v8093 = vadd.f32 %v7820, %v8092
    %v8094 = vpop.f32.mrf.mxu0
    %v8095 = vadd.f32 %v7822, %v8094
    %v8096 = vpop.f32.mrf.mxu0
    %v8097 = vadd.f32 %v7824, %v8096
    %v8098 = vpop.f32.mrf.mxu0
    %v8099 = vadd.f32 %v7826, %v8098
    %8100 = vmatprep.mubr.bf16.mxu0 %v5769
    %8101 = vmatmul.mubr.bf16.gmra.mxu0 %v5768
    %v8102 = vpop.f32.mrf.mxu0
    %v8103 = vadd.f32 %v7830, %v8102
    %v8104 = vpop.f32.mrf.mxu0
    %v8105 = vadd.f32 %v7832, %v8104
    %v8106 = vpop.f32.mrf.mxu0
    %v8107 = vadd.f32 %v7834, %v8106
    %v8108 = vpop.f32.mrf.mxu0
    %v8109 = vadd.f32 %v7836, %v8108
    %8110 = vmatprep.mubr.bf16.mxu0 %v5777
    %8111 = vmatmul.mubr.bf16.gmra.mxu0 %v5776
    %v8112 = vpop.f32.mrf.mxu0
    %v8113 = vadd.f32 %v7840, %v8112
    %v8114 = vpop.f32.mrf.mxu0
    %v8115 = vadd.f32 %v7842, %v8114
    %v8116 = vpop.f32.mrf.mxu0
    %v8117 = vadd.f32 %v7844, %v8116
    %v8118 = vpop.f32.mrf.mxu0
    %v8119 = vadd.f32 %v7846, %v8118
    %8120 = vmatprep.mubr.bf16.mxu0 %v5785
    %8121 = vmatmul.mubr.bf16.gmra.mxu0 %v5784
    %v8122 = vpop.f32.mrf.mxu0
    %v8123 = vadd.f32 %v7850, %v8122
    %v8124 = vpop.f32.mrf.mxu0
    %v8125 = vadd.f32 %v7852, %v8124
    %v8126 = vpop.f32.mrf.mxu0
    %v8127 = vadd.f32 %v7854, %v8126
    %v8128 = vpop.f32.mrf.mxu0
    %v8129 = vadd.f32 %v7856, %v8128
    %8130 = vmatprep.mubr.bf16.mxu0 %v5793
    %8131 = vmatmul.mubr.bf16.gmra.mxu0 %v5792
    %v8132 = vpop.f32.mrf.mxu0
    %v8133 = vadd.f32 %v7860, %v8132
    %v8134 = vpop.f32.mrf.mxu0
    %v8135 = vadd.f32 %v7862, %v8134
    %v8136 = vpop.f32.mrf.mxu0
    %v8137 = vadd.f32 %v7864, %v8136
    %v8138 = vpop.f32.mrf.mxu0
    %v8139 = vadd.f32 %v7866, %v8138
    %8140 = vmatprep.mubr.bf16.mxu0 %v5801
    %8141 = vmatmul.mubr.bf16.gmra.mxu0 %v5800
    %v8142 = vpop.f32.mrf.mxu0
    %v8143 = vadd.f32 %v7870, %v8142
    %v8144 = vpop.f32.mrf.mxu0
    %v8145 = vadd.f32 %v7872, %v8144
    %v8146 = vpop.f32.mrf.mxu0
    %v8147 = vadd.f32 %v7874, %v8146
    %v8148 = vpop.f32.mrf.mxu0
    %v8149 = vadd.f32 %v7876, %v8148
    %8150 = vmatprep.mubr.bf16.mxu0 %v5809
    %8151 = vmatmul.mubr.bf16.gmra.mxu0 %v5808
    %v8152 = vpop.f32.mrf.mxu0
    %v8153 = vadd.f32 %v7880, %v8152
    %v8154 = vpop.f32.mrf.mxu0
    %v8155 = vadd.f32 %v7882, %v8154
    %v8156 = vpop.f32.mrf.mxu0
    %v8157 = vadd.f32 %v7884, %v8156
    %v8158 = vpop.f32.mrf.mxu0
    %v8159 = vadd.f32 %v7886, %v8158
    %8160 = vmatprep.mubr.bf16.mxu0 %v5817
    %8161 = vmatmul.mubr.bf16.gmra.mxu0 %v5816
    %v8162 = vpop.f32.mrf.mxu0
    %v8163 = vadd.f32 %v7890, %v8162
    %v8164 = vpop.f32.mrf.mxu0
    %v8165 = vadd.f32 %v7892, %v8164
    %v8166 = vpop.f32.mrf.mxu0
    %v8167 = vadd.f32 %v7894, %v8166
    %v8168 = vpop.f32.mrf.mxu0
    %v8169 = vadd.f32 %v7896, %v8168
    %8170 = vmatprep.mubr.bf16.mxu0 %v5825
    %8171 = vmatmul.mubr.bf16.gmra.mxu0 %v5824
    %v8172 = vpop.f32.mrf.mxu0
    %v8173 = vadd.f32 %v7900, %v8172
    %v8174 = vpop.f32.mrf.mxu0
    %v8175 = vadd.f32 %v7902, %v8174
    %v8176 = vpop.f32.mrf.mxu0
    %v8177 = vadd.f32 %v7904, %v8176
    %v8178 = vpop.f32.mrf.mxu0
    %v8179 = vadd.f32 %v7906, %v8178
    %8180 = vmatprep.mubr.bf16.mxu0 %v5833
    %8181 = vmatmul.mubr.bf16.gmra.mxu0 %v5832
    %v8182 = vpop.f32.mrf.mxu0
    %v8183 = vadd.f32 %v7910, %v8182
    %v8184 = vpop.f32.mrf.mxu0
    %v8185 = vadd.f32 %v7912, %v8184
    %v8186 = vpop.f32.mrf.mxu0
    %v8187 = vadd.f32 %v7914, %v8186
    %v8188 = vpop.f32.mrf.mxu0
    %v8189 = vadd.f32 %v7916, %v8188
    %8190 = vmatprep.mubr.bf16.mxu0 %v5841
    %8191 = vmatmul.mubr.bf16.gmra.mxu0 %v5840
    %v8192 = vpop.f32.mrf.mxu0
    %v8193 = vadd.f32 %v7920, %v8192
    %v8194 = vpop.f32.mrf.mxu0
    %v8195 = vadd.f32 %v7922, %v8194
    %v8196 = vpop.f32.mrf.mxu0
    %v8197 = vadd.f32 %v7924, %v8196
    %v8198 = vpop.f32.mrf.mxu0
    %v8199 = vadd.f32 %v7926, %v8198
    %8200 = vmatprep.mubr.bf16.mxu0 %v5849
    %8201 = vmatmul.mubr.bf16.gmra.mxu0 %v5848
    %v8202 = vpop.f32.mrf.mxu0
    %v8203 = vadd.f32 %v7930, %v8202
    %v8204 = vpop.f32.mrf.mxu0
    %v8205 = vadd.f32 %v7932, %v8204
    %v8206 = vpop.f32.mrf.mxu0
    %v8207 = vadd.f32 %v7934, %v8206
    %v8208 = vpop.f32.mrf.mxu0
    %v8209 = vadd.f32 %v7936, %v8208
    %8210 = vmatprep.mubr.bf16.mxu0 %v5857
    %8211 = vmatmul.mubr.bf16.gmra.mxu0 %v5856
    %v8212 = vpop.f32.mrf.mxu0
    %v8213 = vadd.f32 %v7940, %v8212
    %v8214 = vpop.f32.mrf.mxu0
    %v8215 = vadd.f32 %v7942, %v8214
    %v8216 = vpop.f32.mrf.mxu0
    %v8217 = vadd.f32 %v7944, %v8216
    %v8218 = vpop.f32.mrf.mxu0
    %v8219 = vadd.f32 %v7946, %v8218
    %8220 = vmatprep.mubr.bf16.mxu0 %v5865
    %8221 = vmatmul.mubr.bf16.gmra.mxu0 %v5864
    %v8222 = vpop.f32.mrf.mxu0
    %v8223 = vadd.f32 %v7950, %v8222
    %v8224 = vpop.f32.mrf.mxu0
    %v8225 = vadd.f32 %v7952, %v8224
    %v8226 = vpop.f32.mrf.mxu0
    %v8227 = vadd.f32 %v7954, %v8226
    %v8228 = vpop.f32.mrf.mxu0
    %v8229 = vadd.f32 %v7956, %v8228
    %8230 = vmatprep.mubr.bf16.mxu0 %v5873
    %8231 = vmatmul.mubr.bf16.gmra.mxu0 %v5872
    %v8232 = vpop.f32.mrf.mxu0
    %v8233 = vadd.f32 %v7960, %v8232
    %v8234 = vpop.f32.mrf.mxu0
    %v8235 = vadd.f32 %v7962, %v8234
    %v8236 = vpop.f32.mrf.mxu0
    %v8237 = vadd.f32 %v7964, %v8236
    %v8238 = vpop.f32.mrf.mxu0
    %v8239 = vadd.f32 %v7966, %v8238
    %8240 = vmatprep.mubr.bf16.mxu0 %v5881
    %8241 = vmatmul.mubr.bf16.gmra.mxu0 %v5880
    %v8242 = vpop.f32.mrf.mxu0
    %v8243 = vadd.f32 %v7970, %v8242
    %v8244 = vpop.f32.mrf.mxu0
    %v8245 = vadd.f32 %v7972, %v8244
    %v8246 = vpop.f32.mrf.mxu0
    %v8247 = vadd.f32 %v7974, %v8246
    %v8248 = vpop.f32.mrf.mxu0
    %v8249 = vadd.f32 %v7976, %v8248
    %8250 = vmatprep.mubr.bf16.mxu0 %v5889
    %8251 = vmatmul.mubr.bf16.gmra.mxu0 %v5888
    %v8252 = vpop.f32.mrf.mxu0
    %v8253 = vadd.f32 %v7980, %v8252
    %v8254 = vpop.f32.mrf.mxu0
    %v8255 = vadd.f32 %v7982, %v8254
    %v8256 = vpop.f32.mrf.mxu0
    %v8257 = vadd.f32 %v7984, %v8256
    %v8258 = vpop.f32.mrf.mxu0
    %v8259 = vadd.f32 %v7986, %v8258
    %8260 = vmatprep.mubr.bf16.mxu0 %v5897
    %8261 = vmatmul.mubr.bf16.gmra.mxu0 %v5896
    %v8262 = vpop.f32.mrf.mxu0
    %v8263 = vadd.f32 %v7990, %v8262
    %v8264 = vpop.f32.mrf.mxu0
    %v8265 = vadd.f32 %v7992, %v8264
    %v8266 = vpop.f32.mrf.mxu0
    %v8267 = vadd.f32 %v7994, %v8266
    %v8268 = vpop.f32.mrf.mxu0
    %v8269 = vadd.f32 %v7996, %v8268
    %8270 = vmatprep.mubr.bf16.mxu0 %v5905
    %8271 = vmatmul.mubr.bf16.gmra.mxu0 %v5904
    %v8272 = vpop.f32.mrf.mxu0
    %v8273 = vadd.f32 %v8000, %v8272
    %v8274 = vpop.f32.mrf.mxu0
    %v8275 = vadd.f32 %v8002, %v8274
    %v8276 = vpop.f32.mrf.mxu0
    %v8277 = vadd.f32 %v8004, %v8276
    %v8278 = vpop.f32.mrf.mxu0
    %v8279 = vadd.f32 %v8006, %v8278
    %8280 = vmatprep.mubr.bf16.mxu0 %v5913
    %8281 = vmatmul.mubr.bf16.gmra.mxu0 %v5912
    %v8282 = vpop.f32.mrf.mxu0
    %v8283 = vadd.f32 %v8010, %v8282
    %v8284 = vpop.f32.mrf.mxu0
    %v8285 = vadd.f32 %v8012, %v8284
    %v8286 = vpop.f32.mrf.mxu0
    %v8287 = vadd.f32 %v8014, %v8286
    %v8288 = vpop.f32.mrf.mxu0
    %v8289 = vadd.f32 %v8016, %v8288
    %8290 = vmatprep.mubr.bf16.mxu0 %v5921
    %8291 = vmatmul.mubr.bf16.gmra.mxu0 %v5920
    %v8292 = vpop.f32.mrf.mxu0
    %v8293 = vadd.f32 %v8020, %v8292
    %v8294 = vpop.f32.mrf.mxu0
    %v8295 = vadd.f32 %v8022, %v8294
    %v8296 = vpop.f32.mrf.mxu0
    %v8297 = vadd.f32 %v8024, %v8296
    %v8298 = vpop.f32.mrf.mxu0
    %v8299 = vadd.f32 %v8026, %v8298
    %8300 = vdwg.mxu0
    %8301 = vmatprep.subr.bf16.mxu0 %v7191
    %8302 = vmatpush1.bf16.msra.mxu0 %v7190
    %8303 = vmatprep.subr.bf16.mxu0 %v7187
    %8304 = vmatpush1.bf16.msra.mxu0 %v7186
    %8305 = vmatprep.subr.bf16.mxu0 %v7183
    %8306 = vmatpush1.bf16.msra.mxu0 %v7182
    %8307 = vmatprep.subr.bf16.mxu0 %v7179
    %8308 = vmatpush1.bf16.msra.mxu0 %v7178
    %8309 = vmatprep.subr.bf16.mxu0 %v7175
    %8310 = vmatpush1.bf16.msra.mxu0 %v7174
    %8311 = vmatprep.subr.bf16.mxu0 %v7171
    %8312 = vmatpush1.bf16.msra.mxu0 %v7170
    %8313 = vmatprep.subr.bf16.mxu0 %v7167
    %8314 = vmatpush1.bf16.msra.mxu0 %v7166
    %8315 = vmatprep.subr.bf16.mxu0 %v7163
    %8316 = vmatpush1.bf16.msra.mxu0 %v7162
    %8317 = vmatprep.subr.bf16.mxu0 %v7223
    %8318 = vmatpush2.bf16.msra.mxu0 %v7222
    %8319 = vmatprep.subr.bf16.mxu0 %v7219
    %8320 = vmatpush2.bf16.msra.mxu0 %v7218
    %8321 = vmatprep.subr.bf16.mxu0 %v7215
    %8322 = vmatpush2.bf16.msra.mxu0 %v7214
    %8323 = vmatprep.subr.bf16.mxu0 %v7211
    %8324 = vmatpush2.bf16.msra.mxu0 %v7210
    %8325 = vmatprep.subr.bf16.mxu0 %v7207
    %8326 = vmatpush2.bf16.msra.mxu0 %v7206
    %8327 = vmatprep.subr.bf16.mxu0 %v7203
    %8328 = vmatpush2.bf16.msra.mxu0 %v7202
    %8329 = vmatprep.subr.bf16.mxu0 %v7199
    %8330 = vmatpush2.bf16.msra.mxu0 %v7198
    %8331 = vmatprep.subr.bf16.mxu0 %v7195
    %8332 = vmatpush2.bf16.msra.mxu0 %v7194
    %8333 = vmatprep.mubr.bf16.mxu0 %v5739
    %8334 = vmatmul.mubr.bf16.gmra.mxu0 %v5738
    %v8335 = vpop.f32.mrf.mxu0
    %v8336 = vadd.f32 %v8063, %v8335
    %v8337 = vpop.f32.mrf.mxu0
    %v8338 = vadd.f32 %v8065, %v8337
    %v8339 = vpop.f32.mrf.mxu0
    %v8340 = vadd.f32 %v8067, %v8339
    %v8341 = vpop.f32.mrf.mxu0
    %v8342 = vadd.f32 %v8069, %v8341
    %8343 = vmatprep.mubr.bf16.mxu0 %v5747
    %8344 = vmatmul.mubr.bf16.gmra.mxu0 %v5746
    %v8345 = vpop.f32.mrf.mxu0
    %v8346 = vadd.f32 %v8073, %v8345
    %v8347 = vpop.f32.mrf.mxu0
    %v8348 = vadd.f32 %v8075, %v8347
    %v8349 = vpop.f32.mrf.mxu0
    %v8350 = vadd.f32 %v8077, %v8349
    %v8351 = vpop.f32.mrf.mxu0
    %v8352 = vadd.f32 %v8079, %v8351
    %8353 = vmatprep.mubr.bf16.mxu0 %v5755
    %8354 = vmatmul.mubr.bf16.gmra.mxu0 %v5754
    %v8355 = vpop.f32.mrf.mxu0
    %v8356 = vadd.f32 %v8083, %v8355
    %v8357 = vpop.f32.mrf.mxu0
    %v8358 = vadd.f32 %v8085, %v8357
    %v8359 = vpop.f32.mrf.mxu0
    %v8360 = vadd.f32 %v8087, %v8359
    %v8361 = vpop.f32.mrf.mxu0
    %v8362 = vadd.f32 %v8089, %v8361
    %8363 = vmatprep.mubr.bf16.mxu0 %v5763
    %8364 = vmatmul.mubr.bf16.gmra.mxu0 %v5762
    %v8365 = vpop.f32.mrf.mxu0
    %v8366 = vadd.f32 %v8093, %v8365
    %v8367 = vpop.f32.mrf.mxu0
    %v8368 = vadd.f32 %v8095, %v8367
    %v8369 = vpop.f32.mrf.mxu0
    %v8370 = vadd.f32 %v8097, %v8369
    %v8371 = vpop.f32.mrf.mxu0
    %v8372 = vadd.f32 %v8099, %v8371
    %8373 = vmatprep.mubr.bf16.mxu0 %v5771
    %8374 = vmatmul.mubr.bf16.gmra.mxu0 %v5770
    %v8375 = vpop.f32.mrf.mxu0
    %v8376 = vadd.f32 %v8103, %v8375
    %v8377 = vpop.f32.mrf.mxu0
    %v8378 = vadd.f32 %v8105, %v8377
    %v8379 = vpop.f32.mrf.mxu0
    %v8380 = vadd.f32 %v8107, %v8379
    %v8381 = vpop.f32.mrf.mxu0
    %v8382 = vadd.f32 %v8109, %v8381
    %8383 = vmatprep.mubr.bf16.mxu0 %v5779
    %8384 = vmatmul.mubr.bf16.gmra.mxu0 %v5778
    %v8385 = vpop.f32.mrf.mxu0
    %v8386 = vadd.f32 %v8113, %v8385
    %v8387 = vpop.f32.mrf.mxu0
    %v8388 = vadd.f32 %v8115, %v8387
    %v8389 = vpop.f32.mrf.mxu0
    %v8390 = vadd.f32 %v8117, %v8389
    %v8391 = vpop.f32.mrf.mxu0
    %v8392 = vadd.f32 %v8119, %v8391
    %8393 = vmatprep.mubr.bf16.mxu0 %v5787
    %8394 = vmatmul.mubr.bf16.gmra.mxu0 %v5786
    %v8395 = vpop.f32.mrf.mxu0
    %v8396 = vadd.f32 %v8123, %v8395
    %v8397 = vpop.f32.mrf.mxu0
    %v8398 = vadd.f32 %v8125, %v8397
    %v8399 = vpop.f32.mrf.mxu0
    %v8400 = vadd.f32 %v8127, %v8399
    %v8401 = vpop.f32.mrf.mxu0
    %v8402 = vadd.f32 %v8129, %v8401
    %8403 = vmatprep.mubr.bf16.mxu0 %v5795
    %8404 = vmatmul.mubr.bf16.gmra.mxu0 %v5794
    %v8405 = vpop.f32.mrf.mxu0
    %v8406 = vadd.f32 %v8133, %v8405
    %v8407 = vpop.f32.mrf.mxu0
    %v8408 = vadd.f32 %v8135, %v8407
    %v8409 = vpop.f32.mrf.mxu0
    %v8410 = vadd.f32 %v8137, %v8409
    %v8411 = vpop.f32.mrf.mxu0
    %v8412 = vadd.f32 %v8139, %v8411
    %8413 = vmatprep.mubr.bf16.mxu0 %v5803
    %8414 = vmatmul.mubr.bf16.gmra.mxu0 %v5802
    %v8415 = vpop.f32.mrf.mxu0
    %v8416 = vadd.f32 %v8143, %v8415
    %v8417 = vpop.f32.mrf.mxu0
    %v8418 = vadd.f32 %v8145, %v8417
    %v8419 = vpop.f32.mrf.mxu0
    %v8420 = vadd.f32 %v8147, %v8419
    %v8421 = vpop.f32.mrf.mxu0
    %v8422 = vadd.f32 %v8149, %v8421
    %8423 = vmatprep.mubr.bf16.mxu0 %v5811
    %8424 = vmatmul.mubr.bf16.gmra.mxu0 %v5810
    %v8425 = vpop.f32.mrf.mxu0
    %v8426 = vadd.f32 %v8153, %v8425
    %v8427 = vpop.f32.mrf.mxu0
    %v8428 = vadd.f32 %v8155, %v8427
    %v8429 = vpop.f32.mrf.mxu0
    %v8430 = vadd.f32 %v8157, %v8429
    %v8431 = vpop.f32.mrf.mxu0
    %v8432 = vadd.f32 %v8159, %v8431
    %8433 = vmatprep.mubr.bf16.mxu0 %v5819
    %8434 = vmatmul.mubr.bf16.gmra.mxu0 %v5818
    %v8435 = vpop.f32.mrf.mxu0
    %v8436 = vadd.f32 %v8163, %v8435
    %v8437 = vpop.f32.mrf.mxu0
    %v8438 = vadd.f32 %v8165, %v8437
    %v8439 = vpop.f32.mrf.mxu0
    %v8440 = vadd.f32 %v8167, %v8439
    %v8441 = vpop.f32.mrf.mxu0
    %v8442 = vadd.f32 %v8169, %v8441
    %8443 = vmatprep.mubr.bf16.mxu0 %v5827
    %8444 = vmatmul.mubr.bf16.gmra.mxu0 %v5826
    %v8445 = vpop.f32.mrf.mxu0
    %v8446 = vadd.f32 %v8173, %v8445
    %v8447 = vpop.f32.mrf.mxu0
    %v8448 = vadd.f32 %v8175, %v8447
    %v8449 = vpop.f32.mrf.mxu0
    %v8450 = vadd.f32 %v8177, %v8449
    %v8451 = vpop.f32.mrf.mxu0
    %v8452 = vadd.f32 %v8179, %v8451
    %8453 = vmatprep.mubr.bf16.mxu0 %v5835
    %8454 = vmatmul.mubr.bf16.gmra.mxu0 %v5834
    %v8455 = vpop.f32.mrf.mxu0
    %v8456 = vadd.f32 %v8183, %v8455
    %v8457 = vpop.f32.mrf.mxu0
    %v8458 = vadd.f32 %v8185, %v8457
    %v8459 = vpop.f32.mrf.mxu0
    %v8460 = vadd.f32 %v8187, %v8459
    %v8461 = vpop.f32.mrf.mxu0
    %v8462 = vadd.f32 %v8189, %v8461
    %8463 = vmatprep.mubr.bf16.mxu0 %v5843
    %8464 = vmatmul.mubr.bf16.gmra.mxu0 %v5842
    %v8465 = vpop.f32.mrf.mxu0
    %v8466 = vadd.f32 %v8193, %v8465
    %v8467 = vpop.f32.mrf.mxu0
    %v8468 = vadd.f32 %v8195, %v8467
    %v8469 = vpop.f32.mrf.mxu0
    %v8470 = vadd.f32 %v8197, %v8469
    %v8471 = vpop.f32.mrf.mxu0
    %v8472 = vadd.f32 %v8199, %v8471
    %8473 = vmatprep.mubr.bf16.mxu0 %v5851
    %8474 = vmatmul.mubr.bf16.gmra.mxu0 %v5850
    %v8475 = vpop.f32.mrf.mxu0
    %v8476 = vadd.f32 %v8203, %v8475
    %v8477 = vpop.f32.mrf.mxu0
    %v8478 = vadd.f32 %v8205, %v8477
    %v8479 = vpop.f32.mrf.mxu0
    %v8480 = vadd.f32 %v8207, %v8479
    %v8481 = vpop.f32.mrf.mxu0
    %v8482 = vadd.f32 %v8209, %v8481
    %8483 = vmatprep.mubr.bf16.mxu0 %v5859
    %8484 = vmatmul.mubr.bf16.gmra.mxu0 %v5858
    %v8485 = vpop.f32.mrf.mxu0
    %v8486 = vadd.f32 %v8213, %v8485
    %v8487 = vpop.f32.mrf.mxu0
    %v8488 = vadd.f32 %v8215, %v8487
    %v8489 = vpop.f32.mrf.mxu0
    %v8490 = vadd.f32 %v8217, %v8489
    %v8491 = vpop.f32.mrf.mxu0
    %v8492 = vadd.f32 %v8219, %v8491
    %8493 = vmatprep.mubr.bf16.mxu0 %v5867
    %8494 = vmatmul.mubr.bf16.gmra.mxu0 %v5866
    %v8495 = vpop.f32.mrf.mxu0
    %v8496 = vadd.f32 %v8223, %v8495
    %v8497 = vpop.f32.mrf.mxu0
    %v8498 = vadd.f32 %v8225, %v8497
    %v8499 = vpop.f32.mrf.mxu0
    %v8500 = vadd.f32 %v8227, %v8499
    %v8501 = vpop.f32.mrf.mxu0
    %v8502 = vadd.f32 %v8229, %v8501
    %8503 = vmatprep.mubr.bf16.mxu0 %v5875
    %8504 = vmatmul.mubr.bf16.gmra.mxu0 %v5874
    %v8505 = vpop.f32.mrf.mxu0
    %v8506 = vadd.f32 %v8233, %v8505
    %v8507 = vpop.f32.mrf.mxu0
    %v8508 = vadd.f32 %v8235, %v8507
    %v8509 = vpop.f32.mrf.mxu0
    %v8510 = vadd.f32 %v8237, %v8509
    %v8511 = vpop.f32.mrf.mxu0
    %v8512 = vadd.f32 %v8239, %v8511
    %8513 = vmatprep.mubr.bf16.mxu0 %v5883
    %8514 = vmatmul.mubr.bf16.gmra.mxu0 %v5882
    %v8515 = vpop.f32.mrf.mxu0
    %v8516 = vadd.f32 %v8243, %v8515
    %v8517 = vpop.f32.mrf.mxu0
    %v8518 = vadd.f32 %v8245, %v8517
    %v8519 = vpop.f32.mrf.mxu0
    %v8520 = vadd.f32 %v8247, %v8519
    %v8521 = vpop.f32.mrf.mxu0
    %v8522 = vadd.f32 %v8249, %v8521
    %8523 = vmatprep.mubr.bf16.mxu0 %v5891
    %8524 = vmatmul.mubr.bf16.gmra.mxu0 %v5890
    %v8525 = vpop.f32.mrf.mxu0
    %v8526 = vadd.f32 %v8253, %v8525
    %v8527 = vpop.f32.mrf.mxu0
    %v8528 = vadd.f32 %v8255, %v8527
    %v8529 = vpop.f32.mrf.mxu0
    %v8530 = vadd.f32 %v8257, %v8529
    %v8531 = vpop.f32.mrf.mxu0
    %v8532 = vadd.f32 %v8259, %v8531
    %8533 = vmatprep.mubr.bf16.mxu0 %v5899
    %8534 = vmatmul.mubr.bf16.gmra.mxu0 %v5898
    %v8535 = vpop.f32.mrf.mxu0
    %v8536 = vadd.f32 %v8263, %v8535
    %v8537 = vpop.f32.mrf.mxu0
    %v8538 = vadd.f32 %v8265, %v8537
    %v8539 = vpop.f32.mrf.mxu0
    %v8540 = vadd.f32 %v8267, %v8539
    %v8541 = vpop.f32.mrf.mxu0
    %v8542 = vadd.f32 %v8269, %v8541
    %8543 = vmatprep.mubr.bf16.mxu0 %v5907
    %8544 = vmatmul.mubr.bf16.gmra.mxu0 %v5906
    %v8545 = vpop.f32.mrf.mxu0
    %v8546 = vadd.f32 %v8273, %v8545
    %v8547 = vpop.f32.mrf.mxu0
    %v8548 = vadd.f32 %v8275, %v8547
    %v8549 = vpop.f32.mrf.mxu0
    %v8550 = vadd.f32 %v8277, %v8549
    %v8551 = vpop.f32.mrf.mxu0
    %v8552 = vadd.f32 %v8279, %v8551
    %8553 = vmatprep.mubr.bf16.mxu0 %v5915
    %8554 = vmatmul.mubr.bf16.gmra.mxu0 %v5914
    %v8555 = vpop.f32.mrf.mxu0
    %v8556 = vadd.f32 %v8283, %v8555
    %v8557 = vpop.f32.mrf.mxu0
    %v8558 = vadd.f32 %v8285, %v8557
    %v8559 = vpop.f32.mrf.mxu0
    %v8560 = vadd.f32 %v8287, %v8559
    %v8561 = vpop.f32.mrf.mxu0
    %v8562 = vadd.f32 %v8289, %v8561
    %8563 = vmatprep.mubr.bf16.mxu0 %v5923
    %8564 = vmatmul.mubr.bf16.gmra.mxu0 %v5922
    %v8565 = vpop.f32.mrf.mxu0
    %v8566 = vadd.f32 %v8293, %v8565
    %v8567 = vpop.f32.mrf.mxu0
    %v8568 = vadd.f32 %v8295, %v8567
    %v8569 = vpop.f32.mrf.mxu0
    %v8570 = vadd.f32 %v8297, %v8569
    %v8571 = vpop.f32.mrf.mxu0
    %v8572 = vadd.f32 %v8299, %v8571
    %8573 = vdwg.mxu0
    %8574 = vmatprep.subr.bf16.mxu0 %v7001
    %8575 = vmatpush1.bf16.msra.mxu0 %v7000
    %8576 = vmatprep.subr.bf16.mxu0 %v6997
    %8577 = vmatpush1.bf16.msra.mxu0 %v6996
    %8578 = vmatprep.subr.bf16.mxu0 %v6993
    %8579 = vmatpush1.bf16.msra.mxu0 %v6992
    %8580 = vmatprep.subr.bf16.mxu0 %v6989
    %8581 = vmatpush1.bf16.msra.mxu0 %v6988
    %8582 = vmatprep.subr.bf16.mxu0 %v6985
    %8583 = vmatpush1.bf16.msra.mxu0 %v6984
    %8584 = vmatprep.subr.bf16.mxu0 %v6981
    %8585 = vmatpush1.bf16.msra.mxu0 %v6980
    %8586 = vmatprep.subr.bf16.mxu0 %v6977
    %8587 = vmatpush1.bf16.msra.mxu0 %v6976
    %8588 = vmatprep.subr.bf16.mxu0 %v6973
    %8589 = vmatpush1.bf16.msra.mxu0 %v6972
    %8590 = vmatprep.subr.bf16.mxu0 %v7033
    %8591 = vmatpush2.bf16.msra.mxu0 %v7032
    %8592 = vmatprep.subr.bf16.mxu0 %v7029
    %8593 = vmatpush2.bf16.msra.mxu0 %v7028
    %8594 = vmatprep.subr.bf16.mxu0 %v7025
    %8595 = vmatpush2.bf16.msra.mxu0 %v7024
    %8596 = vmatprep.subr.bf16.mxu0 %v7021
    %8597 = vmatpush2.bf16.msra.mxu0 %v7020
    %8598 = vmatprep.subr.bf16.mxu0 %v7017
    %8599 = vmatpush2.bf16.msra.mxu0 %v7016
    %8600 = vmatprep.subr.bf16.mxu0 %v7013
    %8601 = vmatpush2.bf16.msra.mxu0 %v7012
    %8602 = vmatprep.subr.bf16.mxu0 %v7009
    %8603 = vmatpush2.bf16.msra.mxu0 %v7008
    %8604 = vmatprep.subr.bf16.mxu0 %v7005
    %8605 = vmatpush2.bf16.msra.mxu0 %v7004
    %8606 = vmatprep.mubr.bf16.mxu0 %v5733
    %8607 = vmatmul.mubr.bf16.gmra.mxu0 %v5732
    %v8608 = vpop.f32.mrf.mxu0
    %v8609 = vadd.f32 %v6193, %v8608
    %v8610 = vpop.f32.mrf.mxu0
    %v8611 = vadd.f32 %v6197, %v8610
    %v8612 = vpop.f32.mrf.mxu0
    %v8613 = vadd.f32 %v6193, %v8612
    %v8614 = vpop.f32.mrf.mxu0
    %v8615 = vadd.f32 %v6197, %v8614
    %8616 = vmatprep.mubr.bf16.mxu0 %v5741
    %8617 = vmatmul.mubr.bf16.gmra.mxu0 %v5740
    %v8618 = vpop.f32.mrf.mxu0
    %v8619 = vadd.f32 %v6193, %v8618
    %v8620 = vpop.f32.mrf.mxu0
    %v8621 = vadd.f32 %v6197, %v8620
    %v8622 = vpop.f32.mrf.mxu0
    %v8623 = vadd.f32 %v6193, %v8622
    %v8624 = vpop.f32.mrf.mxu0
    %v8625 = vadd.f32 %v6197, %v8624
    %8626 = vmatprep.mubr.bf16.mxu0 %v5749
    %8627 = vmatmul.mubr.bf16.gmra.mxu0 %v5748
    %v8628 = vpop.f32.mrf.mxu0
    %v8629 = vadd.f32 %v6193, %v8628
    %v8630 = vpop.f32.mrf.mxu0
    %v8631 = vadd.f32 %v6197, %v8630
    %v8632 = vpop.f32.mrf.mxu0
    %v8633 = vadd.f32 %v6193, %v8632
    %v8634 = vpop.f32.mrf.mxu0
    %v8635 = vadd.f32 %v6197, %v8634
    %8636 = vmatprep.mubr.bf16.mxu0 %v5757
    %8637 = vmatmul.mubr.bf16.gmra.mxu0 %v5756
    %v8638 = vpop.f32.mrf.mxu0
    %v8639 = vadd.f32 %v6193, %v8638
    %v8640 = vpop.f32.mrf.mxu0
    %v8641 = vadd.f32 %v6197, %v8640
    %v8642 = vpop.f32.mrf.mxu0
    %v8643 = vadd.f32 %v6193, %v8642
    %v8644 = vpop.f32.mrf.mxu0
    %v8645 = vadd.f32 %v6197, %v8644
    %8646 = vmatprep.mubr.bf16.mxu0 %v5765
    %8647 = vmatmul.mubr.bf16.gmra.mxu0 %v5764
    %v8648 = vpop.f32.mrf.mxu0
    %v8649 = vadd.f32 %v6193, %v8648
    %v8650 = vpop.f32.mrf.mxu0
    %v8651 = vadd.f32 %v6197, %v8650
    %v8652 = vpop.f32.mrf.mxu0
    %v8653 = vadd.f32 %v6193, %v8652
    %v8654 = vpop.f32.mrf.mxu0
    %v8655 = vadd.f32 %v6197, %v8654
    %8656 = vmatprep.mubr.bf16.mxu0 %v5773
    %8657 = vmatmul.mubr.bf16.gmra.mxu0 %v5772
    %v8658 = vpop.f32.mrf.mxu0
    %v8659 = vadd.f32 %v6193, %v8658
    %v8660 = vpop.f32.mrf.mxu0
    %v8661 = vadd.f32 %v6197, %v8660
    %v8662 = vpop.f32.mrf.mxu0
    %v8663 = vadd.f32 %v6193, %v8662
    %v8664 = vpop.f32.mrf.mxu0
    %v8665 = vadd.f32 %v6197, %v8664
    %8666 = vmatprep.mubr.bf16.mxu0 %v5781
    %8667 = vmatmul.mubr.bf16.gmra.mxu0 %v5780
    %v8668 = vpop.f32.mrf.mxu0
    %v8669 = vadd.f32 %v6193, %v8668
    %v8670 = vpop.f32.mrf.mxu0
    %v8671 = vadd.f32 %v6197, %v8670
    %v8672 = vpop.f32.mrf.mxu0
    %v8673 = vadd.f32 %v6193, %v8672
    %v8674 = vpop.f32.mrf.mxu0
    %v8675 = vadd.f32 %v6197, %v8674
    %8676 = vmatprep.mubr.bf16.mxu0 %v5789
    %8677 = vmatmul.mubr.bf16.gmra.mxu0 %v5788
    %v8678 = vpop.f32.mrf.mxu0
    %v8679 = vadd.f32 %v6193, %v8678
    %v8680 = vpop.f32.mrf.mxu0
    %v8681 = vadd.f32 %v6197, %v8680
    %v8682 = vpop.f32.mrf.mxu0
    %v8683 = vadd.f32 %v6193, %v8682
    %v8684 = vpop.f32.mrf.mxu0
    %v8685 = vadd.f32 %v6197, %v8684
    %8686 = vmatprep.mubr.bf16.mxu0 %v5797
    %8687 = vmatmul.mubr.bf16.gmra.mxu0 %v5796
    %v8688 = vpop.f32.mrf.mxu0
    %v8689 = vadd.f32 %v6193, %v8688
    %v8690 = vpop.f32.mrf.mxu0
    %v8691 = vadd.f32 %v6197, %v8690
    %v8692 = vpop.f32.mrf.mxu0
    %v8693 = vadd.f32 %v6193, %v8692
    %v8694 = vpop.f32.mrf.mxu0
    %v8695 = vadd.f32 %v6197, %v8694
    %8696 = vmatprep.mubr.bf16.mxu0 %v5805
    %8697 = vmatmul.mubr.bf16.gmra.mxu0 %v5804
    %v8698 = vpop.f32.mrf.mxu0
    %v8699 = vadd.f32 %v6193, %v8698
    %v8700 = vpop.f32.mrf.mxu0
    %v8701 = vadd.f32 %v6197, %v8700
    %v8702 = vpop.f32.mrf.mxu0
    %v8703 = vadd.f32 %v6193, %v8702
    %v8704 = vpop.f32.mrf.mxu0
    %v8705 = vadd.f32 %v6197, %v8704
    %8706 = vmatprep.mubr.bf16.mxu0 %v5813
    %8707 = vmatmul.mubr.bf16.gmra.mxu0 %v5812
    %v8708 = vpop.f32.mrf.mxu0
    %v8709 = vadd.f32 %v6193, %v8708
    %v8710 = vpop.f32.mrf.mxu0
    %v8711 = vadd.f32 %v6197, %v8710
    %v8712 = vpop.f32.mrf.mxu0
    %v8713 = vadd.f32 %v6193, %v8712
    %v8714 = vpop.f32.mrf.mxu0
    %v8715 = vadd.f32 %v6197, %v8714
    %8716 = vmatprep.mubr.bf16.mxu0 %v5821
    %8717 = vmatmul.mubr.bf16.gmra.mxu0 %v5820
    %v8718 = vpop.f32.mrf.mxu0
    %v8719 = vadd.f32 %v6193, %v8718
    %v8720 = vpop.f32.mrf.mxu0
    %v8721 = vadd.f32 %v6197, %v8720
    %v8722 = vpop.f32.mrf.mxu0
    %v8723 = vadd.f32 %v6193, %v8722
    %v8724 = vpop.f32.mrf.mxu0
    %v8725 = vadd.f32 %v6197, %v8724
    %8726 = vmatprep.mubr.bf16.mxu0 %v5829
    %8727 = vmatmul.mubr.bf16.gmra.mxu0 %v5828
    %v8728 = vpop.f32.mrf.mxu0
    %v8729 = vadd.f32 %v6193, %v8728
    %v8730 = vpop.f32.mrf.mxu0
    %v8731 = vadd.f32 %v6197, %v8730
    %v8732 = vpop.f32.mrf.mxu0
    %v8733 = vadd.f32 %v6193, %v8732
    %v8734 = vpop.f32.mrf.mxu0
    %v8735 = vadd.f32 %v6197, %v8734
    %8736 = vmatprep.mubr.bf16.mxu0 %v5837
    %8737 = vmatmul.mubr.bf16.gmra.mxu0 %v5836
    %v8738 = vpop.f32.mrf.mxu0
    %v8739 = vadd.f32 %v6193, %v8738
    %v8740 = vpop.f32.mrf.mxu0
    %v8741 = vadd.f32 %v6197, %v8740
    %v8742 = vpop.f32.mrf.mxu0
    %v8743 = vadd.f32 %v6193, %v8742
    %v8744 = vpop.f32.mrf.mxu0
    %v8745 = vadd.f32 %v6197, %v8744
    %8746 = vmatprep.mubr.bf16.mxu0 %v5845
    %8747 = vmatmul.mubr.bf16.gmra.mxu0 %v5844
    %v8748 = vpop.f32.mrf.mxu0
    %v8749 = vadd.f32 %v6193, %v8748
    %v8750 = vpop.f32.mrf.mxu0
    %v8751 = vadd.f32 %v6197, %v8750
    %v8752 = vpop.f32.mrf.mxu0
    %v8753 = vadd.f32 %v6193, %v8752
    %v8754 = vpop.f32.mrf.mxu0
    %v8755 = vadd.f32 %v6197, %v8754
    %8756 = vmatprep.mubr.bf16.mxu0 %v5853
    %8757 = vmatmul.mubr.bf16.gmra.mxu0 %v5852
    %v8758 = vpop.f32.mrf.mxu0
    %v8759 = vadd.f32 %v6193, %v8758
    %v8760 = vpop.f32.mrf.mxu0
    %v8761 = vadd.f32 %v6197, %v8760
    %v8762 = vpop.f32.mrf.mxu0
    %v8763 = vadd.f32 %v6193, %v8762
    %v8764 = vpop.f32.mrf.mxu0
    %v8765 = vadd.f32 %v6197, %v8764
    %8766 = vmatprep.mubr.bf16.mxu0 %v5861
    %8767 = vmatmul.mubr.bf16.gmra.mxu0 %v5860
    %v8768 = vpop.f32.mrf.mxu0
    %v8769 = vadd.f32 %v6193, %v8768
    %v8770 = vpop.f32.mrf.mxu0
    %v8771 = vadd.f32 %v6197, %v8770
    %v8772 = vpop.f32.mrf.mxu0
    %v8773 = vadd.f32 %v6193, %v8772
    %v8774 = vpop.f32.mrf.mxu0
    %v8775 = vadd.f32 %v6197, %v8774
    %8776 = vmatprep.mubr.bf16.mxu0 %v5869
    %8777 = vmatmul.mubr.bf16.gmra.mxu0 %v5868
    %v8778 = vpop.f32.mrf.mxu0
    %v8779 = vadd.f32 %v6193, %v8778
    %v8780 = vpop.f32.mrf.mxu0
    %v8781 = vadd.f32 %v6197, %v8780
    %v8782 = vpop.f32.mrf.mxu0
    %v8783 = vadd.f32 %v6193, %v8782
    %v8784 = vpop.f32.mrf.mxu0
    %v8785 = vadd.f32 %v6197, %v8784
    %8786 = vmatprep.mubr.bf16.mxu0 %v5877
    %8787 = vmatmul.mubr.bf16.gmra.mxu0 %v5876
    %v8788 = vpop.f32.mrf.mxu0
    %v8789 = vadd.f32 %v6193, %v8788
    %v8790 = vpop.f32.mrf.mxu0
    %v8791 = vadd.f32 %v6197, %v8790
    %v8792 = vpop.f32.mrf.mxu0
    %v8793 = vadd.f32 %v6193, %v8792
    %v8794 = vpop.f32.mrf.mxu0
    %v8795 = vadd.f32 %v6197, %v8794
    %8796 = vmatprep.mubr.bf16.mxu0 %v5885
    %8797 = vmatmul.mubr.bf16.gmra.mxu0 %v5884
    %v8798 = vpop.f32.mrf.mxu0
    %v8799 = vadd.f32 %v6193, %v8798
    %v8800 = vpop.f32.mrf.mxu0
    %v8801 = vadd.f32 %v6197, %v8800
    %v8802 = vpop.f32.mrf.mxu0
    %v8803 = vadd.f32 %v6193, %v8802
    %v8804 = vpop.f32.mrf.mxu0
    %v8805 = vadd.f32 %v6197, %v8804
    %8806 = vmatprep.mubr.bf16.mxu0 %v5893
    %8807 = vmatmul.mubr.bf16.gmra.mxu0 %v5892
    %v8808 = vpop.f32.mrf.mxu0
    %v8809 = vadd.f32 %v6193, %v8808
    %v8810 = vpop.f32.mrf.mxu0
    %v8811 = vadd.f32 %v6197, %v8810
    %v8812 = vpop.f32.mrf.mxu0
    %v8813 = vadd.f32 %v6193, %v8812
    %v8814 = vpop.f32.mrf.mxu0
    %v8815 = vadd.f32 %v6197, %v8814
    %8816 = vmatprep.mubr.bf16.mxu0 %v5901
    %8817 = vmatmul.mubr.bf16.gmra.mxu0 %v5900
    %v8818 = vpop.f32.mrf.mxu0
    %v8819 = vadd.f32 %v6193, %v8818
    %v8820 = vpop.f32.mrf.mxu0
    %v8821 = vadd.f32 %v6197, %v8820
    %v8822 = vpop.f32.mrf.mxu0
    %v8823 = vadd.f32 %v6193, %v8822
    %v8824 = vpop.f32.mrf.mxu0
    %v8825 = vadd.f32 %v6197, %v8824
    %8826 = vmatprep.mubr.bf16.mxu0 %v5909
    %8827 = vmatmul.mubr.bf16.gmra.mxu0 %v5908
    %v8828 = vpop.f32.mrf.mxu0
    %v8829 = vadd.f32 %v6193, %v8828
    %v8830 = vpop.f32.mrf.mxu0
    %v8831 = vadd.f32 %v6197, %v8830
    %v8832 = vpop.f32.mrf.mxu0
    %v8833 = vadd.f32 %v6193, %v8832
    %v8834 = vpop.f32.mrf.mxu0
    %v8835 = vadd.f32 %v6197, %v8834
    %8836 = vmatprep.mubr.bf16.mxu0 %v5917
    %8837 = vmatmul.mubr.bf16.gmra.mxu0 %v5916
    %v8838 = vpop.f32.mrf.mxu0
    %v8839 = vadd.f32 %v6193, %v8838
    %v8840 = vpop.f32.mrf.mxu0
    %v8841 = vadd.f32 %v6197, %v8840
    %v8842 = vpop.f32.mrf.mxu0
    %v8843 = vadd.f32 %v6193, %v8842
    %v8844 = vpop.f32.mrf.mxu0
    %v8845 = vadd.f32 %v6197, %v8844
    %8846 = vdwg.mxu0
    %8847 = vmatprep.subr.bf16.mxu0 %v7065
    %8848 = vmatpush1.bf16.msra.mxu0 %v7064
    %8849 = vmatprep.subr.bf16.mxu0 %v7061
    %8850 = vmatpush1.bf16.msra.mxu0 %v7060
    %8851 = vmatprep.subr.bf16.mxu0 %v7057
    %8852 = vmatpush1.bf16.msra.mxu0 %v7056
    %8853 = vmatprep.subr.bf16.mxu0 %v7053
    %8854 = vmatpush1.bf16.msra.mxu0 %v7052
    %8855 = vmatprep.subr.bf16.mxu0 %v7049
    %8856 = vmatpush1.bf16.msra.mxu0 %v7048
    %8857 = vmatprep.subr.bf16.mxu0 %v7045
    %8858 = vmatpush1.bf16.msra.mxu0 %v7044
    %8859 = vmatprep.subr.bf16.mxu0 %v7041
    %8860 = vmatpush1.bf16.msra.mxu0 %v7040
    %8861 = vmatprep.subr.bf16.mxu0 %v7037
    %8862 = vmatpush1.bf16.msra.mxu0 %v7036
    %8863 = vmatprep.subr.bf16.mxu0 %v7097
    %8864 = vmatpush2.bf16.msra.mxu0 %v7096
    %8865 = vmatprep.subr.bf16.mxu0 %v7093
    %8866 = vmatpush2.bf16.msra.mxu0 %v7092
    %8867 = vmatprep.subr.bf16.mxu0 %v7089
    %8868 = vmatpush2.bf16.msra.mxu0 %v7088
    %8869 = vmatprep.subr.bf16.mxu0 %v7085
    %8870 = vmatpush2.bf16.msra.mxu0 %v7084
    %8871 = vmatprep.subr.bf16.mxu0 %v7081
    %8872 = vmatpush2.bf16.msra.mxu0 %v7080
    %8873 = vmatprep.subr.bf16.mxu0 %v7077
    %8874 = vmatpush2.bf16.msra.mxu0 %v7076
    %8875 = vmatprep.subr.bf16.mxu0 %v7073
    %8876 = vmatpush2.bf16.msra.mxu0 %v7072
    %8877 = vmatprep.subr.bf16.mxu0 %v7069
    %8878 = vmatpush2.bf16.msra.mxu0 %v7068
    %8879 = vmatprep.mubr.bf16.mxu0 %v5735
    %8880 = vmatmul.mubr.bf16.gmra.mxu0 %v5734
    %v8881 = vpop.f32.mrf.mxu0
    %v8882 = vadd.f32 %v8609, %v8881
    %v8883 = vpop.f32.mrf.mxu0
    %v8884 = vadd.f32 %v8611, %v8883
    %v8885 = vpop.f32.mrf.mxu0
    %v8886 = vadd.f32 %v8613, %v8885
    %v8887 = vpop.f32.mrf.mxu0
    %v8888 = vadd.f32 %v8615, %v8887
    %8889 = vmatprep.mubr.bf16.mxu0 %v5743
    %8890 = vmatmul.mubr.bf16.gmra.mxu0 %v5742
    %v8891 = vpop.f32.mrf.mxu0
    %v8892 = vadd.f32 %v8619, %v8891
    %v8893 = vpop.f32.mrf.mxu0
    %v8894 = vadd.f32 %v8621, %v8893
    %v8895 = vpop.f32.mrf.mxu0
    %v8896 = vadd.f32 %v8623, %v8895
    %v8897 = vpop.f32.mrf.mxu0
    %v8898 = vadd.f32 %v8625, %v8897
    %8899 = vmatprep.mubr.bf16.mxu0 %v5751
    %8900 = vmatmul.mubr.bf16.gmra.mxu0 %v5750
    %v8901 = vpop.f32.mrf.mxu0
    %v8902 = vadd.f32 %v8629, %v8901
    %v8903 = vpop.f32.mrf.mxu0
    %v8904 = vadd.f32 %v8631, %v8903
    %v8905 = vpop.f32.mrf.mxu0
    %v8906 = vadd.f32 %v8633, %v8905
    %v8907 = vpop.f32.mrf.mxu0
    %v8908 = vadd.f32 %v8635, %v8907
    %8909 = vmatprep.mubr.bf16.mxu0 %v5759
    %8910 = vmatmul.mubr.bf16.gmra.mxu0 %v5758
    %v8911 = vpop.f32.mrf.mxu0
    %v8912 = vadd.f32 %v8639, %v8911
    %v8913 = vpop.f32.mrf.mxu0
    %v8914 = vadd.f32 %v8641, %v8913
    %v8915 = vpop.f32.mrf.mxu0
    %v8916 = vadd.f32 %v8643, %v8915
    %v8917 = vpop.f32.mrf.mxu0
    %v8918 = vadd.f32 %v8645, %v8917
    %8919 = vmatprep.mubr.bf16.mxu0 %v5767
    %8920 = vmatmul.mubr.bf16.gmra.mxu0 %v5766
    %v8921 = vpop.f32.mrf.mxu0
    %v8922 = vadd.f32 %v8649, %v8921
    %v8923 = vpop.f32.mrf.mxu0
    %v8924 = vadd.f32 %v8651, %v8923
    %v8925 = vpop.f32.mrf.mxu0
    %v8926 = vadd.f32 %v8653, %v8925
    %v8927 = vpop.f32.mrf.mxu0
    %v8928 = vadd.f32 %v8655, %v8927
    %8929 = vmatprep.mubr.bf16.mxu0 %v5775
    %8930 = vmatmul.mubr.bf16.gmra.mxu0 %v5774
    %v8931 = vpop.f32.mrf.mxu0
    %v8932 = vadd.f32 %v8659, %v8931
    %v8933 = vpop.f32.mrf.mxu0
    %v8934 = vadd.f32 %v8661, %v8933
    %v8935 = vpop.f32.mrf.mxu0
    %v8936 = vadd.f32 %v8663, %v8935
    %v8937 = vpop.f32.mrf.mxu0
    %v8938 = vadd.f32 %v8665, %v8937
    %8939 = vmatprep.mubr.bf16.mxu0 %v5783
    %8940 = vmatmul.mubr.bf16.gmra.mxu0 %v5782
    %v8941 = vpop.f32.mrf.mxu0
    %v8942 = vadd.f32 %v8669, %v8941
    %v8943 = vpop.f32.mrf.mxu0
    %v8944 = vadd.f32 %v8671, %v8943
    %v8945 = vpop.f32.mrf.mxu0
    %v8946 = vadd.f32 %v8673, %v8945
    %v8947 = vpop.f32.mrf.mxu0
    %v8948 = vadd.f32 %v8675, %v8947
    %8949 = vmatprep.mubr.bf16.mxu0 %v5791
    %8950 = vmatmul.mubr.bf16.gmra.mxu0 %v5790
    %v8951 = vpop.f32.mrf.mxu0
    %v8952 = vadd.f32 %v8679, %v8951
    %v8953 = vpop.f32.mrf.mxu0
    %v8954 = vadd.f32 %v8681, %v8953
    %v8955 = vpop.f32.mrf.mxu0
    %v8956 = vadd.f32 %v8683, %v8955
    %v8957 = vpop.f32.mrf.mxu0
    %v8958 = vadd.f32 %v8685, %v8957
    %8959 = vmatprep.mubr.bf16.mxu0 %v5799
    %8960 = vmatmul.mubr.bf16.gmra.mxu0 %v5798
    %v8961 = vpop.f32.mrf.mxu0
    %v8962 = vadd.f32 %v8689, %v8961
    %v8963 = vpop.f32.mrf.mxu0
    %v8964 = vadd.f32 %v8691, %v8963
    %v8965 = vpop.f32.mrf.mxu0
    %v8966 = vadd.f32 %v8693, %v8965
    %v8967 = vpop.f32.mrf.mxu0
    %v8968 = vadd.f32 %v8695, %v8967
    %8969 = vmatprep.mubr.bf16.mxu0 %v5807
    %8970 = vmatmul.mubr.bf16.gmra.mxu0 %v5806
    %v8971 = vpop.f32.mrf.mxu0
    %v8972 = vadd.f32 %v8699, %v8971
    %v8973 = vpop.f32.mrf.mxu0
    %v8974 = vadd.f32 %v8701, %v8973
    %v8975 = vpop.f32.mrf.mxu0
    %v8976 = vadd.f32 %v8703, %v8975
    %v8977 = vpop.f32.mrf.mxu0
    %v8978 = vadd.f32 %v8705, %v8977
    %8979 = vmatprep.mubr.bf16.mxu0 %v5815
    %8980 = vmatmul.mubr.bf16.gmra.mxu0 %v5814
    %v8981 = vpop.f32.mrf.mxu0
    %v8982 = vadd.f32 %v8709, %v8981
    %v8983 = vpop.f32.mrf.mxu0
    %v8984 = vadd.f32 %v8711, %v8983
    %v8985 = vpop.f32.mrf.mxu0
    %v8986 = vadd.f32 %v8713, %v8985
    %v8987 = vpop.f32.mrf.mxu0
    %v8988 = vadd.f32 %v8715, %v8987
    %8989 = vmatprep.mubr.bf16.mxu0 %v5823
    %8990 = vmatmul.mubr.bf16.gmra.mxu0 %v5822
    %v8991 = vpop.f32.mrf.mxu0
    %v8992 = vadd.f32 %v8719, %v8991
    %v8993 = vpop.f32.mrf.mxu0
    %v8994 = vadd.f32 %v8721, %v8993
    %v8995 = vpop.f32.mrf.mxu0
    %v8996 = vadd.f32 %v8723, %v8995
    %v8997 = vpop.f32.mrf.mxu0
    %v8998 = vadd.f32 %v8725, %v8997
    %8999 = vmatprep.mubr.bf16.mxu0 %v5831
    %9000 = vmatmul.mubr.bf16.gmra.mxu0 %v5830
    %v9001 = vpop.f32.mrf.mxu0
    %v9002 = vadd.f32 %v8729, %v9001
    %v9003 = vpop.f32.mrf.mxu0
    %v9004 = vadd.f32 %v8731, %v9003
    %v9005 = vpop.f32.mrf.mxu0
    %v9006 = vadd.f32 %v8733, %v9005
    %v9007 = vpop.f32.mrf.mxu0
    %v9008 = vadd.f32 %v8735, %v9007
    %9009 = vmatprep.mubr.bf16.mxu0 %v5839
    %9010 = vmatmul.mubr.bf16.gmra.mxu0 %v5838
    %v9011 = vpop.f32.mrf.mxu0
    %v9012 = vadd.f32 %v8739, %v9011
    %v9013 = vpop.f32.mrf.mxu0
    %v9014 = vadd.f32 %v8741, %v9013
    %v9015 = vpop.f32.mrf.mxu0
    %v9016 = vadd.f32 %v8743, %v9015
    %v9017 = vpop.f32.mrf.mxu0
    %v9018 = vadd.f32 %v8745, %v9017
    %9019 = vmatprep.mubr.bf16.mxu0 %v5847
    %9020 = vmatmul.mubr.bf16.gmra.mxu0 %v5846
    %v9021 = vpop.f32.mrf.mxu0
    %v9022 = vadd.f32 %v8749, %v9021
    %v9023 = vpop.f32.mrf.mxu0
    %v9024 = vadd.f32 %v8751, %v9023
    %v9025 = vpop.f32.mrf.mxu0
    %v9026 = vadd.f32 %v8753, %v9025
    %v9027 = vpop.f32.mrf.mxu0
    %v9028 = vadd.f32 %v8755, %v9027
    %9029 = vmatprep.mubr.bf16.mxu0 %v5855
    %9030 = vmatmul.mubr.bf16.gmra.mxu0 %v5854
    %v9031 = vpop.f32.mrf.mxu0
    %v9032 = vadd.f32 %v8759, %v9031
    %v9033 = vpop.f32.mrf.mxu0
    %v9034 = vadd.f32 %v8761, %v9033
    %v9035 = vpop.f32.mrf.mxu0
    %v9036 = vadd.f32 %v8763, %v9035
    %v9037 = vpop.f32.mrf.mxu0
    %v9038 = vadd.f32 %v8765, %v9037
    %9039 = vmatprep.mubr.bf16.mxu0 %v5863
    %9040 = vmatmul.mubr.bf16.gmra.mxu0 %v5862
    %v9041 = vpop.f32.mrf.mxu0
    %v9042 = vadd.f32 %v8769, %v9041
    %v9043 = vpop.f32.mrf.mxu0
    %v9044 = vadd.f32 %v8771, %v9043
    %v9045 = vpop.f32.mrf.mxu0
    %v9046 = vadd.f32 %v8773, %v9045
    %v9047 = vpop.f32.mrf.mxu0
    %v9048 = vadd.f32 %v8775, %v9047
    %9049 = vmatprep.mubr.bf16.mxu0 %v5871
    %9050 = vmatmul.mubr.bf16.gmra.mxu0 %v5870
    %v9051 = vpop.f32.mrf.mxu0
    %v9052 = vadd.f32 %v8779, %v9051
    %v9053 = vpop.f32.mrf.mxu0
    %v9054 = vadd.f32 %v8781, %v9053
    %v9055 = vpop.f32.mrf.mxu0
    %v9056 = vadd.f32 %v8783, %v9055
    %v9057 = vpop.f32.mrf.mxu0
    %v9058 = vadd.f32 %v8785, %v9057
    %9059 = vmatprep.mubr.bf16.mxu0 %v5879
    %9060 = vmatmul.mubr.bf16.gmra.mxu0 %v5878
    %v9061 = vpop.f32.mrf.mxu0
    %v9062 = vadd.f32 %v8789, %v9061
    %v9063 = vpop.f32.mrf.mxu0
    %v9064 = vadd.f32 %v8791, %v9063
    %v9065 = vpop.f32.mrf.mxu0
    %v9066 = vadd.f32 %v8793, %v9065
    %v9067 = vpop.f32.mrf.mxu0
    %v9068 = vadd.f32 %v8795, %v9067
    %9069 = vmatprep.mubr.bf16.mxu0 %v5887
    %9070 = vmatmul.mubr.bf16.gmra.mxu0 %v5886
    %v9071 = vpop.f32.mrf.mxu0
    %v9072 = vadd.f32 %v8799, %v9071
    %v9073 = vpop.f32.mrf.mxu0
    %v9074 = vadd.f32 %v8801, %v9073
    %v9075 = vpop.f32.mrf.mxu0
    %v9076 = vadd.f32 %v8803, %v9075
    %v9077 = vpop.f32.mrf.mxu0
    %v9078 = vadd.f32 %v8805, %v9077
    %9079 = vmatprep.mubr.bf16.mxu0 %v5895
    %9080 = vmatmul.mubr.bf16.gmra.mxu0 %v5894
    %v9081 = vpop.f32.mrf.mxu0
    %v9082 = vadd.f32 %v8809, %v9081
    %v9083 = vpop.f32.mrf.mxu0
    %v9084 = vadd.f32 %v8811, %v9083
    %v9085 = vpop.f32.mrf.mxu0
    %v9086 = vadd.f32 %v8813, %v9085
    %v9087 = vpop.f32.mrf.mxu0
    %v9088 = vadd.f32 %v8815, %v9087
    %9089 = vmatprep.mubr.bf16.mxu0 %v5903
    %9090 = vmatmul.mubr.bf16.gmra.mxu0 %v5902
    %v9091 = vpop.f32.mrf.mxu0
    %v9092 = vadd.f32 %v8819, %v9091
    %v9093 = vpop.f32.mrf.mxu0
    %v9094 = vadd.f32 %v8821, %v9093
    %v9095 = vpop.f32.mrf.mxu0
    %v9096 = vadd.f32 %v8823, %v9095
    %v9097 = vpop.f32.mrf.mxu0
    %v9098 = vadd.f32 %v8825, %v9097
    %9099 = vmatprep.mubr.bf16.mxu0 %v5911
    %9100 = vmatmul.mubr.bf16.gmra.mxu0 %v5910
    %v9101 = vpop.f32.mrf.mxu0
    %v9102 = vadd.f32 %v8829, %v9101
    %v9103 = vpop.f32.mrf.mxu0
    %v9104 = vadd.f32 %v8831, %v9103
    %v9105 = vpop.f32.mrf.mxu0
    %v9106 = vadd.f32 %v8833, %v9105
    %v9107 = vpop.f32.mrf.mxu0
    %v9108 = vadd.f32 %v8835, %v9107
    %9109 = vmatprep.mubr.bf16.mxu0 %v5919
    %9110 = vmatmul.mubr.bf16.gmra.mxu0 %v5918
    %v9111 = vpop.f32.mrf.mxu0
    %v9112 = vadd.f32 %v8839, %v9111
    %v9113 = vpop.f32.mrf.mxu0
    %v9114 = vadd.f32 %v8841, %v9113
    %v9115 = vpop.f32.mrf.mxu0
    %v9116 = vadd.f32 %v8843, %v9115
    %v9117 = vpop.f32.mrf.mxu0
    %v9118 = vadd.f32 %v8845, %v9117
    %9119 = vdwg.mxu0
    %9120 = vmatprep.subr.bf16.mxu0 %v7129
    %9121 = vmatpush1.bf16.msra.mxu0 %v7128
    %9122 = vmatprep.subr.bf16.mxu0 %v7125
    %9123 = vmatpush1.bf16.msra.mxu0 %v7124
    %9124 = vmatprep.subr.bf16.mxu0 %v7121
    %9125 = vmatpush1.bf16.msra.mxu0 %v7120
    %9126 = vmatprep.subr.bf16.mxu0 %v7117
    %9127 = vmatpush1.bf16.msra.mxu0 %v7116
    %9128 = vmatprep.subr.bf16.mxu0 %v7113
    %9129 = vmatpush1.bf16.msra.mxu0 %v7112
    %9130 = vmatprep.subr.bf16.mxu0 %v7109
    %9131 = vmatpush1.bf16.msra.mxu0 %v7108
    %9132 = vmatprep.subr.bf16.mxu0 %v7105
    %9133 = vmatpush1.bf16.msra.mxu0 %v7104
    %9134 = vmatprep.subr.bf16.mxu0 %v7101
    %9135 = vmatpush1.bf16.msra.mxu0 %v7100
    %9136 = vmatprep.subr.bf16.mxu0 %v7161
    %9137 = vmatpush2.bf16.msra.mxu0 %v7160
    %9138 = vmatprep.subr.bf16.mxu0 %v7157
    %9139 = vmatpush2.bf16.msra.mxu0 %v7156
    %9140 = vmatprep.subr.bf16.mxu0 %v7153
    %9141 = vmatpush2.bf16.msra.mxu0 %v7152
    %9142 = vmatprep.subr.bf16.mxu0 %v7149
    %9143 = vmatpush2.bf16.msra.mxu0 %v7148
    %9144 = vmatprep.subr.bf16.mxu0 %v7145
    %9145 = vmatpush2.bf16.msra.mxu0 %v7144
    %9146 = vmatprep.subr.bf16.mxu0 %v7141
    %9147 = vmatpush2.bf16.msra.mxu0 %v7140
    %9148 = vmatprep.subr.bf16.mxu0 %v7137
    %9149 = vmatpush2.bf16.msra.mxu0 %v7136
    %9150 = vmatprep.subr.bf16.mxu0 %v7133
    %9151 = vmatpush2.bf16.msra.mxu0 %v7132
    %9152 = vmatprep.mubr.bf16.mxu0 %v5737
    %9153 = vmatmul.mubr.bf16.gmra.mxu0 %v5736
    %v9154 = vpop.f32.mrf.mxu0
    %v9155 = vadd.f32 %v8882, %v9154
    %v9156 = vpop.f32.mrf.mxu0
    %v9157 = vadd.f32 %v8884, %v9156
    %v9158 = vpop.f32.mrf.mxu0
    %v9159 = vadd.f32 %v8886, %v9158
    %v9160 = vpop.f32.mrf.mxu0
    %v9161 = vadd.f32 %v8888, %v9160
    %9162 = vmatprep.mubr.bf16.mxu0 %v5745
    %9163 = vmatmul.mubr.bf16.gmra.mxu0 %v5744
    %v9164 = vpop.f32.mrf.mxu0
    %v9165 = vadd.f32 %v8892, %v9164
    %v9166 = vpop.f32.mrf.mxu0
    %v9167 = vadd.f32 %v8894, %v9166
    %v9168 = vpop.f32.mrf.mxu0
    %v9169 = vadd.f32 %v8896, %v9168
    %v9170 = vpop.f32.mrf.mxu0
    %v9171 = vadd.f32 %v8898, %v9170
    %9172 = vmatprep.mubr.bf16.mxu0 %v5753
    %9173 = vmatmul.mubr.bf16.gmra.mxu0 %v5752
    %v9174 = vpop.f32.mrf.mxu0
    %v9175 = vadd.f32 %v8902, %v9174
    %v9176 = vpop.f32.mrf.mxu0
    %v9177 = vadd.f32 %v8904, %v9176
    %v9178 = vpop.f32.mrf.mxu0
    %v9179 = vadd.f32 %v8906, %v9178
    %v9180 = vpop.f32.mrf.mxu0
    %v9181 = vadd.f32 %v8908, %v9180
    %9182 = vmatprep.mubr.bf16.mxu0 %v5761
    %9183 = vmatmul.mubr.bf16.gmra.mxu0 %v5760
    %v9184 = vpop.f32.mrf.mxu0
    %v9185 = vadd.f32 %v8912, %v9184
    %v9186 = vpop.f32.mrf.mxu0
    %v9187 = vadd.f32 %v8914, %v9186
    %v9188 = vpop.f32.mrf.mxu0
    %v9189 = vadd.f32 %v8916, %v9188
    %v9190 = vpop.f32.mrf.mxu0
    %v9191 = vadd.f32 %v8918, %v9190
    %9192 = vmatprep.mubr.bf16.mxu0 %v5769
    %9193 = vmatmul.mubr.bf16.gmra.mxu0 %v5768
    %v9194 = vpop.f32.mrf.mxu0
    %v9195 = vadd.f32 %v8922, %v9194
    %v9196 = vpop.f32.mrf.mxu0
    %v9197 = vadd.f32 %v8924, %v9196
    %v9198 = vpop.f32.mrf.mxu0
    %v9199 = vadd.f32 %v8926, %v9198
    %v9200 = vpop.f32.mrf.mxu0
    %v9201 = vadd.f32 %v8928, %v9200
    %9202 = vmatprep.mubr.bf16.mxu0 %v5777
    %9203 = vmatmul.mubr.bf16.gmra.mxu0 %v5776
    %v9204 = vpop.f32.mrf.mxu0
    %v9205 = vadd.f32 %v8932, %v9204
    %v9206 = vpop.f32.mrf.mxu0
    %v9207 = vadd.f32 %v8934, %v9206
    %v9208 = vpop.f32.mrf.mxu0
    %v9209 = vadd.f32 %v8936, %v9208
    %v9210 = vpop.f32.mrf.mxu0
    %v9211 = vadd.f32 %v8938, %v9210
    %9212 = vmatprep.mubr.bf16.mxu0 %v5785
    %9213 = vmatmul.mubr.bf16.gmra.mxu0 %v5784
    %v9214 = vpop.f32.mrf.mxu0
    %v9215 = vadd.f32 %v8942, %v9214
    %v9216 = vpop.f32.mrf.mxu0
    %v9217 = vadd.f32 %v8944, %v9216
    %v9218 = vpop.f32.mrf.mxu0
    %v9219 = vadd.f32 %v8946, %v9218
    %v9220 = vpop.f32.mrf.mxu0
    %v9221 = vadd.f32 %v8948, %v9220
    %9222 = vmatprep.mubr.bf16.mxu0 %v5793
    %9223 = vmatmul.mubr.bf16.gmra.mxu0 %v5792
    %v9224 = vpop.f32.mrf.mxu0
    %v9225 = vadd.f32 %v8952, %v9224
    %v9226 = vpop.f32.mrf.mxu0
    %v9227 = vadd.f32 %v8954, %v9226
    %v9228 = vpop.f32.mrf.mxu0
    %v9229 = vadd.f32 %v8956, %v9228
    %v9230 = vpop.f32.mrf.mxu0
    %v9231 = vadd.f32 %v8958, %v9230
    %9232 = vmatprep.mubr.bf16.mxu0 %v5801
    %9233 = vmatmul.mubr.bf16.gmra.mxu0 %v5800
    %v9234 = vpop.f32.mrf.mxu0
    %v9235 = vadd.f32 %v8962, %v9234
    %v9236 = vpop.f32.mrf.mxu0
    %v9237 = vadd.f32 %v8964, %v9236
    %v9238 = vpop.f32.mrf.mxu0
    %v9239 = vadd.f32 %v8966, %v9238
    %v9240 = vpop.f32.mrf.mxu0
    %v9241 = vadd.f32 %v8968, %v9240
    %9242 = vmatprep.mubr.bf16.mxu0 %v5809
    %9243 = vmatmul.mubr.bf16.gmra.mxu0 %v5808
    %v9244 = vpop.f32.mrf.mxu0
    %v9245 = vadd.f32 %v8972, %v9244
    %v9246 = vpop.f32.mrf.mxu0
    %v9247 = vadd.f32 %v8974, %v9246
    %v9248 = vpop.f32.mrf.mxu0
    %v9249 = vadd.f32 %v8976, %v9248
    %v9250 = vpop.f32.mrf.mxu0
    %v9251 = vadd.f32 %v8978, %v9250
    %9252 = vmatprep.mubr.bf16.mxu0 %v5817
    %9253 = vmatmul.mubr.bf16.gmra.mxu0 %v5816
    %v9254 = vpop.f32.mrf.mxu0
    %v9255 = vadd.f32 %v8982, %v9254
    %v9256 = vpop.f32.mrf.mxu0
    %v9257 = vadd.f32 %v8984, %v9256
    %v9258 = vpop.f32.mrf.mxu0
    %v9259 = vadd.f32 %v8986, %v9258
    %v9260 = vpop.f32.mrf.mxu0
    %v9261 = vadd.f32 %v8988, %v9260
    %9262 = vmatprep.mubr.bf16.mxu0 %v5825
    %9263 = vmatmul.mubr.bf16.gmra.mxu0 %v5824
    %v9264 = vpop.f32.mrf.mxu0
    %v9265 = vadd.f32 %v8992, %v9264
    %v9266 = vpop.f32.mrf.mxu0
    %v9267 = vadd.f32 %v8994, %v9266
    %v9268 = vpop.f32.mrf.mxu0
    %v9269 = vadd.f32 %v8996, %v9268
    %v9270 = vpop.f32.mrf.mxu0
    %v9271 = vadd.f32 %v8998, %v9270
    %9272 = vmatprep.mubr.bf16.mxu0 %v5833
    %9273 = vmatmul.mubr.bf16.gmra.mxu0 %v5832
    %v9274 = vpop.f32.mrf.mxu0
    %v9275 = vadd.f32 %v9002, %v9274
    %v9276 = vpop.f32.mrf.mxu0
    %v9277 = vadd.f32 %v9004, %v9276
    %v9278 = vpop.f32.mrf.mxu0
    %v9279 = vadd.f32 %v9006, %v9278
    %v9280 = vpop.f32.mrf.mxu0
    %v9281 = vadd.f32 %v9008, %v9280
    %9282 = vmatprep.mubr.bf16.mxu0 %v5841
    %9283 = vmatmul.mubr.bf16.gmra.mxu0 %v5840
    %v9284 = vpop.f32.mrf.mxu0
    %v9285 = vadd.f32 %v9012, %v9284
    %v9286 = vpop.f32.mrf.mxu0
    %v9287 = vadd.f32 %v9014, %v9286
    %v9288 = vpop.f32.mrf.mxu0
    %v9289 = vadd.f32 %v9016, %v9288
    %v9290 = vpop.f32.mrf.mxu0
    %v9291 = vadd.f32 %v9018, %v9290
    %9292 = vmatprep.mubr.bf16.mxu0 %v5849
    %9293 = vmatmul.mubr.bf16.gmra.mxu0 %v5848
    %v9294 = vpop.f32.mrf.mxu0
    %v9295 = vadd.f32 %v9022, %v9294
    %v9296 = vpop.f32.mrf.mxu0
    %v9297 = vadd.f32 %v9024, %v9296
    %v9298 = vpop.f32.mrf.mxu0
    %v9299 = vadd.f32 %v9026, %v9298
    %v9300 = vpop.f32.mrf.mxu0
    %v9301 = vadd.f32 %v9028, %v9300
    %9302 = vmatprep.mubr.bf16.mxu0 %v5857
    %9303 = vmatmul.mubr.bf16.gmra.mxu0 %v5856
    %v9304 = vpop.f32.mrf.mxu0
    %v9305 = vadd.f32 %v9032, %v9304
    %v9306 = vpop.f32.mrf.mxu0
    %v9307 = vadd.f32 %v9034, %v9306
    %v9308 = vpop.f32.mrf.mxu0
    %v9309 = vadd.f32 %v9036, %v9308
    %v9310 = vpop.f32.mrf.mxu0
    %v9311 = vadd.f32 %v9038, %v9310
    %9312 = vmatprep.mubr.bf16.mxu0 %v5865
    %9313 = vmatmul.mubr.bf16.gmra.mxu0 %v5864
    %v9314 = vpop.f32.mrf.mxu0
    %v9315 = vadd.f32 %v9042, %v9314
    %v9316 = vpop.f32.mrf.mxu0
    %v9317 = vadd.f32 %v9044, %v9316
    %v9318 = vpop.f32.mrf.mxu0
    %v9319 = vadd.f32 %v9046, %v9318
    %v9320 = vpop.f32.mrf.mxu0
    %v9321 = vadd.f32 %v9048, %v9320
    %9322 = vmatprep.mubr.bf16.mxu0 %v5873
    %9323 = vmatmul.mubr.bf16.gmra.mxu0 %v5872
    %v9324 = vpop.f32.mrf.mxu0
    %v9325 = vadd.f32 %v9052, %v9324
    %v9326 = vpop.f32.mrf.mxu0
    %v9327 = vadd.f32 %v9054, %v9326
    %v9328 = vpop.f32.mrf.mxu0
    %v9329 = vadd.f32 %v9056, %v9328
    %v9330 = vpop.f32.mrf.mxu0
    %v9331 = vadd.f32 %v9058, %v9330
    %9332 = vmatprep.mubr.bf16.mxu0 %v5881
    %9333 = vmatmul.mubr.bf16.gmra.mxu0 %v5880
    %v9334 = vpop.f32.mrf.mxu0
    %v9335 = vadd.f32 %v9062, %v9334
    %v9336 = vpop.f32.mrf.mxu0
    %v9337 = vadd.f32 %v9064, %v9336
    %v9338 = vpop.f32.mrf.mxu0
    %v9339 = vadd.f32 %v9066, %v9338
    %v9340 = vpop.f32.mrf.mxu0
    %v9341 = vadd.f32 %v9068, %v9340
    %9342 = vmatprep.mubr.bf16.mxu0 %v5889
    %9343 = vmatmul.mubr.bf16.gmra.mxu0 %v5888
    %v9344 = vpop.f32.mrf.mxu0
    %v9345 = vadd.f32 %v9072, %v9344
    %v9346 = vpop.f32.mrf.mxu0
    %v9347 = vadd.f32 %v9074, %v9346
    %v9348 = vpop.f32.mrf.mxu0
    %v9349 = vadd.f32 %v9076, %v9348
    %v9350 = vpop.f32.mrf.mxu0
    %v9351 = vadd.f32 %v9078, %v9350
    %9352 = vmatprep.mubr.bf16.mxu0 %v5897
    %9353 = vmatmul.mubr.bf16.gmra.mxu0 %v5896
    %v9354 = vpop.f32.mrf.mxu0
    %v9355 = vadd.f32 %v9082, %v9354
    %v9356 = vpop.f32.mrf.mxu0
    %v9357 = vadd.f32 %v9084, %v9356
    %v9358 = vpop.f32.mrf.mxu0
    %v9359 = vadd.f32 %v9086, %v9358
    %v9360 = vpop.f32.mrf.mxu0
    %v9361 = vadd.f32 %v9088, %v9360
    %9362 = vmatprep.mubr.bf16.mxu0 %v5905
    %9363 = vmatmul.mubr.bf16.gmra.mxu0 %v5904
    %v9364 = vpop.f32.mrf.mxu0
    %v9365 = vadd.f32 %v9092, %v9364
    %v9366 = vpop.f32.mrf.mxu0
    %v9367 = vadd.f32 %v9094, %v9366
    %v9368 = vpop.f32.mrf.mxu0
    %v9369 = vadd.f32 %v9096, %v9368
    %v9370 = vpop.f32.mrf.mxu0
    %v9371 = vadd.f32 %v9098, %v9370
    %9372 = vmatprep.mubr.bf16.mxu0 %v5913
    %9373 = vmatmul.mubr.bf16.gmra.mxu0 %v5912
    %v9374 = vpop.f32.mrf.mxu0
    %v9375 = vadd.f32 %v9102, %v9374
    %v9376 = vpop.f32.mrf.mxu0
    %v9377 = vadd.f32 %v9104, %v9376
    %v9378 = vpop.f32.mrf.mxu0
    %v9379 = vadd.f32 %v9106, %v9378
    %v9380 = vpop.f32.mrf.mxu0
    %v9381 = vadd.f32 %v9108, %v9380
    %9382 = vmatprep.mubr.bf16.mxu0 %v5921
    %9383 = vmatmul.mubr.bf16.gmra.mxu0 %v5920
    %v9384 = vpop.f32.mrf.mxu0
    %v9385 = vadd.f32 %v9112, %v9384
    %v9386 = vpop.f32.mrf.mxu0
    %v9387 = vadd.f32 %v9114, %v9386
    %v9388 = vpop.f32.mrf.mxu0
    %v9389 = vadd.f32 %v9116, %v9388
    %v9390 = vpop.f32.mrf.mxu0
    %v9391 = vadd.f32 %v9118, %v9390
    %9392 = vdwg.mxu0
    %9393 = vmatprep.subr.bf16.mxu0 %v7193
    %9394 = vmatpush1.bf16.msra.mxu0 %v7192
    %9395 = vmatprep.subr.bf16.mxu0 %v7189
    %9396 = vmatpush1.bf16.msra.mxu0 %v7188
    %9397 = vmatprep.subr.bf16.mxu0 %v7185
    %9398 = vmatpush1.bf16.msra.mxu0 %v7184
    %9399 = vmatprep.subr.bf16.mxu0 %v7181
    %9400 = vmatpush1.bf16.msra.mxu0 %v7180
    %9401 = vmatprep.subr.bf16.mxu0 %v7177
    %9402 = vmatpush1.bf16.msra.mxu0 %v7176
    %9403 = vmatprep.subr.bf16.mxu0 %v7173
    %9404 = vmatpush1.bf16.msra.mxu0 %v7172
    %9405 = vmatprep.subr.bf16.mxu0 %v7169
    %9406 = vmatpush1.bf16.msra.mxu0 %v7168
    %9407 = vmatprep.subr.bf16.mxu0 %v7165
    %9408 = vmatpush1.bf16.msra.mxu0 %v7164
    %9409 = vmatprep.subr.bf16.mxu0 %v7225
    %9410 = vmatpush2.bf16.msra.mxu0 %v7224
    %9411 = vmatprep.subr.bf16.mxu0 %v7221
    %9412 = vmatpush2.bf16.msra.mxu0 %v7220
    %9413 = vmatprep.subr.bf16.mxu0 %v7217
    %9414 = vmatpush2.bf16.msra.mxu0 %v7216
    %9415 = vmatprep.subr.bf16.mxu0 %v7213
    %9416 = vmatpush2.bf16.msra.mxu0 %v7212
    %9417 = vmatprep.subr.bf16.mxu0 %v7209
    %9418 = vmatpush2.bf16.msra.mxu0 %v7208
    %9419 = vmatprep.subr.bf16.mxu0 %v7205
    %9420 = vmatpush2.bf16.msra.mxu0 %v7204
    %9421 = vmatprep.subr.bf16.mxu0 %v7201
    %9422 = vmatpush2.bf16.msra.mxu0 %v7200
    %9423 = vmatprep.subr.bf16.mxu0 %v7197
    %9424 = vmatpush2.bf16.msra.mxu0 %v7196
    %9425 = vmatprep.mubr.bf16.mxu0 %v5739
    %9426 = vmatmul.mubr.bf16.gmra.mxu0 %v5738
    %v9427 = vpop.f32.mrf.mxu0
    %v9428 = vadd.f32 %v9155, %v9427
    %v9429 = vpop.f32.mrf.mxu0
    %v9430 = vadd.f32 %v9157, %v9429
    %v9431 = vpop.f32.mrf.mxu0
    %v9432 = vadd.f32 %v9159, %v9431
    %v9433 = vpop.f32.mrf.mxu0
    %v9434 = vadd.f32 %v9161, %v9433
    %9435 = vmatprep.mubr.bf16.mxu0 %v5747
    %9436 = vmatmul.mubr.bf16.gmra.mxu0 %v5746
    %v9437 = vpop.f32.mrf.mxu0
    %v9438 = vadd.f32 %v9165, %v9437
    %v9439 = vpop.f32.mrf.mxu0
    %v9440 = vadd.f32 %v9167, %v9439
    %v9441 = vpop.f32.mrf.mxu0
    %v9442 = vadd.f32 %v9169, %v9441
    %v9443 = vpop.f32.mrf.mxu0
    %v9444 = vadd.f32 %v9171, %v9443
    %9445 = vmatprep.mubr.bf16.mxu0 %v5755
    %9446 = vmatmul.mubr.bf16.gmra.mxu0 %v5754
    %v9447 = vpop.f32.mrf.mxu0
    %v9448 = vadd.f32 %v9175, %v9447
    %v9449 = vpop.f32.mrf.mxu0
    %v9450 = vadd.f32 %v9177, %v9449
    %v9451 = vpop.f32.mrf.mxu0
    %v9452 = vadd.f32 %v9179, %v9451
    %v9453 = vpop.f32.mrf.mxu0
    %v9454 = vadd.f32 %v9181, %v9453
    %9455 = vmatprep.mubr.bf16.mxu0 %v5763
    %9456 = vmatmul.mubr.bf16.gmra.mxu0 %v5762
    %v9457 = vpop.f32.mrf.mxu0
    %v9458 = vadd.f32 %v9185, %v9457
    %v9459 = vpop.f32.mrf.mxu0
    %v9460 = vadd.f32 %v9187, %v9459
    %v9461 = vpop.f32.mrf.mxu0
    %v9462 = vadd.f32 %v9189, %v9461
    %v9463 = vpop.f32.mrf.mxu0
    %v9464 = vadd.f32 %v9191, %v9463
    %9465 = vmatprep.mubr.bf16.mxu0 %v5771
    %9466 = vmatmul.mubr.bf16.gmra.mxu0 %v5770
    %v9467 = vpop.f32.mrf.mxu0
    %v9468 = vadd.f32 %v9195, %v9467
    %v9469 = vpop.f32.mrf.mxu0
    %v9470 = vadd.f32 %v9197, %v9469
    %v9471 = vpop.f32.mrf.mxu0
    %v9472 = vadd.f32 %v9199, %v9471
    %v9473 = vpop.f32.mrf.mxu0
    %v9474 = vadd.f32 %v9201, %v9473
    %9475 = vmatprep.mubr.bf16.mxu0 %v5779
    %9476 = vmatmul.mubr.bf16.gmra.mxu0 %v5778
    %v9477 = vpop.f32.mrf.mxu0
    %v9478 = vadd.f32 %v9205, %v9477
    %v9479 = vpop.f32.mrf.mxu0
    %v9480 = vadd.f32 %v9207, %v9479
    %v9481 = vpop.f32.mrf.mxu0
    %v9482 = vadd.f32 %v9209, %v9481
    %v9483 = vpop.f32.mrf.mxu0
    %v9484 = vadd.f32 %v9211, %v9483
    %9485 = vmatprep.mubr.bf16.mxu0 %v5787
    %9486 = vmatmul.mubr.bf16.gmra.mxu0 %v5786
    %v9487 = vpop.f32.mrf.mxu0
    %v9488 = vadd.f32 %v9215, %v9487
    %v9489 = vpop.f32.mrf.mxu0
    %v9490 = vadd.f32 %v9217, %v9489
    %v9491 = vpop.f32.mrf.mxu0
    %v9492 = vadd.f32 %v9219, %v9491
    %v9493 = vpop.f32.mrf.mxu0
    %v9494 = vadd.f32 %v9221, %v9493
    %9495 = vmatprep.mubr.bf16.mxu0 %v5795
    %9496 = vmatmul.mubr.bf16.gmra.mxu0 %v5794
    %v9497 = vpop.f32.mrf.mxu0
    %v9498 = vadd.f32 %v9225, %v9497
    %v9499 = vpop.f32.mrf.mxu0
    %v9500 = vadd.f32 %v9227, %v9499
    %v9501 = vpop.f32.mrf.mxu0
    %v9502 = vadd.f32 %v9229, %v9501
    %v9503 = vpop.f32.mrf.mxu0
    %v9504 = vadd.f32 %v9231, %v9503
    %9505 = vmatprep.mubr.bf16.mxu0 %v5803
    %9506 = vmatmul.mubr.bf16.gmra.mxu0 %v5802
    %v9507 = vpop.f32.mrf.mxu0
    %v9508 = vadd.f32 %v9235, %v9507
    %v9509 = vpop.f32.mrf.mxu0
    %v9510 = vadd.f32 %v9237, %v9509
    %v9511 = vpop.f32.mrf.mxu0
    %v9512 = vadd.f32 %v9239, %v9511
    %v9513 = vpop.f32.mrf.mxu0
    %v9514 = vadd.f32 %v9241, %v9513
    %9515 = vmatprep.mubr.bf16.mxu0 %v5811
    %9516 = vmatmul.mubr.bf16.gmra.mxu0 %v5810
    %v9517 = vpop.f32.mrf.mxu0
    %v9518 = vadd.f32 %v9245, %v9517
    %v9519 = vpop.f32.mrf.mxu0
    %v9520 = vadd.f32 %v9247, %v9519
    %v9521 = vpop.f32.mrf.mxu0
    %v9522 = vadd.f32 %v9249, %v9521
    %v9523 = vpop.f32.mrf.mxu0
    %v9524 = vadd.f32 %v9251, %v9523
    %9525 = vmatprep.mubr.bf16.mxu0 %v5819
    %9526 = vmatmul.mubr.bf16.gmra.mxu0 %v5818
    %v9527 = vpop.f32.mrf.mxu0
    %v9528 = vadd.f32 %v9255, %v9527
    %v9529 = vpop.f32.mrf.mxu0
    %v9530 = vadd.f32 %v9257, %v9529
    %v9531 = vpop.f32.mrf.mxu0
    %v9532 = vadd.f32 %v9259, %v9531
    %v9533 = vpop.f32.mrf.mxu0
    %v9534 = vadd.f32 %v9261, %v9533
    %9535 = vmatprep.mubr.bf16.mxu0 %v5827
    %9536 = vmatmul.mubr.bf16.gmra.mxu0 %v5826
    %v9537 = vpop.f32.mrf.mxu0
    %v9538 = vadd.f32 %v9265, %v9537
    %v9539 = vpop.f32.mrf.mxu0
    %v9540 = vadd.f32 %v9267, %v9539
    %v9541 = vpop.f32.mrf.mxu0
    %v9542 = vadd.f32 %v9269, %v9541
    %v9543 = vpop.f32.mrf.mxu0
    %v9544 = vadd.f32 %v9271, %v9543
    %9545 = vmatprep.mubr.bf16.mxu0 %v5835
    %9546 = vmatmul.mubr.bf16.gmra.mxu0 %v5834
    %v9547 = vpop.f32.mrf.mxu0
    %v9548 = vadd.f32 %v9275, %v9547
    %v9549 = vpop.f32.mrf.mxu0
    %v9550 = vadd.f32 %v9277, %v9549
    %v9551 = vpop.f32.mrf.mxu0
    %v9552 = vadd.f32 %v9279, %v9551
    %v9553 = vpop.f32.mrf.mxu0
    %v9554 = vadd.f32 %v9281, %v9553
    %9555 = vmatprep.mubr.bf16.mxu0 %v5843
    %9556 = vmatmul.mubr.bf16.gmra.mxu0 %v5842
    %v9557 = vpop.f32.mrf.mxu0
    %v9558 = vadd.f32 %v9285, %v9557
    %v9559 = vpop.f32.mrf.mxu0
    %v9560 = vadd.f32 %v9287, %v9559
    %v9561 = vpop.f32.mrf.mxu0
    %v9562 = vadd.f32 %v9289, %v9561
    %v9563 = vpop.f32.mrf.mxu0
    %v9564 = vadd.f32 %v9291, %v9563
    %9565 = vmatprep.mubr.bf16.mxu0 %v5851
    %9566 = vmatmul.mubr.bf16.gmra.mxu0 %v5850
    %v9567 = vpop.f32.mrf.mxu0
    %v9568 = vadd.f32 %v9295, %v9567
    %v9569 = vpop.f32.mrf.mxu0
    %v9570 = vadd.f32 %v9297, %v9569
    %v9571 = vpop.f32.mrf.mxu0
    %v9572 = vadd.f32 %v9299, %v9571
    %v9573 = vpop.f32.mrf.mxu0
    %v9574 = vadd.f32 %v9301, %v9573
    %9575 = vmatprep.mubr.bf16.mxu0 %v5859
    %9576 = vmatmul.mubr.bf16.gmra.mxu0 %v5858
    %v9577 = vpop.f32.mrf.mxu0
    %v9578 = vadd.f32 %v9305, %v9577
    %v9579 = vpop.f32.mrf.mxu0
    %v9580 = vadd.f32 %v9307, %v9579
    %v9581 = vpop.f32.mrf.mxu0
    %v9582 = vadd.f32 %v9309, %v9581
    %v9583 = vpop.f32.mrf.mxu0
    %v9584 = vadd.f32 %v9311, %v9583
    %9585 = vmatprep.mubr.bf16.mxu0 %v5867
    %9586 = vmatmul.mubr.bf16.gmra.mxu0 %v5866
    %v9587 = vpop.f32.mrf.mxu0
    %v9588 = vadd.f32 %v9315, %v9587
    %v9589 = vpop.f32.mrf.mxu0
    %v9590 = vadd.f32 %v9317, %v9589
    %v9591 = vpop.f32.mrf.mxu0
    %v9592 = vadd.f32 %v9319, %v9591
    %v9593 = vpop.f32.mrf.mxu0
    %v9594 = vadd.f32 %v9321, %v9593
    %9595 = vmatprep.mubr.bf16.mxu0 %v5875
    %9596 = vmatmul.mubr.bf16.gmra.mxu0 %v5874
    %v9597 = vpop.f32.mrf.mxu0
    %v9598 = vadd.f32 %v9325, %v9597
    %v9599 = vpop.f32.mrf.mxu0
    %v9600 = vadd.f32 %v9327, %v9599
    %v9601 = vpop.f32.mrf.mxu0
    %v9602 = vadd.f32 %v9329, %v9601
    %v9603 = vpop.f32.mrf.mxu0
    %v9604 = vadd.f32 %v9331, %v9603
    %9605 = vmatprep.mubr.bf16.mxu0 %v5883
    %9606 = vmatmul.mubr.bf16.gmra.mxu0 %v5882
    %v9607 = vpop.f32.mrf.mxu0
    %v9608 = vadd.f32 %v9335, %v9607
    %v9609 = vpop.f32.mrf.mxu0
    %v9610 = vadd.f32 %v9337, %v9609
    %v9611 = vpop.f32.mrf.mxu0
    %v9612 = vadd.f32 %v9339, %v9611
    %v9613 = vpop.f32.mrf.mxu0
    %v9614 = vadd.f32 %v9341, %v9613
    %9615 = vmatprep.mubr.bf16.mxu0 %v5891
    %9616 = vmatmul.mubr.bf16.gmra.mxu0 %v5890
    %v9617 = vpop.f32.mrf.mxu0
    %v9618 = vadd.f32 %v9345, %v9617
    %v9619 = vpop.f32.mrf.mxu0
    %v9620 = vadd.f32 %v9347, %v9619
    %v9621 = vpop.f32.mrf.mxu0
    %v9622 = vadd.f32 %v9349, %v9621
    %v9623 = vpop.f32.mrf.mxu0
    %v9624 = vadd.f32 %v9351, %v9623
    %9625 = vmatprep.mubr.bf16.mxu0 %v5899
    %9626 = vmatmul.mubr.bf16.gmra.mxu0 %v5898
    %v9627 = vpop.f32.mrf.mxu0
    %v9628 = vadd.f32 %v9355, %v9627
    %v9629 = vpop.f32.mrf.mxu0
    %v9630 = vadd.f32 %v9357, %v9629
    %v9631 = vpop.f32.mrf.mxu0
    %v9632 = vadd.f32 %v9359, %v9631
    %v9633 = vpop.f32.mrf.mxu0
    %v9634 = vadd.f32 %v9361, %v9633
    %9635 = vmatprep.mubr.bf16.mxu0 %v5907
    %9636 = vmatmul.mubr.bf16.gmra.mxu0 %v5906
    %v9637 = vpop.f32.mrf.mxu0
    %v9638 = vadd.f32 %v9365, %v9637
    %v9639 = vpop.f32.mrf.mxu0
    %v9640 = vadd.f32 %v9367, %v9639
    %v9641 = vpop.f32.mrf.mxu0
    %v9642 = vadd.f32 %v9369, %v9641
    %v9643 = vpop.f32.mrf.mxu0
    %v9644 = vadd.f32 %v9371, %v9643
    %9645 = vmatprep.mubr.bf16.mxu0 %v5915
    %9646 = vmatmul.mubr.bf16.gmra.mxu0 %v5914
    %v9647 = vpop.f32.mrf.mxu0
    %v9648 = vadd.f32 %v9375, %v9647
    %v9649 = vpop.f32.mrf.mxu0
    %v9650 = vadd.f32 %v9377, %v9649
    %v9651 = vpop.f32.mrf.mxu0
    %v9652 = vadd.f32 %v9379, %v9651
    %v9653 = vpop.f32.mrf.mxu0
    %v9654 = vadd.f32 %v9381, %v9653
    %9655 = vmatprep.mubr.bf16.mxu0 %v5923
    %9656 = vmatmul.mubr.bf16.gmra.mxu0 %v5922
    %v9657 = vpop.f32.mrf.mxu0
    %v9658 = vadd.f32 %v9385, %v9657
    %v9659 = vpop.f32.mrf.mxu0
    %v9660 = vadd.f32 %v9387, %v9659
    %v9661 = vpop.f32.mrf.mxu0
    %v9662 = vadd.f32 %v9389, %v9661
    %v9663 = vpop.f32.mrf.mxu0
    %v9664 = vadd.f32 %v9391, %v9663
    %9665 = vdwg.mxu0
    %v9666 = vmax.f32 %v8336, 0.0
    %v9667 = vmax.f32 %v8338, 0.0
    %v9668 = vmax.f32 %v9428, 0.0
    %v9669 = vmax.f32 %v9430, 0.0
    %v9670 = vmax.f32 %v8340, 0.0
    %v9671 = vmax.f32 %v8342, 0.0
    %v9672 = vmax.f32 %v9432, 0.0
    %v9673 = vmax.f32 %v9434, 0.0
    %v9674 = vmax.f32 %v8346, 0.0
    %v9675 = vmax.f32 %v8348, 0.0
    %v9676 = vmax.f32 %v9438, 0.0
    %v9677 = vmax.f32 %v9440, 0.0
    %v9678 = vmax.f32 %v8350, 0.0
    %v9679 = vmax.f32 %v8352, 0.0
    %v9680 = vmax.f32 %v9442, 0.0
    %v9681 = vmax.f32 %v9444, 0.0
    %v9682 = vmax.f32 %v8356, 0.0
    %v9683 = vmax.f32 %v8358, 0.0
    %v9684 = vmax.f32 %v9448, 0.0
    %v9685 = vmax.f32 %v9450, 0.0
    %v9686 = vmax.f32 %v8360, 0.0
    %v9687 = vmax.f32 %v8362, 0.0
    %v9688 = vmax.f32 %v9452, 0.0
    %v9689 = vmax.f32 %v9454, 0.0
    %v9690 = vmax.f32 %v8366, 0.0
    %v9691 = vmax.f32 %v8368, 0.0
    %v9692 = vmax.f32 %v9458, 0.0
    %v9693 = vmax.f32 %v9460, 0.0
    %v9694 = vmax.f32 %v8370, 0.0
    %v9695 = vmax.f32 %v8372, 0.0
    %v9696 = vmax.f32 %v9462, 0.0
    %v9697 = vmax.f32 %v9464, 0.0
    %v9698 = vmax.f32 %v8376, 0.0
    %v9699 = vmax.f32 %v8378, 0.0
    %v9700 = vmax.f32 %v9468, 0.0
    %v9701 = vmax.f32 %v9470, 0.0
    %v9702 = vmax.f32 %v8380, 0.0
    %v9703 = vmax.f32 %v8382, 0.0
    %v9704 = vmax.f32 %v9472, 0.0
    %v9705 = vmax.f32 %v9474, 0.0
    %v9706 = vmax.f32 %v8386, 0.0
    %v9707 = vmax.f32 %v8388, 0.0
    %v9708 = vmax.f32 %v9478, 0.0
    %v9709 = vmax.f32 %v9480, 0.0
    %v9710 = vmax.f32 %v8390, 0.0
    %v9711 = vmax.f32 %v8392, 0.0
    %v9712 = vmax.f32 %v9482, 0.0
    %v9713 = vmax.f32 %v9484, 0.0
    %v9714 = vmax.f32 %v8396, 0.0
    %v9715 = vmax.f32 %v8398, 0.0
    %v9716 = vmax.f32 %v9488, 0.0
    %v9717 = vmax.f32 %v9490, 0.0
    %v9718 = vmax.f32 %v8400, 0.0
    %v9719 = vmax.f32 %v8402, 0.0
    %v9720 = vmax.f32 %v9492, 0.0
    %v9721 = vmax.f32 %v9494, 0.0
    %v9722 = vmax.f32 %v8406, 0.0
    %v9723 = vmax.f32 %v8408, 0.0
    %v9724 = vmax.f32 %v9498, 0.0
    %v9725 = vmax.f32 %v9500, 0.0
    %v9726 = vmax.f32 %v8410, 0.0
    %v9727 = vmax.f32 %v8412, 0.0
    %v9728 = vmax.f32 %v9502, 0.0
    %v9729 = vmax.f32 %v9504, 0.0
    %v9730 = vmax.f32 %v8416, 0.0
    %v9731 = vmax.f32 %v8418, 0.0
    %v9732 = vmax.f32 %v9508, 0.0
    %v9733 = vmax.f32 %v9510, 0.0
    %v9734 = vmax.f32 %v8420, 0.0
    %v9735 = vmax.f32 %v8422, 0.0
    %v9736 = vmax.f32 %v9512, 0.0
    %v9737 = vmax.f32 %v9514, 0.0
    %v9738 = vmax.f32 %v8426, 0.0
    %v9739 = vmax.f32 %v8428, 0.0
    %v9740 = vmax.f32 %v9518, 0.0
    %v9741 = vmax.f32 %v9520, 0.0
    %v9742 = vmax.f32 %v8430, 0.0
    %v9743 = vmax.f32 %v8432, 0.0
    %v9744 = vmax.f32 %v9522, 0.0
    %v9745 = vmax.f32 %v9524, 0.0
    %v9746 = vmax.f32 %v8436, 0.0
    %v9747 = vmax.f32 %v8438, 0.0
    %v9748 = vmax.f32 %v9528, 0.0
    %v9749 = vmax.f32 %v9530, 0.0
    %v9750 = vmax.f32 %v8440, 0.0
    %v9751 = vmax.f32 %v8442, 0.0
    %v9752 = vmax.f32 %v9532, 0.0
    %v9753 = vmax.f32 %v9534, 0.0
    %v9754 = vmax.f32 %v8446, 0.0
    %v9755 = vmax.f32 %v8448, 0.0
    %v9756 = vmax.f32 %v9538, 0.0
    %v9757 = vmax.f32 %v9540, 0.0
    %v9758 = vmax.f32 %v8450, 0.0
    %v9759 = vmax.f32 %v8452, 0.0
    %v9760 = vmax.f32 %v9542, 0.0
    %v9761 = vmax.f32 %v9544, 0.0
    %v9762 = vmax.f32 %v8456, 0.0
    %v9763 = vmax.f32 %v8458, 0.0
    %v9764 = vmax.f32 %v9548, 0.0
    %v9765 = vmax.f32 %v9550, 0.0
    %v9766 = vmax.f32 %v8460, 0.0
    %v9767 = vmax.f32 %v8462, 0.0
    %v9768 = vmax.f32 %v9552, 0.0
    %v9769 = vmax.f32 %v9554, 0.0
    %v9770 = vmax.f32 %v8466, 0.0
    %v9771 = vmax.f32 %v8468, 0.0
    %v9772 = vmax.f32 %v9558, 0.0
    %v9773 = vmax.f32 %v9560, 0.0
    %v9774 = vmax.f32 %v8470, 0.0
    %v9775 = vmax.f32 %v8472, 0.0
    %v9776 = vmax.f32 %v9562, 0.0
    %v9777 = vmax.f32 %v9564, 0.0
    %v9778 = vmax.f32 %v8476, 0.0
    %v9779 = vmax.f32 %v8478, 0.0
    %v9780 = vmax.f32 %v9568, 0.0
    %v9781 = vmax.f32 %v9570, 0.0
    %v9782 = vmax.f32 %v8480, 0.0
    %v9783 = vmax.f32 %v8482, 0.0
    %v9784 = vmax.f32 %v9572, 0.0
    %v9785 = vmax.f32 %v9574, 0.0
    %v9786 = vmax.f32 %v8486, 0.0
    %v9787 = vmax.f32 %v8488, 0.0
    %v9788 = vmax.f32 %v9578, 0.0
    %v9789 = vmax.f32 %v9580, 0.0
    %v9790 = vmax.f32 %v8490, 0.0
    %v9791 = vmax.f32 %v8492, 0.0
    %v9792 = vmax.f32 %v9582, 0.0
    %v9793 = vmax.f32 %v9584, 0.0
    %v9794 = vmax.f32 %v8496, 0.0
    %v9795 = vmax.f32 %v8498, 0.0
    %v9796 = vmax.f32 %v9588, 0.0
    %v9797 = vmax.f32 %v9590, 0.0
    %v9798 = vmax.f32 %v8500, 0.0
    %v9799 = vmax.f32 %v8502, 0.0
    %v9800 = vmax.f32 %v9592, 0.0
    %v9801 = vmax.f32 %v9594, 0.0
    %v9802 = vmax.f32 %v8506, 0.0
    %v9803 = vmax.f32 %v8508, 0.0
    %v9804 = vmax.f32 %v9598, 0.0
    %v9805 = vmax.f32 %v9600, 0.0
    %v9806 = vmax.f32 %v8510, 0.0
    %v9807 = vmax.f32 %v8512, 0.0
    %v9808 = vmax.f32 %v9602, 0.0
    %v9809 = vmax.f32 %v9604, 0.0
    %v9810 = vmax.f32 %v8516, 0.0
    %v9811 = vmax.f32 %v8518, 0.0
    %v9812 = vmax.f32 %v9608, 0.0
    %v9813 = vmax.f32 %v9610, 0.0
    %v9814 = vmax.f32 %v8520, 0.0
    %v9815 = vmax.f32 %v8522, 0.0
    %v9816 = vmax.f32 %v9612, 0.0
    %v9817 = vmax.f32 %v9614, 0.0
    %v9818 = vmax.f32 %v8526, 0.0
    %v9819 = vmax.f32 %v8528, 0.0
    %v9820 = vmax.f32 %v9618, 0.0
    %v9821 = vmax.f32 %v9620, 0.0
    %v9822 = vmax.f32 %v8530, 0.0
    %v9823 = vmax.f32 %v8532, 0.0
    %v9824 = vmax.f32 %v9622, 0.0
    %v9825 = vmax.f32 %v9624, 0.0
    %v9826 = vmax.f32 %v8536, 0.0
    %v9827 = vmax.f32 %v8538, 0.0
    %v9828 = vmax.f32 %v9628, 0.0
    %v9829 = vmax.f32 %v9630, 0.0
    %v9830 = vmax.f32 %v8540, 0.0
    %v9831 = vmax.f32 %v8542, 0.0
    %v9832 = vmax.f32 %v9632, 0.0
    %v9833 = vmax.f32 %v9634, 0.0
    %v9834 = vmax.f32 %v8546, 0.0
    %v9835 = vmax.f32 %v8548, 0.0
    %v9836 = vmax.f32 %v9638, 0.0
    %v9837 = vmax.f32 %v9640, 0.0
    %v9838 = vmax.f32 %v8550, 0.0
    %v9839 = vmax.f32 %v8552, 0.0
    %v9840 = vmax.f32 %v9642, 0.0
    %v9841 = vmax.f32 %v9644, 0.0
    %v9842 = vmax.f32 %v8556, 0.0
    %v9843 = vmax.f32 %v8558, 0.0
    %v9844 = vmax.f32 %v9648, 0.0
    %v9845 = vmax.f32 %v9650, 0.0
    %v9846 = vmax.f32 %v8560, 0.0
    %v9847 = vmax.f32 %v8562, 0.0
    %v9848 = vmax.f32 %v9652, 0.0
    %v9849 = vmax.f32 %v9654, 0.0
    %v9850 = vmax.f32 %v8566, 0.0
    %v9851 = vmax.f32 %v8568, 0.0
    %v9852 = vmax.f32 %v9658, 0.0
    %v9853 = vmax.f32 %v9660, 0.0
    %v9854 = vmax.f32 %v8570, 0.0
    %v9855 = vmax.f32 %v8572, 0.0
    %v9856 = vmax.f32 %v9662, 0.0
    %v9857 = vmax.f32 %v9664, 0.0
    %v9858 = vpack.c.bf16 %v9670, %v9666
    %v9859 = vpack.c.bf16 %v9671, %v9667
    %v9860 = vpack.c.bf16 %v9672, %v9668
    %v9861 = vpack.c.bf16 %v9673, %v9669
    %v9862 = vpack.c.bf16 %v9678, %v9674
    %v9863 = vpack.c.bf16 %v9679, %v9675
    %v9864 = vpack.c.bf16 %v9680, %v9676
    %v9865 = vpack.c.bf16 %v9681, %v9677
    %v9866 = vpack.c.bf16 %v9686, %v9682
    %v9867 = vpack.c.bf16 %v9687, %v9683
    %v9868 = vpack.c.bf16 %v9688, %v9684
    %v9869 = vpack.c.bf16 %v9689, %v9685
    %v9870 = vpack.c.bf16 %v9694, %v9690
    %v9871 = vpack.c.bf16 %v9695, %v9691
    %v9872 = vpack.c.bf16 %v9696, %v9692
    %v9873 = vpack.c.bf16 %v9697, %v9693
    %v9874 = vpack.c.bf16 %v9702, %v9698
    %v9875 = vpack.c.bf16 %v9703, %v9699
    %v9876 = vpack.c.bf16 %v9704, %v9700
    %v9877 = vpack.c.bf16 %v9705, %v9701
    %v9878 = vpack.c.bf16 %v9710, %v9706
    %v9879 = vpack.c.bf16 %v9711, %v9707
    %v9880 = vpack.c.bf16 %v9712, %v9708
    %v9881 = vpack.c.bf16 %v9713, %v9709
    %v9882 = vpack.c.bf16 %v9718, %v9714
    %v9883 = vpack.c.bf16 %v9719, %v9715
    %v9884 = vpack.c.bf16 %v9720, %v9716
    %v9885 = vpack.c.bf16 %v9721, %v9717
    %v9886 = vpack.c.bf16 %v9726, %v9722
    %v9887 = vpack.c.bf16 %v9727, %v9723
    %v9888 = vpack.c.bf16 %v9728, %v9724
    %v9889 = vpack.c.bf16 %v9729, %v9725
    %v9890 = vpack.c.bf16 %v9734, %v9730
    %v9891 = vpack.c.bf16 %v9735, %v9731
    %v9892 = vpack.c.bf16 %v9736, %v9732
    %v9893 = vpack.c.bf16 %v9737, %v9733
    %v9894 = vpack.c.bf16 %v9742, %v9738
    %v9895 = vpack.c.bf16 %v9743, %v9739
    %v9896 = vpack.c.bf16 %v9744, %v9740
    %v9897 = vpack.c.bf16 %v9745, %v9741
    %v9898 = vpack.c.bf16 %v9750, %v9746
    %v9899 = vpack.c.bf16 %v9751, %v9747
    %v9900 = vpack.c.bf16 %v9752, %v9748
    %v9901 = vpack.c.bf16 %v9753, %v9749
    %v9902 = vpack.c.bf16 %v9758, %v9754
    %v9903 = vpack.c.bf16 %v9759, %v9755
    %v9904 = vpack.c.bf16 %v9760, %v9756
    %v9905 = vpack.c.bf16 %v9761, %v9757
    %v9906 = vpack.c.bf16 %v9766, %v9762
    %v9907 = vpack.c.bf16 %v9767, %v9763
    %v9908 = vpack.c.bf16 %v9768, %v9764
    %v9909 = vpack.c.bf16 %v9769, %v9765
    %v9910 = vpack.c.bf16 %v9774, %v9770
    %v9911 = vpack.c.bf16 %v9775, %v9771
    %v9912 = vpack.c.bf16 %v9776, %v9772
    %v9913 = vpack.c.bf16 %v9777, %v9773
    %v9914 = vpack.c.bf16 %v9782, %v9778
    %v9915 = vpack.c.bf16 %v9783, %v9779
    %v9916 = vpack.c.bf16 %v9784, %v9780
    %v9917 = vpack.c.bf16 %v9785, %v9781
    %v9918 = vpack.c.bf16 %v9790, %v9786
    %v9919 = vpack.c.bf16 %v9791, %v9787
    %v9920 = vpack.c.bf16 %v9792, %v9788
    %v9921 = vpack.c.bf16 %v9793, %v9789
    %v9922 = vpack.c.bf16 %v9798, %v9794
    %v9923 = vpack.c.bf16 %v9799, %v9795
    %v9924 = vpack.c.bf16 %v9800, %v9796
    %v9925 = vpack.c.bf16 %v9801, %v9797
    %v9926 = vpack.c.bf16 %v9806, %v9802
    %v9927 = vpack.c.bf16 %v9807, %v9803
    %v9928 = vpack.c.bf16 %v9808, %v9804
    %v9929 = vpack.c.bf16 %v9809, %v9805
    %v9930 = vpack.c.bf16 %v9814, %v9810
    %v9931 = vpack.c.bf16 %v9815, %v9811
    %v9932 = vpack.c.bf16 %v9816, %v9812
    %v9933 = vpack.c.bf16 %v9817, %v9813
    %v9934 = vpack.c.bf16 %v9822, %v9818
    %v9935 = vpack.c.bf16 %v9823, %v9819
    %v9936 = vpack.c.bf16 %v9824, %v9820
    %v9937 = vpack.c.bf16 %v9825, %v9821
    %v9938 = vpack.c.bf16 %v9830, %v9826
    %v9939 = vpack.c.bf16 %v9831, %v9827
    %v9940 = vpack.c.bf16 %v9832, %v9828
    %v9941 = vpack.c.bf16 %v9833, %v9829
    %v9942 = vpack.c.bf16 %v9838, %v9834
    %v9943 = vpack.c.bf16 %v9839, %v9835
    %v9944 = vpack.c.bf16 %v9840, %v9836
    %v9945 = vpack.c.bf16 %v9841, %v9837
    %v9946 = vpack.c.bf16 %v9846, %v9842
    %v9947 = vpack.c.bf16 %v9847, %v9843
    %v9948 = vpack.c.bf16 %v9848, %v9844
    %v9949 = vpack.c.bf16 %v9849, %v9845
    %v9950 = vpack.c.bf16 %v9854, %v9850
    %v9951 = vpack.c.bf16 %v9855, %v9851
    %v9952 = vpack.c.bf16 %v9856, %v9852
    %v9953 = vpack.c.bf16 %v9857, %v9853
    %v9954 = vld [vmem:[%s9] sm:$0xf]
    %v9955 = vld [vmem:[%s9 + $0x4] sm:$0xf]
    %v9956 = vld [vmem:[%s9 + $0x8] sm:$0xf]
    %v9957 = vld [vmem:[%s9 + $0xc] sm:$0xf]
    %v9958 = vld [vmem:[%s9 + $0x10] sm:$0xf]
    %v9959 = vld [vmem:[%s9 + $0x14] sm:$0xf]
    %v9960 = vld [vmem:[%s9 + $0x18] sm:$0xf]
    %v9961 = vld [vmem:[%s9 + $0x1c] sm:$0xf]
    %v9962 = vld [vmem:[%s9 + $0x20] sm:$0xf]
    %v9963 = vld [vmem:[%s9 + $0x24] sm:$0xf]
    %v9964 = vld [vmem:[%s9 + $0x28] sm:$0xf]
    %v9965 = vld [vmem:[%s9 + $0x2c] sm:$0xf]
    %v9966 = vld [vmem:[%s9 + $0x30] sm:$0xf]
    %v9967 = vld [vmem:[%s9 + $0x34] sm:$0xf]
    %v9968 = vld [vmem:[%s9 + $0x38] sm:$0xf]
    %v9969 = vld [vmem:[%s9 + $0x3c] sm:$0xf]
    %v9970 = vld [vmem:[%s9 + $0x40] sm:$0xf]
    %v9971 = vld [vmem:[%s9 + $0x44] sm:$0xf]
    %v9972 = vld [vmem:[%s9 + $0x48] sm:$0xf]
    %v9973 = vld [vmem:[%s9 + $0x4c] sm:$0xf]
    %v9974 = vld [vmem:[%s9 + $0x50] sm:$0xf]
    %v9975 = vld [vmem:[%s9 + $0x54] sm:$0xf]
    %v9976 = vld [vmem:[%s9 + $0x58] sm:$0xf]
    %v9977 = vld [vmem:[%s9 + $0x5c] sm:$0xf]
    %v9978 = vld [vmem:[%s9 + $0x60] sm:$0xf]
    %v9979 = vld [vmem:[%s9 + $0x64] sm:$0xf]
    %v9980 = vld [vmem:[%s9 + $0x68] sm:$0xf]
    %v9981 = vld [vmem:[%s9 + $0x6c] sm:$0xf]
    %v9982 = vld [vmem:[%s9 + $0x70] sm:$0xf]
    %v9983 = vld [vmem:[%s9 + $0x74] sm:$0xf]
    %v9984 = vld [vmem:[%s9 + $0x78] sm:$0xf]
    %v9985 = vld [vmem:[%s9 + $0x7c] sm:$0xf]
    %v9986 = vld [vmem:[%s9 + $0x80] sm:$0xf]
    %v9987 = vld [vmem:[%s9 + $0x84] sm:$0xf]
    %v9988 = vld [vmem:[%s9 + $0x88] sm:$0xf]
    %v9989 = vld [vmem:[%s9 + $0x8c] sm:$0xf]
    %v9990 = vld [vmem:[%s9 + $0x90] sm:$0xf]
    %v9991 = vld [vmem:[%s9 + $0x94] sm:$0xf]
    %v9992 = vld [vmem:[%s9 + $0x98] sm:$0xf]
    %v9993 = vld [vmem:[%s9 + $0x9c] sm:$0xf]
    %v9994 = vld [vmem:[%s9 + $0xa0] sm:$0xf]
    %v9995 = vld [vmem:[%s9 + $0xa4] sm:$0xf]
    %v9996 = vld [vmem:[%s9 + $0xa8] sm:$0xf]
    %v9997 = vld [vmem:[%s9 + $0xac] sm:$0xf]
    %v9998 = vld [vmem:[%s9 + $0xb0] sm:$0xf]
    %v9999 = vld [vmem:[%s9 + $0xb4] sm:$0xf]
    %v10000 = vld [vmem:[%s9 + $0xb8] sm:$0xf]
    %v10001 = vld [vmem:[%s9 + $0xbc] sm:$0xf]
    %v10002 = vld [vmem:[%s9 + $0xc0] sm:$0xf]
    %v10003 = vld [vmem:[%s9 + $0xc4] sm:$0xf]
    %v10004 = vld [vmem:[%s9 + $0xc8] sm:$0xf]
    %v10005 = vld [vmem:[%s9 + $0xcc] sm:$0xf]
    %v10006 = vld [vmem:[%s9 + $0xd0] sm:$0xf]
    %v10007 = vld [vmem:[%s9 + $0xd4] sm:$0xf]
    %v10008 = vld [vmem:[%s9 + $0xd8] sm:$0xf]
    %v10009 = vld [vmem:[%s9 + $0xdc] sm:$0xf]
    %v10010 = vld [vmem:[%s9 + $0xe0] sm:$0xf]
    %v10011 = vld [vmem:[%s9 + $0xe4] sm:$0xf]
    %v10012 = vld [vmem:[%s9 + $0xe8] sm:$0xf]
    %v10013 = vld [vmem:[%s9 + $0xec] sm:$0xf]
    %v10014 = vld [vmem:[%s9 + $0xf0] sm:$0xf]
    %v10015 = vld [vmem:[%s9 + $0xf4] sm:$0xf]
    %v10016 = vld [vmem:[%s9 + $0xf8] sm:$0xf]
    %v10017 = vld [vmem:[%s9 + $0xfc] sm:$0xf]
    %v10018 = vld [vmem:[%s10] sm:$0x1]
    %v10020 = vlaneseq
    %v10021 = vshrl.u32 %v10020, 7
    %v10022 = vsub.s32 0, %v10021
    %v10023 = vrot.slane %v10018, %v10022
    %v10089 = vunpack.c.l.b16 %v9954
    %v10090 = vunpack.c.l.b16 %v9955
    %v10091 = vunpack.c.l.b16 %v9956
    %v10092 = vunpack.c.l.b16 %v9957
    %v10093 = vunpack.c.l.b16 %v9958
    %v10094 = vunpack.c.l.b16 %v9959
    %v10095 = vunpack.c.l.b16 %v9960
    %v10096 = vunpack.c.l.b16 %v9961
    %v10097 = vunpack.c.l.b16 %v9962
    %v10098 = vunpack.c.l.b16 %v9963
    %v10099 = vunpack.c.l.b16 %v9964
    %v10100 = vunpack.c.l.b16 %v9965
    %v10101 = vunpack.c.l.b16 %v9966
    %v10102 = vunpack.c.l.b16 %v9967
    %v10103 = vunpack.c.l.b16 %v9968
    %v10104 = vunpack.c.l.b16 %v9969
    %v10105 = vunpack.c.l.b16 %v9970
    %v10106 = vunpack.c.l.b16 %v9971
    %v10107 = vunpack.c.l.b16 %v9972
    %v10108 = vunpack.c.l.b16 %v9973
    %v10109 = vunpack.c.l.b16 %v9974
    %v10110 = vunpack.c.l.b16 %v9975
    %v10111 = vunpack.c.l.b16 %v9976
    %v10112 = vunpack.c.l.b16 %v9977
    %v10113 = vunpack.c.l.b16 %v9978
    %v10114 = vunpack.c.l.b16 %v9979
    %v10115 = vunpack.c.l.b16 %v9980
    %v10116 = vunpack.c.l.b16 %v9981
    %v10117 = vunpack.c.l.b16 %v9982
    %v10118 = vunpack.c.l.b16 %v9983
    %v10119 = vunpack.c.l.b16 %v9984
    %v10120 = vunpack.c.l.b16 %v9985
    %v10121 = vunpack.c.l.b16 %v9986
    %v10122 = vunpack.c.l.b16 %v9987
    %v10123 = vunpack.c.l.b16 %v9988
    %v10124 = vunpack.c.l.b16 %v9989
    %v10125 = vunpack.c.l.b16 %v9990
    %v10126 = vunpack.c.l.b16 %v9991
    %v10127 = vunpack.c.l.b16 %v9992
    %v10128 = vunpack.c.l.b16 %v9993
    %v10129 = vunpack.c.l.b16 %v9994
    %v10130 = vunpack.c.l.b16 %v9995
    %v10131 = vunpack.c.l.b16 %v9996
    %v10132 = vunpack.c.l.b16 %v9997
    %v10133 = vunpack.c.l.b16 %v9998
    %v10134 = vunpack.c.l.b16 %v9999
    %v10135 = vunpack.c.l.b16 %v10000
    %v10136 = vunpack.c.l.b16 %v10001
    %v10137 = vunpack.c.l.b16 %v10002
    %v10138 = vunpack.c.l.b16 %v10003
    %v10139 = vunpack.c.l.b16 %v10004
    %v10140 = vunpack.c.l.b16 %v10005
    %v10141 = vunpack.c.l.b16 %v10006
    %v10142 = vunpack.c.l.b16 %v10007
    %v10143 = vunpack.c.l.b16 %v10008
    %v10144 = vunpack.c.l.b16 %v10009
    %v10145 = vunpack.c.l.b16 %v10010
    %v10146 = vunpack.c.l.b16 %v10011
    %v10147 = vunpack.c.l.b16 %v10012
    %v10148 = vunpack.c.l.b16 %v10013
    %v10149 = vunpack.c.l.b16 %v10014
    %v10150 = vunpack.c.l.b16 %v10015
    %v10151 = vunpack.c.l.b16 %v10016
    %v10152 = vunpack.c.l.b16 %v10017
    %v10153 = vpack.c.b16 %v10090, %v10089
    %v10154 = vpack.c.b16 %v10092, %v10091
    %v10155 = vpack.c.b16 %v10094, %v10093
    %v10156 = vpack.c.b16 %v10096, %v10095
    %v10157 = vpack.c.b16 %v10098, %v10097
    %v10158 = vpack.c.b16 %v10100, %v10099
    %v10159 = vpack.c.b16 %v10102, %v10101
    %v10160 = vpack.c.b16 %v10104, %v10103
    %v10161 = vpack.c.b16 %v10106, %v10105
    %v10162 = vpack.c.b16 %v10108, %v10107
    %v10163 = vpack.c.b16 %v10110, %v10109
    %v10164 = vpack.c.b16 %v10112, %v10111
    %v10165 = vpack.c.b16 %v10114, %v10113
    %v10166 = vpack.c.b16 %v10116, %v10115
    %v10167 = vpack.c.b16 %v10118, %v10117
    %v10168 = vpack.c.b16 %v10120, %v10119
    %v10169 = vpack.c.b16 %v10122, %v10121
    %v10170 = vpack.c.b16 %v10124, %v10123
    %v10171 = vpack.c.b16 %v10126, %v10125
    %v10172 = vpack.c.b16 %v10128, %v10127
    %v10173 = vpack.c.b16 %v10130, %v10129
    %v10174 = vpack.c.b16 %v10132, %v10131
    %v10175 = vpack.c.b16 %v10134, %v10133
    %v10176 = vpack.c.b16 %v10136, %v10135
    %v10177 = vpack.c.b16 %v10138, %v10137
    %v10178 = vpack.c.b16 %v10140, %v10139
    %v10179 = vpack.c.b16 %v10142, %v10141
    %v10180 = vpack.c.b16 %v10144, %v10143
    %v10181 = vpack.c.b16 %v10146, %v10145
    %v10182 = vpack.c.b16 %v10148, %v10147
    %v10183 = vpack.c.b16 %v10150, %v10149
    %v10184 = vpack.c.b16 %v10152, %v10151
    %10217 = vmatprep.subr.bf16.mxu0 0
    %10218 = vmatpush1.bf16.msra.mxu0 %v10160
    %10219 = vmatprep.subr.bf16.mxu0 0
    %10220 = vmatpush1.bf16.msra.mxu0 %v10159
    %10221 = vmatprep.subr.bf16.mxu0 0
    %10222 = vmatpush1.bf16.msra.mxu0 %v10158
    %10223 = vmatprep.subr.bf16.mxu0 0
    %10224 = vmatpush1.bf16.msra.mxu0 %v10157
    %10225 = vmatprep.subr.bf16.mxu0 0
    %10226 = vmatpush1.bf16.msra.mxu0 %v10156
    %10227 = vmatprep.subr.bf16.mxu0 0
    %10228 = vmatpush1.bf16.msra.mxu0 %v10155
    %10229 = vmatprep.subr.bf16.mxu0 0
    %10230 = vmatpush1.bf16.msra.mxu0 %v10154
    %10231 = vmatprep.subr.bf16.mxu0 0
    %10232 = vmatpush1.bf16.msra.mxu0 %v10153
    %10233 = vmatprep.subr.bf16.mxu0 0
    %10234 = vmatpush2.bf16.msra.mxu0 %v10168
    %10235 = vmatprep.subr.bf16.mxu0 0
    %10236 = vmatpush2.bf16.msra.mxu0 %v10167
    %10237 = vmatprep.subr.bf16.mxu0 0
    %10238 = vmatpush2.bf16.msra.mxu0 %v10166
    %10239 = vmatprep.subr.bf16.mxu0 0
    %10240 = vmatpush2.bf16.msra.mxu0 %v10165
    %10241 = vmatprep.subr.bf16.mxu0 0
    %10242 = vmatpush2.bf16.msra.mxu0 %v10164
    %10243 = vmatprep.subr.bf16.mxu0 0
    %10244 = vmatpush2.bf16.msra.mxu0 %v10163
    %10245 = vmatprep.subr.bf16.mxu0 0
    %10246 = vmatpush2.bf16.msra.mxu0 %v10162
    %10247 = vmatprep.subr.bf16.mxu0 0
    %10248 = vmatpush2.bf16.msra.mxu0 %v10161
    %10249 = vmatprep.mubr.bf16.mxu0 %v9859
    %10250 = vmatmul.mubr.bf16.gmra.mxu0 %v9858
    %v10251 = vpop.f32.mrf.mxu0
    %v10252 = vadd.f32 %v10023, %v10251
    %v10253 = vpop.f32.mrf.mxu0
    %v10254 = vpop.f32.mrf.mxu0
    %v10255 = vadd.f32 %v10023, %v10254
    %v10256 = vpop.f32.mrf.mxu0
    %10257 = vmatprep.mubr.bf16.mxu0 %v9863
    %10258 = vmatmul.mubr.bf16.gmra.mxu0 %v9862
    %v10259 = vpop.f32.mrf.mxu0
    %v10260 = vadd.f32 %v10023, %v10259
    %v10261 = vpop.f32.mrf.mxu0
    %v10262 = vpop.f32.mrf.mxu0
    %v10263 = vadd.f32 %v10023, %v10262
    %v10264 = vpop.f32.mrf.mxu0
    %10265 = vmatprep.mubr.bf16.mxu0 %v9867
    %10266 = vmatmul.mubr.bf16.gmra.mxu0 %v9866
    %v10267 = vpop.f32.mrf.mxu0
    %v10268 = vadd.f32 %v10023, %v10267
    %v10269 = vpop.f32.mrf.mxu0
    %v10270 = vpop.f32.mrf.mxu0
    %v10271 = vadd.f32 %v10023, %v10270
    %v10272 = vpop.f32.mrf.mxu0
    %10273 = vmatprep.mubr.bf16.mxu0 %v9871
    %10274 = vmatmul.mubr.bf16.gmra.mxu0 %v9870
    %v10275 = vpop.f32.mrf.mxu0
    %v10276 = vadd.f32 %v10023, %v10275
    %v10277 = vpop.f32.mrf.mxu0
    %v10278 = vpop.f32.mrf.mxu0
    %v10279 = vadd.f32 %v10023, %v10278
    %v10280 = vpop.f32.mrf.mxu0
    %10281 = vmatprep.mubr.bf16.mxu0 %v9875
    %10282 = vmatmul.mubr.bf16.gmra.mxu0 %v9874
    %v10283 = vpop.f32.mrf.mxu0
    %v10284 = vadd.f32 %v10023, %v10283
    %v10285 = vpop.f32.mrf.mxu0
    %v10286 = vpop.f32.mrf.mxu0
    %v10287 = vadd.f32 %v10023, %v10286
    %v10288 = vpop.f32.mrf.mxu0
    %10289 = vmatprep.mubr.bf16.mxu0 %v9879
    %10290 = vmatmul.mubr.bf16.gmra.mxu0 %v9878
    %v10291 = vpop.f32.mrf.mxu0
    %v10292 = vadd.f32 %v10023, %v10291
    %v10293 = vpop.f32.mrf.mxu0
    %v10294 = vpop.f32.mrf.mxu0
    %v10295 = vadd.f32 %v10023, %v10294
    %v10296 = vpop.f32.mrf.mxu0
    %10297 = vmatprep.mubr.bf16.mxu0 %v9883
    %10298 = vmatmul.mubr.bf16.gmra.mxu0 %v9882
    %v10299 = vpop.f32.mrf.mxu0
    %v10300 = vadd.f32 %v10023, %v10299
    %v10301 = vpop.f32.mrf.mxu0
    %v10302 = vpop.f32.mrf.mxu0
    %v10303 = vadd.f32 %v10023, %v10302
    %v10304 = vpop.f32.mrf.mxu0
    %10305 = vmatprep.mubr.bf16.mxu0 %v9887
    %10306 = vmatmul.mubr.bf16.gmra.mxu0 %v9886
    %v10307 = vpop.f32.mrf.mxu0
    %v10308 = vadd.f32 %v10023, %v10307
    %v10309 = vpop.f32.mrf.mxu0
    %v10310 = vpop.f32.mrf.mxu0
    %v10311 = vadd.f32 %v10023, %v10310
    %v10312 = vpop.f32.mrf.mxu0
    %10313 = vmatprep.mubr.bf16.mxu0 %v9891
    %10314 = vmatmul.mubr.bf16.gmra.mxu0 %v9890
    %v10315 = vpop.f32.mrf.mxu0
    %v10316 = vadd.f32 %v10023, %v10315
    %v10317 = vpop.f32.mrf.mxu0
    %v10318 = vpop.f32.mrf.mxu0
    %v10319 = vadd.f32 %v10023, %v10318
    %v10320 = vpop.f32.mrf.mxu0
    %10321 = vmatprep.mubr.bf16.mxu0 %v9895
    %10322 = vmatmul.mubr.bf16.gmra.mxu0 %v9894
    %v10323 = vpop.f32.mrf.mxu0
    %v10324 = vadd.f32 %v10023, %v10323
    %v10325 = vpop.f32.mrf.mxu0
    %v10326 = vpop.f32.mrf.mxu0
    %v10327 = vadd.f32 %v10023, %v10326
    %v10328 = vpop.f32.mrf.mxu0
    %10329 = vmatprep.mubr.bf16.mxu0 %v9899
    %10330 = vmatmul.mubr.bf16.gmra.mxu0 %v9898
    %v10331 = vpop.f32.mrf.mxu0
    %v10332 = vadd.f32 %v10023, %v10331
    %v10333 = vpop.f32.mrf.mxu0
    %v10334 = vpop.f32.mrf.mxu0
    %v10335 = vadd.f32 %v10023, %v10334
    %v10336 = vpop.f32.mrf.mxu0
    %10337 = vmatprep.mubr.bf16.mxu0 %v9903
    %10338 = vmatmul.mubr.bf16.gmra.mxu0 %v9902
    %v10339 = vpop.f32.mrf.mxu0
    %v10340 = vadd.f32 %v10023, %v10339
    %v10341 = vpop.f32.mrf.mxu0
    %v10342 = vpop.f32.mrf.mxu0
    %v10343 = vadd.f32 %v10023, %v10342
    %v10344 = vpop.f32.mrf.mxu0
    %10345 = vmatprep.mubr.bf16.mxu0 %v9907
    %10346 = vmatmul.mubr.bf16.gmra.mxu0 %v9906
    %v10347 = vpop.f32.mrf.mxu0
    %v10348 = vadd.f32 %v10023, %v10347
    %v10349 = vpop.f32.mrf.mxu0
    %v10350 = vpop.f32.mrf.mxu0
    %v10351 = vadd.f32 %v10023, %v10350
    %v10352 = vpop.f32.mrf.mxu0
    %10353 = vmatprep.mubr.bf16.mxu0 %v9911
    %10354 = vmatmul.mubr.bf16.gmra.mxu0 %v9910
    %v10355 = vpop.f32.mrf.mxu0
    %v10356 = vadd.f32 %v10023, %v10355
    %v10357 = vpop.f32.mrf.mxu0
    %v10358 = vpop.f32.mrf.mxu0
    %v10359 = vadd.f32 %v10023, %v10358
    %v10360 = vpop.f32.mrf.mxu0
    %10361 = vmatprep.mubr.bf16.mxu0 %v9915
    %10362 = vmatmul.mubr.bf16.gmra.mxu0 %v9914
    %v10363 = vpop.f32.mrf.mxu0
    %v10364 = vadd.f32 %v10023, %v10363
    %v10365 = vpop.f32.mrf.mxu0
    %v10366 = vpop.f32.mrf.mxu0
    %v10367 = vadd.f32 %v10023, %v10366
    %v10368 = vpop.f32.mrf.mxu0
    %10369 = vmatprep.mubr.bf16.mxu0 %v9919
    %10370 = vmatmul.mubr.bf16.gmra.mxu0 %v9918
    %v10371 = vpop.f32.mrf.mxu0
    %v10372 = vadd.f32 %v10023, %v10371
    %v10373 = vpop.f32.mrf.mxu0
    %v10374 = vpop.f32.mrf.mxu0
    %v10375 = vadd.f32 %v10023, %v10374
    %v10376 = vpop.f32.mrf.mxu0
    %10377 = vmatprep.mubr.bf16.mxu0 %v9923
    %10378 = vmatmul.mubr.bf16.gmra.mxu0 %v9922
    %v10379 = vpop.f32.mrf.mxu0
    %v10380 = vadd.f32 %v10023, %v10379
    %v10381 = vpop.f32.mrf.mxu0
    %v10382 = vpop.f32.mrf.mxu0
    %v10383 = vadd.f32 %v10023, %v10382
    %v10384 = vpop.f32.mrf.mxu0
    %10385 = vmatprep.mubr.bf16.mxu0 %v9927
    %10386 = vmatmul.mubr.bf16.gmra.mxu0 %v9926
    %v10387 = vpop.f32.mrf.mxu0
    %v10388 = vadd.f32 %v10023, %v10387
    %v10389 = vpop.f32.mrf.mxu0
    %v10390 = vpop.f32.mrf.mxu0
    %v10391 = vadd.f32 %v10023, %v10390
    %v10392 = vpop.f32.mrf.mxu0
    %10393 = vmatprep.mubr.bf16.mxu0 %v9931
    %10394 = vmatmul.mubr.bf16.gmra.mxu0 %v9930
    %v10395 = vpop.f32.mrf.mxu0
    %v10396 = vadd.f32 %v10023, %v10395
    %v10397 = vpop.f32.mrf.mxu0
    %v10398 = vpop.f32.mrf.mxu0
    %v10399 = vadd.f32 %v10023, %v10398
    %v10400 = vpop.f32.mrf.mxu0
    %10401 = vmatprep.mubr.bf16.mxu0 %v9935
    %10402 = vmatmul.mubr.bf16.gmra.mxu0 %v9934
    %v10403 = vpop.f32.mrf.mxu0
    %v10404 = vadd.f32 %v10023, %v10403
    %v10405 = vpop.f32.mrf.mxu0
    %v10406 = vpop.f32.mrf.mxu0
    %v10407 = vadd.f32 %v10023, %v10406
    %v10408 = vpop.f32.mrf.mxu0
    %10409 = vmatprep.mubr.bf16.mxu0 %v9939
    %10410 = vmatmul.mubr.bf16.gmra.mxu0 %v9938
    %v10411 = vpop.f32.mrf.mxu0
    %v10412 = vadd.f32 %v10023, %v10411
    %v10413 = vpop.f32.mrf.mxu0
    %v10414 = vpop.f32.mrf.mxu0
    %v10415 = vadd.f32 %v10023, %v10414
    %v10416 = vpop.f32.mrf.mxu0
    %10417 = vmatprep.mubr.bf16.mxu0 %v9943
    %10418 = vmatmul.mubr.bf16.gmra.mxu0 %v9942
    %v10419 = vpop.f32.mrf.mxu0
    %v10420 = vadd.f32 %v10023, %v10419
    %v10421 = vpop.f32.mrf.mxu0
    %v10422 = vpop.f32.mrf.mxu0
    %v10423 = vadd.f32 %v10023, %v10422
    %v10424 = vpop.f32.mrf.mxu0
    %10425 = vmatprep.mubr.bf16.mxu0 %v9947
    %10426 = vmatmul.mubr.bf16.gmra.mxu0 %v9946
    %v10427 = vpop.f32.mrf.mxu0
    %v10428 = vadd.f32 %v10023, %v10427
    %v10429 = vpop.f32.mrf.mxu0
    %v10430 = vpop.f32.mrf.mxu0
    %v10431 = vadd.f32 %v10023, %v10430
    %v10432 = vpop.f32.mrf.mxu0
    %10433 = vmatprep.mubr.bf16.mxu0 %v9951
    %10434 = vmatmul.mubr.bf16.gmra.mxu0 %v9950
    %v10435 = vpop.f32.mrf.mxu0
    %v10436 = vadd.f32 %v10023, %v10435
    %v10437 = vpop.f32.mrf.mxu0
    %v10438 = vpop.f32.mrf.mxu0
    %v10439 = vadd.f32 %v10023, %v10438
    %v10440 = vpop.f32.mrf.mxu0
    %10441 = vdwg.mxu0
    %10442 = vmatprep.subr.bf16.mxu0 0
    %10443 = vmatpush1.bf16.msra.mxu0 %v10176
    %10444 = vmatprep.subr.bf16.mxu0 0
    %10445 = vmatpush1.bf16.msra.mxu0 %v10175
    %10446 = vmatprep.subr.bf16.mxu0 0
    %10447 = vmatpush1.bf16.msra.mxu0 %v10174
    %10448 = vmatprep.subr.bf16.mxu0 0
    %10449 = vmatpush1.bf16.msra.mxu0 %v10173
    %10450 = vmatprep.subr.bf16.mxu0 0
    %10451 = vmatpush1.bf16.msra.mxu0 %v10172
    %10452 = vmatprep.subr.bf16.mxu0 0
    %10453 = vmatpush1.bf16.msra.mxu0 %v10171
    %10454 = vmatprep.subr.bf16.mxu0 0
    %10455 = vmatpush1.bf16.msra.mxu0 %v10170
    %10456 = vmatprep.subr.bf16.mxu0 0
    %10457 = vmatpush1.bf16.msra.mxu0 %v10169
    %10458 = vmatprep.subr.bf16.mxu0 0
    %10459 = vmatpush2.bf16.msra.mxu0 %v10184
    %10460 = vmatprep.subr.bf16.mxu0 0
    %10461 = vmatpush2.bf16.msra.mxu0 %v10183
    %10462 = vmatprep.subr.bf16.mxu0 0
    %10463 = vmatpush2.bf16.msra.mxu0 %v10182
    %10464 = vmatprep.subr.bf16.mxu0 0
    %10465 = vmatpush2.bf16.msra.mxu0 %v10181
    %10466 = vmatprep.subr.bf16.mxu0 0
    %10467 = vmatpush2.bf16.msra.mxu0 %v10180
    %10468 = vmatprep.subr.bf16.mxu0 0
    %10469 = vmatpush2.bf16.msra.mxu0 %v10179
    %10470 = vmatprep.subr.bf16.mxu0 0
    %10471 = vmatpush2.bf16.msra.mxu0 %v10178
    %10472 = vmatprep.subr.bf16.mxu0 0
    %10473 = vmatpush2.bf16.msra.mxu0 %v10177
    %10474 = vmatprep.mubr.bf16.mxu0 %v9861
    %10475 = vmatmul.mubr.bf16.gmra.mxu0 %v9860
    %v10476 = vpop.f32.mrf.mxu0
    %v10477 = vadd.f32 %v10252, %v10476
    %v10478 = vpop.f32.mrf.mxu0
    %v10479 = vpop.f32.mrf.mxu0
    %v10480 = vadd.f32 %v10255, %v10479
    %v10481 = vpop.f32.mrf.mxu0
    %10482 = vmatprep.mubr.bf16.mxu0 %v9865
    %10483 = vmatmul.mubr.bf16.gmra.mxu0 %v9864
    %v10484 = vpop.f32.mrf.mxu0
    %v10485 = vadd.f32 %v10260, %v10484
    %v10486 = vpop.f32.mrf.mxu0
    %v10487 = vpop.f32.mrf.mxu0
    %v10488 = vadd.f32 %v10263, %v10487
    %v10489 = vpop.f32.mrf.mxu0
    %10490 = vmatprep.mubr.bf16.mxu0 %v9869
    %10491 = vmatmul.mubr.bf16.gmra.mxu0 %v9868
    %v10492 = vpop.f32.mrf.mxu0
    %v10493 = vadd.f32 %v10268, %v10492
    %v10494 = vpop.f32.mrf.mxu0
    %v10495 = vpop.f32.mrf.mxu0
    %v10496 = vadd.f32 %v10271, %v10495
    %v10497 = vpop.f32.mrf.mxu0
    %10498 = vmatprep.mubr.bf16.mxu0 %v9873
    %10499 = vmatmul.mubr.bf16.gmra.mxu0 %v9872
    %v10500 = vpop.f32.mrf.mxu0
    %v10501 = vadd.f32 %v10276, %v10500
    %v10502 = vpop.f32.mrf.mxu0
    %v10503 = vpop.f32.mrf.mxu0
    %v10504 = vadd.f32 %v10279, %v10503
    %v10505 = vpop.f32.mrf.mxu0
    %10506 = vmatprep.mubr.bf16.mxu0 %v9877
    %10507 = vmatmul.mubr.bf16.gmra.mxu0 %v9876
    %v10508 = vpop.f32.mrf.mxu0
    %v10509 = vadd.f32 %v10284, %v10508
    %v10510 = vpop.f32.mrf.mxu0
    %v10511 = vpop.f32.mrf.mxu0
    %v10512 = vadd.f32 %v10287, %v10511
    %v10513 = vpop.f32.mrf.mxu0
    %10514 = vmatprep.mubr.bf16.mxu0 %v9881
    %10515 = vmatmul.mubr.bf16.gmra.mxu0 %v9880
    %v10516 = vpop.f32.mrf.mxu0
    %v10517 = vadd.f32 %v10292, %v10516
    %v10518 = vpop.f32.mrf.mxu0
    %v10519 = vpop.f32.mrf.mxu0
    %v10520 = vadd.f32 %v10295, %v10519
    %v10521 = vpop.f32.mrf.mxu0
    %10522 = vmatprep.mubr.bf16.mxu0 %v9885
    %10523 = vmatmul.mubr.bf16.gmra.mxu0 %v9884
    %v10524 = vpop.f32.mrf.mxu0
    %v10525 = vadd.f32 %v10300, %v10524
    %v10526 = vpop.f32.mrf.mxu0
    %v10527 = vpop.f32.mrf.mxu0
    %v10528 = vadd.f32 %v10303, %v10527
    %v10529 = vpop.f32.mrf.mxu0
    %10530 = vmatprep.mubr.bf16.mxu0 %v9889
    %10531 = vmatmul.mubr.bf16.gmra.mxu0 %v9888
    %v10532 = vpop.f32.mrf.mxu0
    %v10533 = vadd.f32 %v10308, %v10532
    %v10534 = vpop.f32.mrf.mxu0
    %v10535 = vpop.f32.mrf.mxu0
    %v10536 = vadd.f32 %v10311, %v10535
    %v10537 = vpop.f32.mrf.mxu0
    %10538 = vmatprep.mubr.bf16.mxu0 %v9893
    %10539 = vmatmul.mubr.bf16.gmra.mxu0 %v9892
    %v10540 = vpop.f32.mrf.mxu0
    %v10541 = vadd.f32 %v10316, %v10540
    %v10542 = vpop.f32.mrf.mxu0
    %v10543 = vpop.f32.mrf.mxu0
    %v10544 = vadd.f32 %v10319, %v10543
    %v10545 = vpop.f32.mrf.mxu0
    %10546 = vmatprep.mubr.bf16.mxu0 %v9897
    %10547 = vmatmul.mubr.bf16.gmra.mxu0 %v9896
    %v10548 = vpop.f32.mrf.mxu0
    %v10549 = vadd.f32 %v10324, %v10548
    %v10550 = vpop.f32.mrf.mxu0
    %v10551 = vpop.f32.mrf.mxu0
    %v10552 = vadd.f32 %v10327, %v10551
    %v10553 = vpop.f32.mrf.mxu0
    %10554 = vmatprep.mubr.bf16.mxu0 %v9901
    %10555 = vmatmul.mubr.bf16.gmra.mxu0 %v9900
    %v10556 = vpop.f32.mrf.mxu0
    %v10557 = vadd.f32 %v10332, %v10556
    %v10558 = vpop.f32.mrf.mxu0
    %v10559 = vpop.f32.mrf.mxu0
    %v10560 = vadd.f32 %v10335, %v10559
    %v10561 = vpop.f32.mrf.mxu0
    %10562 = vmatprep.mubr.bf16.mxu0 %v9905
    %10563 = vmatmul.mubr.bf16.gmra.mxu0 %v9904
    %v10564 = vpop.f32.mrf.mxu0
    %v10565 = vadd.f32 %v10340, %v10564
    %v10566 = vpop.f32.mrf.mxu0
    %v10567 = vpop.f32.mrf.mxu0
    %v10568 = vadd.f32 %v10343, %v10567
    %v10569 = vpop.f32.mrf.mxu0
    %10570 = vmatprep.mubr.bf16.mxu0 %v9909
    %10571 = vmatmul.mubr.bf16.gmra.mxu0 %v9908
    %v10572 = vpop.f32.mrf.mxu0
    %v10573 = vadd.f32 %v10348, %v10572
    %v10574 = vpop.f32.mrf.mxu0
    %v10575 = vpop.f32.mrf.mxu0
    %v10576 = vadd.f32 %v10351, %v10575
    %v10577 = vpop.f32.mrf.mxu0
    %10578 = vmatprep.mubr.bf16.mxu0 %v9913
    %10579 = vmatmul.mubr.bf16.gmra.mxu0 %v9912
    %v10580 = vpop.f32.mrf.mxu0
    %v10581 = vadd.f32 %v10356, %v10580
    %v10582 = vpop.f32.mrf.mxu0
    %v10583 = vpop.f32.mrf.mxu0
    %v10584 = vadd.f32 %v10359, %v10583
    %v10585 = vpop.f32.mrf.mxu0
    %10586 = vmatprep.mubr.bf16.mxu0 %v9917
    %10587 = vmatmul.mubr.bf16.gmra.mxu0 %v9916
    %v10588 = vpop.f32.mrf.mxu0
    %v10589 = vadd.f32 %v10364, %v10588
    %v10590 = vpop.f32.mrf.mxu0
    %v10591 = vpop.f32.mrf.mxu0
    %v10592 = vadd.f32 %v10367, %v10591
    %v10593 = vpop.f32.mrf.mxu0
    %10594 = vmatprep.mubr.bf16.mxu0 %v9921
    %10595 = vmatmul.mubr.bf16.gmra.mxu0 %v9920
    %v10596 = vpop.f32.mrf.mxu0
    %v10597 = vadd.f32 %v10372, %v10596
    %v10598 = vpop.f32.mrf.mxu0
    %v10599 = vpop.f32.mrf.mxu0
    %v10600 = vadd.f32 %v10375, %v10599
    %v10601 = vpop.f32.mrf.mxu0
    %10602 = vmatprep.mubr.bf16.mxu0 %v9925
    %10603 = vmatmul.mubr.bf16.gmra.mxu0 %v9924
    %v10604 = vpop.f32.mrf.mxu0
    %v10605 = vadd.f32 %v10380, %v10604
    %v10606 = vpop.f32.mrf.mxu0
    %v10607 = vpop.f32.mrf.mxu0
    %v10608 = vadd.f32 %v10383, %v10607
    %v10609 = vpop.f32.mrf.mxu0
    %10610 = vmatprep.mubr.bf16.mxu0 %v9929
    %10611 = vmatmul.mubr.bf16.gmra.mxu0 %v9928
    %v10612 = vpop.f32.mrf.mxu0
    %v10613 = vadd.f32 %v10388, %v10612
    %v10614 = vpop.f32.mrf.mxu0
    %v10615 = vpop.f32.mrf.mxu0
    %v10616 = vadd.f32 %v10391, %v10615
    %v10617 = vpop.f32.mrf.mxu0
    %10618 = vmatprep.mubr.bf16.mxu0 %v9933
    %10619 = vmatmul.mubr.bf16.gmra.mxu0 %v9932
    %v10620 = vpop.f32.mrf.mxu0
    %v10621 = vadd.f32 %v10396, %v10620
    %v10622 = vpop.f32.mrf.mxu0
    %v10623 = vpop.f32.mrf.mxu0
    %v10624 = vadd.f32 %v10399, %v10623
    %v10625 = vpop.f32.mrf.mxu0
    %10626 = vmatprep.mubr.bf16.mxu0 %v9937
    %10627 = vmatmul.mubr.bf16.gmra.mxu0 %v9936
    %v10628 = vpop.f32.mrf.mxu0
    %v10629 = vadd.f32 %v10404, %v10628
    %v10630 = vpop.f32.mrf.mxu0
    %v10631 = vpop.f32.mrf.mxu0
    %v10632 = vadd.f32 %v10407, %v10631
    %v10633 = vpop.f32.mrf.mxu0
    %10634 = vmatprep.mubr.bf16.mxu0 %v9941
    %10635 = vmatmul.mubr.bf16.gmra.mxu0 %v9940
    %v10636 = vpop.f32.mrf.mxu0
    %v10637 = vadd.f32 %v10412, %v10636
    %v10638 = vpop.f32.mrf.mxu0
    %v10639 = vpop.f32.mrf.mxu0
    %v10640 = vadd.f32 %v10415, %v10639
    %v10641 = vpop.f32.mrf.mxu0
    %10642 = vmatprep.mubr.bf16.mxu0 %v9945
    %10643 = vmatmul.mubr.bf16.gmra.mxu0 %v9944
    %v10644 = vpop.f32.mrf.mxu0
    %v10645 = vadd.f32 %v10420, %v10644
    %v10646 = vpop.f32.mrf.mxu0
    %v10647 = vpop.f32.mrf.mxu0
    %v10648 = vadd.f32 %v10423, %v10647
    %v10649 = vpop.f32.mrf.mxu0
    %10650 = vmatprep.mubr.bf16.mxu0 %v9949
    %10651 = vmatmul.mubr.bf16.gmra.mxu0 %v9948
    %v10652 = vpop.f32.mrf.mxu0
    %v10653 = vadd.f32 %v10428, %v10652
    %v10654 = vpop.f32.mrf.mxu0
    %v10655 = vpop.f32.mrf.mxu0
    %v10656 = vadd.f32 %v10431, %v10655
    %v10657 = vpop.f32.mrf.mxu0
    %10658 = vmatprep.mubr.bf16.mxu0 %v9953
    %10659 = vmatmul.mubr.bf16.gmra.mxu0 %v9952
    %v10660 = vpop.f32.mrf.mxu0
    %v10661 = vadd.f32 %v10436, %v10660
    %v10662 = vpop.f32.mrf.mxu0
    %v10663 = vpop.f32.mrf.mxu0
    %v10664 = vadd.f32 %v10439, %v10663
    %v10665 = vpop.f32.mrf.mxu0
    %10666 = vdwg.mxu0
    %v10667 = vmax.f32 %v10477, 0.0
    %v10668 = vmax.f32 %v10480, 0.0
    %v10669 = vmax.f32 %v10485, 0.0
    %v10670 = vmax.f32 %v10488, 0.0
    %v10671 = vmax.f32 %v10493, 0.0
    %v10672 = vmax.f32 %v10496, 0.0
    %v10673 = vmax.f32 %v10501, 0.0
    %v10674 = vmax.f32 %v10504, 0.0
    %v10675 = vmax.f32 %v10509, 0.0
    %v10676 = vmax.f32 %v10512, 0.0
    %v10677 = vmax.f32 %v10517, 0.0
    %v10678 = vmax.f32 %v10520, 0.0
    %v10679 = vmax.f32 %v10525, 0.0
    %v10680 = vmax.f32 %v10528, 0.0
    %v10681 = vmax.f32 %v10533, 0.0
    %v10682 = vmax.f32 %v10536, 0.0
    %v10683 = vmax.f32 %v10541, 0.0
    %v10684 = vmax.f32 %v10544, 0.0
    %v10685 = vmax.f32 %v10549, 0.0
    %v10686 = vmax.f32 %v10552, 0.0
    %v10687 = vmax.f32 %v10557, 0.0
    %v10688 = vmax.f32 %v10560, 0.0
    %v10689 = vmax.f32 %v10565, 0.0
    %v10690 = vmax.f32 %v10568, 0.0
    %v10691 = vmax.f32 %v10573, 0.0
    %v10692 = vmax.f32 %v10576, 0.0
    %v10693 = vmax.f32 %v10581, 0.0
    %v10694 = vmax.f32 %v10584, 0.0
    %v10695 = vmax.f32 %v10589, 0.0
    %v10696 = vmax.f32 %v10592, 0.0
    %v10697 = vmax.f32 %v10597, 0.0
    %v10698 = vmax.f32 %v10600, 0.0
    %v10699 = vmax.f32 %v10605, 0.0
    %v10700 = vmax.f32 %v10608, 0.0
    %v10701 = vmax.f32 %v10613, 0.0
    %v10702 = vmax.f32 %v10616, 0.0
    %v10703 = vmax.f32 %v10621, 0.0
    %v10704 = vmax.f32 %v10624, 0.0
    %v10705 = vmax.f32 %v10629, 0.0
    %v10706 = vmax.f32 %v10632, 0.0
    %v10707 = vmax.f32 %v10637, 0.0
    %v10708 = vmax.f32 %v10640, 0.0
    %v10709 = vmax.f32 %v10645, 0.0
    %v10710 = vmax.f32 %v10648, 0.0
    %v10711 = vmax.f32 %v10653, 0.0
    %v10712 = vmax.f32 %v10656, 0.0
    %v10713 = vmax.f32 %v10661, 0.0
    %v10714 = vmax.f32 %v10664, 0.0
    %v10715 = vpack.c.bf16 %v10668, %v10667
    %v10716 = vpack.c.bf16 %v10670, %v10669
    %v10717 = vpack.c.bf16 %v10672, %v10671
    %v10718 = vpack.c.bf16 %v10674, %v10673
    %v10719 = vpack.c.bf16 %v10676, %v10675
    %v10720 = vpack.c.bf16 %v10678, %v10677
    %v10721 = vpack.c.bf16 %v10680, %v10679
    %v10722 = vpack.c.bf16 %v10682, %v10681
    %v10723 = vpack.c.bf16 %v10684, %v10683
    %v10724 = vpack.c.bf16 %v10686, %v10685
    %v10725 = vpack.c.bf16 %v10688, %v10687
    %v10726 = vpack.c.bf16 %v10690, %v10689
    %v10727 = vpack.c.bf16 %v10692, %v10691
    %v10728 = vpack.c.bf16 %v10694, %v10693
    %v10729 = vpack.c.bf16 %v10696, %v10695
    %v10730 = vpack.c.bf16 %v10698, %v10697
    %v10731 = vpack.c.bf16 %v10700, %v10699
    %v10732 = vpack.c.bf16 %v10702, %v10701
    %v10733 = vpack.c.bf16 %v10704, %v10703
    %v10734 = vpack.c.bf16 %v10706, %v10705
    %v10735 = vpack.c.bf16 %v10708, %v10707
    %v10736 = vpack.c.bf16 %v10710, %v10709
    %v10737 = vpack.c.bf16 %v10712, %v10711
    %v10738 = vpack.c.bf16 %v10714, %v10713
    %v10739 = vld [vmem:[%s11] sm:$0xf]
    %v10740 = vld [vmem:[%s11 + $0x4] sm:$0xf]
    %v10741 = vld [vmem:[%s11 + $0x8] sm:$0xf]
    %v10742 = vld [vmem:[%s11 + $0xc] sm:$0xf]
    %v10743 = vld [vmem:[%s11 + $0x10] sm:$0xf]
    %v10744 = vld [vmem:[%s11 + $0x14] sm:$0xf]
    %v10745 = vld [vmem:[%s11 + $0x18] sm:$0xf]
    %v10746 = vld [vmem:[%s11 + $0x1c] sm:$0xf]
    %v10747 = vld [vmem:[%s11 + $0x20] sm:$0xf]
    %v10748 = vld [vmem:[%s11 + $0x24] sm:$0xf]
    %v10749 = vld [vmem:[%s11 + $0x28] sm:$0xf]
    %v10750 = vld [vmem:[%s11 + $0x2c] sm:$0xf]
    %v10751 = vld [vmem:[%s11 + $0x30] sm:$0xf]
    %v10752 = vld [vmem:[%s11 + $0x34] sm:$0xf]
    %v10753 = vld [vmem:[%s11 + $0x38] sm:$0xf]
    %v10754 = vld [vmem:[%s11 + $0x3c] sm:$0xf]
    %v10755 = vld [vmem:[%s12] sm:$0x1]
    %v10757 = vlaneseq
    %v10758 = vshrl.u32 %v10757, 7
    %v10759 = vsub.s32 0, %v10758
    %v10760 = vrot.slane %v10755, %v10759
    %v10778 = vunpack.c.l.b16 %v10739
    %v10779 = vunpack.c.l.b16 %v10740
    %v10780 = vunpack.c.l.b16 %v10741
    %v10781 = vunpack.c.l.b16 %v10742
    %v10782 = vunpack.c.l.b16 %v10743
    %v10783 = vunpack.c.l.b16 %v10744
    %v10784 = vunpack.c.l.b16 %v10745
    %v10785 = vunpack.c.l.b16 %v10746
    %v10786 = vunpack.c.l.b16 %v10747
    %v10787 = vunpack.c.l.b16 %v10748
    %v10788 = vunpack.c.l.b16 %v10749
    %v10789 = vunpack.c.l.b16 %v10750
    %v10790 = vunpack.c.l.b16 %v10751
    %v10791 = vunpack.c.l.b16 %v10752
    %v10792 = vunpack.c.l.b16 %v10753
    %v10793 = vunpack.c.l.b16 %v10754
    %v10794 = vpack.c.b16 %v10779, %v10778
    %v10795 = vpack.c.b16 %v10781, %v10780
    %v10796 = vpack.c.b16 %v10783, %v10782
    %v10797 = vpack.c.b16 %v10785, %v10784
    %v10798 = vpack.c.b16 %v10787, %v10786
    %v10799 = vpack.c.b16 %v10789, %v10788
    %v10800 = vpack.c.b16 %v10791, %v10790
    %v10801 = vpack.c.b16 %v10793, %v10792
    %10810 = vmatprep.subr.bf16.mxu0 0
    %10811 = vmatpush1.bf16.msra.mxu0 %v10801
    %10812 = vmatprep.subr.bf16.mxu0 0
    %10813 = vmatpush1.bf16.msra.mxu0 %v10800
    %10814 = vmatprep.subr.bf16.mxu0 0
    %10815 = vmatpush1.bf16.msra.mxu0 %v10799
    %10816 = vmatprep.subr.bf16.mxu0 0
    %10817 = vmatpush1.bf16.msra.mxu0 %v10798
    %10818 = vmatprep.subr.bf16.mxu0 0
    %10819 = vmatpush1.bf16.msra.mxu0 %v10797
    %10820 = vmatprep.subr.bf16.mxu0 0
    %10821 = vmatpush1.bf16.msra.mxu0 %v10796
    %10822 = vmatprep.subr.bf16.mxu0 0
    %10823 = vmatpush1.bf16.msra.mxu0 %v10795
    %10824 = vmatprep.subr.bf16.mxu0 0
    %10825 = vmatpush1.bf16.msra.mxu0 %v10794
    %10826 = vmatprep.subr.bf16.mxu0 0
    %10827 = vmatpush2.bf16.msra.mxu0 0
    %10828 = vmatprep.subr.bf16.mxu0 0
    %10829 = vmatpush2.bf16.msra.mxu0 0
    %10830 = vmatprep.subr.bf16.mxu0 0
    %10831 = vmatpush2.bf16.msra.mxu0 0
    %10832 = vmatprep.subr.bf16.mxu0 0
    %10833 = vmatpush2.bf16.msra.mxu0 0
    %10834 = vmatprep.subr.bf16.mxu0 0
    %10835 = vmatpush2.bf16.msra.mxu0 0
    %10836 = vmatprep.subr.bf16.mxu0 0
    %10837 = vmatpush2.bf16.msra.mxu0 0
    %10838 = vmatprep.subr.bf16.mxu0 0
    %10839 = vmatpush2.bf16.msra.mxu0 0
    %10840 = vmatprep.subr.bf16.mxu0 0
    %10841 = vmatpush2.bf16.msra.mxu0 0
    %10842 = vmatprep.mubr.bf16.mxu0 0
    %10843 = vmatmul.mubr.bf16.gmra.mxu0 %v10715
    %v10844 = vpop.f32.mrf.mxu0
    %v10845 = vadd.f32 %v10760, %v10844
    %v10846 = vpop.f32.mrf.mxu0
    %v10847 = vpop.f32.mrf.mxu0
    %v10848 = vadd.f32 %v10760, %v10847
    %v10849 = vpop.f32.mrf.mxu0
    %10850 = vmatprep.mubr.bf16.mxu0 0
    %10851 = vmatmul.mubr.bf16.gmra.mxu0 %v10716
    %v10852 = vpop.f32.mrf.mxu0
    %v10853 = vadd.f32 %v10760, %v10852
    %v10854 = vpop.f32.mrf.mxu0
    %v10855 = vpop.f32.mrf.mxu0
    %v10856 = vadd.f32 %v10760, %v10855
    %v10857 = vpop.f32.mrf.mxu0
    %10858 = vmatprep.mubr.bf16.mxu0 0
    %10859 = vmatmul.mubr.bf16.gmra.mxu0 %v10717
    %v10860 = vpop.f32.mrf.mxu0
    %v10861 = vadd.f32 %v10760, %v10860
    %v10862 = vpop.f32.mrf.mxu0
    %v10863 = vpop.f32.mrf.mxu0
    %v10864 = vadd.f32 %v10760, %v10863
    %v10865 = vpop.f32.mrf.mxu0
    %10866 = vmatprep.mubr.bf16.mxu0 0
    %10867 = vmatmul.mubr.bf16.gmra.mxu0 %v10718
    %v10868 = vpop.f32.mrf.mxu0
    %v10869 = vadd.f32 %v10760, %v10868
    %v10870 = vpop.f32.mrf.mxu0
    %v10871 = vpop.f32.mrf.mxu0
    %v10872 = vadd.f32 %v10760, %v10871
    %v10873 = vpop.f32.mrf.mxu0
    %10874 = vmatprep.mubr.bf16.mxu0 0
    %10875 = vmatmul.mubr.bf16.gmra.mxu0 %v10719
    %v10876 = vpop.f32.mrf.mxu0
    %v10877 = vadd.f32 %v10760, %v10876
    %v10878 = vpop.f32.mrf.mxu0
    %v10879 = vpop.f32.mrf.mxu0
    %v10880 = vadd.f32 %v10760, %v10879
    %v10881 = vpop.f32.mrf.mxu0
    %10882 = vmatprep.mubr.bf16.mxu0 0
    %10883 = vmatmul.mubr.bf16.gmra.mxu0 %v10720
    %v10884 = vpop.f32.mrf.mxu0
    %v10885 = vadd.f32 %v10760, %v10884
    %v10886 = vpop.f32.mrf.mxu0
    %v10887 = vpop.f32.mrf.mxu0
    %v10888 = vadd.f32 %v10760, %v10887
    %v10889 = vpop.f32.mrf.mxu0
    %10890 = vmatprep.mubr.bf16.mxu0 0
    %10891 = vmatmul.mubr.bf16.gmra.mxu0 %v10721
    %v10892 = vpop.f32.mrf.mxu0
    %v10893 = vadd.f32 %v10760, %v10892
    %v10894 = vpop.f32.mrf.mxu0
    %v10895 = vpop.f32.mrf.mxu0
    %v10896 = vadd.f32 %v10760, %v10895
    %v10897 = vpop.f32.mrf.mxu0
    %10898 = vmatprep.mubr.bf16.mxu0 0
    %10899 = vmatmul.mubr.bf16.gmra.mxu0 %v10722
    %v10900 = vpop.f32.mrf.mxu0
    %v10901 = vadd.f32 %v10760, %v10900
    %v10902 = vpop.f32.mrf.mxu0
    %v10903 = vpop.f32.mrf.mxu0
    %v10904 = vadd.f32 %v10760, %v10903
    %v10905 = vpop.f32.mrf.mxu0
    %10906 = vmatprep.mubr.bf16.mxu0 0
    %10907 = vmatmul.mubr.bf16.gmra.mxu0 %v10723
    %v10908 = vpop.f32.mrf.mxu0
    %v10909 = vadd.f32 %v10760, %v10908
    %v10910 = vpop.f32.mrf.mxu0
    %v10911 = vpop.f32.mrf.mxu0
    %v10912 = vadd.f32 %v10760, %v10911
    %v10913 = vpop.f32.mrf.mxu0
    %10914 = vmatprep.mubr.bf16.mxu0 0
    %10915 = vmatmul.mubr.bf16.gmra.mxu0 %v10724
    %v10916 = vpop.f32.mrf.mxu0
    %v10917 = vadd.f32 %v10760, %v10916
    %v10918 = vpop.f32.mrf.mxu0
    %v10919 = vpop.f32.mrf.mxu0
    %v10920 = vadd.f32 %v10760, %v10919
    %v10921 = vpop.f32.mrf.mxu0
    %10922 = vmatprep.mubr.bf16.mxu0 0
    %10923 = vmatmul.mubr.bf16.gmra.mxu0 %v10725
    %v10924 = vpop.f32.mrf.mxu0
    %v10925 = vadd.f32 %v10760, %v10924
    %v10926 = vpop.f32.mrf.mxu0
    %v10927 = vpop.f32.mrf.mxu0
    %v10928 = vadd.f32 %v10760, %v10927
    %v10929 = vpop.f32.mrf.mxu0
    %10930 = vmatprep.mubr.bf16.mxu0 0
    %10931 = vmatmul.mubr.bf16.gmra.mxu0 %v10726
    %v10932 = vpop.f32.mrf.mxu0
    %v10933 = vadd.f32 %v10760, %v10932
    %v10934 = vpop.f32.mrf.mxu0
    %v10935 = vpop.f32.mrf.mxu0
    %v10936 = vadd.f32 %v10760, %v10935
    %v10937 = vpop.f32.mrf.mxu0
    %10938 = vmatprep.mubr.bf16.mxu0 0
    %10939 = vmatmul.mubr.bf16.gmra.mxu0 %v10727
    %v10940 = vpop.f32.mrf.mxu0
    %v10941 = vadd.f32 %v10760, %v10940
    %v10942 = vpop.f32.mrf.mxu0
    %v10943 = vpop.f32.mrf.mxu0
    %v10944 = vadd.f32 %v10760, %v10943
    %v10945 = vpop.f32.mrf.mxu0
    %10946 = vmatprep.mubr.bf16.mxu0 0
    %10947 = vmatmul.mubr.bf16.gmra.mxu0 %v10728
    %v10948 = vpop.f32.mrf.mxu0
    %v10949 = vadd.f32 %v10760, %v10948
    %v10950 = vpop.f32.mrf.mxu0
    %v10951 = vpop.f32.mrf.mxu0
    %v10952 = vadd.f32 %v10760, %v10951
    %v10953 = vpop.f32.mrf.mxu0
    %10954 = vmatprep.mubr.bf16.mxu0 0
    %10955 = vmatmul.mubr.bf16.gmra.mxu0 %v10729
    %v10956 = vpop.f32.mrf.mxu0
    %v10957 = vadd.f32 %v10760, %v10956
    %v10958 = vpop.f32.mrf.mxu0
    %v10959 = vpop.f32.mrf.mxu0
    %v10960 = vadd.f32 %v10760, %v10959
    %v10961 = vpop.f32.mrf.mxu0
    %10962 = vmatprep.mubr.bf16.mxu0 0
    %10963 = vmatmul.mubr.bf16.gmra.mxu0 %v10730
    %v10964 = vpop.f32.mrf.mxu0
    %v10965 = vadd.f32 %v10760, %v10964
    %v10966 = vpop.f32.mrf.mxu0
    %v10967 = vpop.f32.mrf.mxu0
    %v10968 = vadd.f32 %v10760, %v10967
    %v10969 = vpop.f32.mrf.mxu0
    %10970 = vmatprep.mubr.bf16.mxu0 0
    %10971 = vmatmul.mubr.bf16.gmra.mxu0 %v10731
    %v10972 = vpop.f32.mrf.mxu0
    %v10973 = vadd.f32 %v10760, %v10972
    %v10974 = vpop.f32.mrf.mxu0
    %v10975 = vpop.f32.mrf.mxu0
    %v10976 = vadd.f32 %v10760, %v10975
    %v10977 = vpop.f32.mrf.mxu0
    %10978 = vmatprep.mubr.bf16.mxu0 0
    %10979 = vmatmul.mubr.bf16.gmra.mxu0 %v10732
    %v10980 = vpop.f32.mrf.mxu0
    %v10981 = vadd.f32 %v10760, %v10980
    %v10982 = vpop.f32.mrf.mxu0
    %v10983 = vpop.f32.mrf.mxu0
    %v10984 = vadd.f32 %v10760, %v10983
    %v10985 = vpop.f32.mrf.mxu0
    %10986 = vmatprep.mubr.bf16.mxu0 0
    %10987 = vmatmul.mubr.bf16.gmra.mxu0 %v10733
    %v10988 = vpop.f32.mrf.mxu0
    %v10989 = vadd.f32 %v10760, %v10988
    %v10990 = vpop.f32.mrf.mxu0
    %v10991 = vpop.f32.mrf.mxu0
    %v10992 = vadd.f32 %v10760, %v10991
    %v10993 = vpop.f32.mrf.mxu0
    %10994 = vmatprep.mubr.bf16.mxu0 0
    %10995 = vmatmul.mubr.bf16.gmra.mxu0 %v10734
    %v10996 = vpop.f32.mrf.mxu0
    %v10997 = vadd.f32 %v10760, %v10996
    %v10998 = vpop.f32.mrf.mxu0
    %v10999 = vpop.f32.mrf.mxu0
    %v11000 = vadd.f32 %v10760, %v10999
    %v11001 = vpop.f32.mrf.mxu0
    %11002 = vmatprep.mubr.bf16.mxu0 0
    %11003 = vmatmul.mubr.bf16.gmra.mxu0 %v10735
    %v11004 = vpop.f32.mrf.mxu0
    %v11005 = vadd.f32 %v10760, %v11004
    %v11006 = vpop.f32.mrf.mxu0
    %v11007 = vpop.f32.mrf.mxu0
    %v11008 = vadd.f32 %v10760, %v11007
    %v11009 = vpop.f32.mrf.mxu0
    %11010 = vmatprep.mubr.bf16.mxu0 0
    %11011 = vmatmul.mubr.bf16.gmra.mxu0 %v10736
    %v11012 = vpop.f32.mrf.mxu0
    %v11013 = vadd.f32 %v10760, %v11012
    %v11014 = vpop.f32.mrf.mxu0
    %v11015 = vpop.f32.mrf.mxu0
    %v11016 = vadd.f32 %v10760, %v11015
    %v11017 = vpop.f32.mrf.mxu0
    %11018 = vmatprep.mubr.bf16.mxu0 0
    %11019 = vmatmul.mubr.bf16.gmra.mxu0 %v10737
    %v11020 = vpop.f32.mrf.mxu0
    %v11021 = vadd.f32 %v10760, %v11020
    %v11022 = vpop.f32.mrf.mxu0
    %v11023 = vpop.f32.mrf.mxu0
    %v11024 = vadd.f32 %v10760, %v11023
    %v11025 = vpop.f32.mrf.mxu0
    %11026 = vmatprep.mubr.bf16.mxu0 0
    %11027 = vmatmul.mubr.bf16.gmra.mxu0 %v10738
    %v11028 = vpop.f32.mrf.mxu0
    %v11029 = vadd.f32 %v10760, %v11028
    %v11030 = vpop.f32.mrf.mxu0
    %v11031 = vpop.f32.mrf.mxu0
    %v11032 = vadd.f32 %v10760, %v11031
    %v11033 = vpop.f32.mrf.mxu0
    %11034 = vdwg.mxu0
    %v11035 = vxor.u32 %v10845, 2147483648
    %v11036 = vxor.u32 %v10848, 2147483648
    %v11037 = vxor.u32 %v10853, 2147483648
    %v11038 = vxor.u32 %v10856, 2147483648
    %v11039 = vxor.u32 %v10861, 2147483648
    %v11040 = vxor.u32 %v10864, 2147483648
    %v11041 = vxor.u32 %v10869, 2147483648
    %v11042 = vxor.u32 %v10872, 2147483648
    %v11043 = vxor.u32 %v10877, 2147483648
    %v11044 = vxor.u32 %v10880, 2147483648
    %v11045 = vxor.u32 %v10885, 2147483648
    %v11046 = vxor.u32 %v10888, 2147483648
    %v11047 = vxor.u32 %v10893, 2147483648
    %v11048 = vxor.u32 %v10896, 2147483648
    %v11049 = vxor.u32 %v10901, 2147483648
    %v11050 = vxor.u32 %v10904, 2147483648
    %v11051 = vxor.u32 %v10909, 2147483648
    %v11052 = vxor.u32 %v10912, 2147483648
    %v11053 = vxor.u32 %v10917, 2147483648
    %v11054 = vxor.u32 %v10920, 2147483648
    %v11055 = vxor.u32 %v10925, 2147483648
    %v11056 = vxor.u32 %v10928, 2147483648
    %v11057 = vxor.u32 %v10933, 2147483648
    %v11058 = vxor.u32 %v10936, 2147483648
    %v11059 = vxor.u32 %v10941, 2147483648
    %v11060 = vxor.u32 %v10944, 2147483648
    %v11061 = vxor.u32 %v10949, 2147483648
    %v11062 = vxor.u32 %v10952, 2147483648
    %v11063 = vxor.u32 %v10957, 2147483648
    %v11064 = vxor.u32 %v10960, 2147483648
    %v11065 = vxor.u32 %v10965, 2147483648
    %v11066 = vxor.u32 %v10968, 2147483648
    %v11067 = vxor.u32 %v10973, 2147483648
    %v11068 = vxor.u32 %v10976, 2147483648
    %v11069 = vxor.u32 %v10981, 2147483648
    %v11070 = vxor.u32 %v10984, 2147483648
    %v11071 = vxor.u32 %v10989, 2147483648
    %v11072 = vxor.u32 %v10992, 2147483648
    %v11073 = vxor.u32 %v10997, 2147483648
    %v11074 = vxor.u32 %v11000, 2147483648
    %v11075 = vxor.u32 %v11005, 2147483648
    %v11076 = vxor.u32 %v11008, 2147483648
    %v11077 = vxor.u32 %v11013, 2147483648
    %v11078 = vxor.u32 %v11016, 2147483648
    %v11079 = vxor.u32 %v11021, 2147483648
    %v11080 = vxor.u32 %v11024, 2147483648
    %v11081 = vxor.u32 %v11029, 2147483648
    %v11082 = vxor.u32 %v11032, 2147483648
    %v11083 = vmul.f32 %v11035, 1.442695
    %v11084 = vpow.pop %v11083
    %v11085 = vmul.f32 %v11036, 1.442695
    %v11086 = vpow.pop %v11085
    %v11087 = vmul.f32 %v11037, 1.442695
    %v11088 = vpow.pop %v11087
    %v11089 = vmul.f32 %v11038, 1.442695
    %v11090 = vpow.pop %v11089
    %v11091 = vmul.f32 %v11039, 1.442695
    %v11092 = vpow.pop %v11091
    %v11093 = vmul.f32 %v11040, 1.442695
    %v11094 = vpow.pop %v11093
    %v11095 = vmul.f32 %v11041, 1.442695
    %v11096 = vpow.pop %v11095
    %v11097 = vmul.f32 %v11042, 1.442695
    %v11098 = vpow.pop %v11097
    %v11099 = vmul.f32 %v11043, 1.442695
    %v11100 = vpow.pop %v11099
    %v11101 = vmul.f32 %v11044, 1.442695
    %v11102 = vpow.pop %v11101
    %v11103 = vmul.f32 %v11045, 1.442695
    %v11104 = vpow.pop %v11103
    %v11105 = vmul.f32 %v11046, 1.442695
    %v11106 = vpow.pop %v11105
    %v11107 = vmul.f32 %v11047, 1.442695
    %v11108 = vpow.pop %v11107
    %v11109 = vmul.f32 %v11048, 1.442695
    %v11110 = vpow.pop %v11109
    %v11111 = vmul.f32 %v11049, 1.442695
    %v11112 = vpow.pop %v11111
    %v11113 = vmul.f32 %v11050, 1.442695
    %v11114 = vpow.pop %v11113
    %v11115 = vmul.f32 %v11051, 1.442695
    %v11116 = vpow.pop %v11115
    %v11117 = vmul.f32 %v11052, 1.442695
    %v11118 = vpow.pop %v11117
    %v11119 = vmul.f32 %v11053, 1.442695
    %v11120 = vpow.pop %v11119
    %v11121 = vmul.f32 %v11054, 1.442695
    %v11122 = vpow.pop %v11121
    %v11123 = vmul.f32 %v11055, 1.442695
    %v11124 = vpow.pop %v11123
    %v11125 = vmul.f32 %v11056, 1.442695
    %v11126 = vpow.pop %v11125
    %v11127 = vmul.f32 %v11057, 1.442695
    %v11128 = vpow.pop %v11127
    %v11129 = vmul.f32 %v11058, 1.442695
    %v11130 = vpow.pop %v11129
    %v11131 = vmul.f32 %v11059, 1.442695
    %v11132 = vpow.pop %v11131
    %v11133 = vmul.f32 %v11060, 1.442695
    %v11134 = vpow.pop %v11133
    %v11135 = vmul.f32 %v11061, 1.442695
    %v11136 = vpow.pop %v11135
    %v11137 = vmul.f32 %v11062, 1.442695
    %v11138 = vpow.pop %v11137
    %v11139 = vmul.f32 %v11063, 1.442695
    %v11140 = vpow.pop %v11139
    %v11141 = vmul.f32 %v11064, 1.442695
    %v11142 = vpow.pop %v11141
    %v11143 = vmul.f32 %v11065, 1.442695
    %v11144 = vpow.pop %v11143
    %v11145 = vmul.f32 %v11066, 1.442695
    %v11146 = vpow.pop %v11145
    %v11147 = vmul.f32 %v11067, 1.442695
    %v11148 = vpow.pop %v11147
    %v11149 = vmul.f32 %v11068, 1.442695
    %v11150 = vpow.pop %v11149
    %v11151 = vmul.f32 %v11069, 1.442695
    %v11152 = vpow.pop %v11151
    %v11153 = vmul.f32 %v11070, 1.442695
    %v11154 = vpow.pop %v11153
    %v11155 = vmul.f32 %v11071, 1.442695
    %v11156 = vpow.pop %v11155
    %v11157 = vmul.f32 %v11072, 1.442695
    %v11158 = vpow.pop %v11157
    %v11159 = vmul.f32 %v11073, 1.442695
    %v11160 = vpow.pop %v11159
    %v11161 = vmul.f32 %v11074, 1.442695
    %v11162 = vpow.pop %v11161
    %v11163 = vmul.f32 %v11075, 1.442695
    %v11164 = vpow.pop %v11163
    %v11165 = vmul.f32 %v11076, 1.442695
    %v11166 = vpow.pop %v11165
    %v11167 = vmul.f32 %v11077, 1.442695
    %v11168 = vpow.pop %v11167
    %v11169 = vmul.f32 %v11078, 1.442695
    %v11170 = vpow.pop %v11169
    %v11171 = vmul.f32 %v11079, 1.442695
    %v11172 = vpow.pop %v11171
    %v11173 = vmul.f32 %v11080, 1.442695
    %v11174 = vpow.pop %v11173
    %v11175 = vmul.f32 %v11081, 1.442695
    %v11176 = vpow.pop %v11175
    %v11177 = vmul.f32 %v11082, 1.442695
    %v11178 = vpow.pop %v11177
    %v11179 = vadd.f32 %v11084, 1.0
    %v11180 = vadd.f32 %v11086, 1.0
    %v11181 = vadd.f32 %v11088, 1.0
    %v11182 = vadd.f32 %v11090, 1.0
    %v11183 = vadd.f32 %v11092, 1.0
    %v11184 = vadd.f32 %v11094, 1.0
    %v11185 = vadd.f32 %v11096, 1.0
    %v11186 = vadd.f32 %v11098, 1.0
    %v11187 = vadd.f32 %v11100, 1.0
    %v11188 = vadd.f32 %v11102, 1.0
    %v11189 = vadd.f32 %v11104, 1.0
    %v11190 = vadd.f32 %v11106, 1.0
    %v11191 = vadd.f32 %v11108, 1.0
    %v11192 = vadd.f32 %v11110, 1.0
    %v11193 = vadd.f32 %v11112, 1.0
    %v11194 = vadd.f32 %v11114, 1.0
    %v11195 = vadd.f32 %v11116, 1.0
    %v11196 = vadd.f32 %v11118, 1.0
    %v11197 = vadd.f32 %v11120, 1.0
    %v11198 = vadd.f32 %v11122, 1.0
    %v11199 = vadd.f32 %v11124, 1.0
    %v11200 = vadd.f32 %v11126, 1.0
    %v11201 = vadd.f32 %v11128, 1.0
    %v11202 = vadd.f32 %v11130, 1.0
    %v11203 = vadd.f32 %v11132, 1.0
    %v11204 = vadd.f32 %v11134, 1.0
    %v11205 = vadd.f32 %v11136, 1.0
    %v11206 = vadd.f32 %v11138, 1.0
    %v11207 = vadd.f32 %v11140, 1.0
    %v11208 = vadd.f32 %v11142, 1.0
    %v11209 = vadd.f32 %v11144, 1.0
    %v11210 = vadd.f32 %v11146, 1.0
    %v11211 = vadd.f32 %v11148, 1.0
    %v11212 = vadd.f32 %v11150, 1.0
    %v11213 = vadd.f32 %v11152, 1.0
    %v11214 = vadd.f32 %v11154, 1.0
    %v11215 = vadd.f32 %v11156, 1.0
    %v11216 = vadd.f32 %v11158, 1.0
    %v11217 = vadd.f32 %v11160, 1.0
    %v11218 = vadd.f32 %v11162, 1.0
    %v11219 = vadd.f32 %v11164, 1.0
    %v11220 = vadd.f32 %v11166, 1.0
    %v11221 = vadd.f32 %v11168, 1.0
    %v11222 = vadd.f32 %v11170, 1.0
    %v11223 = vadd.f32 %v11172, 1.0
    %v11224 = vadd.f32 %v11174, 1.0
    %v11225 = vadd.f32 %v11176, 1.0
    %v11226 = vadd.f32 %v11178, 1.0
    %v11227 = vrcp.pop %v11179
    %v11228 = vmul.f32 1.0, %v11227
    %v11229 = vrcp.pop %v11180
    %v11230 = vmul.f32 1.0, %v11229
    %v11231 = vrcp.pop %v11181
    %v11232 = vmul.f32 1.0, %v11231
    %v11233 = vrcp.pop %v11182
    %v11234 = vmul.f32 1.0, %v11233
    %v11235 = vrcp.pop %v11183
    %v11236 = vmul.f32 1.0, %v11235
    %v11237 = vrcp.pop %v11184
    %v11238 = vmul.f32 1.0, %v11237
    %v11239 = vrcp.pop %v11185
    %v11240 = vmul.f32 1.0, %v11239
    %v11241 = vrcp.pop %v11186
    %v11242 = vmul.f32 1.0, %v11241
    %v11243 = vrcp.pop %v11187
    %v11244 = vmul.f32 1.0, %v11243
    %v11245 = vrcp.pop %v11188
    %v11246 = vmul.f32 1.0, %v11245
    %v11247 = vrcp.pop %v11189
    %v11248 = vmul.f32 1.0, %v11247
    %v11249 = vrcp.pop %v11190
    %v11250 = vmul.f32 1.0, %v11249
    %v11251 = vrcp.pop %v11191
    %v11252 = vmul.f32 1.0, %v11251
    %v11253 = vrcp.pop %v11192
    %v11254 = vmul.f32 1.0, %v11253
    %v11255 = vrcp.pop %v11193
    %v11256 = vmul.f32 1.0, %v11255
    %v11257 = vrcp.pop %v11194
    %v11258 = vmul.f32 1.0, %v11257
    %v11259 = vrcp.pop %v11195
    %v11260 = vmul.f32 1.0, %v11259
    %v11261 = vrcp.pop %v11196
    %v11262 = vmul.f32 1.0, %v11261
    %v11263 = vrcp.pop %v11197
    %v11264 = vmul.f32 1.0, %v11263
    %v11265 = vrcp.pop %v11198
    %v11266 = vmul.f32 1.0, %v11265
    %v11267 = vrcp.pop %v11199
    %v11268 = vmul.f32 1.0, %v11267
    %v11269 = vrcp.pop %v11200
    %v11270 = vmul.f32 1.0, %v11269
    %v11271 = vrcp.pop %v11201
    %v11272 = vmul.f32 1.0, %v11271
    %v11273 = vrcp.pop %v11202
    %v11274 = vmul.f32 1.0, %v11273
    %v11275 = vrcp.pop %v11203
    %v11276 = vmul.f32 1.0, %v11275
    %v11277 = vrcp.pop %v11204
    %v11278 = vmul.f32 1.0, %v11277
    %v11279 = vrcp.pop %v11205
    %v11280 = vmul.f32 1.0, %v11279
    %v11281 = vrcp.pop %v11206
    %v11282 = vmul.f32 1.0, %v11281
    %v11283 = vrcp.pop %v11207
    %v11284 = vmul.f32 1.0, %v11283
    %v11285 = vrcp.pop %v11208
    %v11286 = vmul.f32 1.0, %v11285
    %v11287 = vrcp.pop %v11209
    %v11288 = vmul.f32 1.0, %v11287
    %v11289 = vrcp.pop %v11210
    %v11290 = vmul.f32 1.0, %v11289
    %v11291 = vrcp.pop %v11211
    %v11292 = vmul.f32 1.0, %v11291
    %v11293 = vrcp.pop %v11212
    %v11294 = vmul.f32 1.0, %v11293
    %v11295 = vrcp.pop %v11213
    %v11296 = vmul.f32 1.0, %v11295
    %v11297 = vrcp.pop %v11214
    %v11298 = vmul.f32 1.0, %v11297
    %v11299 = vrcp.pop %v11215
    %v11300 = vmul.f32 1.0, %v11299
    %v11301 = vrcp.pop %v11216
    %v11302 = vmul.f32 1.0, %v11301
    %v11303 = vrcp.pop %v11217
    %v11304 = vmul.f32 1.0, %v11303
    %v11305 = vrcp.pop %v11218
    %v11306 = vmul.f32 1.0, %v11305
    %v11307 = vrcp.pop %v11219
    %v11308 = vmul.f32 1.0, %v11307
    %v11309 = vrcp.pop %v11220
    %v11310 = vmul.f32 1.0, %v11309
    %v11311 = vrcp.pop %v11221
    %v11312 = vmul.f32 1.0, %v11311
    %v11313 = vrcp.pop %v11222
    %v11314 = vmul.f32 1.0, %v11313
    %v11315 = vrcp.pop %v11223
    %v11316 = vmul.f32 1.0, %v11315
    %v11317 = vrcp.pop %v11224
    %v11318 = vmul.f32 1.0, %v11317
    %v11319 = vrcp.pop %v11225
    %v11320 = vmul.f32 1.0, %v11319
    %v11321 = vrcp.pop %v11226
    %v11322 = vmul.f32 1.0, %v11321
    %vm11323 = vcmask 7168
    %11324 = vst.msk [vmem:[%s13] sm:$0xff] %vm11323, %v11228
    %11325 = vst.msk [vmem:[%s13 + $0x8] sm:$0xff] %vm11323, %v11230
    %11326 = vst.msk [vmem:[%s13 + $0x10] sm:$0xff] %vm11323, %v11232
    %11327 = vst.msk [vmem:[%s13 + $0x18] sm:$0xff] %vm11323, %v11234
    %11328 = vst.msk [vmem:[%s13 + $0x20] sm:$0xff] %vm11323, %v11236
    %11329 = vst.msk [vmem:[%s13 + $0x28] sm:$0xff] %vm11323, %v11238
    %11330 = vst.msk [vmem:[%s13 + $0x30] sm:$0xff] %vm11323, %v11240
    %11331 = vst.msk [vmem:[%s13 + $0x38] sm:$0xff] %vm11323, %v11242
    %11332 = vst.msk [vmem:[%s13 + $0x40] sm:$0xff] %vm11323, %v11244
    %11333 = vst.msk [vmem:[%s13 + $0x48] sm:$0xff] %vm11323, %v11246
    %11334 = vst.msk [vmem:[%s13 + $0x50] sm:$0xff] %vm11323, %v11248
    %11335 = vst.msk [vmem:[%s13 + $0x58] sm:$0xff] %vm11323, %v11250
    %11336 = vst.msk [vmem:[%s13 + $0x60] sm:$0xff] %vm11323, %v11252
    %11337 = vst.msk [vmem:[%s13 + $0x68] sm:$0xff] %vm11323, %v11254
    %11338 = vst.msk [vmem:[%s13 + $0x70] sm:$0xff] %vm11323, %v11256
    %11339 = vst.msk [vmem:[%s13 + $0x78] sm:$0xff] %vm11323, %v11258
    %11340 = vst.msk [vmem:[%s13 + $0x80] sm:$0xff] %vm11323, %v11260
    %11341 = vst.msk [vmem:[%s13 + $0x88] sm:$0xff] %vm11323, %v11262
    %11342 = vst.msk [vmem:[%s13 + $0x90] sm:$0xff] %vm11323, %v11264
    %11343 = vst.msk [vmem:[%s13 + $0x98] sm:$0xff] %vm11323, %v11266
    %11344 = vst.msk [vmem:[%s13 + $0xa0] sm:$0xff] %vm11323, %v11268
    %11345 = vst.msk [vmem:[%s13 + $0xa8] sm:$0xff] %vm11323, %v11270
    %11346 = vst.msk [vmem:[%s13 + $0xb0] sm:$0xff] %vm11323, %v11272
    %11347 = vst.msk [vmem:[%s13 + $0xb8] sm:$0xff] %vm11323, %v11274
    %11348 = vst.msk [vmem:[%s13 + $0xc0] sm:$0xff] %vm11323, %v11276
    %11349 = vst.msk [vmem:[%s13 + $0xc8] sm:$0xff] %vm11323, %v11278
    %11350 = vst.msk [vmem:[%s13 + $0xd0] sm:$0xff] %vm11323, %v11280
    %11351 = vst.msk [vmem:[%s13 + $0xd8] sm:$0xff] %vm11323, %v11282
    %11352 = vst.msk [vmem:[%s13 + $0xe0] sm:$0xff] %vm11323, %v11284
    %11353 = vst.msk [vmem:[%s13 + $0xe8] sm:$0xff] %vm11323, %v11286
    %11354 = vst.msk [vmem:[%s13 + $0xf0] sm:$0xff] %vm11323, %v11288
    %11355 = vst.msk [vmem:[%s13 + $0xf8] sm:$0xff] %vm11323, %v11290
    %11356 = vst.msk [vmem:[%s13 + $0x100] sm:$0xff] %vm11323, %v11292
    %11357 = vst.msk [vmem:[%s13 + $0x108] sm:$0xff] %vm11323, %v11294
    %11358 = vst.msk [vmem:[%s13 + $0x110] sm:$0xff] %vm11323, %v11296
    %11359 = vst.msk [vmem:[%s13 + $0x118] sm:$0xff] %vm11323, %v11298
    %11360 = vst.msk [vmem:[%s13 + $0x120] sm:$0xff] %vm11323, %v11300
    %11361 = vst.msk [vmem:[%s13 + $0x128] sm:$0xff] %vm11323, %v11302
    %11362 = vst.msk [vmem:[%s13 + $0x130] sm:$0xff] %vm11323, %v11304
    %11363 = vst.msk [vmem:[%s13 + $0x138] sm:$0xff] %vm11323, %v11306
    %11364 = vst.msk [vmem:[%s13 + $0x140] sm:$0xff] %vm11323, %v11308
    %11365 = vst.msk [vmem:[%s13 + $0x148] sm:$0xff] %vm11323, %v11310
    %11366 = vst.msk [vmem:[%s13 + $0x150] sm:$0xff] %vm11323, %v11312
    %11367 = vst.msk [vmem:[%s13 + $0x158] sm:$0xff] %vm11323, %v11314
    %11368 = vst.msk [vmem:[%s13 + $0x160] sm:$0xff] %vm11323, %v11316
    %11369 = vst.msk [vmem:[%s13 + $0x168] sm:$0xff] %vm11323, %v11318
    %11370 = vst.msk [vmem:[%s13 + $0x170] sm:$0xff] %vm11323, %v11320
    %11371 = vst.msk [vmem:[%s13 + $0x178] sm:$0xff] %vm11323, %v11322
    // Predicated region
    $region62: #{_nn_forward.1} parent=1 // pred_check
      _
    $region63: #{_nn_forward.1} parent=1 // pred_check_branch
      %11373 = sbr.rel (0) target = $region65
    $region64: #{_nn_forward.1} parent=1 // pred_region
      _
    $region65: #{_nn_forward.1} parent=1 // pred_fallthru
      _
    // Predicated region
    $region66: #{_nn_forward.1} parent=1 // pred_check
      _
    $region67: #{_nn_forward.1} parent=1 // pred_check_branch
      %11375 = sbr.rel (0) target = $region69
    $region68: #{_nn_forward.1} parent=1 // pred_region
      _
    $region69: #{_nn_forward.1} parent=1 // pred_fallthru
      _
    %11376 = vsyncpa [#allocation3], 1
    %11377 = vsyncpa [#allocation5], 1

</llo_original>
